<compile_context>
chip_gen: v5e
topology: v5e:2x2
jax: 0.10.0
libtpu: 0.0.40
codegen_flags: <defaults>
</compile_context>

<pallas_src>
import jax
import jax.numpy as jnp
import numpy as np
from jax.experimental import pallas as pl
from jax.experimental.pallas import tpu as pltpu

N_BATCH = 2
C_IN = 4            # conv in/out channels == lstm input == hidden size
L_IN = 35
K_CONV = 7
STRIDE = 4
T_SEQ = (L_IN - K_CONV) // STRIDE + 1   # = 8 timesteps after the conv
HID = 4
N_LAYERS = 4
N_CLASSES = 5
BN_EPS = 1e-5

# ---- static row layout of the packed parameter slab (cols padded to 128) ----
LANE = 128
ROW_WC = 0                                   # (28, 4)
ROW_WIH = ROW_WC + C_IN * K_CONV             # 28 : (16, 16) — 4 rows per layer
ROW_WHH = ROW_WIH + N_LAYERS * HID           # 44 : (16, 16)
ROW_BL = ROW_WHH + N_LAYERS * HID            # 60 : (4, 16)  — 1 row per layer
ROW_BC = ROW_BL + N_LAYERS                   # 64 : (1, 4)
ROW_GAMMA = ROW_BC + 1                       # 65 : (1, 4)
ROW_BETA = ROW_GAMMA + 1                     # 66 : (1, 4)
ROW_W1 = ROW_BETA + 1                        # 67 : (4, 4)
ROW_B1 = ROW_W1 + HID                        # 71 : (1, 4)
ROW_W2 = ROW_B1 + 1                          # 72 : (4, 5)
ROW_B2 = ROW_W2 + HID                        # 76 : (1, 5)
PARAM_ROWS = 80                              # padded to a multiple of 8


def _net_kernel(x_ref, prm_ref, out_ref):
    n, t, h = N_BATCH, T_SEQ, HID

    # ---- Conv1d(4,4,k=7,stride=4) as matmul on im2col patches:
    #      (T*N, Cin*K) @ (Cin*K, Cout) + bias
    wc = prm_ref[ROW_WC:ROW_WC + C_IN * K_CONV, 0:C_IN]           # (28, 4)
    bc = prm_ref[ROW_BC:ROW_BC + 1, 0:C_IN]                       # (1, 4)
    conv = jnp.dot(x_ref[...], wc, preferred_element_type=jnp.float32) + bc

    # ---- BatchNorm1d(4): training-mode batch statistics over (N, L) per
    #      channel, two-pass (robust) biased variance.
    # TODO(synk): running-mean/var buffer updates (a training side effect) are
    # not modeled; only the normalized forward output is produced.
    gamma = prm_ref[ROW_GAMMA:ROW_GAMMA + 1, 0:C_IN]
    beta = prm_ref[ROW_BETA:ROW_BETA + 1, 0:C_IN]
    mean = jnp.mean(conv, axis=0, keepdims=True)
    centered = conv - mean
    var = jnp.mean(centered * centered, axis=0, keepdims=True)
    y = centered * jax.lax.rsqrt(var + BN_EPS) * gamma + beta

    # ---- ELU (alpha = 1); clamp exp arg so the unselected branch never overflows.
    cur = jnp.where(y > 0.0, y, jnp.exp(jnp.minimum(y, 0.0)) - 1.0)

    # Constant vectors for recovering sigmoid from tanh on the [i,f,o] lanes:
    #   sigmoid(a) = 0.5 * tanh(a/2) + 0.5   (the 0.5 prescale of a is folded
    #   into the packed w_ih / w_hh / bias columns at init).
    halves = jnp.full((n, 3 * h), 0.5, jnp.float32)
    gate_scale = jnp.concatenate([halves, jnp.ones((n, h), jnp.float32)], axis=1)
    gate_shift = jnp.concatenate([halves, jnp.zeros((n, h), jnp.float32)], axis=1)

    # ---- 4-layer LSTM applied twice; each call starts from zero (h, c).
    # Gate columns are pre-permuted to [i, f, o, g] by pack_params.
    hs = jnp.zeros((n, h), jnp.float32)
    for pass_idx in range(2):
        for layer in range(N_LAYERS):
            is_last = (pass_idx == 1) and (layer == N_LAYERS - 1)

            wih_l = prm_ref[ROW_WIH + h * layer:ROW_WIH + h * (layer + 1), 0:4 * h]
            whh_l = prm_ref[ROW_WHH + h * layer:ROW_WHH + h * (layer + 1), 0:4 * h]
            bl_l = prm_ref[ROW_BL + layer:ROW_BL + layer + 1, 0:4 * h]

            # Hoisted input projection + fused bias (off the recurrence chain):
            # (T*N, H) @ (H, 4H) + (1, 4H)
            gates_x = (jnp.dot(cur, wih_l, preferred_element_type=jnp.float32)
                       + bl_l)

            # Pre-broadcast recurrent weight rows once per layer.
            w_rows = [jnp.broadcast_to(whh_l[k:k + 1, :], (n, 4 * h))
                      for k in range(h)]

            hs = jnp.zeros((n, h), jnp.float32)
            cs = jnp.zeros((n, h), jnp.float32)
            outs = []
            for step in range(t):
                g = gates_x[step * n:(step + 1) * n, :]
                # Recurrent term h @ W_hh as VPU broadcast MACs, tree-reduced
                # to shorten the dependent add chain (no MXU on the serial path).
                m = [hs[:, k:k + 1] * w_rows[k] for k in range(h)]
                g = g + ((m[0] + m[1]) + (m[2] + m[3]))

                # One tanh over all 16 gate lanes; sigmoids recovered with one
                # fused mul-add by constants.
                tg = jnp.tanh(g)
                act = tg * gate_scale + gate_shift
                i_g = act[:, 0 * h:1 * h]
                f_g = act[:, 1 * h:2 * h]
                o_g = act[:, 2 * h:3 * h]
                g_g = act[:, 3 * h:4 * h]

                cs = f_g * cs + i_g * g_g
                hs = o_g * jnp.tanh(cs)

                if not is_last:
                    outs.append(hs)

            if not is_last:
                # Inter-layer handoff stays in vregs (no VMEM scratch).
                cur = jnp.concatenate(outs, axis=0)          # (T*N, H)

    # ---- last timestep of the final layer (live in vregs):
    #      fc1 -> relu -> fc2 -> log_softmax, all as VPU broadcast MACs.
    last = hs                                                # (N, H)
    w1 = prm_ref[ROW_W1:ROW_W1 + h, 0:h]
    b1 = prm_ref[ROW_B1:ROW_B1 + 1, 0:h]
    zm = [last[:, k:k + 1] * jnp.broadcast_to(w1[k:k + 1, :], (n, h))
          for k in range(h)]
    z1 = jnp.broadcast_to(b1, (n, h)) + ((zm[0] + zm[1]) + (zm[2] + zm[3]))
    z1 = jnp.maximum(z1, 0.0)

    w2 = prm_ref[ROW_W2:ROW_W2 + h, 0:N_CLASSES]
    b2 = prm_ref[ROW_B2:ROW_B2 + 1, 0:N_CLASSES]
    lm = [z1[:, k:k + 1] * jnp.broadcast_to(w2[k:k + 1, :], (n, N_CLASSES))
          for k in range(h)]
    logits = (jnp.broadcast_to(b2, (n, N_CLASSES))
              + ((lm[0] + lm[1]) + (lm[2] + lm[3])))

    mx = jnp.max(logits, axis=1, keepdims=True)
    zc = logits - mx
    lse = jnp.log(jnp.sum(jnp.exp(zc), axis=1, keepdims=True))
    out_ref[...] = zc - lse


def init_params(key):
    ks = list(jax.random.split(key, 24))
    it = iter(ks)

    def unif(shape, fan_in):
        bound = 1.0 / np.sqrt(fan_in)
        return jax.random.uniform(next(it), shape, jnp.float32, -bound, bound)

    p = {}
    p["conv_w"] = unif((C_IN, C_IN, K_CONV), C_IN * K_CONV)     # (Cout, Cin, K)
    p["conv_b"] = unif((C_IN,), C_IN * K_CONV)
    p["bn_gamma"] = jnp.ones((C_IN,), jnp.float32)
    p["bn_beta"] = jnp.zeros((C_IN,), jnp.float32)
    for l in range(N_LAYERS):
        p[f"w_ih_{l}"] = unif((4 * HID, HID), HID)
        p[f"w_hh_{l}"] = unif((4 * HID, HID), HID)
        p[f"b_ih_{l}"] = unif((4 * HID,), HID)
        p[f"b_hh_{l}"] = unif((4 * HID,), HID)
    p["fc1_w"] = unif((HID, HID), HID)
    p["fc1_b"] = unif((HID,), HID)
    p["fc2_w"] = unif((N_CLASSES, HID), HID)
    p["fc2_b"] = unif((N_CLASSES,), HID)        # <- bug fix: (5,), not (4,)
    return p


def _reorder_gates(w):
    """Permute gate columns [i, f, g, o] (PyTorch order) -> [i, f, o, g]."""
    h = HID
    return np.concatenate([w[..., :2 * h], w[..., 3 * h:4 * h],
                           w[..., 2 * h:3 * h]], axis=-1)


def pack_params(p):
    """One-time packing of ALL parameters into a single lane-dense (80, 128)
    f32 slab: transposes, gate reorder, bias fusion, and the 0.5 prescale of
    the [i, f, o] gate columns (sigmoid-via-tanh) are done here, NOT per call."""
    h = HID
    pn = {k: np.asarray(v, np.float32) for k, v in p.items()}
    # prescale: 0.5 on the [i, f, o] columns (post-reorder layout), 1.0 on [g]
    prescale = np.concatenate([np.full((3 * h,), 0.5, np.float32),
                               np.ones((h,), np.float32)])

    slab = np.zeros((PARAM_ROWS, LANE), np.float32)

    def put(row, a):
        a = np.atleast_2d(np.asarray(a, np.float32))
        slab[row:row + a.shape[0], :a.shape[1]] = a

    put(ROW_WC, pn["conv_w"].reshape(C_IN, C_IN * K_CONV).T)      # (28, 4)
    put(ROW_BC, pn["conv_b"].reshape(1, C_IN))
    put(ROW_GAMMA, pn["bn_gamma"].reshape(1, C_IN))
    put(ROW_BETA, pn["bn_beta"].reshape(1, C_IN))
    for l in range(N_LAYERS):
        put(ROW_WIH + h * l, _reorder_gates(pn[f"w_ih_{l}"].T) * prescale)
        put(ROW_WHH + h * l, _reorder_gates(pn[f"w_hh_{l}"].T) * prescale)
        bfused = (pn[f"b_ih_{l}"] + pn[f"b_hh_{l}"]).reshape(1, 4 * h)
        put(ROW_BL + l, _reorder_gates(bfused) * prescale)
    put(ROW_W1, pn["fc1_w"].T)                                    # (4, 4)
    put(ROW_B1, pn["fc1_b"].reshape(1, HID))
    put(ROW_W2, pn["fc2_w"].T)                                    # (4, 5)
    put(ROW_B2, pn["fc2_b"].reshape(1, N_CLASSES))
    return jnp.asarray(slab)


@jax.jit
def net_forward(x, packed_params):
    """Per-call path: only im2col glue + one pallas_call (2 input DMAs)."""
    # timestep-major patches: row index = t*N + n, cols = (ci, k) row-major
    cols = jnp.stack([x[:, :, t * STRIDE:t * STRIDE + K_CONV]
                      for t in range(T_SEQ)], axis=0)             # (T, N, Cin, K)
    patches = cols.reshape(T_SEQ * N_BATCH, C_IN * K_CONV)        # (T*N, 28)

    vmem = pl.BlockSpec(memory_space=pltpu.MemorySpace.VMEM)
    return pl.pallas_call(
        _net_kernel,
        out_shape=jax.ShapeDtypeStruct((N_BATCH, N_CLASSES), jnp.float32),
        in_specs=[vmem, vmem],
        out_specs=vmem,
    )(patches, packed_params)


def reference_forward(x, p):
    """Pure-JAX reference mirroring the PyTorch forward (original gate order)."""
    n, h = N_BATCH, HID
    # Conv1d
    cols = jnp.stack([x[:, :, t * STRIDE:t * STRIDE + K_CONV]
                      for t in range(T_SEQ)], axis=-1)            # (N, Cin, K, T)
    conv = (jnp.einsum("nckt,ock->not", cols, p["conv_w"])
            + p["conv_b"][None, :, None])                         # (N, Cout, T)
    # BatchNorm1d (training-mode batch stats, biased variance)
    mean = conv.mean(axis=(0, 2), keepdims=True)
    var = ((conv - mean) ** 2).mean(axis=(0, 2), keepdims=True)
    y = ((conv - mean) / jnp.sqrt(var + BN_EPS)
         * p["bn_gamma"][None, :, None] + p["bn_beta"][None, :, None])
    act = jnp.where(y > 0.0, y, jnp.expm1(y))
    seq = jnp.transpose(act, (0, 2, 1))                           # (N, T, H)
    # 4-layer LSTM applied twice, zero initial state each call.
    for _ in range(2):
        for layer in range(N_LAYERS):
            wih = p[f"w_ih_{layer}"]
            whh = p[f"w_hh_{layer}"]
            b = p[f"b_ih_{layer}"] + p[f"b_hh_{layer}"]
            hs = jnp.zeros((n, h), jnp.float32)
            cs = jnp.zeros((n, h), jnp.float32)
            outs = []
            for t in range(T_SEQ):
                x_t = seq[:, t, :]
                g = x_t @ wih.T + hs @ whh.T + b
                i_g = jax.nn.sigmoid(g[:, :h])
                f_g = jax.nn.sigmoid(g[:, h:2 * h])
                g_g = jnp.tanh(g[:, 2 * h:3 * h])
                o_g = jax.nn.sigmoid(g[:, 3 * h:])
                cs = f_g * cs + i_g * g_g
                hs = o_g * jnp.tanh(cs)
                outs.append(hs)
            seq = jnp.stack(outs, axis=1)
    last = seq[:, -1, :]
    z1 = jnp.maximum(last @ p["fc1_w"].T + p["fc1_b"], 0.0)
    logits = z1 @ p["fc2_w"].T + p["fc2_b"]
    return jax.nn.log_softmax(logits, axis=1)


if __name__ == "__main__":
    key = jax.random.PRNGKey(0)
    kx, kp = jax.random.split(key)
    x = jax.random.normal(kx, (N_BATCH, C_IN, L_IN), jnp.float32)
    params = init_params(kp)
    packed = pack_params(params)

    out = net_forward(x, packed)
    jax.block_until_ready(out)

    ref = reference_forward(x, params)
    assert out.shape == (N_BATCH, N_CLASSES)
    assert np.allclose(np.asarray(out), np.asarray(ref), atol=1e-4, rtol=1e-4), (
        "Pallas kernel output does not match pure-JAX reference")
    print("KERNEL_OK")
</pallas_src>

<mosaic_0001>
module attributes {stable_mosaic.version = 11 : i64} {
  func.func @_net_kernel(%arg0: memref<16x28xf32, #tpu.memory_space<vmem>>, %arg1: memref<80x128xf32, #tpu.memory_space<vmem>>, %arg2: memref<2x5xf32, #tpu.memory_space<vmem>>) attributes {dimension_semantics = [], scalar_prefetch = 0 : i64, scratch_operands = 0 : i64, tpu.core_type = #tpu.core_type<tc>} {
    %c0 = arith.constant 0 : index
    %c0_0 = arith.constant 0 : index
    %0 = vector.load %arg1[%c0, %c0_0] : memref<80x128xf32, #tpu.memory_space<vmem>>, vector<28x4xf32>
    %c64 = arith.constant 64 : index
    %c0_1 = arith.constant 0 : index
    %1 = vector.load %arg1[%c64, %c0_1] : memref<80x128xf32, #tpu.memory_space<vmem>>, vector<1x4xf32>
    %c0_2 = arith.constant 0 : index
    %c0_3 = arith.constant 0 : index
    %2 = vector.load %arg0[%c0_2, %c0_3] : memref<16x28xf32, #tpu.memory_space<vmem>>, vector<16x28xf32>
    %cst = arith.constant dense<0.000000e+00> : vector<16x4xf32>
    %3 = tpu.matmul %2, %0, %cst {dimension_numbers = #tpu.dot_dimension_numbers<[1], [0], [0], [1], [0, 0, 1, 1], [], []>} : vector<16x28xf32>, vector<28x4xf32>, vector<16x4xf32> -> vector<16x4xf32>
    %4 = vector.broadcast %1 : vector<1x4xf32> to vector<16x4xf32>
    %5 = arith.addf %3, %4 : vector<16x4xf32>
    %c65 = arith.constant 65 : index
    %c0_4 = arith.constant 0 : index
    %6 = vector.load %arg1[%c65, %c0_4] : memref<80x128xf32, #tpu.memory_space<vmem>>, vector<1x4xf32>
    %c66 = arith.constant 66 : index
    %c0_5 = arith.constant 0 : index
    %7 = vector.load %arg1[%c66, %c0_5] : memref<80x128xf32, #tpu.memory_space<vmem>>, vector<1x4xf32>
    %cst_6 = arith.constant dense<0.000000e+00> : vector<4xf32>
    %8 = vector.multi_reduction <add>, %5, %cst_6 [0] : vector<16x4xf32> to vector<4xf32>
    %9 = vector.shape_cast %8 : vector<4xf32> to vector<1x4xf32>
    %cst_7 = arith.constant 1.600000e+01 : f32
    %10 = vector.broadcast %cst_7 : f32 to vector<1x4xf32>
    %11 = arith.divf %9, %10 : vector<1x4xf32>
    %12 = vector.broadcast %11 : vector<1x4xf32> to vector<16x4xf32>
    %13 = arith.subf %5, %12 : vector<16x4xf32>
    %14 = arith.mulf %13, %13 : vector<16x4xf32>
    %cst_8 = arith.constant dense<0.000000e+00> : vector<4xf32>
    %15 = vector.multi_reduction <add>, %14, %cst_8 [0] : vector<16x4xf32> to vector<4xf32>
    %16 = vector.shape_cast %15 : vector<4xf32> to vector<1x4xf32>
    %cst_9 = arith.constant 1.600000e+01 : f32
    %17 = vector.broadcast %cst_9 : f32 to vector<1x4xf32>
    %18 = arith.divf %16, %17 : vector<1x4xf32>
    %cst_10 = arith.constant 9.99999974E-6 : f32
    %19 = vector.broadcast %cst_10 : f32 to vector<1x4xf32>
    %20 = arith.addf %18, %19 : vector<1x4xf32>
    %21 = math.rsqrt %20 : vector<1x4xf32>
    %22 = vector.broadcast %21 : vector<1x4xf32> to vector<16x4xf32>
    %23 = arith.mulf %13, %22 : vector<16x4xf32>
    %24 = vector.broadcast %6 : vector<1x4xf32> to vector<16x4xf32>
    %25 = arith.mulf %23, %24 : vector<16x4xf32>
    %26 = vector.broadcast %7 : vector<1x4xf32> to vector<16x4xf32>
    %27 = arith.addf %25, %26 : vector<16x4xf32>
    %cst_11 = arith.constant 0.000000e+00 : f32
    %28 = vector.broadcast %cst_11 : f32 to vector<16x4xf32>
    %29 = arith.cmpf ogt, %27, %28 : vector<16x4xf32>
    %cst_12 = arith.constant 0.000000e+00 : f32
    %30 = vector.broadcast %cst_12 : f32 to vector<16x4xf32>
    %31 = arith.minimumf %27, %30 : vector<16x4xf32>
    %32 = math.exp %31 : vector<16x4xf32>
    %cst_13 = arith.constant 1.000000e+00 : f32
    %33 = vector.broadcast %cst_13 : f32 to vector<16x4xf32>
    %34 = arith.subf %32, %33 : vector<16x4xf32>
    %35 = arith.select %29, %27, %34 : vector<16x4xi1>, vector<16x4xf32>
    %cst_14 = arith.constant 5.000000e-01 : f32
    %36 = vector.broadcast %cst_14 : f32 to vector<2x12xf32>
    %cst_15 = arith.constant 1.000000e+00 : f32
    %37 = vector.broadcast %cst_15 : f32 to vector<2x4xf32>
    %38 = tpu.concatenate %36, %37 in 1 : vector<2x12xf32>, vector<2x4xf32> -> vector<2x16xf32>
    %cst_16 = arith.constant 0.000000e+00 : f32
    %39 = vector.broadcast %cst_16 : f32 to vector<2x4xf32>
    %40 = tpu.concatenate %36, %39 in 1 : vector<2x12xf32>, vector<2x4xf32> -> vector<2x16xf32>
    %c28 = arith.constant 28 : index
    %c0_17 = arith.constant 0 : index
    %41 = vector.load %arg1[%c28, %c0_17] : memref<80x128xf32, #tpu.memory_space<vmem>>, vector<4x16xf32>
    %c44 = arith.constant 44 : index
    %c0_18 = arith.constant 0 : index
    %42 = vector.load %arg1[%c44, %c0_18] : memref<80x128xf32, #tpu.memory_space<vmem>>, vector<4x16xf32>
    %c60 = arith.constant 60 : index
    %c0_19 = arith.constant 0 : index
    %43 = vector.load %arg1[%c60, %c0_19] : memref<80x128xf32, #tpu.memory_space<vmem>>, vector<1x16xf32>
    %cst_20 = arith.constant dense<0.000000e+00> : vector<16x16xf32>
    %44 = tpu.matmul %35, %41, %cst_20 {dimension_numbers = #tpu.dot_dimension_numbers<[1], [0], [0], [1], [0, 0, 1, 1], [], []>} : vector<16x4xf32>, vector<4x16xf32>, vector<16x16xf32> -> vector<16x16xf32>
    %45 = vector.broadcast %43 : vector<1x16xf32> to vector<16x16xf32>
    %46 = arith.addf %44, %45 : vector<16x16xf32>
    %47 = vector.extract_strided_slice %42 {offsets = [0, 0], sizes = [1, 16], strides = [1, 1]} : vector<4x16xf32> to vector<1x16xf32>
    %48 = vector.shape_cast %47 : vector<1x16xf32> to vector<1x16xf32>
    %49 = vector.broadcast %48 : vector<1x16xf32> to vector<2x16xf32>
    %50 = vector.extract_strided_slice %42 {offsets = [1, 0], sizes = [1, 16], strides = [1, 1]} : vector<4x16xf32> to vector<1x16xf32>
    %51 = vector.shape_cast %50 : vector<1x16xf32> to vector<1x16xf32>
    %52 = vector.broadcast %51 : vector<1x16xf32> to vector<2x16xf32>
    %53 = vector.extract_strided_slice %42 {offsets = [2, 0], sizes = [1, 16], strides = [1, 1]} : vector<4x16xf32> to vector<1x16xf32>
    %54 = vector.shape_cast %53 : vector<1x16xf32> to vector<1x16xf32>
    %55 = vector.broadcast %54 : vector<1x16xf32> to vector<2x16xf32>
    %56 = vector.extract_strided_slice %42 {offsets = [3, 0], sizes = [1, 16], strides = [1, 1]} : vector<4x16xf32> to vector<1x16xf32>
    %57 = vector.shape_cast %56 : vector<1x16xf32> to vector<1x16xf32>
    %58 = vector.broadcast %57 : vector<1x16xf32> to vector<2x16xf32>
    %cst_21 = arith.constant 0.000000e+00 : f32
    %59 = vector.broadcast %cst_21 : f32 to vector<2x4xf32>
    %cst_22 = arith.constant 0.000000e+00 : f32
    %60 = vector.broadcast %cst_22 : f32 to vector<2x4xf32>
    %61 = vector.extract_strided_slice %46 {offsets = [0, 0], sizes = [2, 16], strides = [1, 1]} : vector<16x16xf32> to vector<2x16xf32>
    %62 = vector.extract_strided_slice %59 {offsets = [0, 0], sizes = [2, 1], strides = [1, 1]} : vector<2x4xf32> to vector<2x1xf32>
    %63 = vector.broadcast %62 : vector<2x1xf32> to vector<2x16xf32>
    %64 = arith.mulf %63, %49 : vector<2x16xf32>
    %65 = vector.extract_strided_slice %59 {offsets = [0, 1], sizes = [2, 1], strides = [1, 1]} : vector<2x4xf32> to vector<2x1xf32>
    %66 = vector.broadcast %65 : vector<2x1xf32> to vector<2x16xf32>
    %67 = arith.mulf %66, %52 : vector<2x16xf32>
    %68 = vector.extract_strided_slice %59 {offsets = [0, 2], sizes = [2, 1], strides = [1, 1]} : vector<2x4xf32> to vector<2x1xf32>
    %69 = vector.broadcast %68 : vector<2x1xf32> to vector<2x16xf32>
    %70 = arith.mulf %69, %55 : vector<2x16xf32>
    %71 = vector.extract_strided_slice %59 {offsets = [0, 3], sizes = [2, 1], strides = [1, 1]} : vector<2x4xf32> to vector<2x1xf32>
    %72 = vector.broadcast %71 : vector<2x1xf32> to vector<2x16xf32>
    %73 = arith.mulf %72, %58 : vector<2x16xf32>
    %74 = arith.addf %64, %67 : vector<2x16xf32>
    %75 = arith.addf %70, %73 : vector<2x16xf32>
    %76 = arith.addf %74, %75 : vector<2x16xf32>
    %77 = arith.addf %61, %76 : vector<2x16xf32>
    %78 = math.tanh %77 : vector<2x16xf32>
    %79 = arith.mulf %78, %38 : vector<2x16xf32>
    %80 = arith.addf %79, %40 : vector<2x16xf32>
    %81 = vector.extract_strided_slice %80 {offsets = [0, 0], sizes = [2, 4], strides = [1, 1]} : vector<2x16xf32> to vector<2x4xf32>
    %82 = vector.extract_strided_slice %80 {offsets = [0, 4], sizes = [2, 4], strides = [1, 1]} : vector<2x16xf32> to vector<2x4xf32>
    %83 = vector.extract_strided_slice %80 {offsets = [0, 8], sizes = [2, 4], strides = [1, 1]} : vector<2x16xf32> to vector<2x4xf32>
    %84 = vector.extract_strided_slice %80 {offsets = [0, 12], sizes = [2, 4], strides = [1, 1]} : vector<2x16xf32> to vector<2x4xf32>
    %85 = arith.mulf %82, %60 : vector<2x4xf32>
    %86 = arith.mulf %81, %84 : vector<2x4xf32>
    %87 = arith.addf %85, %86 : vector<2x4xf32>
    %88 = math.tanh %87 : vector<2x4xf32>
    %89 = arith.mulf %83, %88 : vector<2x4xf32>
    %90 = vector.extract_strided_slice %46 {offsets = [2, 0], sizes = [2, 16], strides = [1, 1]} : vector<16x16xf32> to vector<2x16xf32>
    %91 = vector.extract_strided_slice %89 {offsets = [0, 0], sizes = [2, 1], strides = [1, 1]} : vector<2x4xf32> to vector<2x1xf32>
    %92 = vector.broadcast %91 : vector<2x1xf32> to vector<2x16xf32>
    %93 = arith.mulf %92, %49 : vector<2x16xf32>
    %94 = vector.extract_strided_slice %89 {offsets = [0, 1], sizes = [2, 1], strides = [1, 1]} : vector<2x4xf32> to vector<2x1xf32>
    %95 = vector.broadcast %94 : vector<2x1xf32> to vector<2x16xf32>
    %96 = arith.mulf %95, %52 : vector<2x16xf32>
    %97 = vector.extract_strided_slice %89 {offsets = [0, 2], sizes = [2, 1], strides = [1, 1]} : vector<2x4xf32> to vector<2x1xf32>
    %98 = vector.broadcast %97 : vector<2x1xf32> to vector<2x16xf32>
    %99 = arith.mulf %98, %55 : vector<2x16xf32>
    %100 = vector.extract_strided_slice %89 {offsets = [0, 3], sizes = [2, 1], strides = [1, 1]} : vector<2x4xf32> to vector<2x1xf32>
    %101 = vector.broadcast %100 : vector<2x1xf32> to vector<2x16xf32>
    %102 = arith.mulf %101, %58 : vector<2x16xf32>
    %103 = arith.addf %93, %96 : vector<2x16xf32>
    %104 = arith.addf %99, %102 : vector<2x16xf32>
    %105 = arith.addf %103, %104 : vector<2x16xf32>
    %106 = arith.addf %90, %105 : vector<2x16xf32>
    %107 = math.tanh %106 : vector<2x16xf32>
    %108 = arith.mulf %107, %38 : vector<2x16xf32>
    %109 = arith.addf %108, %40 : vector<2x16xf32>
    %110 = vector.extract_strided_slice %109 {offsets = [0, 0], sizes = [2, 4], strides = [1, 1]} : vector<2x16xf32> to vector<2x4xf32>
    %111 = vector.extract_strided_slice %109 {offsets = [0, 4], sizes = [2, 4], strides = [1, 1]} : vector<2x16xf32> to vector<2x4xf32>
    %112 = vector.extract_strided_slice %109 {offsets = [0, 8], sizes = [2, 4], strides = [1, 1]} : vector<2x16xf32> to vector<2x4xf32>
    %113 = vector.extract_strided_slice %109 {offsets = [0, 12], sizes = [2, 4], strides = [1, 1]} : vector<2x16xf32> to vector<2x4xf32>
    %114 = arith.mulf %111, %87 : vector<2x4xf32>
    %115 = arith.mulf %110, %113 : vector<2x4xf32>
    %116 = arith.addf %114, %115 : vector<2x4xf32>
    %117 = math.tanh %116 : vector<2x4xf32>
    %118 = arith.mulf %112, %117 : vector<2x4xf32>
    %119 = vector.extract_strided_slice %46 {offsets = [4, 0], sizes = [2, 16], strides = [1, 1]} : vector<16x16xf32> to vector<2x16xf32>
    %120 = vector.extract_strided_slice %118 {offsets = [0, 0], sizes = [2, 1], strides = [1, 1]} : vector<2x4xf32> to vector<2x1xf32>
    %121 = vector.broadcast %120 : vector<2x1xf32> to vector<2x16xf32>
    %122 = arith.mulf %121, %49 : vector<2x16xf32>
    %123 = vector.extract_strided_slice %118 {offsets = [0, 1], sizes = [2, 1], strides = [1, 1]} : vector<2x4xf32> to vector<2x1xf32>
    %124 = vector.broadcast %123 : vector<2x1xf32> to vector<2x16xf32>
    %125 = arith.mulf %124, %52 : vector<2x16xf32>
    %126 = vector.extract_strided_slice %118 {offsets = [0, 2], sizes = [2, 1], strides = [1, 1]} : vector<2x4xf32> to vector<2x1xf32>
    %127 = vector.broadcast %126 : vector<2x1xf32> to vector<2x16xf32>
    %128 = arith.mulf %127, %55 : vector<2x16xf32>
    %129 = vector.extract_strided_slice %118 {offsets = [0, 3], sizes = [2, 1], strides = [1, 1]} : vector<2x4xf32> to vector<2x1xf32>
    %130 = vector.broadcast %129 : vector<2x1xf32> to vector<2x16xf32>
    %131 = arith.mulf %130, %58 : vector<2x16xf32>
    %132 = arith.addf %122, %125 : vector<2x16xf32>
    %133 = arith.addf %128, %131 : vector<2x16xf32>
    %134 = arith.addf %132, %133 : vector<2x16xf32>
    %135 = arith.addf %119, %134 : vector<2x16xf32>
    %136 = math.tanh %135 : vector<2x16xf32>
    %137 = arith.mulf %136, %38 : vector<2x16xf32>
    %138 = arith.addf %137, %40 : vector<2x16xf32>
    %139 = vector.extract_strided_slice %138 {offsets = [0, 0], sizes = [2, 4], strides = [1, 1]} : vector<2x16xf32> to vector<2x4xf32>
    %140 = vector.extract_strided_slice %138 {offsets = [0, 4], sizes = [2, 4], strides = [1, 1]} : vector<2x16xf32> to vector<2x4xf32>
    %141 = vector.extract_strided_slice %138 {offsets = [0, 8], sizes = [2, 4], strides = [1, 1]} : vector<2x16xf32> to vector<2x4xf32>
    %142 = vector.extract_strided_slice %138 {offsets = [0, 12], sizes = [2, 4], strides = [1, 1]} : vector<2x16xf32> to vector<2x4xf32>
    %143 = arith.mulf %140, %116 : vector<2x4xf32>
    %144 = arith.mulf %139, %142 : vector<2x4xf32>
    %145 = arith.addf %143, %144 : vector<2x4xf32>
    %146 = math.tanh %145 : vector<2x4xf32>
    %147 = arith.mulf %141, %146 : vector<2x4xf32>
    %148 = vector.extract_strided_slice %46 {offsets = [6, 0], sizes = [2, 16], strides = [1, 1]} : vector<16x16xf32> to vector<2x16xf32>
    %149 = vector.extract_strided_slice %147 {offsets = [0, 0], sizes = [2, 1], strides = [1, 1]} : vector<2x4xf32> to vector<2x1xf32>
    %150 = vector.broadcast %149 : vector<2x1xf32> to vector<2x16xf32>
    %151 = arith.mulf %150, %49 : vector<2x16xf32>
    %152 = vector.extract_strided_slice %147 {offsets = [0, 1], sizes = [2, 1], strides = [1, 1]} : vector<2x4xf32> to vector<2x1xf32>
    %153 = vector.broadcast %152 : vector<2x1xf32> to vector<2x16xf32>
    %154 = arith.mulf %153, %52 : vector<2x16xf32>
    %155 = vector.extract_strided_slice %147 {offsets = [0, 2], sizes = [2, 1], strides = [1, 1]} : vector<2x4xf32> to vector<2x1xf32>
    %156 = vector.broadcast %155 : vector<2x1xf32> to vector<2x16xf32>
    %157 = arith.mulf %156, %55 : vector<2x16xf32>
    %158 = vector.extract_strided_slice %147 {offsets = [0, 3], sizes = [2, 1], strides = [1, 1]} : vector<2x4xf32> to vector<2x1xf32>
    %159 = vector.broadcast %158 : vector<2x1xf32> to vector<2x16xf32>
    %160 = arith.mulf %159, %58 : vector<2x16xf32>
    %161 = arith.addf %151, %154 : vector<2x16xf32>
    %162 = arith.addf %157, %160 : vector<2x16xf32>
    %163 = arith.addf %161, %162 : vector<2x16xf32>
    %164 = arith.addf %148, %163 : vector<2x16xf32>
    %165 = math.tanh %164 : vector<2x16xf32>
    %166 = arith.mulf %165, %38 : vector<2x16xf32>
    %167 = arith.addf %166, %40 : vector<2x16xf32>
    %168 = vector.extract_strided_slice %167 {offsets = [0, 0], sizes = [2, 4], strides = [1, 1]} : vector<2x16xf32> to vector<2x4xf32>
    %169 = vector.extract_strided_slice %167 {offsets = [0, 4], sizes = [2, 4], strides = [1, 1]} : vector<2x16xf32> to vector<2x4xf32>
    %170 = vector.extract_strided_slice %167 {offsets = [0, 8], sizes = [2, 4], strides = [1, 1]} : vector<2x16xf32> to vector<2x4xf32>
    %171 = vector.extract_strided_slice %167 {offsets = [0, 12], sizes = [2, 4], strides = [1, 1]} : vector<2x16xf32> to vector<2x4xf32>
    %172 = arith.mulf %169, %145 : vector<2x4xf32>
    %173 = arith.mulf %168, %171 : vector<2x4xf32>
    %174 = arith.addf %172, %173 : vector<2x4xf32>
    %175 = math.tanh %174 : vector<2x4xf32>
    %176 = arith.mulf %170, %175 : vector<2x4xf32>
    %177 = vector.extract_strided_slice %46 {offsets = [8, 0], sizes = [2, 16], strides = [1, 1]} : vector<16x16xf32> to vector<2x16xf32>
    %178 = vector.extract_strided_slice %176 {offsets = [0, 0], sizes = [2, 1], strides = [1, 1]} : vector<2x4xf32> to vector<2x1xf32>
    %179 = vector.broadcast %178 : vector<2x1xf32> to vector<2x16xf32>
    %180 = arith.mulf %179, %49 : vector<2x16xf32>
    %181 = vector.extract_strided_slice %176 {offsets = [0, 1], sizes = [2, 1], strides = [1, 1]} : vector<2x4xf32> to vector<2x1xf32>
    %182 = vector.broadcast %181 : vector<2x1xf32> to vector<2x16xf32>
    %183 = arith.mulf %182, %52 : vector<2x16xf32>
    %184 = vector.extract_strided_slice %176 {offsets = [0, 2], sizes = [2, 1], strides = [1, 1]} : vector<2x4xf32> to vector<2x1xf32>
    %185 = vector.broadcast %184 : vector<2x1xf32> to vector<2x16xf32>
    %186 = arith.mulf %185, %55 : vector<2x16xf32>
    %187 = vector.extract_strided_slice %176 {offsets = [0, 3], sizes = [2, 1], strides = [1, 1]} : vector<2x4xf32> to vector<2x1xf32>
    %188 = vector.broadcast %187 : vector<2x1xf32> to vector<2x16xf32>
    %189 = arith.mulf %188, %58 : vector<2x16xf32>
    %190 = arith.addf %180, %183 : vector<2x16xf32>
    %191 = arith.addf %186, %189 : vector<2x16xf32>
    %192 = arith.addf %190, %191 : vector<2x16xf32>
    %193 = arith.addf %177, %192 : vector<2x16xf32>
    %194 = math.tanh %193 : vector<2x16xf32>
    %195 = arith.mulf %194, %38 : vector<2x16xf32>
    %196 = arith.addf %195, %40 : vector<2x16xf32>
    %197 = vector.extract_strided_slice %196 {offsets = [0, 0], sizes = [2, 4], strides = [1, 1]} : vector<2x16xf32> to vector<2x4xf32>
    %198 = vector.extract_strided_slice %196 {offsets = [0, 4], sizes = [2, 4], strides = [1, 1]} : vector<2x16xf32> to vector<2x4xf32>
    %199 = vector.extract_strided_slice %196 {offsets = [0, 8], sizes = [2, 4], strides = [1, 1]} : vector<2x16xf32> to vector<2x4xf32>
    %200 = vector.extract_strided_slice %196 {offsets = [0, 12], sizes = [2, 4], strides = [1, 1]} : vector<2x16xf32> to vector<2x4xf32>
    %201 = arith.mulf %198, %174 : vector<2x4xf32>
    %202 = arith.mulf %197, %200 : vector<2x4xf32>
    %203 = arith.addf %201, %202 : vector<2x4xf32>
    %204 = math.tanh %203 : vector<2x4xf32>
    %205 = arith.mulf %199, %204 : vector<2x4xf32>
    %206 = vector.extract_strided_slice %46 {offsets = [10, 0], sizes = [2, 16], strides = [1, 1]} : vector<16x16xf32> to vector<2x16xf32>
    %207 = vector.extract_strided_slice %205 {offsets = [0, 0], sizes = [2, 1], strides = [1, 1]} : vector<2x4xf32> to vector<2x1xf32>
    %208 = vector.broadcast %207 : vector<2x1xf32> to vector<2x16xf32>
    %209 = arith.mulf %208, %49 : vector<2x16xf32>
    %210 = vector.extract_strided_slice %205 {offsets = [0, 1], sizes = [2, 1], strides = [1, 1]} : vector<2x4xf32> to vector<2x1xf32>
    %211 = vector.broadcast %210 : vector<2x1xf32> to vector<2x16xf32>
    %212 = arith.mulf %211, %52 : vector<2x16xf32>
    %213 = vector.extract_strided_slice %205 {offsets = [0, 2], sizes = [2, 1], strides = [1, 1]} : vector<2x4xf32> to vector<2x1xf32>
    %214 = vector.broadcast %213 : vector<2x1xf32> to vector<2x16xf32>
    %215 = arith.mulf %214, %55 : vector<2x16xf32>
    %216 = vector.extract_strided_slice %205 {offsets = [0, 3], sizes = [2, 1], strides = [1, 1]} : vector<2x4xf32> to vector<2x1xf32>
    %217 = vector.broadcast %216 : vector<2x1xf32> to vector<2x16xf32>
    %218 = arith.mulf %217, %58 : vector<2x16xf32>
    %219 = arith.addf %209, %212 : vector<2x16xf32>
    %220 = arith.addf %215, %218 : vector<2x16xf32>
    %221 = arith.addf %219, %220 : vector<2x16xf32>
    %222 = arith.addf %206, %221 : vector<2x16xf32>
    %223 = math.tanh %222 : vector<2x16xf32>
    %224 = arith.mulf %223, %38 : vector<2x16xf32>
    %225 = arith.addf %224, %40 : vector<2x16xf32>
    %226 = vector.extract_strided_slice %225 {offsets = [0, 0], sizes = [2, 4], strides = [1, 1]} : vector<2x16xf32> to vector<2x4xf32>
    %227 = vector.extract_strided_slice %225 {offsets = [0, 4], sizes = [2, 4], strides = [1, 1]} : vector<2x16xf32> to vector<2x4xf32>
    %228 = vector.extract_strided_slice %225 {offsets = [0, 8], sizes = [2, 4], strides = [1, 1]} : vector<2x16xf32> to vector<2x4xf32>
    %229 = vector.extract_strided_slice %225 {offsets = [0, 12], sizes = [2, 4], strides = [1, 1]} : vector<2x16xf32> to vector<2x4xf32>
    %230 = arith.mulf %227, %203 : vector<2x4xf32>
    %231 = arith.mulf %226, %229 : vector<2x4xf32>
    %232 = arith.addf %230, %231 : vector<2x4xf32>
    %233 = math.tanh %232 : vector<2x4xf32>
    %234 = arith.mulf %228, %233 : vector<2x4xf32>
    %235 = vector.extract_strided_slice %46 {offsets = [12, 0], sizes = [2, 16], strides = [1, 1]} : vector<16x16xf32> to vector<2x16xf32>
    %236 = vector.extract_strided_slice %234 {offsets = [0, 0], sizes = [2, 1], strides = [1, 1]} : vector<2x4xf32> to vector<2x1xf32>
    %237 = vector.broadcast %236 : vector<2x1xf32> to vector<2x16xf32>
    %238 = arith.mulf %237, %49 : vector<2x16xf32>
    %239 = vector.extract_strided_slice %234 {offsets = [0, 1], sizes = [2, 1], strides = [1, 1]} : vector<2x4xf32> to vector<2x1xf32>
    %240 = vector.broadcast %239 : vector<2x1xf32> to vector<2x16xf32>
    %241 = arith.mulf %240, %52 : vector<2x16xf32>
    %242 = vector.extract_strided_slice %234 {offsets = [0, 2], sizes = [2, 1], strides = [1, 1]} : vector<2x4xf32> to vector<2x1xf32>
    %243 = vector.broadcast %242 : vector<2x1xf32> to vector<2x16xf32>
    %244 = arith.mulf %243, %55 : vector<2x16xf32>
    %245 = vector.extract_strided_slice %234 {offsets = [0, 3], sizes = [2, 1], strides = [1, 1]} : vector<2x4xf32> to vector<2x1xf32>
    %246 = vector.broadcast %245 : vector<2x1xf32> to vector<2x16xf32>
    %247 = arith.mulf %246, %58 : vector<2x16xf32>
    %248 = arith.addf %238, %241 : vector<2x16xf32>
    %249 = arith.addf %244, %247 : vector<2x16xf32>
    %250 = arith.addf %248, %249 : vector<2x16xf32>
    %251 = arith.addf %235, %250 : vector<2x16xf32>
    %252 = math.tanh %251 : vector<2x16xf32>
    %253 = arith.mulf %252, %38 : vector<2x16xf32>
    %254 = arith.addf %253, %40 : vector<2x16xf32>
    %255 = vector.extract_strided_slice %254 {offsets = [0, 0], sizes = [2, 4], strides = [1, 1]} : vector<2x16xf32> to vector<2x4xf32>
    %256 = vector.extract_strided_slice %254 {offsets = [0, 4], sizes = [2, 4], strides = [1, 1]} : vector<2x16xf32> to vector<2x4xf32>
    %257 = vector.extract_strided_slice %254 {offsets = [0, 8], sizes = [2, 4], strides = [1, 1]} : vector<2x16xf32> to vector<2x4xf32>
    %258 = vector.extract_strided_slice %254 {offsets = [0, 12], sizes = [2, 4], strides = [1, 1]} : vector<2x16xf32> to vector<2x4xf32>
    %259 = arith.mulf %256, %232 : vector<2x4xf32>
    %260 = arith.mulf %255, %258 : vector<2x4xf32>
    %261 = arith.addf %259, %260 : vector<2x4xf32>
    %262 = math.tanh %261 : vector<2x4xf32>
    %263 = arith.mulf %257, %262 : vector<2x4xf32>
    %264 = vector.extract_strided_slice %46 {offsets = [14, 0], sizes = [2, 16], strides = [1, 1]} : vector<16x16xf32> to vector<2x16xf32>
    %265 = vector.extract_strided_slice %263 {offsets = [0, 0], sizes = [2, 1], strides = [1, 1]} : vector<2x4xf32> to vector<2x1xf32>
    %266 = vector.broadcast %265 : vector<2x1xf32> to vector<2x16xf32>
    %267 = arith.mulf %266, %49 : vector<2x16xf32>
    %268 = vector.extract_strided_slice %263 {offsets = [0, 1], sizes = [2, 1], strides = [1, 1]} : vector<2x4xf32> to vector<2x1xf32>
    %269 = vector.broadcast %268 : vector<2x1xf32> to vector<2x16xf32>
    %270 = arith.mulf %269, %52 : vector<2x16xf32>
    %271 = vector.extract_strided_slice %263 {offsets = [0, 2], sizes = [2, 1], strides = [1, 1]} : vector<2x4xf32> to vector<2x1xf32>
    %272 = vector.broadcast %271 : vector<2x1xf32> to vector<2x16xf32>
    %273 = arith.mulf %272, %55 : vector<2x16xf32>
    %274 = vector.extract_strided_slice %263 {offsets = [0, 3], sizes = [2, 1], strides = [1, 1]} : vector<2x4xf32> to vector<2x1xf32>
    %275 = vector.broadcast %274 : vector<2x1xf32> to vector<2x16xf32>
    %276 = arith.mulf %275, %58 : vector<2x16xf32>
    %277 = arith.addf %267, %270 : vector<2x16xf32>
    %278 = arith.addf %273, %276 : vector<2x16xf32>
    %279 = arith.addf %277, %278 : vector<2x16xf32>
    %280 = arith.addf %264, %279 : vector<2x16xf32>
    %281 = math.tanh %280 : vector<2x16xf32>
    %282 = arith.mulf %281, %38 : vector<2x16xf32>
    %283 = arith.addf %282, %40 : vector<2x16xf32>
    %284 = vector.extract_strided_slice %283 {offsets = [0, 0], sizes = [2, 4], strides = [1, 1]} : vector<2x16xf32> to vector<2x4xf32>
    %285 = vector.extract_strided_slice %283 {offsets = [0, 4], sizes = [2, 4], strides = [1, 1]} : vector<2x16xf32> to vector<2x4xf32>
    %286 = vector.extract_strided_slice %283 {offsets = [0, 8], sizes = [2, 4], strides = [1, 1]} : vector<2x16xf32> to vector<2x4xf32>
    %287 = vector.extract_strided_slice %283 {offsets = [0, 12], sizes = [2, 4], strides = [1, 1]} : vector<2x16xf32> to vector<2x4xf32>
    %288 = arith.mulf %285, %261 : vector<2x4xf32>
    %289 = arith.mulf %284, %287 : vector<2x4xf32>
    %290 = arith.addf %288, %289 : vector<2x4xf32>
    %291 = math.tanh %290 : vector<2x4xf32>
    %292 = arith.mulf %286, %291 : vector<2x4xf32>
    %293 = tpu.concatenate %89, %118, %147, %176, %205, %234, %263, %292 in 0 : vector<2x4xf32>, vector<2x4xf32>, vector<2x4xf32>, vector<2x4xf32>, vector<2x4xf32>, vector<2x4xf32>, vector<2x4xf32>, vector<2x4xf32> -> vector<16x4xf32>
    %c32 = arith.constant 32 : index
    %c0_23 = arith.constant 0 : index
    %294 = vector.load %arg1[%c32, %c0_23] : memref<80x128xf32, #tpu.memory_space<vmem>>, vector<4x16xf32>
    %c48 = arith.constant 48 : index
    %c0_24 = arith.constant 0 : index
    %295 = vector.load %arg1[%c48, %c0_24] : memref<80x128xf32, #tpu.memory_space<vmem>>, vector<4x16xf32>
    %c61 = arith.constant 61 : index
    %c0_25 = arith.constant 0 : index
    %296 = vector.load %arg1[%c61, %c0_25] : memref<80x128xf32, #tpu.memory_space<vmem>>, vector<1x16xf32>
    %cst_26 = arith.constant dense<0.000000e+00> : vector<16x16xf32>
    %297 = tpu.matmul %293, %294, %cst_26 {dimension_numbers = #tpu.dot_dimension_numbers<[1], [0], [0], [1], [0, 0, 1, 1], [], []>} : vector<16x4xf32>, vector<4x16xf32>, vector<16x16xf32> -> vector<16x16xf32>
    %298 = vector.broadcast %296 : vector<1x16xf32> to vector<16x16xf32>
    %299 = arith.addf %297, %298 : vector<16x16xf32>
    %300 = vector.extract_strided_slice %295 {offsets = [0, 0], sizes = [1, 16], strides = [1, 1]} : vector<4x16xf32> to vector<1x16xf32>
    %301 = vector.shape_cast %300 : vector<1x16xf32> to vector<1x16xf32>
    %302 = vector.broadcast %301 : vector<1x16xf32> to vector<2x16xf32>
    %303 = vector.extract_strided_slice %295 {offsets = [1, 0], sizes = [1, 16], strides = [1, 1]} : vector<4x16xf32> to vector<1x16xf32>
    %304 = vector.shape_cast %303 : vector<1x16xf32> to vector<1x16xf32>
    %305 = vector.broadcast %304 : vector<1x16xf32> to vector<2x16xf32>
    %306 = vector.extract_strided_slice %295 {offsets = [2, 0], sizes = [1, 16], strides = [1, 1]} : vector<4x16xf32> to vector<1x16xf32>
    %307 = vector.shape_cast %306 : vector<1x16xf32> to vector<1x16xf32>
    %308 = vector.broadcast %307 : vector<1x16xf32> to vector<2x16xf32>
    %309 = vector.extract_strided_slice %295 {offsets = [3, 0], sizes = [1, 16], strides = [1, 1]} : vector<4x16xf32> to vector<1x16xf32>
    %310 = vector.shape_cast %309 : vector<1x16xf32> to vector<1x16xf32>
    %311 = vector.broadcast %310 : vector<1x16xf32> to vector<2x16xf32>
    %cst_27 = arith.constant 0.000000e+00 : f32
    %312 = vector.broadcast %cst_27 : f32 to vector<2x4xf32>
    %cst_28 = arith.constant 0.000000e+00 : f32
    %313 = vector.broadcast %cst_28 : f32 to vector<2x4xf32>
    %314 = vector.extract_strided_slice %299 {offsets = [0, 0], sizes = [2, 16], strides = [1, 1]} : vector<16x16xf32> to vector<2x16xf32>
    %315 = vector.extract_strided_slice %312 {offsets = [0, 0], sizes = [2, 1], strides = [1, 1]} : vector<2x4xf32> to vector<2x1xf32>
    %316 = vector.broadcast %315 : vector<2x1xf32> to vector<2x16xf32>
    %317 = arith.mulf %316, %302 : vector<2x16xf32>
    %318 = vector.extract_strided_slice %312 {offsets = [0, 1], sizes = [2, 1], strides = [1, 1]} : vector<2x4xf32> to vector<2x1xf32>
    %319 = vector.broadcast %318 : vector<2x1xf32> to vector<2x16xf32>
    %320 = arith.mulf %319, %305 : vector<2x16xf32>
    %321 = vector.extract_strided_slice %312 {offsets = [0, 2], sizes = [2, 1], strides = [1, 1]} : vector<2x4xf32> to vector<2x1xf32>
    %322 = vector.broadcast %321 : vector<2x1xf32> to vector<2x16xf32>
    %323 = arith.mulf %322, %308 : vector<2x16xf32>
    %324 = vector.extract_strided_slice %312 {offsets = [0, 3], sizes = [2, 1], strides = [1, 1]} : vector<2x4xf32> to vector<2x1xf32>
    %325 = vector.broadcast %324 : vector<2x1xf32> to vector<2x16xf32>
    %326 = arith.mulf %325, %311 : vector<2x16xf32>
    %327 = arith.addf %317, %320 : vector<2x16xf32>
    %328 = arith.addf %323, %326 : vector<2x16xf32>
    %329 = arith.addf %327, %328 : vector<2x16xf32>
    %330 = arith.addf %314, %329 : vector<2x16xf32>
    %331 = math.tanh %330 : vector<2x16xf32>
    %332 = arith.mulf %331, %38 : vector<2x16xf32>
    %333 = arith.addf %332, %40 : vector<2x16xf32>
    %334 = vector.extract_strided_slice %333 {offsets = [0, 0], sizes = [2, 4], strides = [1, 1]} : vector<2x16xf32> to vector<2x4xf32>
    %335 = vector.extract_strided_slice %333 {offsets = [0, 4], sizes = [2, 4], strides = [1, 1]} : vector<2x16xf32> to vector<2x4xf32>
    %336 = vector.extract_strided_slice %333 {offsets = [0, 8], sizes = [2, 4], strides = [1, 1]} : vector<2x16xf32> to vector<2x4xf32>
    %337 = vector.extract_strided_slice %333 {offsets = [0, 12], sizes = [2, 4], strides = [1, 1]} : vector<2x16xf32> to vector<2x4xf32>
    %338 = arith.mulf %335, %313 : vector<2x4xf32>
    %339 = arith.mulf %334, %337 : vector<2x4xf32>
    %340 = arith.addf %338, %339 : vector<2x4xf32>
    %341 = math.tanh %340 : vector<2x4xf32>
    %342 = arith.mulf %336, %341 : vector<2x4xf32>
    %343 = vector.extract_strided_slice %299 {offsets = [2, 0], sizes = [2, 16], strides = [1, 1]} : vector<16x16xf32> to vector<2x16xf32>
    %344 = vector.extract_strided_slice %342 {offsets = [0, 0], sizes = [2, 1], strides = [1, 1]} : vector<2x4xf32> to vector<2x1xf32>
    %345 = vector.broadcast %344 : vector<2x1xf32> to vector<2x16xf32>
    %346 = arith.mulf %345, %302 : vector<2x16xf32>
    %347 = vector.extract_strided_slice %342 {offsets = [0, 1], sizes = [2, 1], strides = [1, 1]} : vector<2x4xf32> to vector<2x1xf32>
    %348 = vector.broadcast %347 : vector<2x1xf32> to vector<2x16xf32>
    %349 = arith.mulf %348, %305 : vector<2x16xf32>
    %350 = vector.extract_strided_slice %342 {offsets = [0, 2], sizes = [2, 1], strides = [1, 1]} : vector<2x4xf32> to vector<2x1xf32>
    %351 = vector.broadcast %350 : vector<2x1xf32> to vector<2x16xf32>
    %352 = arith.mulf %351, %308 : vector<2x16xf32>
    %353 = vector.extract_strided_slice %342 {offsets = [0, 3], sizes = [2, 1], strides = [1, 1]} : vector<2x4xf32> to vector<2x1xf32>
    %354 = vector.broadcast %353 : vector<2x1xf32> to vector<2x16xf32>
    %355 = arith.mulf %354, %311 : vector<2x16xf32>
    %356 = arith.addf %346, %349 : vector<2x16xf32>
    %357 = arith.addf %352, %355 : vector<2x16xf32>
    %358 = arith.addf %356, %357 : vector<2x16xf32>
    %359 = arith.addf %343, %358 : vector<2x16xf32>
    %360 = math.tanh %359 : vector<2x16xf32>
    %361 = arith.mulf %360, %38 : vector<2x16xf32>
    %362 = arith.addf %361, %40 : vector<2x16xf32>
    %363 = vector.extract_strided_slice %362 {offsets = [0, 0], sizes = [2, 4], strides = [1, 1]} : vector<2x16xf32> to vector<2x4xf32>
    %364 = vector.extract_strided_slice %362 {offsets = [0, 4], sizes = [2, 4], strides = [1, 1]} : vector<2x16xf32> to vector<2x4xf32>
    %365 = vector.extract_strided_slice %362 {offsets = [0, 8], sizes = [2, 4], strides = [1, 1]} : vector<2x16xf32> to vector<2x4xf32>
    %366 = vector.extract_strided_slice %362 {offsets = [0, 12], sizes = [2, 4], strides = [1, 1]} : vector<2x16xf32> to vector<2x4xf32>
    %367 = arith.mulf %364, %340 : vector<2x4xf32>
    %368 = arith.mulf %363, %366 : vector<2x4xf32>
    %369 = arith.addf %367, %368 : vector<2x4xf32>
    %370 = math.tanh %369 : vector<2x4xf32>
    %371 = arith.mulf %365, %370 : vector<2x4xf32>
    %372 = vector.extract_strided_slice %299 {offsets = [4, 0], sizes = [2, 16], strides = [1, 1]} : vector<16x16xf32> to vector<2x16xf32>
    %373 = vector.extract_strided_slice %371 {offsets = [0, 0], sizes = [2, 1], strides = [1, 1]} : vector<2x4xf32> to vector<2x1xf32>
    %374 = vector.broadcast %373 : vector<2x1xf32> to vector<2x16xf32>
    %375 = arith.mulf %374, %302 : vector<2x16xf32>
    %376 = vector.extract_strided_slice %371 {offsets = [0, 1], sizes = [2, 1], strides = [1, 1]} : vector<2x4xf32> to vector<2x1xf32>
    %377 = vector.broadcast %376 : vector<2x1xf32> to vector<2x16xf32>
    %378 = arith.mulf %377, %305 : vector<2x16xf32>
    %379 = vector.extract_strided_slice %371 {offsets = [0, 2], sizes = [2, 1], strides = [1, 1]} : vector<2x4xf32> to vector<2x1xf32>
    %380 = vector.broadcast %379 : vector<2x1xf32> to vector<2x16xf32>
    %381 = arith.mulf %380, %308 : vector<2x16xf32>
    %382 = vector.extract_strided_slice %371 {offsets = [0, 3], sizes = [2, 1], strides = [1, 1]} : vector<2x4xf32> to vector<2x1xf32>
    %383 = vector.broadcast %382 : vector<2x1xf32> to vector<2x16xf32>
    %384 = arith.mulf %383, %311 : vector<2x16xf32>
    %385 = arith.addf %375, %378 : vector<2x16xf32>
    %386 = arith.addf %381, %384 : vector<2x16xf32>
    %387 = arith.addf %385, %386 : vector<2x16xf32>
    %388 = arith.addf %372, %387 : vector<2x16xf32>
    %389 = math.tanh %388 : vector<2x16xf32>
    %390 = arith.mulf %389, %38 : vector<2x16xf32>
    %391 = arith.addf %390, %40 : vector<2x16xf32>
    %392 = vector.extract_strided_slice %391 {offsets = [0, 0], sizes = [2, 4], strides = [1, 1]} : vector<2x16xf32> to vector<2x4xf32>
    %393 = vector.extract_strided_slice %391 {offsets = [0, 4], sizes = [2, 4], strides = [1, 1]} : vector<2x16xf32> to vector<2x4xf32>
    %394 = vector.extract_strided_slice %391 {offsets = [0, 8], sizes = [2, 4], strides = [1, 1]} : vector<2x16xf32> to vector<2x4xf32>
    %395 = vector.extract_strided_slice %391 {offsets = [0, 12], sizes = [2, 4], strides = [1, 1]} : vector<2x16xf32> to vector<2x4xf32>
    %396 = arith.mulf %393, %369 : vector<2x4xf32>
    %397 = arith.mulf %392, %395 : vector<2x4xf32>
    %398 = arith.addf %396, %397 : vector<2x4xf32>
    %399 = math.tanh %398 : vector<2x4xf32>
    %400 = arith.mulf %394, %399 : vector<2x4xf32>
    %401 = vector.extract_strided_slice %299 {offsets = [6, 0], sizes = [2, 16], strides = [1, 1]} : vector<16x16xf32> to vector<2x16xf32>
    %402 = vector.extract_strided_slice %400 {offsets = [0, 0], sizes = [2, 1], strides = [1, 1]} : vector<2x4xf32> to vector<2x1xf32>
    %403 = vector.broadcast %402 : vector<2x1xf32> to vector<2x16xf32>
    %404 = arith.mulf %403, %302 : vector<2x16xf32>
    %405 = vector.extract_strided_slice %400 {offsets = [0, 1], sizes = [2, 1], strides = [1, 1]} : vector<2x4xf32> to vector<2x1xf32>
    %406 = vector.broadcast %405 : vector<2x1xf32> to vector<2x16xf32>
    %407 = arith.mulf %406, %305 : vector<2x16xf32>
    %408 = vector.extract_strided_slice %400 {offsets = [0, 2], sizes = [2, 1], strides = [1, 1]} : vector<2x4xf32> to vector<2x1xf32>
    %409 = vector.broadcast %408 : vector<2x1xf32> to vector<2x16xf32>
    %410 = arith.mulf %409, %308 : vector<2x16xf32>
    %411 = vector.extract_strided_slice %400 {offsets = [0, 3], sizes = [2, 1], strides = [1, 1]} : vector<2x4xf32> to vector<2x1xf32>
    %412 = vector.broadcast %411 : vector<2x1xf32> to vector<2x16xf32>
    %413 = arith.mulf %412, %311 : vector<2x16xf32>
    %414 = arith.addf %404, %407 : vector<2x16xf32>
    %415 = arith.addf %410, %413 : vector<2x16xf32>
    %416 = arith.addf %414, %415 : vector<2x16xf32>
    %417 = arith.addf %401, %416 : vector<2x16xf32>
    %418 = math.tanh %417 : vector<2x16xf32>
    %419 = arith.mulf %418, %38 : vector<2x16xf32>
    %420 = arith.addf %419, %40 : vector<2x16xf32>
    %421 = vector.extract_strided_slice %420 {offsets = [0, 0], sizes = [2, 4], strides = [1, 1]} : vector<2x16xf32> to vector<2x4xf32>
    %422 = vector.extract_strided_slice %420 {offsets = [0, 4], sizes = [2, 4], strides = [1, 1]} : vector<2x16xf32> to vector<2x4xf32>
    %423 = vector.extract_strided_slice %420 {offsets = [0, 8], sizes = [2, 4], strides = [1, 1]} : vector<2x16xf32> to vector<2x4xf32>
    %424 = vector.extract_strided_slice %420 {offsets = [0, 12], sizes = [2, 4], strides = [1, 1]} : vector<2x16xf32> to vector<2x4xf32>
    %425 = arith.mulf %422, %398 : vector<2x4xf32>
    %426 = arith.mulf %421, %424 : vector<2x4xf32>
    %427 = arith.addf %425, %426 : vector<2x4xf32>
    %428 = math.tanh %427 : vector<2x4xf32>
    %429 = arith.mulf %423, %428 : vector<2x4xf32>
    %430 = vector.extract_strided_slice %299 {offsets = [8, 0], sizes = [2, 16], strides = [1, 1]} : vector<16x16xf32> to vector<2x16xf32>
    %431 = vector.extract_strided_slice %429 {offsets = [0, 0], sizes = [2, 1], strides = [1, 1]} : vector<2x4xf32> to vector<2x1xf32>
    %432 = vector.broadcast %431 : vector<2x1xf32> to vector<2x16xf32>
    %433 = arith.mulf %432, %302 : vector<2x16xf32>
    %434 = vector.extract_strided_slice %429 {offsets = [0, 1], sizes = [2, 1], strides = [1, 1]} : vector<2x4xf32> to vector<2x1xf32>
    %435 = vector.broadcast %434 : vector<2x1xf32> to vector<2x16xf32>
    %436 = arith.mulf %435, %305 : vector<2x16xf32>
    %437 = vector.extract_strided_slice %429 {offsets = [0, 2], sizes = [2, 1], strides = [1, 1]} : vector<2x4xf32> to vector<2x1xf32>
    %438 = vector.broadcast %437 : vector<2x1xf32> to vector<2x16xf32>
    %439 = arith.mulf %438, %308 : vector<2x16xf32>
    %440 = vector.extract_strided_slice %429 {offsets = [0, 3], sizes = [2, 1], strides = [1, 1]} : vector<2x4xf32> to vector<2x1xf32>
    %441 = vector.broadcast %440 : vector<2x1xf32> to vector<2x16xf32>
    %442 = arith.mulf %441, %311 : vector<2x16xf32>
    %443 = arith.addf %433, %436 : vector<2x16xf32>
    %444 = arith.addf %439, %442 : vector<2x16xf32>
    %445 = arith.addf %443, %444 : vector<2x16xf32>
    %446 = arith.addf %430, %445 : vector<2x16xf32>
    %447 = math.tanh %446 : vector<2x16xf32>
    %448 = arith.mulf %447, %38 : vector<2x16xf32>
    %449 = arith.addf %448, %40 : vector<2x16xf32>
    %450 = vector.extract_strided_slice %449 {offsets = [0, 0], sizes = [2, 4], strides = [1, 1]} : vector<2x16xf32> to vector<2x4xf32>
    %451 = vector.extract_strided_slice %449 {offsets = [0, 4], sizes = [2, 4], strides = [1, 1]} : vector<2x16xf32> to vector<2x4xf32>
    %452 = vector.extract_strided_slice %449 {offsets = [0, 8], sizes = [2, 4], strides = [1, 1]} : vector<2x16xf32> to vector<2x4xf32>
    %453 = vector.extract_strided_slice %449 {offsets = [0, 12], sizes = [2, 4], strides = [1, 1]} : vector<2x16xf32> to vector<2x4xf32>
    %454 = arith.mulf %451, %427 : vector<2x4xf32>
    %455 = arith.mulf %450, %453 : vector<2x4xf32>
    %456 = arith.addf %454, %455 : vector<2x4xf32>
    %457 = math.tanh %456 : vector<2x4xf32>
    %458 = arith.mulf %452, %457 : vector<2x4xf32>
    %459 = vector.extract_strided_slice %299 {offsets = [10, 0], sizes = [2, 16], strides = [1, 1]} : vector<16x16xf32> to vector<2x16xf32>
    %460 = vector.extract_strided_slice %458 {offsets = [0, 0], sizes = [2, 1], strides = [1, 1]} : vector<2x4xf32> to vector<2x1xf32>
    %461 = vector.broadcast %460 : vector<2x1xf32> to vector<2x16xf32>
    %462 = arith.mulf %461, %302 : vector<2x16xf32>
    %463 = vector.extract_strided_slice %458 {offsets = [0, 1], sizes = [2, 1], strides = [1, 1]} : vector<2x4xf32> to vector<2x1xf32>
    %464 = vector.broadcast %463 : vector<2x1xf32> to vector<2x16xf32>
    %465 = arith.mulf %464, %305 : vector<2x16xf32>
    %466 = vector.extract_strided_slice %458 {offsets = [0, 2], sizes = [2, 1], strides = [1, 1]} : vector<2x4xf32> to vector<2x1xf32>
    %467 = vector.broadcast %466 : vector<2x1xf32> to vector<2x16xf32>
    %468 = arith.mulf %467, %308 : vector<2x16xf32>
    %469 = vector.extract_strided_slice %458 {offsets = [0, 3], sizes = [2, 1], strides = [1, 1]} : vector<2x4xf32> to vector<2x1xf32>
    %470 = vector.broadcast %469 : vector<2x1xf32> to vector<2x16xf32>
    %471 = arith.mulf %470, %311 : vector<2x16xf32>
    %472 = arith.addf %462, %465 : vector<2x16xf32>
    %473 = arith.addf %468, %471 : vector<2x16xf32>
    %474 = arith.addf %472, %473 : vector<2x16xf32>
    %475 = arith.addf %459, %474 : vector<2x16xf32>
    %476 = math.tanh %475 : vector<2x16xf32>
    %477 = arith.mulf %476, %38 : vector<2x16xf32>
    %478 = arith.addf %477, %40 : vector<2x16xf32>
    %479 = vector.extract_strided_slice %478 {offsets = [0, 0], sizes = [2, 4], strides = [1, 1]} : vector<2x16xf32> to vector<2x4xf32>
    %480 = vector.extract_strided_slice %478 {offsets = [0, 4], sizes = [2, 4], strides = [1, 1]} : vector<2x16xf32> to vector<2x4xf32>
    %481 = vector.extract_strided_slice %478 {offsets = [0, 8], sizes = [2, 4], strides = [1, 1]} : vector<2x16xf32> to vector<2x4xf32>
    %482 = vector.extract_strided_slice %478 {offsets = [0, 12], sizes = [2, 4], strides = [1, 1]} : vector<2x16xf32> to vector<2x4xf32>
    %483 = arith.mulf %480, %456 : vector<2x4xf32>
    %484 = arith.mulf %479, %482 : vector<2x4xf32>
    %485 = arith.addf %483, %484 : vector<2x4xf32>
    %486 = math.tanh %485 : vector<2x4xf32>
    %487 = arith.mulf %481, %486 : vector<2x4xf32>
    %488 = vector.extract_strided_slice %299 {offsets = [12, 0], sizes = [2, 16], strides = [1, 1]} : vector<16x16xf32> to vector<2x16xf32>
    %489 = vector.extract_strided_slice %487 {offsets = [0, 0], sizes = [2, 1], strides = [1, 1]} : vector<2x4xf32> to vector<2x1xf32>
    %490 = vector.broadcast %489 : vector<2x1xf32> to vector<2x16xf32>
    %491 = arith.mulf %490, %302 : vector<2x16xf32>
    %492 = vector.extract_strided_slice %487 {offsets = [0, 1], sizes = [2, 1], strides = [1, 1]} : vector<2x4xf32> to vector<2x1xf32>
    %493 = vector.broadcast %492 : vector<2x1xf32> to vector<2x16xf32>
    %494 = arith.mulf %493, %305 : vector<2x16xf32>
    %495 = vector.extract_strided_slice %487 {offsets = [0, 2], sizes = [2, 1], strides = [1, 1]} : vector<2x4xf32> to vector<2x1xf32>
    %496 = vector.broadcast %495 : vector<2x1xf32> to vector<2x16xf32>
    %497 = arith.mulf %496, %308 : vector<2x16xf32>
    %498 = vector.extract_strided_slice %487 {offsets = [0, 3], sizes = [2, 1], strides = [1, 1]} : vector<2x4xf32> to vector<2x1xf32>
    %499 = vector.broadcast %498 : vector<2x1xf32> to vector<2x16xf32>
    %500 = arith.mulf %499, %311 : vector<2x16xf32>
    %501 = arith.addf %491, %494 : vector<2x16xf32>
    %502 = arith.addf %497, %500 : vector<2x16xf32>
    %503 = arith.addf %501, %502 : vector<2x16xf32>
    %504 = arith.addf %488, %503 : vector<2x16xf32>
    %505 = math.tanh %504 : vector<2x16xf32>
    %506 = arith.mulf %505, %38 : vector<2x16xf32>
    %507 = arith.addf %506, %40 : vector<2x16xf32>
    %508 = vector.extract_strided_slice %507 {offsets = [0, 0], sizes = [2, 4], strides = [1, 1]} : vector<2x16xf32> to vector<2x4xf32>
    %509 = vector.extract_strided_slice %507 {offsets = [0, 4], sizes = [2, 4], strides = [1, 1]} : vector<2x16xf32> to vector<2x4xf32>
    %510 = vector.extract_strided_slice %507 {offsets = [0, 8], sizes = [2, 4], strides = [1, 1]} : vector<2x16xf32> to vector<2x4xf32>
    %511 = vector.extract_strided_slice %507 {offsets = [0, 12], sizes = [2, 4], strides = [1, 1]} : vector<2x16xf32> to vector<2x4xf32>
    %512 = arith.mulf %509, %485 : vector<2x4xf32>
    %513 = arith.mulf %508, %511 : vector<2x4xf32>
    %514 = arith.addf %512, %513 : vector<2x4xf32>
    %515 = math.tanh %514 : vector<2x4xf32>
    %516 = arith.mulf %510, %515 : vector<2x4xf32>
    %517 = vector.extract_strided_slice %299 {offsets = [14, 0], sizes = [2, 16], strides = [1, 1]} : vector<16x16xf32> to vector<2x16xf32>
    %518 = vector.extract_strided_slice %516 {offsets = [0, 0], sizes = [2, 1], strides = [1, 1]} : vector<2x4xf32> to vector<2x1xf32>
    %519 = vector.broadcast %518 : vector<2x1xf32> to vector<2x16xf32>
    %520 = arith.mulf %519, %302 : vector<2x16xf32>
    %521 = vector.extract_strided_slice %516 {offsets = [0, 1], sizes = [2, 1], strides = [1, 1]} : vector<2x4xf32> to vector<2x1xf32>
    %522 = vector.broadcast %521 : vector<2x1xf32> to vector<2x16xf32>
    %523 = arith.mulf %522, %305 : vector<2x16xf32>
    %524 = vector.extract_strided_slice %516 {offsets = [0, 2], sizes = [2, 1], strides = [1, 1]} : vector<2x4xf32> to vector<2x1xf32>
    %525 = vector.broadcast %524 : vector<2x1xf32> to vector<2x16xf32>
    %526 = arith.mulf %525, %308 : vector<2x16xf32>
    %527 = vector.extract_strided_slice %516 {offsets = [0, 3], sizes = [2, 1], strides = [1, 1]} : vector<2x4xf32> to vector<2x1xf32>
    %528 = vector.broadcast %527 : vector<2x1xf32> to vector<2x16xf32>
    %529 = arith.mulf %528, %311 : vector<2x16xf32>
    %530 = arith.addf %520, %523 : vector<2x16xf32>
    %531 = arith.addf %526, %529 : vector<2x16xf32>
    %532 = arith.addf %530, %531 : vector<2x16xf32>
    %533 = arith.addf %517, %532 : vector<2x16xf32>
    %534 = math.tanh %533 : vector<2x16xf32>
    %535 = arith.mulf %534, %38 : vector<2x16xf32>
    %536 = arith.addf %535, %40 : vector<2x16xf32>
    %537 = vector.extract_strided_slice %536 {offsets = [0, 0], sizes = [2, 4], strides = [1, 1]} : vector<2x16xf32> to vector<2x4xf32>
    %538 = vector.extract_strided_slice %536 {offsets = [0, 4], sizes = [2, 4], strides = [1, 1]} : vector<2x16xf32> to vector<2x4xf32>
    %539 = vector.extract_strided_slice %536 {offsets = [0, 8], sizes = [2, 4], strides = [1, 1]} : vector<2x16xf32> to vector<2x4xf32>
    %540 = vector.extract_strided_slice %536 {offsets = [0, 12], sizes = [2, 4], strides = [1, 1]} : vector<2x16xf32> to vector<2x4xf32>
    %541 = arith.mulf %538, %514 : vector<2x4xf32>
    %542 = arith.mulf %537, %540 : vector<2x4xf32>
    %543 = arith.addf %541, %542 : vector<2x4xf32>
    %544 = math.tanh %543 : vector<2x4xf32>
    %545 = arith.mulf %539, %544 : vector<2x4xf32>
    %546 = tpu.concatenate %342, %371, %400, %429, %458, %487, %516, %545 in 0 : vector<2x4xf32>, vector<2x4xf32>, vector<2x4xf32>, vector<2x4xf32>, vector<2x4xf32>, vector<2x4xf32>, vector<2x4xf32>, vector<2x4xf32> -> vector<16x4xf32>
    %c36 = arith.constant 36 : index
    %c0_29 = arith.constant 0 : index
    %547 = vector.load %arg1[%c36, %c0_29] : memref<80x128xf32, #tpu.memory_space<vmem>>, vector<4x16xf32>
    %c52 = arith.constant 52 : index
    %c0_30 = arith.constant 0 : index
    %548 = vector.load %arg1[%c52, %c0_30] : memref<80x128xf32, #tpu.memory_space<vmem>>, vector<4x16xf32>
    %c62 = arith.constant 62 : index
    %c0_31 = arith.constant 0 : index
    %549 = vector.load %arg1[%c62, %c0_31] : memref<80x128xf32, #tpu.memory_space<vmem>>, vector<1x16xf32>
    %cst_32 = arith.constant dense<0.000000e+00> : vector<16x16xf32>
    %550 = tpu.matmul %546, %547, %cst_32 {dimension_numbers = #tpu.dot_dimension_numbers<[1], [0], [0], [1], [0, 0, 1, 1], [], []>} : vector<16x4xf32>, vector<4x16xf32>, vector<16x16xf32> -> vector<16x16xf32>
    %551 = vector.broadcast %549 : vector<1x16xf32> to vector<16x16xf32>
    %552 = arith.addf %550, %551 : vector<16x16xf32>
    %553 = vector.extract_strided_slice %548 {offsets = [0, 0], sizes = [1, 16], strides = [1, 1]} : vector<4x16xf32> to vector<1x16xf32>
    %554 = vector.shape_cast %553 : vector<1x16xf32> to vector<1x16xf32>
    %555 = vector.broadcast %554 : vector<1x16xf32> to vector<2x16xf32>
    %556 = vector.extract_strided_slice %548 {offsets = [1, 0], sizes = [1, 16], strides = [1, 1]} : vector<4x16xf32> to vector<1x16xf32>
    %557 = vector.shape_cast %556 : vector<1x16xf32> to vector<1x16xf32>
    %558 = vector.broadcast %557 : vector<1x16xf32> to vector<2x16xf32>
    %559 = vector.extract_strided_slice %548 {offsets = [2, 0], sizes = [1, 16], strides = [1, 1]} : vector<4x16xf32> to vector<1x16xf32>
    %560 = vector.shape_cast %559 : vector<1x16xf32> to vector<1x16xf32>
    %561 = vector.broadcast %560 : vector<1x16xf32> to vector<2x16xf32>
    %562 = vector.extract_strided_slice %548 {offsets = [3, 0], sizes = [1, 16], strides = [1, 1]} : vector<4x16xf32> to vector<1x16xf32>
    %563 = vector.shape_cast %562 : vector<1x16xf32> to vector<1x16xf32>
    %564 = vector.broadcast %563 : vector<1x16xf32> to vector<2x16xf32>
    %cst_33 = arith.constant 0.000000e+00 : f32
    %565 = vector.broadcast %cst_33 : f32 to vector<2x4xf32>
    %cst_34 = arith.constant 0.000000e+00 : f32
    %566 = vector.broadcast %cst_34 : f32 to vector<2x4xf32>
    %567 = vector.extract_strided_slice %552 {offsets = [0, 0], sizes = [2, 16], strides = [1, 1]} : vector<16x16xf32> to vector<2x16xf32>
    %568 = vector.extract_strided_slice %565 {offsets = [0, 0], sizes = [2, 1], strides = [1, 1]} : vector<2x4xf32> to vector<2x1xf32>
    %569 = vector.broadcast %568 : vector<2x1xf32> to vector<2x16xf32>
    %570 = arith.mulf %569, %555 : vector<2x16xf32>
    %571 = vector.extract_strided_slice %565 {offsets = [0, 1], sizes = [2, 1], strides = [1, 1]} : vector<2x4xf32> to vector<2x1xf32>
    %572 = vector.broadcast %571 : vector<2x1xf32> to vector<2x16xf32>
    %573 = arith.mulf %572, %558 : vector<2x16xf32>
    %574 = vector.extract_strided_slice %565 {offsets = [0, 2], sizes = [2, 1], strides = [1, 1]} : vector<2x4xf32> to vector<2x1xf32>
    %575 = vector.broadcast %574 : vector<2x1xf32> to vector<2x16xf32>
    %576 = arith.mulf %575, %561 : vector<2x16xf32>
    %577 = vector.extract_strided_slice %565 {offsets = [0, 3], sizes = [2, 1], strides = [1, 1]} : vector<2x4xf32> to vector<2x1xf32>
    %578 = vector.broadcast %577 : vector<2x1xf32> to vector<2x16xf32>
    %579 = arith.mulf %578, %564 : vector<2x16xf32>
    %580 = arith.addf %570, %573 : vector<2x16xf32>
    %581 = arith.addf %576, %579 : vector<2x16xf32>
    %582 = arith.addf %580, %581 : vector<2x16xf32>
    %583 = arith.addf %567, %582 : vector<2x16xf32>
    %584 = math.tanh %583 : vector<2x16xf32>
    %585 = arith.mulf %584, %38 : vector<2x16xf32>
    %586 = arith.addf %585, %40 : vector<2x16xf32>
    %587 = vector.extract_strided_slice %586 {offsets = [0, 0], sizes = [2, 4], strides = [1, 1]} : vector<2x16xf32> to vector<2x4xf32>
    %588 = vector.extract_strided_slice %586 {offsets = [0, 4], sizes = [2, 4], strides = [1, 1]} : vector<2x16xf32> to vector<2x4xf32>
    %589 = vector.extract_strided_slice %586 {offsets = [0, 8], sizes = [2, 4], strides = [1, 1]} : vector<2x16xf32> to vector<2x4xf32>
    %590 = vector.extract_strided_slice %586 {offsets = [0, 12], sizes = [2, 4], strides = [1, 1]} : vector<2x16xf32> to vector<2x4xf32>
    %591 = arith.mulf %588, %566 : vector<2x4xf32>
    %592 = arith.mulf %587, %590 : vector<2x4xf32>
    %593 = arith.addf %591, %592 : vector<2x4xf32>
    %594 = math.tanh %593 : vector<2x4xf32>
    %595 = arith.mulf %589, %594 : vector<2x4xf32>
    %596 = vector.extract_strided_slice %552 {offsets = [2, 0], sizes = [2, 16], strides = [1, 1]} : vector<16x16xf32> to vector<2x16xf32>
    %597 = vector.extract_strided_slice %595 {offsets = [0, 0], sizes = [2, 1], strides = [1, 1]} : vector<2x4xf32> to vector<2x1xf32>
    %598 = vector.broadcast %597 : vector<2x1xf32> to vector<2x16xf32>
    %599 = arith.mulf %598, %555 : vector<2x16xf32>
    %600 = vector.extract_strided_slice %595 {offsets = [0, 1], sizes = [2, 1], strides = [1, 1]} : vector<2x4xf32> to vector<2x1xf32>
    %601 = vector.broadcast %600 : vector<2x1xf32> to vector<2x16xf32>
    %602 = arith.mulf %601, %558 : vector<2x16xf32>
    %603 = vector.extract_strided_slice %595 {offsets = [0, 2], sizes = [2, 1], strides = [1, 1]} : vector<2x4xf32> to vector<2x1xf32>
    %604 = vector.broadcast %603 : vector<2x1xf32> to vector<2x16xf32>
    %605 = arith.mulf %604, %561 : vector<2x16xf32>
    %606 = vector.extract_strided_slice %595 {offsets = [0, 3], sizes = [2, 1], strides = [1, 1]} : vector<2x4xf32> to vector<2x1xf32>
    %607 = vector.broadcast %606 : vector<2x1xf32> to vector<2x16xf32>
    %608 = arith.mulf %607, %564 : vector<2x16xf32>
    %609 = arith.addf %599, %602 : vector<2x16xf32>
    %610 = arith.addf %605, %608 : vector<2x16xf32>
    %611 = arith.addf %609, %610 : vector<2x16xf32>
    %612 = arith.addf %596, %611 : vector<2x16xf32>
    %613 = math.tanh %612 : vector<2x16xf32>
    %614 = arith.mulf %613, %38 : vector<2x16xf32>
    %615 = arith.addf %614, %40 : vector<2x16xf32>
    %616 = vector.extract_strided_slice %615 {offsets = [0, 0], sizes = [2, 4], strides = [1, 1]} : vector<2x16xf32> to vector<2x4xf32>
    %617 = vector.extract_strided_slice %615 {offsets = [0, 4], sizes = [2, 4], strides = [1, 1]} : vector<2x16xf32> to vector<2x4xf32>
    %618 = vector.extract_strided_slice %615 {offsets = [0, 8], sizes = [2, 4], strides = [1, 1]} : vector<2x16xf32> to vector<2x4xf32>
    %619 = vector.extract_strided_slice %615 {offsets = [0, 12], sizes = [2, 4], strides = [1, 1]} : vector<2x16xf32> to vector<2x4xf32>
    %620 = arith.mulf %617, %593 : vector<2x4xf32>
    %621 = arith.mulf %616, %619 : vector<2x4xf32>
    %622 = arith.addf %620, %621 : vector<2x4xf32>
    %623 = math.tanh %622 : vector<2x4xf32>
    %624 = arith.mulf %618, %623 : vector<2x4xf32>
    %625 = vector.extract_strided_slice %552 {offsets = [4, 0], sizes = [2, 16], strides = [1, 1]} : vector<16x16xf32> to vector<2x16xf32>
    %626 = vector.extract_strided_slice %624 {offsets = [0, 0], sizes = [2, 1], strides = [1, 1]} : vector<2x4xf32> to vector<2x1xf32>
    %627 = vector.broadcast %626 : vector<2x1xf32> to vector<2x16xf32>
    %628 = arith.mulf %627, %555 : vector<2x16xf32>
    %629 = vector.extract_strided_slice %624 {offsets = [0, 1], sizes = [2, 1], strides = [1, 1]} : vector<2x4xf32> to vector<2x1xf32>
    %630 = vector.broadcast %629 : vector<2x1xf32> to vector<2x16xf32>
    %631 = arith.mulf %630, %558 : vector<2x16xf32>
    %632 = vector.extract_strided_slice %624 {offsets = [0, 2], sizes = [2, 1], strides = [1, 1]} : vector<2x4xf32> to vector<2x1xf32>
    %633 = vector.broadcast %632 : vector<2x1xf32> to vector<2x16xf32>
    %634 = arith.mulf %633, %561 : vector<2x16xf32>
    %635 = vector.extract_strided_slice %624 {offsets = [0, 3], sizes = [2, 1], strides = [1, 1]} : vector<2x4xf32> to vector<2x1xf32>
    %636 = vector.broadcast %635 : vector<2x1xf32> to vector<2x16xf32>
    %637 = arith.mulf %636, %564 : vector<2x16xf32>
    %638 = arith.addf %628, %631 : vector<2x16xf32>
    %639 = arith.addf %634, %637 : vector<2x16xf32>
    %640 = arith.addf %638, %639 : vector<2x16xf32>
    %641 = arith.addf %625, %640 : vector<2x16xf32>
    %642 = math.tanh %641 : vector<2x16xf32>
    %643 = arith.mulf %642, %38 : vector<2x16xf32>
    %644 = arith.addf %643, %40 : vector<2x16xf32>
    %645 = vector.extract_strided_slice %644 {offsets = [0, 0], sizes = [2, 4], strides = [1, 1]} : vector<2x16xf32> to vector<2x4xf32>
    %646 = vector.extract_strided_slice %644 {offsets = [0, 4], sizes = [2, 4], strides = [1, 1]} : vector<2x16xf32> to vector<2x4xf32>
    %647 = vector.extract_strided_slice %644 {offsets = [0, 8], sizes = [2, 4], strides = [1, 1]} : vector<2x16xf32> to vector<2x4xf32>
    %648 = vector.extract_strided_slice %644 {offsets = [0, 12], sizes = [2, 4], strides = [1, 1]} : vector<2x16xf32> to vector<2x4xf32>
    %649 = arith.mulf %646, %622 : vector<2x4xf32>
    %650 = arith.mulf %645, %648 : vector<2x4xf32>
    %651 = arith.addf %649, %650 : vector<2x4xf32>
    %652 = math.tanh %651 : vector<2x4xf32>
    %653 = arith.mulf %647, %652 : vector<2x4xf32>
    %654 = vector.extract_strided_slice %552 {offsets = [6, 0], sizes = [2, 16], strides = [1, 1]} : vector<16x16xf32> to vector<2x16xf32>
    %655 = vector.extract_strided_slice %653 {offsets = [0, 0], sizes = [2, 1], strides = [1, 1]} : vector<2x4xf32> to vector<2x1xf32>
    %656 = vector.broadcast %655 : vector<2x1xf32> to vector<2x16xf32>
    %657 = arith.mulf %656, %555 : vector<2x16xf32>
    %658 = vector.extract_strided_slice %653 {offsets = [0, 1], sizes = [2, 1], strides = [1, 1]} : vector<2x4xf32> to vector<2x1xf32>
    %659 = vector.broadcast %658 : vector<2x1xf32> to vector<2x16xf32>
    %660 = arith.mulf %659, %558 : vector<2x16xf32>
    %661 = vector.extract_strided_slice %653 {offsets = [0, 2], sizes = [2, 1], strides = [1, 1]} : vector<2x4xf32> to vector<2x1xf32>
    %662 = vector.broadcast %661 : vector<2x1xf32> to vector<2x16xf32>
    %663 = arith.mulf %662, %561 : vector<2x16xf32>
    %664 = vector.extract_strided_slice %653 {offsets = [0, 3], sizes = [2, 1], strides = [1, 1]} : vector<2x4xf32> to vector<2x1xf32>
    %665 = vector.broadcast %664 : vector<2x1xf32> to vector<2x16xf32>
    %666 = arith.mulf %665, %564 : vector<2x16xf32>
    %667 = arith.addf %657, %660 : vector<2x16xf32>
    %668 = arith.addf %663, %666 : vector<2x16xf32>
    %669 = arith.addf %667, %668 : vector<2x16xf32>
    %670 = arith.addf %654, %669 : vector<2x16xf32>
    %671 = math.tanh %670 : vector<2x16xf32>
    %672 = arith.mulf %671, %38 : vector<2x16xf32>
    %673 = arith.addf %672, %40 : vector<2x16xf32>
    %674 = vector.extract_strided_slice %673 {offsets = [0, 0], sizes = [2, 4], strides = [1, 1]} : vector<2x16xf32> to vector<2x4xf32>
    %675 = vector.extract_strided_slice %673 {offsets = [0, 4], sizes = [2, 4], strides = [1, 1]} : vector<2x16xf32> to vector<2x4xf32>
    %676 = vector.extract_strided_slice %673 {offsets = [0, 8], sizes = [2, 4], strides = [1, 1]} : vector<2x16xf32> to vector<2x4xf32>
    %677 = vector.extract_strided_slice %673 {offsets = [0, 12], sizes = [2, 4], strides = [1, 1]} : vector<2x16xf32> to vector<2x4xf32>
    %678 = arith.mulf %675, %651 : vector<2x4xf32>
    %679 = arith.mulf %674, %677 : vector<2x4xf32>
    %680 = arith.addf %678, %679 : vector<2x4xf32>
    %681 = math.tanh %680 : vector<2x4xf32>
    %682 = arith.mulf %676, %681 : vector<2x4xf32>
    %683 = vector.extract_strided_slice %552 {offsets = [8, 0], sizes = [2, 16], strides = [1, 1]} : vector<16x16xf32> to vector<2x16xf32>
    %684 = vector.extract_strided_slice %682 {offsets = [0, 0], sizes = [2, 1], strides = [1, 1]} : vector<2x4xf32> to vector<2x1xf32>
    %685 = vector.broadcast %684 : vector<2x1xf32> to vector<2x16xf32>
    %686 = arith.mulf %685, %555 : vector<2x16xf32>
    %687 = vector.extract_strided_slice %682 {offsets = [0, 1], sizes = [2, 1], strides = [1, 1]} : vector<2x4xf32> to vector<2x1xf32>
    %688 = vector.broadcast %687 : vector<2x1xf32> to vector<2x16xf32>
    %689 = arith.mulf %688, %558 : vector<2x16xf32>
    %690 = vector.extract_strided_slice %682 {offsets = [0, 2], sizes = [2, 1], strides = [1, 1]} : vector<2x4xf32> to vector<2x1xf32>
    %691 = vector.broadcast %690 : vector<2x1xf32> to vector<2x16xf32>
    %692 = arith.mulf %691, %561 : vector<2x16xf32>
    %693 = vector.extract_strided_slice %682 {offsets = [0, 3], sizes = [2, 1], strides = [1, 1]} : vector<2x4xf32> to vector<2x1xf32>
    %694 = vector.broadcast %693 : vector<2x1xf32> to vector<2x16xf32>
    %695 = arith.mulf %694, %564 : vector<2x16xf32>
    %696 = arith.addf %686, %689 : vector<2x16xf32>
    %697 = arith.addf %692, %695 : vector<2x16xf32>
    %698 = arith.addf %696, %697 : vector<2x16xf32>
    %699 = arith.addf %683, %698 : vector<2x16xf32>
    %700 = math.tanh %699 : vector<2x16xf32>
    %701 = arith.mulf %700, %38 : vector<2x16xf32>
    %702 = arith.addf %701, %40 : vector<2x16xf32>
    %703 = vector.extract_strided_slice %702 {offsets = [0, 0], sizes = [2, 4], strides = [1, 1]} : vector<2x16xf32> to vector<2x4xf32>
    %704 = vector.extract_strided_slice %702 {offsets = [0, 4], sizes = [2, 4], strides = [1, 1]} : vector<2x16xf32> to vector<2x4xf32>
    %705 = vector.extract_strided_slice %702 {offsets = [0, 8], sizes = [2, 4], strides = [1, 1]} : vector<2x16xf32> to vector<2x4xf32>
    %706 = vector.extract_strided_slice %702 {offsets = [0, 12], sizes = [2, 4], strides = [1, 1]} : vector<2x16xf32> to vector<2x4xf32>
    %707 = arith.mulf %704, %680 : vector<2x4xf32>
    %708 = arith.mulf %703, %706 : vector<2x4xf32>
    %709 = arith.addf %707, %708 : vector<2x4xf32>
    %710 = math.tanh %709 : vector<2x4xf32>
    %711 = arith.mulf %705, %710 : vector<2x4xf32>
    %712 = vector.extract_strided_slice %552 {offsets = [10, 0], sizes = [2, 16], strides = [1, 1]} : vector<16x16xf32> to vector<2x16xf32>
    %713 = vector.extract_strided_slice %711 {offsets = [0, 0], sizes = [2, 1], strides = [1, 1]} : vector<2x4xf32> to vector<2x1xf32>
    %714 = vector.broadcast %713 : vector<2x1xf32> to vector<2x16xf32>
    %715 = arith.mulf %714, %555 : vector<2x16xf32>
    %716 = vector.extract_strided_slice %711 {offsets = [0, 1], sizes = [2, 1], strides = [1, 1]} : vector<2x4xf32> to vector<2x1xf32>
    %717 = vector.broadcast %716 : vector<2x1xf32> to vector<2x16xf32>
    %718 = arith.mulf %717, %558 : vector<2x16xf32>
    %719 = vector.extract_strided_slice %711 {offsets = [0, 2], sizes = [2, 1], strides = [1, 1]} : vector<2x4xf32> to vector<2x1xf32>
    %720 = vector.broadcast %719 : vector<2x1xf32> to vector<2x16xf32>
    %721 = arith.mulf %720, %561 : vector<2x16xf32>
    %722 = vector.extract_strided_slice %711 {offsets = [0, 3], sizes = [2, 1], strides = [1, 1]} : vector<2x4xf32> to vector<2x1xf32>
    %723 = vector.broadcast %722 : vector<2x1xf32> to vector<2x16xf32>
    %724 = arith.mulf %723, %564 : vector<2x16xf32>
    %725 = arith.addf %715, %718 : vector<2x16xf32>
    %726 = arith.addf %721, %724 : vector<2x16xf32>
    %727 = arith.addf %725, %726 : vector<2x16xf32>
    %728 = arith.addf %712, %727 : vector<2x16xf32>
    %729 = math.tanh %728 : vector<2x16xf32>
    %730 = arith.mulf %729, %38 : vector<2x16xf32>
    %731 = arith.addf %730, %40 : vector<2x16xf32>
    %732 = vector.extract_strided_slice %731 {offsets = [0, 0], sizes = [2, 4], strides = [1, 1]} : vector<2x16xf32> to vector<2x4xf32>
    %733 = vector.extract_strided_slice %731 {offsets = [0, 4], sizes = [2, 4], strides = [1, 1]} : vector<2x16xf32> to vector<2x4xf32>
    %734 = vector.extract_strided_slice %731 {offsets = [0, 8], sizes = [2, 4], strides = [1, 1]} : vector<2x16xf32> to vector<2x4xf32>
    %735 = vector.extract_strided_slice %731 {offsets = [0, 12], sizes = [2, 4], strides = [1, 1]} : vector<2x16xf32> to vector<2x4xf32>
    %736 = arith.mulf %733, %709 : vector<2x4xf32>
    %737 = arith.mulf %732, %735 : vector<2x4xf32>
    %738 = arith.addf %736, %737 : vector<2x4xf32>
    %739 = math.tanh %738 : vector<2x4xf32>
    %740 = arith.mulf %734, %739 : vector<2x4xf32>
    %741 = vector.extract_strided_slice %552 {offsets = [12, 0], sizes = [2, 16], strides = [1, 1]} : vector<16x16xf32> to vector<2x16xf32>
    %742 = vector.extract_strided_slice %740 {offsets = [0, 0], sizes = [2, 1], strides = [1, 1]} : vector<2x4xf32> to vector<2x1xf32>
    %743 = vector.broadcast %742 : vector<2x1xf32> to vector<2x16xf32>
    %744 = arith.mulf %743, %555 : vector<2x16xf32>
    %745 = vector.extract_strided_slice %740 {offsets = [0, 1], sizes = [2, 1], strides = [1, 1]} : vector<2x4xf32> to vector<2x1xf32>
    %746 = vector.broadcast %745 : vector<2x1xf32> to vector<2x16xf32>
    %747 = arith.mulf %746, %558 : vector<2x16xf32>
    %748 = vector.extract_strided_slice %740 {offsets = [0, 2], sizes = [2, 1], strides = [1, 1]} : vector<2x4xf32> to vector<2x1xf32>
    %749 = vector.broadcast %748 : vector<2x1xf32> to vector<2x16xf32>
    %750 = arith.mulf %749, %561 : vector<2x16xf32>
    %751 = vector.extract_strided_slice %740 {offsets = [0, 3], sizes = [2, 1], strides = [1, 1]} : vector<2x4xf32> to vector<2x1xf32>
    %752 = vector.broadcast %751 : vector<2x1xf32> to vector<2x16xf32>
    %753 = arith.mulf %752, %564 : vector<2x16xf32>
    %754 = arith.addf %744, %747 : vector<2x16xf32>
    %755 = arith.addf %750, %753 : vector<2x16xf32>
    %756 = arith.addf %754, %755 : vector<2x16xf32>
    %757 = arith.addf %741, %756 : vector<2x16xf32>
    %758 = math.tanh %757 : vector<2x16xf32>
    %759 = arith.mulf %758, %38 : vector<2x16xf32>
    %760 = arith.addf %759, %40 : vector<2x16xf32>
    %761 = vector.extract_strided_slice %760 {offsets = [0, 0], sizes = [2, 4], strides = [1, 1]} : vector<2x16xf32> to vector<2x4xf32>
    %762 = vector.extract_strided_slice %760 {offsets = [0, 4], sizes = [2, 4], strides = [1, 1]} : vector<2x16xf32> to vector<2x4xf32>
    %763 = vector.extract_strided_slice %760 {offsets = [0, 8], sizes = [2, 4], strides = [1, 1]} : vector<2x16xf32> to vector<2x4xf32>
    %764 = vector.extract_strided_slice %760 {offsets = [0, 12], sizes = [2, 4], strides = [1, 1]} : vector<2x16xf32> to vector<2x4xf32>
    %765 = arith.mulf %762, %738 : vector<2x4xf32>
    %766 = arith.mulf %761, %764 : vector<2x4xf32>
    %767 = arith.addf %765, %766 : vector<2x4xf32>
    %768 = math.tanh %767 : vector<2x4xf32>
    %769 = arith.mulf %763, %768 : vector<2x4xf32>
    %770 = vector.extract_strided_slice %552 {offsets = [14, 0], sizes = [2, 16], strides = [1, 1]} : vector<16x16xf32> to vector<2x16xf32>
    %771 = vector.extract_strided_slice %769 {offsets = [0, 0], sizes = [2, 1], strides = [1, 1]} : vector<2x4xf32> to vector<2x1xf32>
    %772 = vector.broadcast %771 : vector<2x1xf32> to vector<2x16xf32>
    %773 = arith.mulf %772, %555 : vector<2x16xf32>
    %774 = vector.extract_strided_slice %769 {offsets = [0, 1], sizes = [2, 1], strides = [1, 1]} : vector<2x4xf32> to vector<2x1xf32>
    %775 = vector.broadcast %774 : vector<2x1xf32> to vector<2x16xf32>
    %776 = arith.mulf %775, %558 : vector<2x16xf32>
    %777 = vector.extract_strided_slice %769 {offsets = [0, 2], sizes = [2, 1], strides = [1, 1]} : vector<2x4xf32> to vector<2x1xf32>
    %778 = vector.broadcast %777 : vector<2x1xf32> to vector<2x16xf32>
    %779 = arith.mulf %778, %561 : vector<2x16xf32>
    %780 = vector.extract_strided_slice %769 {offsets = [0, 3], sizes = [2, 1], strides = [1, 1]} : vector<2x4xf32> to vector<2x1xf32>
    %781 = vector.broadcast %780 : vector<2x1xf32> to vector<2x16xf32>
    %782 = arith.mulf %781, %564 : vector<2x16xf32>
    %783 = arith.addf %773, %776 : vector<2x16xf32>
    %784 = arith.addf %779, %782 : vector<2x16xf32>
    %785 = arith.addf %783, %784 : vector<2x16xf32>
    %786 = arith.addf %770, %785 : vector<2x16xf32>
    %787 = math.tanh %786 : vector<2x16xf32>
    %788 = arith.mulf %787, %38 : vector<2x16xf32>
    %789 = arith.addf %788, %40 : vector<2x16xf32>
    %790 = vector.extract_strided_slice %789 {offsets = [0, 0], sizes = [2, 4], strides = [1, 1]} : vector<2x16xf32> to vector<2x4xf32>
    %791 = vector.extract_strided_slice %789 {offsets = [0, 4], sizes = [2, 4], strides = [1, 1]} : vector<2x16xf32> to vector<2x4xf32>
    %792 = vector.extract_strided_slice %789 {offsets = [0, 8], sizes = [2, 4], strides = [1, 1]} : vector<2x16xf32> to vector<2x4xf32>
    %793 = vector.extract_strided_slice %789 {offsets = [0, 12], sizes = [2, 4], strides = [1, 1]} : vector<2x16xf32> to vector<2x4xf32>
    %794 = arith.mulf %791, %767 : vector<2x4xf32>
    %795 = arith.mulf %790, %793 : vector<2x4xf32>
    %796 = arith.addf %794, %795 : vector<2x4xf32>
    %797 = math.tanh %796 : vector<2x4xf32>
    %798 = arith.mulf %792, %797 : vector<2x4xf32>
    %799 = tpu.concatenate %595, %624, %653, %682, %711, %740, %769, %798 in 0 : vector<2x4xf32>, vector<2x4xf32>, vector<2x4xf32>, vector<2x4xf32>, vector<2x4xf32>, vector<2x4xf32>, vector<2x4xf32>, vector<2x4xf32> -> vector<16x4xf32>
    %c40 = arith.constant 40 : index
    %c0_35 = arith.constant 0 : index
    %800 = vector.load %arg1[%c40, %c0_35] : memref<80x128xf32, #tpu.memory_space<vmem>>, vector<4x16xf32>
    %c56 = arith.constant 56 : index
    %c0_36 = arith.constant 0 : index
    %801 = vector.load %arg1[%c56, %c0_36] : memref<80x128xf32, #tpu.memory_space<vmem>>, vector<4x16xf32>
    %c63 = arith.constant 63 : index
    %c0_37 = arith.constant 0 : index
    %802 = vector.load %arg1[%c63, %c0_37] : memref<80x128xf32, #tpu.memory_space<vmem>>, vector<1x16xf32>
    %cst_38 = arith.constant dense<0.000000e+00> : vector<16x16xf32>
    %803 = tpu.matmul %799, %800, %cst_38 {dimension_numbers = #tpu.dot_dimension_numbers<[1], [0], [0], [1], [0, 0, 1, 1], [], []>} : vector<16x4xf32>, vector<4x16xf32>, vector<16x16xf32> -> vector<16x16xf32>
    %804 = vector.broadcast %802 : vector<1x16xf32> to vector<16x16xf32>
    %805 = arith.addf %803, %804 : vector<16x16xf32>
    %806 = vector.extract_strided_slice %801 {offsets = [0, 0], sizes = [1, 16], strides = [1, 1]} : vector<4x16xf32> to vector<1x16xf32>
    %807 = vector.shape_cast %806 : vector<1x16xf32> to vector<1x16xf32>
    %808 = vector.broadcast %807 : vector<1x16xf32> to vector<2x16xf32>
    %809 = vector.extract_strided_slice %801 {offsets = [1, 0], sizes = [1, 16], strides = [1, 1]} : vector<4x16xf32> to vector<1x16xf32>
    %810 = vector.shape_cast %809 : vector<1x16xf32> to vector<1x16xf32>
    %811 = vector.broadcast %810 : vector<1x16xf32> to vector<2x16xf32>
    %812 = vector.extract_strided_slice %801 {offsets = [2, 0], sizes = [1, 16], strides = [1, 1]} : vector<4x16xf32> to vector<1x16xf32>
    %813 = vector.shape_cast %812 : vector<1x16xf32> to vector<1x16xf32>
    %814 = vector.broadcast %813 : vector<1x16xf32> to vector<2x16xf32>
    %815 = vector.extract_strided_slice %801 {offsets = [3, 0], sizes = [1, 16], strides = [1, 1]} : vector<4x16xf32> to vector<1x16xf32>
    %816 = vector.shape_cast %815 : vector<1x16xf32> to vector<1x16xf32>
    %817 = vector.broadcast %816 : vector<1x16xf32> to vector<2x16xf32>
    %cst_39 = arith.constant 0.000000e+00 : f32
    %818 = vector.broadcast %cst_39 : f32 to vector<2x4xf32>
    %cst_40 = arith.constant 0.000000e+00 : f32
    %819 = vector.broadcast %cst_40 : f32 to vector<2x4xf32>
    %820 = vector.extract_strided_slice %805 {offsets = [0, 0], sizes = [2, 16], strides = [1, 1]} : vector<16x16xf32> to vector<2x16xf32>
    %821 = vector.extract_strided_slice %818 {offsets = [0, 0], sizes = [2, 1], strides = [1, 1]} : vector<2x4xf32> to vector<2x1xf32>
    %822 = vector.broadcast %821 : vector<2x1xf32> to vector<2x16xf32>
    %823 = arith.mulf %822, %808 : vector<2x16xf32>
    %824 = vector.extract_strided_slice %818 {offsets = [0, 1], sizes = [2, 1], strides = [1, 1]} : vector<2x4xf32> to vector<2x1xf32>
    %825 = vector.broadcast %824 : vector<2x1xf32> to vector<2x16xf32>
    %826 = arith.mulf %825, %811 : vector<2x16xf32>
    %827 = vector.extract_strided_slice %818 {offsets = [0, 2], sizes = [2, 1], strides = [1, 1]} : vector<2x4xf32> to vector<2x1xf32>
    %828 = vector.broadcast %827 : vector<2x1xf32> to vector<2x16xf32>
    %829 = arith.mulf %828, %814 : vector<2x16xf32>
    %830 = vector.extract_strided_slice %818 {offsets = [0, 3], sizes = [2, 1], strides = [1, 1]} : vector<2x4xf32> to vector<2x1xf32>
    %831 = vector.broadcast %830 : vector<2x1xf32> to vector<2x16xf32>
    %832 = arith.mulf %831, %817 : vector<2x16xf32>
    %833 = arith.addf %823, %826 : vector<2x16xf32>
    %834 = arith.addf %829, %832 : vector<2x16xf32>
    %835 = arith.addf %833, %834 : vector<2x16xf32>
    %836 = arith.addf %820, %835 : vector<2x16xf32>
    %837 = math.tanh %836 : vector<2x16xf32>
    %838 = arith.mulf %837, %38 : vector<2x16xf32>
    %839 = arith.addf %838, %40 : vector<2x16xf32>
    %840 = vector.extract_strided_slice %839 {offsets = [0, 0], sizes = [2, 4], strides = [1, 1]} : vector<2x16xf32> to vector<2x4xf32>
    %841 = vector.extract_strided_slice %839 {offsets = [0, 4], sizes = [2, 4], strides = [1, 1]} : vector<2x16xf32> to vector<2x4xf32>
    %842 = vector.extract_strided_slice %839 {offsets = [0, 8], sizes = [2, 4], strides = [1, 1]} : vector<2x16xf32> to vector<2x4xf32>
    %843 = vector.extract_strided_slice %839 {offsets = [0, 12], sizes = [2, 4], strides = [1, 1]} : vector<2x16xf32> to vector<2x4xf32>
    %844 = arith.mulf %841, %819 : vector<2x4xf32>
    %845 = arith.mulf %840, %843 : vector<2x4xf32>
    %846 = arith.addf %844, %845 : vector<2x4xf32>
    %847 = math.tanh %846 : vector<2x4xf32>
    %848 = arith.mulf %842, %847 : vector<2x4xf32>
    %849 = vector.extract_strided_slice %805 {offsets = [2, 0], sizes = [2, 16], strides = [1, 1]} : vector<16x16xf32> to vector<2x16xf32>
    %850 = vector.extract_strided_slice %848 {offsets = [0, 0], sizes = [2, 1], strides = [1, 1]} : vector<2x4xf32> to vector<2x1xf32>
    %851 = vector.broadcast %850 : vector<2x1xf32> to vector<2x16xf32>
    %852 = arith.mulf %851, %808 : vector<2x16xf32>
    %853 = vector.extract_strided_slice %848 {offsets = [0, 1], sizes = [2, 1], strides = [1, 1]} : vector<2x4xf32> to vector<2x1xf32>
    %854 = vector.broadcast %853 : vector<2x1xf32> to vector<2x16xf32>
    %855 = arith.mulf %854, %811 : vector<2x16xf32>
    %856 = vector.extract_strided_slice %848 {offsets = [0, 2], sizes = [2, 1], strides = [1, 1]} : vector<2x4xf32> to vector<2x1xf32>
    %857 = vector.broadcast %856 : vector<2x1xf32> to vector<2x16xf32>
    %858 = arith.mulf %857, %814 : vector<2x16xf32>
    %859 = vector.extract_strided_slice %848 {offsets = [0, 3], sizes = [2, 1], strides = [1, 1]} : vector<2x4xf32> to vector<2x1xf32>
    %860 = vector.broadcast %859 : vector<2x1xf32> to vector<2x16xf32>
    %861 = arith.mulf %860, %817 : vector<2x16xf32>
    %862 = arith.addf %852, %855 : vector<2x16xf32>
    %863 = arith.addf %858, %861 : vector<2x16xf32>
    %864 = arith.addf %862, %863 : vector<2x16xf32>
    %865 = arith.addf %849, %864 : vector<2x16xf32>
    %866 = math.tanh %865 : vector<2x16xf32>
    %867 = arith.mulf %866, %38 : vector<2x16xf32>
    %868 = arith.addf %867, %40 : vector<2x16xf32>
    %869 = vector.extract_strided_slice %868 {offsets = [0, 0], sizes = [2, 4], strides = [1, 1]} : vector<2x16xf32> to vector<2x4xf32>
    %870 = vector.extract_strided_slice %868 {offsets = [0, 4], sizes = [2, 4], strides = [1, 1]} : vector<2x16xf32> to vector<2x4xf32>
    %871 = vector.extract_strided_slice %868 {offsets = [0, 8], sizes = [2, 4], strides = [1, 1]} : vector<2x16xf32> to vector<2x4xf32>
    %872 = vector.extract_strided_slice %868 {offsets = [0, 12], sizes = [2, 4], strides = [1, 1]} : vector<2x16xf32> to vector<2x4xf32>
    %873 = arith.mulf %870, %846 : vector<2x4xf32>
    %874 = arith.mulf %869, %872 : vector<2x4xf32>
    %875 = arith.addf %873, %874 : vector<2x4xf32>
    %876 = math.tanh %875 : vector<2x4xf32>
    %877 = arith.mulf %871, %876 : vector<2x4xf32>
    %878 = vector.extract_strided_slice %805 {offsets = [4, 0], sizes = [2, 16], strides = [1, 1]} : vector<16x16xf32> to vector<2x16xf32>
    %879 = vector.extract_strided_slice %877 {offsets = [0, 0], sizes = [2, 1], strides = [1, 1]} : vector<2x4xf32> to vector<2x1xf32>
    %880 = vector.broadcast %879 : vector<2x1xf32> to vector<2x16xf32>
    %881 = arith.mulf %880, %808 : vector<2x16xf32>
    %882 = vector.extract_strided_slice %877 {offsets = [0, 1], sizes = [2, 1], strides = [1, 1]} : vector<2x4xf32> to vector<2x1xf32>
    %883 = vector.broadcast %882 : vector<2x1xf32> to vector<2x16xf32>
    %884 = arith.mulf %883, %811 : vector<2x16xf32>
    %885 = vector.extract_strided_slice %877 {offsets = [0, 2], sizes = [2, 1], strides = [1, 1]} : vector<2x4xf32> to vector<2x1xf32>
    %886 = vector.broadcast %885 : vector<2x1xf32> to vector<2x16xf32>
    %887 = arith.mulf %886, %814 : vector<2x16xf32>
    %888 = vector.extract_strided_slice %877 {offsets = [0, 3], sizes = [2, 1], strides = [1, 1]} : vector<2x4xf32> to vector<2x1xf32>
    %889 = vector.broadcast %888 : vector<2x1xf32> to vector<2x16xf32>
    %890 = arith.mulf %889, %817 : vector<2x16xf32>
    %891 = arith.addf %881, %884 : vector<2x16xf32>
    %892 = arith.addf %887, %890 : vector<2x16xf32>
    %893 = arith.addf %891, %892 : vector<2x16xf32>
    %894 = arith.addf %878, %893 : vector<2x16xf32>
    %895 = math.tanh %894 : vector<2x16xf32>
    %896 = arith.mulf %895, %38 : vector<2x16xf32>
    %897 = arith.addf %896, %40 : vector<2x16xf32>
    %898 = vector.extract_strided_slice %897 {offsets = [0, 0], sizes = [2, 4], strides = [1, 1]} : vector<2x16xf32> to vector<2x4xf32>
    %899 = vector.extract_strided_slice %897 {offsets = [0, 4], sizes = [2, 4], strides = [1, 1]} : vector<2x16xf32> to vector<2x4xf32>
    %900 = vector.extract_strided_slice %897 {offsets = [0, 8], sizes = [2, 4], strides = [1, 1]} : vector<2x16xf32> to vector<2x4xf32>
    %901 = vector.extract_strided_slice %897 {offsets = [0, 12], sizes = [2, 4], strides = [1, 1]} : vector<2x16xf32> to vector<2x4xf32>
    %902 = arith.mulf %899, %875 : vector<2x4xf32>
    %903 = arith.mulf %898, %901 : vector<2x4xf32>
    %904 = arith.addf %902, %903 : vector<2x4xf32>
    %905 = math.tanh %904 : vector<2x4xf32>
    %906 = arith.mulf %900, %905 : vector<2x4xf32>
    %907 = vector.extract_strided_slice %805 {offsets = [6, 0], sizes = [2, 16], strides = [1, 1]} : vector<16x16xf32> to vector<2x16xf32>
    %908 = vector.extract_strided_slice %906 {offsets = [0, 0], sizes = [2, 1], strides = [1, 1]} : vector<2x4xf32> to vector<2x1xf32>
    %909 = vector.broadcast %908 : vector<2x1xf32> to vector<2x16xf32>
    %910 = arith.mulf %909, %808 : vector<2x16xf32>
    %911 = vector.extract_strided_slice %906 {offsets = [0, 1], sizes = [2, 1], strides = [1, 1]} : vector<2x4xf32> to vector<2x1xf32>
    %912 = vector.broadcast %911 : vector<2x1xf32> to vector<2x16xf32>
    %913 = arith.mulf %912, %811 : vector<2x16xf32>
    %914 = vector.extract_strided_slice %906 {offsets = [0, 2], sizes = [2, 1], strides = [1, 1]} : vector<2x4xf32> to vector<2x1xf32>
    %915 = vector.broadcast %914 : vector<2x1xf32> to vector<2x16xf32>
    %916 = arith.mulf %915, %814 : vector<2x16xf32>
    %917 = vector.extract_strided_slice %906 {offsets = [0, 3], sizes = [2, 1], strides = [1, 1]} : vector<2x4xf32> to vector<2x1xf32>
    %918 = vector.broadcast %917 : vector<2x1xf32> to vector<2x16xf32>
    %919 = arith.mulf %918, %817 : vector<2x16xf32>
    %920 = arith.addf %910, %913 : vector<2x16xf32>
    %921 = arith.addf %916, %919 : vector<2x16xf32>
    %922 = arith.addf %920, %921 : vector<2x16xf32>
    %923 = arith.addf %907, %922 : vector<2x16xf32>
    %924 = math.tanh %923 : vector<2x16xf32>
    %925 = arith.mulf %924, %38 : vector<2x16xf32>
    %926 = arith.addf %925, %40 : vector<2x16xf32>
    %927 = vector.extract_strided_slice %926 {offsets = [0, 0], sizes = [2, 4], strides = [1, 1]} : vector<2x16xf32> to vector<2x4xf32>
    %928 = vector.extract_strided_slice %926 {offsets = [0, 4], sizes = [2, 4], strides = [1, 1]} : vector<2x16xf32> to vector<2x4xf32>
    %929 = vector.extract_strided_slice %926 {offsets = [0, 8], sizes = [2, 4], strides = [1, 1]} : vector<2x16xf32> to vector<2x4xf32>
    %930 = vector.extract_strided_slice %926 {offsets = [0, 12], sizes = [2, 4], strides = [1, 1]} : vector<2x16xf32> to vector<2x4xf32>
    %931 = arith.mulf %928, %904 : vector<2x4xf32>
    %932 = arith.mulf %927, %930 : vector<2x4xf32>
    %933 = arith.addf %931, %932 : vector<2x4xf32>
    %934 = math.tanh %933 : vector<2x4xf32>
    %935 = arith.mulf %929, %934 : vector<2x4xf32>
    %936 = vector.extract_strided_slice %805 {offsets = [8, 0], sizes = [2, 16], strides = [1, 1]} : vector<16x16xf32> to vector<2x16xf32>
    %937 = vector.extract_strided_slice %935 {offsets = [0, 0], sizes = [2, 1], strides = [1, 1]} : vector<2x4xf32> to vector<2x1xf32>
    %938 = vector.broadcast %937 : vector<2x1xf32> to vector<2x16xf32>
    %939 = arith.mulf %938, %808 : vector<2x16xf32>
    %940 = vector.extract_strided_slice %935 {offsets = [0, 1], sizes = [2, 1], strides = [1, 1]} : vector<2x4xf32> to vector<2x1xf32>
    %941 = vector.broadcast %940 : vector<2x1xf32> to vector<2x16xf32>
    %942 = arith.mulf %941, %811 : vector<2x16xf32>
    %943 = vector.extract_strided_slice %935 {offsets = [0, 2], sizes = [2, 1], strides = [1, 1]} : vector<2x4xf32> to vector<2x1xf32>
    %944 = vector.broadcast %943 : vector<2x1xf32> to vector<2x16xf32>
    %945 = arith.mulf %944, %814 : vector<2x16xf32>
    %946 = vector.extract_strided_slice %935 {offsets = [0, 3], sizes = [2, 1], strides = [1, 1]} : vector<2x4xf32> to vector<2x1xf32>
    %947 = vector.broadcast %946 : vector<2x1xf32> to vector<2x16xf32>
    %948 = arith.mulf %947, %817 : vector<2x16xf32>
    %949 = arith.addf %939, %942 : vector<2x16xf32>
    %950 = arith.addf %945, %948 : vector<2x16xf32>
    %951 = arith.addf %949, %950 : vector<2x16xf32>
    %952 = arith.addf %936, %951 : vector<2x16xf32>
    %953 = math.tanh %952 : vector<2x16xf32>
    %954 = arith.mulf %953, %38 : vector<2x16xf32>
    %955 = arith.addf %954, %40 : vector<2x16xf32>
    %956 = vector.extract_strided_slice %955 {offsets = [0, 0], sizes = [2, 4], strides = [1, 1]} : vector<2x16xf32> to vector<2x4xf32>
    %957 = vector.extract_strided_slice %955 {offsets = [0, 4], sizes = [2, 4], strides = [1, 1]} : vector<2x16xf32> to vector<2x4xf32>
    %958 = vector.extract_strided_slice %955 {offsets = [0, 8], sizes = [2, 4], strides = [1, 1]} : vector<2x16xf32> to vector<2x4xf32>
    %959 = vector.extract_strided_slice %955 {offsets = [0, 12], sizes = [2, 4], strides = [1, 1]} : vector<2x16xf32> to vector<2x4xf32>
    %960 = arith.mulf %957, %933 : vector<2x4xf32>
    %961 = arith.mulf %956, %959 : vector<2x4xf32>
    %962 = arith.addf %960, %961 : vector<2x4xf32>
    %963 = math.tanh %962 : vector<2x4xf32>
    %964 = arith.mulf %958, %963 : vector<2x4xf32>
    %965 = vector.extract_strided_slice %805 {offsets = [10, 0], sizes = [2, 16], strides = [1, 1]} : vector<16x16xf32> to vector<2x16xf32>
    %966 = vector.extract_strided_slice %964 {offsets = [0, 0], sizes = [2, 1], strides = [1, 1]} : vector<2x4xf32> to vector<2x1xf32>
    %967 = vector.broadcast %966 : vector<2x1xf32> to vector<2x16xf32>
    %968 = arith.mulf %967, %808 : vector<2x16xf32>
    %969 = vector.extract_strided_slice %964 {offsets = [0, 1], sizes = [2, 1], strides = [1, 1]} : vector<2x4xf32> to vector<2x1xf32>
    %970 = vector.broadcast %969 : vector<2x1xf32> to vector<2x16xf32>
    %971 = arith.mulf %970, %811 : vector<2x16xf32>
    %972 = vector.extract_strided_slice %964 {offsets = [0, 2], sizes = [2, 1], strides = [1, 1]} : vector<2x4xf32> to vector<2x1xf32>
    %973 = vector.broadcast %972 : vector<2x1xf32> to vector<2x16xf32>
    %974 = arith.mulf %973, %814 : vector<2x16xf32>
    %975 = vector.extract_strided_slice %964 {offsets = [0, 3], sizes = [2, 1], strides = [1, 1]} : vector<2x4xf32> to vector<2x1xf32>
    %976 = vector.broadcast %975 : vector<2x1xf32> to vector<2x16xf32>
    %977 = arith.mulf %976, %817 : vector<2x16xf32>
    %978 = arith.addf %968, %971 : vector<2x16xf32>
    %979 = arith.addf %974, %977 : vector<2x16xf32>
    %980 = arith.addf %978, %979 : vector<2x16xf32>
    %981 = arith.addf %965, %980 : vector<2x16xf32>
    %982 = math.tanh %981 : vector<2x16xf32>
    %983 = arith.mulf %982, %38 : vector<2x16xf32>
    %984 = arith.addf %983, %40 : vector<2x16xf32>
    %985 = vector.extract_strided_slice %984 {offsets = [0, 0], sizes = [2, 4], strides = [1, 1]} : vector<2x16xf32> to vector<2x4xf32>
    %986 = vector.extract_strided_slice %984 {offsets = [0, 4], sizes = [2, 4], strides = [1, 1]} : vector<2x16xf32> to vector<2x4xf32>
    %987 = vector.extract_strided_slice %984 {offsets = [0, 8], sizes = [2, 4], strides = [1, 1]} : vector<2x16xf32> to vector<2x4xf32>
    %988 = vector.extract_strided_slice %984 {offsets = [0, 12], sizes = [2, 4], strides = [1, 1]} : vector<2x16xf32> to vector<2x4xf32>
    %989 = arith.mulf %986, %962 : vector<2x4xf32>
    %990 = arith.mulf %985, %988 : vector<2x4xf32>
    %991 = arith.addf %989, %990 : vector<2x4xf32>
    %992 = math.tanh %991 : vector<2x4xf32>
    %993 = arith.mulf %987, %992 : vector<2x4xf32>
    %994 = vector.extract_strided_slice %805 {offsets = [12, 0], sizes = [2, 16], strides = [1, 1]} : vector<16x16xf32> to vector<2x16xf32>
    %995 = vector.extract_strided_slice %993 {offsets = [0, 0], sizes = [2, 1], strides = [1, 1]} : vector<2x4xf32> to vector<2x1xf32>
    %996 = vector.broadcast %995 : vector<2x1xf32> to vector<2x16xf32>
    %997 = arith.mulf %996, %808 : vector<2x16xf32>
    %998 = vector.extract_strided_slice %993 {offsets = [0, 1], sizes = [2, 1], strides = [1, 1]} : vector<2x4xf32> to vector<2x1xf32>
    %999 = vector.broadcast %998 : vector<2x1xf32> to vector<2x16xf32>
    %1000 = arith.mulf %999, %811 : vector<2x16xf32>
    %1001 = vector.extract_strided_slice %993 {offsets = [0, 2], sizes = [2, 1], strides = [1, 1]} : vector<2x4xf32> to vector<2x1xf32>
    %1002 = vector.broadcast %1001 : vector<2x1xf32> to vector<2x16xf32>
    %1003 = arith.mulf %1002, %814 : vector<2x16xf32>
    %1004 = vector.extract_strided_slice %993 {offsets = [0, 3], sizes = [2, 1], strides = [1, 1]} : vector<2x4xf32> to vector<2x1xf32>
    %1005 = vector.broadcast %1004 : vector<2x1xf32> to vector<2x16xf32>
    %1006 = arith.mulf %1005, %817 : vector<2x16xf32>
    %1007 = arith.addf %997, %1000 : vector<2x16xf32>
    %1008 = arith.addf %1003, %1006 : vector<2x16xf32>
    %1009 = arith.addf %1007, %1008 : vector<2x16xf32>
    %1010 = arith.addf %994, %1009 : vector<2x16xf32>
    %1011 = math.tanh %1010 : vector<2x16xf32>
    %1012 = arith.mulf %1011, %38 : vector<2x16xf32>
    %1013 = arith.addf %1012, %40 : vector<2x16xf32>
    %1014 = vector.extract_strided_slice %1013 {offsets = [0, 0], sizes = [2, 4], strides = [1, 1]} : vector<2x16xf32> to vector<2x4xf32>
    %1015 = vector.extract_strided_slice %1013 {offsets = [0, 4], sizes = [2, 4], strides = [1, 1]} : vector<2x16xf32> to vector<2x4xf32>
    %1016 = vector.extract_strided_slice %1013 {offsets = [0, 8], sizes = [2, 4], strides = [1, 1]} : vector<2x16xf32> to vector<2x4xf32>
    %1017 = vector.extract_strided_slice %1013 {offsets = [0, 12], sizes = [2, 4], strides = [1, 1]} : vector<2x16xf32> to vector<2x4xf32>
    %1018 = arith.mulf %1015, %991 : vector<2x4xf32>
    %1019 = arith.mulf %1014, %1017 : vector<2x4xf32>
    %1020 = arith.addf %1018, %1019 : vector<2x4xf32>
    %1021 = math.tanh %1020 : vector<2x4xf32>
    %1022 = arith.mulf %1016, %1021 : vector<2x4xf32>
    %1023 = vector.extract_strided_slice %805 {offsets = [14, 0], sizes = [2, 16], strides = [1, 1]} : vector<16x16xf32> to vector<2x16xf32>
    %1024 = vector.extract_strided_slice %1022 {offsets = [0, 0], sizes = [2, 1], strides = [1, 1]} : vector<2x4xf32> to vector<2x1xf32>
    %1025 = vector.broadcast %1024 : vector<2x1xf32> to vector<2x16xf32>
    %1026 = arith.mulf %1025, %808 : vector<2x16xf32>
    %1027 = vector.extract_strided_slice %1022 {offsets = [0, 1], sizes = [2, 1], strides = [1, 1]} : vector<2x4xf32> to vector<2x1xf32>
    %1028 = vector.broadcast %1027 : vector<2x1xf32> to vector<2x16xf32>
    %1029 = arith.mulf %1028, %811 : vector<2x16xf32>
    %1030 = vector.extract_strided_slice %1022 {offsets = [0, 2], sizes = [2, 1], strides = [1, 1]} : vector<2x4xf32> to vector<2x1xf32>
    %1031 = vector.broadcast %1030 : vector<2x1xf32> to vector<2x16xf32>
    %1032 = arith.mulf %1031, %814 : vector<2x16xf32>
    %1033 = vector.extract_strided_slice %1022 {offsets = [0, 3], sizes = [2, 1], strides = [1, 1]} : vector<2x4xf32> to vector<2x1xf32>
    %1034 = vector.broadcast %1033 : vector<2x1xf32> to vector<2x16xf32>
    %1035 = arith.mulf %1034, %817 : vector<2x16xf32>
    %1036 = arith.addf %1026, %1029 : vector<2x16xf32>
    %1037 = arith.addf %1032, %1035 : vector<2x16xf32>
    %1038 = arith.addf %1036, %1037 : vector<2x16xf32>
    %1039 = arith.addf %1023, %1038 : vector<2x16xf32>
    %1040 = math.tanh %1039 : vector<2x16xf32>
    %1041 = arith.mulf %1040, %38 : vector<2x16xf32>
    %1042 = arith.addf %1041, %40 : vector<2x16xf32>
    %1043 = vector.extract_strided_slice %1042 {offsets = [0, 0], sizes = [2, 4], strides = [1, 1]} : vector<2x16xf32> to vector<2x4xf32>
    %1044 = vector.extract_strided_slice %1042 {offsets = [0, 4], sizes = [2, 4], strides = [1, 1]} : vector<2x16xf32> to vector<2x4xf32>
    %1045 = vector.extract_strided_slice %1042 {offsets = [0, 8], sizes = [2, 4], strides = [1, 1]} : vector<2x16xf32> to vector<2x4xf32>
    %1046 = vector.extract_strided_slice %1042 {offsets = [0, 12], sizes = [2, 4], strides = [1, 1]} : vector<2x16xf32> to vector<2x4xf32>
    %1047 = arith.mulf %1044, %1020 : vector<2x4xf32>
    %1048 = arith.mulf %1043, %1046 : vector<2x4xf32>
    %1049 = arith.addf %1047, %1048 : vector<2x4xf32>
    %1050 = math.tanh %1049 : vector<2x4xf32>
    %1051 = arith.mulf %1045, %1050 : vector<2x4xf32>
    %1052 = tpu.concatenate %848, %877, %906, %935, %964, %993, %1022, %1051 in 0 : vector<2x4xf32>, vector<2x4xf32>, vector<2x4xf32>, vector<2x4xf32>, vector<2x4xf32>, vector<2x4xf32>, vector<2x4xf32>, vector<2x4xf32> -> vector<16x4xf32>
    %c28_41 = arith.constant 28 : index
    %c0_42 = arith.constant 0 : index
    %1053 = vector.load %arg1[%c28_41, %c0_42] : memref<80x128xf32, #tpu.memory_space<vmem>>, vector<4x16xf32>
    %c44_43 = arith.constant 44 : index
    %c0_44 = arith.constant 0 : index
    %1054 = vector.load %arg1[%c44_43, %c0_44] : memref<80x128xf32, #tpu.memory_space<vmem>>, vector<4x16xf32>
    %c60_45 = arith.constant 60 : index
    %c0_46 = arith.constant 0 : index
    %1055 = vector.load %arg1[%c60_45, %c0_46] : memref<80x128xf32, #tpu.memory_space<vmem>>, vector<1x16xf32>
    %cst_47 = arith.constant dense<0.000000e+00> : vector<16x16xf32>
    %1056 = tpu.matmul %1052, %1053, %cst_47 {dimension_numbers = #tpu.dot_dimension_numbers<[1], [0], [0], [1], [0, 0, 1, 1], [], []>} : vector<16x4xf32>, vector<4x16xf32>, vector<16x16xf32> -> vector<16x16xf32>
    %1057 = vector.broadcast %1055 : vector<1x16xf32> to vector<16x16xf32>
    %1058 = arith.addf %1056, %1057 : vector<16x16xf32>
    %1059 = vector.extract_strided_slice %1054 {offsets = [0, 0], sizes = [1, 16], strides = [1, 1]} : vector<4x16xf32> to vector<1x16xf32>
    %1060 = vector.shape_cast %1059 : vector<1x16xf32> to vector<1x16xf32>
    %1061 = vector.broadcast %1060 : vector<1x16xf32> to vector<2x16xf32>
    %1062 = vector.extract_strided_slice %1054 {offsets = [1, 0], sizes = [1, 16], strides = [1, 1]} : vector<4x16xf32> to vector<1x16xf32>
    %1063 = vector.shape_cast %1062 : vector<1x16xf32> to vector<1x16xf32>
    %1064 = vector.broadcast %1063 : vector<1x16xf32> to vector<2x16xf32>
    %1065 = vector.extract_strided_slice %1054 {offsets = [2, 0], sizes = [1, 16], strides = [1, 1]} : vector<4x16xf32> to vector<1x16xf32>
    %1066 = vector.shape_cast %1065 : vector<1x16xf32> to vector<1x16xf32>
    %1067 = vector.broadcast %1066 : vector<1x16xf32> to vector<2x16xf32>
    %1068 = vector.extract_strided_slice %1054 {offsets = [3, 0], sizes = [1, 16], strides = [1, 1]} : vector<4x16xf32> to vector<1x16xf32>
    %1069 = vector.shape_cast %1068 : vector<1x16xf32> to vector<1x16xf32>
    %1070 = vector.broadcast %1069 : vector<1x16xf32> to vector<2x16xf32>
    %cst_48 = arith.constant 0.000000e+00 : f32
    %1071 = vector.broadcast %cst_48 : f32 to vector<2x4xf32>
    %cst_49 = arith.constant 0.000000e+00 : f32
    %1072 = vector.broadcast %cst_49 : f32 to vector<2x4xf32>
    %1073 = vector.extract_strided_slice %1058 {offsets = [0, 0], sizes = [2, 16], strides = [1, 1]} : vector<16x16xf32> to vector<2x16xf32>
    %1074 = vector.extract_strided_slice %1071 {offsets = [0, 0], sizes = [2, 1], strides = [1, 1]} : vector<2x4xf32> to vector<2x1xf32>
    %1075 = vector.broadcast %1074 : vector<2x1xf32> to vector<2x16xf32>
    %1076 = arith.mulf %1075, %1061 : vector<2x16xf32>
    %1077 = vector.extract_strided_slice %1071 {offsets = [0, 1], sizes = [2, 1], strides = [1, 1]} : vector<2x4xf32> to vector<2x1xf32>
    %1078 = vector.broadcast %1077 : vector<2x1xf32> to vector<2x16xf32>
    %1079 = arith.mulf %1078, %1064 : vector<2x16xf32>
    %1080 = vector.extract_strided_slice %1071 {offsets = [0, 2], sizes = [2, 1], strides = [1, 1]} : vector<2x4xf32> to vector<2x1xf32>
    %1081 = vector.broadcast %1080 : vector<2x1xf32> to vector<2x16xf32>
    %1082 = arith.mulf %1081, %1067 : vector<2x16xf32>
    %1083 = vector.extract_strided_slice %1071 {offsets = [0, 3], sizes = [2, 1], strides = [1, 1]} : vector<2x4xf32> to vector<2x1xf32>
    %1084 = vector.broadcast %1083 : vector<2x1xf32> to vector<2x16xf32>
    %1085 = arith.mulf %1084, %1070 : vector<2x16xf32>
    %1086 = arith.addf %1076, %1079 : vector<2x16xf32>
    %1087 = arith.addf %1082, %1085 : vector<2x16xf32>
    %1088 = arith.addf %1086, %1087 : vector<2x16xf32>
    %1089 = arith.addf %1073, %1088 : vector<2x16xf32>
    %1090 = math.tanh %1089 : vector<2x16xf32>
    %1091 = arith.mulf %1090, %38 : vector<2x16xf32>
    %1092 = arith.addf %1091, %40 : vector<2x16xf32>
    %1093 = vector.extract_strided_slice %1092 {offsets = [0, 0], sizes = [2, 4], strides = [1, 1]} : vector<2x16xf32> to vector<2x4xf32>
    %1094 = vector.extract_strided_slice %1092 {offsets = [0, 4], sizes = [2, 4], strides = [1, 1]} : vector<2x16xf32> to vector<2x4xf32>
    %1095 = vector.extract_strided_slice %1092 {offsets = [0, 8], sizes = [2, 4], strides = [1, 1]} : vector<2x16xf32> to vector<2x4xf32>
    %1096 = vector.extract_strided_slice %1092 {offsets = [0, 12], sizes = [2, 4], strides = [1, 1]} : vector<2x16xf32> to vector<2x4xf32>
    %1097 = arith.mulf %1094, %1072 : vector<2x4xf32>
    %1098 = arith.mulf %1093, %1096 : vector<2x4xf32>
    %1099 = arith.addf %1097, %1098 : vector<2x4xf32>
    %1100 = math.tanh %1099 : vector<2x4xf32>
    %1101 = arith.mulf %1095, %1100 : vector<2x4xf32>
    %1102 = vector.extract_strided_slice %1058 {offsets = [2, 0], sizes = [2, 16], strides = [1, 1]} : vector<16x16xf32> to vector<2x16xf32>
    %1103 = vector.extract_strided_slice %1101 {offsets = [0, 0], sizes = [2, 1], strides = [1, 1]} : vector<2x4xf32> to vector<2x1xf32>
    %1104 = vector.broadcast %1103 : vector<2x1xf32> to vector<2x16xf32>
    %1105 = arith.mulf %1104, %1061 : vector<2x16xf32>
    %1106 = vector.extract_strided_slice %1101 {offsets = [0, 1], sizes = [2, 1], strides = [1, 1]} : vector<2x4xf32> to vector<2x1xf32>
    %1107 = vector.broadcast %1106 : vector<2x1xf32> to vector<2x16xf32>
    %1108 = arith.mulf %1107, %1064 : vector<2x16xf32>
    %1109 = vector.extract_strided_slice %1101 {offsets = [0, 2], sizes = [2, 1], strides = [1, 1]} : vector<2x4xf32> to vector<2x1xf32>
    %1110 = vector.broadcast %1109 : vector<2x1xf32> to vector<2x16xf32>
    %1111 = arith.mulf %1110, %1067 : vector<2x16xf32>
    %1112 = vector.extract_strided_slice %1101 {offsets = [0, 3], sizes = [2, 1], strides = [1, 1]} : vector<2x4xf32> to vector<2x1xf32>
    %1113 = vector.broadcast %1112 : vector<2x1xf32> to vector<2x16xf32>
    %1114 = arith.mulf %1113, %1070 : vector<2x16xf32>
    %1115 = arith.addf %1105, %1108 : vector<2x16xf32>
    %1116 = arith.addf %1111, %1114 : vector<2x16xf32>
    %1117 = arith.addf %1115, %1116 : vector<2x16xf32>
    %1118 = arith.addf %1102, %1117 : vector<2x16xf32>
    %1119 = math.tanh %1118 : vector<2x16xf32>
    %1120 = arith.mulf %1119, %38 : vector<2x16xf32>
    %1121 = arith.addf %1120, %40 : vector<2x16xf32>
    %1122 = vector.extract_strided_slice %1121 {offsets = [0, 0], sizes = [2, 4], strides = [1, 1]} : vector<2x16xf32> to vector<2x4xf32>
    %1123 = vector.extract_strided_slice %1121 {offsets = [0, 4], sizes = [2, 4], strides = [1, 1]} : vector<2x16xf32> to vector<2x4xf32>
    %1124 = vector.extract_strided_slice %1121 {offsets = [0, 8], sizes = [2, 4], strides = [1, 1]} : vector<2x16xf32> to vector<2x4xf32>
    %1125 = vector.extract_strided_slice %1121 {offsets = [0, 12], sizes = [2, 4], strides = [1, 1]} : vector<2x16xf32> to vector<2x4xf32>
    %1126 = arith.mulf %1123, %1099 : vector<2x4xf32>
    %1127 = arith.mulf %1122, %1125 : vector<2x4xf32>
    %1128 = arith.addf %1126, %1127 : vector<2x4xf32>
    %1129 = math.tanh %1128 : vector<2x4xf32>
    %1130 = arith.mulf %1124, %1129 : vector<2x4xf32>
    %1131 = vector.extract_strided_slice %1058 {offsets = [4, 0], sizes = [2, 16], strides = [1, 1]} : vector<16x16xf32> to vector<2x16xf32>
    %1132 = vector.extract_strided_slice %1130 {offsets = [0, 0], sizes = [2, 1], strides = [1, 1]} : vector<2x4xf32> to vector<2x1xf32>
    %1133 = vector.broadcast %1132 : vector<2x1xf32> to vector<2x16xf32>
    %1134 = arith.mulf %1133, %1061 : vector<2x16xf32>
    %1135 = vector.extract_strided_slice %1130 {offsets = [0, 1], sizes = [2, 1], strides = [1, 1]} : vector<2x4xf32> to vector<2x1xf32>
    %1136 = vector.broadcast %1135 : vector<2x1xf32> to vector<2x16xf32>
    %1137 = arith.mulf %1136, %1064 : vector<2x16xf32>
    %1138 = vector.extract_strided_slice %1130 {offsets = [0, 2], sizes = [2, 1], strides = [1, 1]} : vector<2x4xf32> to vector<2x1xf32>
    %1139 = vector.broadcast %1138 : vector<2x1xf32> to vector<2x16xf32>
    %1140 = arith.mulf %1139, %1067 : vector<2x16xf32>
    %1141 = vector.extract_strided_slice %1130 {offsets = [0, 3], sizes = [2, 1], strides = [1, 1]} : vector<2x4xf32> to vector<2x1xf32>
    %1142 = vector.broadcast %1141 : vector<2x1xf32> to vector<2x16xf32>
    %1143 = arith.mulf %1142, %1070 : vector<2x16xf32>
    %1144 = arith.addf %1134, %1137 : vector<2x16xf32>
    %1145 = arith.addf %1140, %1143 : vector<2x16xf32>
    %1146 = arith.addf %1144, %1145 : vector<2x16xf32>
    %1147 = arith.addf %1131, %1146 : vector<2x16xf32>
    %1148 = math.tanh %1147 : vector<2x16xf32>
    %1149 = arith.mulf %1148, %38 : vector<2x16xf32>
    %1150 = arith.addf %1149, %40 : vector<2x16xf32>
    %1151 = vector.extract_strided_slice %1150 {offsets = [0, 0], sizes = [2, 4], strides = [1, 1]} : vector<2x16xf32> to vector<2x4xf32>
    %1152 = vector.extract_strided_slice %1150 {offsets = [0, 4], sizes = [2, 4], strides = [1, 1]} : vector<2x16xf32> to vector<2x4xf32>
    %1153 = vector.extract_strided_slice %1150 {offsets = [0, 8], sizes = [2, 4], strides = [1, 1]} : vector<2x16xf32> to vector<2x4xf32>
    %1154 = vector.extract_strided_slice %1150 {offsets = [0, 12], sizes = [2, 4], strides = [1, 1]} : vector<2x16xf32> to vector<2x4xf32>
    %1155 = arith.mulf %1152, %1128 : vector<2x4xf32>
    %1156 = arith.mulf %1151, %1154 : vector<2x4xf32>
    %1157 = arith.addf %1155, %1156 : vector<2x4xf32>
    %1158 = math.tanh %1157 : vector<2x4xf32>
    %1159 = arith.mulf %1153, %1158 : vector<2x4xf32>
    %1160 = vector.extract_strided_slice %1058 {offsets = [6, 0], sizes = [2, 16], strides = [1, 1]} : vector<16x16xf32> to vector<2x16xf32>
    %1161 = vector.extract_strided_slice %1159 {offsets = [0, 0], sizes = [2, 1], strides = [1, 1]} : vector<2x4xf32> to vector<2x1xf32>
    %1162 = vector.broadcast %1161 : vector<2x1xf32> to vector<2x16xf32>
    %1163 = arith.mulf %1162, %1061 : vector<2x16xf32>
    %1164 = vector.extract_strided_slice %1159 {offsets = [0, 1], sizes = [2, 1], strides = [1, 1]} : vector<2x4xf32> to vector<2x1xf32>
    %1165 = vector.broadcast %1164 : vector<2x1xf32> to vector<2x16xf32>
    %1166 = arith.mulf %1165, %1064 : vector<2x16xf32>
    %1167 = vector.extract_strided_slice %1159 {offsets = [0, 2], sizes = [2, 1], strides = [1, 1]} : vector<2x4xf32> to vector<2x1xf32>
    %1168 = vector.broadcast %1167 : vector<2x1xf32> to vector<2x16xf32>
    %1169 = arith.mulf %1168, %1067 : vector<2x16xf32>
    %1170 = vector.extract_strided_slice %1159 {offsets = [0, 3], sizes = [2, 1], strides = [1, 1]} : vector<2x4xf32> to vector<2x1xf32>
    %1171 = vector.broadcast %1170 : vector<2x1xf32> to vector<2x16xf32>
    %1172 = arith.mulf %1171, %1070 : vector<2x16xf32>
    %1173 = arith.addf %1163, %1166 : vector<2x16xf32>
    %1174 = arith.addf %1169, %1172 : vector<2x16xf32>
    %1175 = arith.addf %1173, %1174 : vector<2x16xf32>
    %1176 = arith.addf %1160, %1175 : vector<2x16xf32>
    %1177 = math.tanh %1176 : vector<2x16xf32>
    %1178 = arith.mulf %1177, %38 : vector<2x16xf32>
    %1179 = arith.addf %1178, %40 : vector<2x16xf32>
    %1180 = vector.extract_strided_slice %1179 {offsets = [0, 0], sizes = [2, 4], strides = [1, 1]} : vector<2x16xf32> to vector<2x4xf32>
    %1181 = vector.extract_strided_slice %1179 {offsets = [0, 4], sizes = [2, 4], strides = [1, 1]} : vector<2x16xf32> to vector<2x4xf32>
    %1182 = vector.extract_strided_slice %1179 {offsets = [0, 8], sizes = [2, 4], strides = [1, 1]} : vector<2x16xf32> to vector<2x4xf32>
    %1183 = vector.extract_strided_slice %1179 {offsets = [0, 12], sizes = [2, 4], strides = [1, 1]} : vector<2x16xf32> to vector<2x4xf32>
    %1184 = arith.mulf %1181, %1157 : vector<2x4xf32>
    %1185 = arith.mulf %1180, %1183 : vector<2x4xf32>
    %1186 = arith.addf %1184, %1185 : vector<2x4xf32>
    %1187 = math.tanh %1186 : vector<2x4xf32>
    %1188 = arith.mulf %1182, %1187 : vector<2x4xf32>
    %1189 = vector.extract_strided_slice %1058 {offsets = [8, 0], sizes = [2, 16], strides = [1, 1]} : vector<16x16xf32> to vector<2x16xf32>
    %1190 = vector.extract_strided_slice %1188 {offsets = [0, 0], sizes = [2, 1], strides = [1, 1]} : vector<2x4xf32> to vector<2x1xf32>
    %1191 = vector.broadcast %1190 : vector<2x1xf32> to vector<2x16xf32>
    %1192 = arith.mulf %1191, %1061 : vector<2x16xf32>
    %1193 = vector.extract_strided_slice %1188 {offsets = [0, 1], sizes = [2, 1], strides = [1, 1]} : vector<2x4xf32> to vector<2x1xf32>
    %1194 = vector.broadcast %1193 : vector<2x1xf32> to vector<2x16xf32>
    %1195 = arith.mulf %1194, %1064 : vector<2x16xf32>
    %1196 = vector.extract_strided_slice %1188 {offsets = [0, 2], sizes = [2, 1], strides = [1, 1]} : vector<2x4xf32> to vector<2x1xf32>
    %1197 = vector.broadcast %1196 : vector<2x1xf32> to vector<2x16xf32>
    %1198 = arith.mulf %1197, %1067 : vector<2x16xf32>
    %1199 = vector.extract_strided_slice %1188 {offsets = [0, 3], sizes = [2, 1], strides = [1, 1]} : vector<2x4xf32> to vector<2x1xf32>
    %1200 = vector.broadcast %1199 : vector<2x1xf32> to vector<2x16xf32>
    %1201 = arith.mulf %1200, %1070 : vector<2x16xf32>
    %1202 = arith.addf %1192, %1195 : vector<2x16xf32>
    %1203 = arith.addf %1198, %1201 : vector<2x16xf32>
    %1204 = arith.addf %1202, %1203 : vector<2x16xf32>
    %1205 = arith.addf %1189, %1204 : vector<2x16xf32>
    %1206 = math.tanh %1205 : vector<2x16xf32>
    %1207 = arith.mulf %1206, %38 : vector<2x16xf32>
    %1208 = arith.addf %1207, %40 : vector<2x16xf32>
    %1209 = vector.extract_strided_slice %1208 {offsets = [0, 0], sizes = [2, 4], strides = [1, 1]} : vector<2x16xf32> to vector<2x4xf32>
    %1210 = vector.extract_strided_slice %1208 {offsets = [0, 4], sizes = [2, 4], strides = [1, 1]} : vector<2x16xf32> to vector<2x4xf32>
    %1211 = vector.extract_strided_slice %1208 {offsets = [0, 8], sizes = [2, 4], strides = [1, 1]} : vector<2x16xf32> to vector<2x4xf32>
    %1212 = vector.extract_strided_slice %1208 {offsets = [0, 12], sizes = [2, 4], strides = [1, 1]} : vector<2x16xf32> to vector<2x4xf32>
    %1213 = arith.mulf %1210, %1186 : vector<2x4xf32>
    %1214 = arith.mulf %1209, %1212 : vector<2x4xf32>
    %1215 = arith.addf %1213, %1214 : vector<2x4xf32>
    %1216 = math.tanh %1215 : vector<2x4xf32>
    %1217 = arith.mulf %1211, %1216 : vector<2x4xf32>
    %1218 = vector.extract_strided_slice %1058 {offsets = [10, 0], sizes = [2, 16], strides = [1, 1]} : vector<16x16xf32> to vector<2x16xf32>
    %1219 = vector.extract_strided_slice %1217 {offsets = [0, 0], sizes = [2, 1], strides = [1, 1]} : vector<2x4xf32> to vector<2x1xf32>
    %1220 = vector.broadcast %1219 : vector<2x1xf32> to vector<2x16xf32>
    %1221 = arith.mulf %1220, %1061 : vector<2x16xf32>
    %1222 = vector.extract_strided_slice %1217 {offsets = [0, 1], sizes = [2, 1], strides = [1, 1]} : vector<2x4xf32> to vector<2x1xf32>
    %1223 = vector.broadcast %1222 : vector<2x1xf32> to vector<2x16xf32>
    %1224 = arith.mulf %1223, %1064 : vector<2x16xf32>
    %1225 = vector.extract_strided_slice %1217 {offsets = [0, 2], sizes = [2, 1], strides = [1, 1]} : vector<2x4xf32> to vector<2x1xf32>
    %1226 = vector.broadcast %1225 : vector<2x1xf32> to vector<2x16xf32>
    %1227 = arith.mulf %1226, %1067 : vector<2x16xf32>
    %1228 = vector.extract_strided_slice %1217 {offsets = [0, 3], sizes = [2, 1], strides = [1, 1]} : vector<2x4xf32> to vector<2x1xf32>
    %1229 = vector.broadcast %1228 : vector<2x1xf32> to vector<2x16xf32>
    %1230 = arith.mulf %1229, %1070 : vector<2x16xf32>
    %1231 = arith.addf %1221, %1224 : vector<2x16xf32>
    %1232 = arith.addf %1227, %1230 : vector<2x16xf32>
    %1233 = arith.addf %1231, %1232 : vector<2x16xf32>
    %1234 = arith.addf %1218, %1233 : vector<2x16xf32>
    %1235 = math.tanh %1234 : vector<2x16xf32>
    %1236 = arith.mulf %1235, %38 : vector<2x16xf32>
    %1237 = arith.addf %1236, %40 : vector<2x16xf32>
    %1238 = vector.extract_strided_slice %1237 {offsets = [0, 0], sizes = [2, 4], strides = [1, 1]} : vector<2x16xf32> to vector<2x4xf32>
    %1239 = vector.extract_strided_slice %1237 {offsets = [0, 4], sizes = [2, 4], strides = [1, 1]} : vector<2x16xf32> to vector<2x4xf32>
    %1240 = vector.extract_strided_slice %1237 {offsets = [0, 8], sizes = [2, 4], strides = [1, 1]} : vector<2x16xf32> to vector<2x4xf32>
    %1241 = vector.extract_strided_slice %1237 {offsets = [0, 12], sizes = [2, 4], strides = [1, 1]} : vector<2x16xf32> to vector<2x4xf32>
    %1242 = arith.mulf %1239, %1215 : vector<2x4xf32>
    %1243 = arith.mulf %1238, %1241 : vector<2x4xf32>
    %1244 = arith.addf %1242, %1243 : vector<2x4xf32>
    %1245 = math.tanh %1244 : vector<2x4xf32>
    %1246 = arith.mulf %1240, %1245 : vector<2x4xf32>
    %1247 = vector.extract_strided_slice %1058 {offsets = [12, 0], sizes = [2, 16], strides = [1, 1]} : vector<16x16xf32> to vector<2x16xf32>
    %1248 = vector.extract_strided_slice %1246 {offsets = [0, 0], sizes = [2, 1], strides = [1, 1]} : vector<2x4xf32> to vector<2x1xf32>
    %1249 = vector.broadcast %1248 : vector<2x1xf32> to vector<2x16xf32>
    %1250 = arith.mulf %1249, %1061 : vector<2x16xf32>
    %1251 = vector.extract_strided_slice %1246 {offsets = [0, 1], sizes = [2, 1], strides = [1, 1]} : vector<2x4xf32> to vector<2x1xf32>
    %1252 = vector.broadcast %1251 : vector<2x1xf32> to vector<2x16xf32>
    %1253 = arith.mulf %1252, %1064 : vector<2x16xf32>
    %1254 = vector.extract_strided_slice %1246 {offsets = [0, 2], sizes = [2, 1], strides = [1, 1]} : vector<2x4xf32> to vector<2x1xf32>
    %1255 = vector.broadcast %1254 : vector<2x1xf32> to vector<2x16xf32>
    %1256 = arith.mulf %1255, %1067 : vector<2x16xf32>
    %1257 = vector.extract_strided_slice %1246 {offsets = [0, 3], sizes = [2, 1], strides = [1, 1]} : vector<2x4xf32> to vector<2x1xf32>
    %1258 = vector.broadcast %1257 : vector<2x1xf32> to vector<2x16xf32>
    %1259 = arith.mulf %1258, %1070 : vector<2x16xf32>
    %1260 = arith.addf %1250, %1253 : vector<2x16xf32>
    %1261 = arith.addf %1256, %1259 : vector<2x16xf32>
    %1262 = arith.addf %1260, %1261 : vector<2x16xf32>
    %1263 = arith.addf %1247, %1262 : vector<2x16xf32>
    %1264 = math.tanh %1263 : vector<2x16xf32>
    %1265 = arith.mulf %1264, %38 : vector<2x16xf32>
    %1266 = arith.addf %1265, %40 : vector<2x16xf32>
    %1267 = vector.extract_strided_slice %1266 {offsets = [0, 0], sizes = [2, 4], strides = [1, 1]} : vector<2x16xf32> to vector<2x4xf32>
    %1268 = vector.extract_strided_slice %1266 {offsets = [0, 4], sizes = [2, 4], strides = [1, 1]} : vector<2x16xf32> to vector<2x4xf32>
    %1269 = vector.extract_strided_slice %1266 {offsets = [0, 8], sizes = [2, 4], strides = [1, 1]} : vector<2x16xf32> to vector<2x4xf32>
    %1270 = vector.extract_strided_slice %1266 {offsets = [0, 12], sizes = [2, 4], strides = [1, 1]} : vector<2x16xf32> to vector<2x4xf32>
    %1271 = arith.mulf %1268, %1244 : vector<2x4xf32>
    %1272 = arith.mulf %1267, %1270 : vector<2x4xf32>
    %1273 = arith.addf %1271, %1272 : vector<2x4xf32>
    %1274 = math.tanh %1273 : vector<2x4xf32>
    %1275 = arith.mulf %1269, %1274 : vector<2x4xf32>
    %1276 = vector.extract_strided_slice %1058 {offsets = [14, 0], sizes = [2, 16], strides = [1, 1]} : vector<16x16xf32> to vector<2x16xf32>
    %1277 = vector.extract_strided_slice %1275 {offsets = [0, 0], sizes = [2, 1], strides = [1, 1]} : vector<2x4xf32> to vector<2x1xf32>
    %1278 = vector.broadcast %1277 : vector<2x1xf32> to vector<2x16xf32>
    %1279 = arith.mulf %1278, %1061 : vector<2x16xf32>
    %1280 = vector.extract_strided_slice %1275 {offsets = [0, 1], sizes = [2, 1], strides = [1, 1]} : vector<2x4xf32> to vector<2x1xf32>
    %1281 = vector.broadcast %1280 : vector<2x1xf32> to vector<2x16xf32>
    %1282 = arith.mulf %1281, %1064 : vector<2x16xf32>
    %1283 = vector.extract_strided_slice %1275 {offsets = [0, 2], sizes = [2, 1], strides = [1, 1]} : vector<2x4xf32> to vector<2x1xf32>
    %1284 = vector.broadcast %1283 : vector<2x1xf32> to vector<2x16xf32>
    %1285 = arith.mulf %1284, %1067 : vector<2x16xf32>
    %1286 = vector.extract_strided_slice %1275 {offsets = [0, 3], sizes = [2, 1], strides = [1, 1]} : vector<2x4xf32> to vector<2x1xf32>
    %1287 = vector.broadcast %1286 : vector<2x1xf32> to vector<2x16xf32>
    %1288 = arith.mulf %1287, %1070 : vector<2x16xf32>
    %1289 = arith.addf %1279, %1282 : vector<2x16xf32>
    %1290 = arith.addf %1285, %1288 : vector<2x16xf32>
    %1291 = arith.addf %1289, %1290 : vector<2x16xf32>
    %1292 = arith.addf %1276, %1291 : vector<2x16xf32>
    %1293 = math.tanh %1292 : vector<2x16xf32>
    %1294 = arith.mulf %1293, %38 : vector<2x16xf32>
    %1295 = arith.addf %1294, %40 : vector<2x16xf32>
    %1296 = vector.extract_strided_slice %1295 {offsets = [0, 0], sizes = [2, 4], strides = [1, 1]} : vector<2x16xf32> to vector<2x4xf32>
    %1297 = vector.extract_strided_slice %1295 {offsets = [0, 4], sizes = [2, 4], strides = [1, 1]} : vector<2x16xf32> to vector<2x4xf32>
    %1298 = vector.extract_strided_slice %1295 {offsets = [0, 8], sizes = [2, 4], strides = [1, 1]} : vector<2x16xf32> to vector<2x4xf32>
    %1299 = vector.extract_strided_slice %1295 {offsets = [0, 12], sizes = [2, 4], strides = [1, 1]} : vector<2x16xf32> to vector<2x4xf32>
    %1300 = arith.mulf %1297, %1273 : vector<2x4xf32>
    %1301 = arith.mulf %1296, %1299 : vector<2x4xf32>
    %1302 = arith.addf %1300, %1301 : vector<2x4xf32>
    %1303 = math.tanh %1302 : vector<2x4xf32>
    %1304 = arith.mulf %1298, %1303 : vector<2x4xf32>
    %1305 = tpu.concatenate %1101, %1130, %1159, %1188, %1217, %1246, %1275, %1304 in 0 : vector<2x4xf32>, vector<2x4xf32>, vector<2x4xf32>, vector<2x4xf32>, vector<2x4xf32>, vector<2x4xf32>, vector<2x4xf32>, vector<2x4xf32> -> vector<16x4xf32>
    %c32_50 = arith.constant 32 : index
    %c0_51 = arith.constant 0 : index
    %1306 = vector.load %arg1[%c32_50, %c0_51] : memref<80x128xf32, #tpu.memory_space<vmem>>, vector<4x16xf32>
    %c48_52 = arith.constant 48 : index
    %c0_53 = arith.constant 0 : index
    %1307 = vector.load %arg1[%c48_52, %c0_53] : memref<80x128xf32, #tpu.memory_space<vmem>>, vector<4x16xf32>
    %c61_54 = arith.constant 61 : index
    %c0_55 = arith.constant 0 : index
    %1308 = vector.load %arg1[%c61_54, %c0_55] : memref<80x128xf32, #tpu.memory_space<vmem>>, vector<1x16xf32>
    %cst_56 = arith.constant dense<0.000000e+00> : vector<16x16xf32>
    %1309 = tpu.matmul %1305, %1306, %cst_56 {dimension_numbers = #tpu.dot_dimension_numbers<[1], [0], [0], [1], [0, 0, 1, 1], [], []>} : vector<16x4xf32>, vector<4x16xf32>, vector<16x16xf32> -> vector<16x16xf32>
    %1310 = vector.broadcast %1308 : vector<1x16xf32> to vector<16x16xf32>
    %1311 = arith.addf %1309, %1310 : vector<16x16xf32>
    %1312 = vector.extract_strided_slice %1307 {offsets = [0, 0], sizes = [1, 16], strides = [1, 1]} : vector<4x16xf32> to vector<1x16xf32>
    %1313 = vector.shape_cast %1312 : vector<1x16xf32> to vector<1x16xf32>
    %1314 = vector.broadcast %1313 : vector<1x16xf32> to vector<2x16xf32>
    %1315 = vector.extract_strided_slice %1307 {offsets = [1, 0], sizes = [1, 16], strides = [1, 1]} : vector<4x16xf32> to vector<1x16xf32>
    %1316 = vector.shape_cast %1315 : vector<1x16xf32> to vector<1x16xf32>
    %1317 = vector.broadcast %1316 : vector<1x16xf32> to vector<2x16xf32>
    %1318 = vector.extract_strided_slice %1307 {offsets = [2, 0], sizes = [1, 16], strides = [1, 1]} : vector<4x16xf32> to vector<1x16xf32>
    %1319 = vector.shape_cast %1318 : vector<1x16xf32> to vector<1x16xf32>
    %1320 = vector.broadcast %1319 : vector<1x16xf32> to vector<2x16xf32>
    %1321 = vector.extract_strided_slice %1307 {offsets = [3, 0], sizes = [1, 16], strides = [1, 1]} : vector<4x16xf32> to vector<1x16xf32>
    %1322 = vector.shape_cast %1321 : vector<1x16xf32> to vector<1x16xf32>
    %1323 = vector.broadcast %1322 : vector<1x16xf32> to vector<2x16xf32>
    %cst_57 = arith.constant 0.000000e+00 : f32
    %1324 = vector.broadcast %cst_57 : f32 to vector<2x4xf32>
    %cst_58 = arith.constant 0.000000e+00 : f32
    %1325 = vector.broadcast %cst_58 : f32 to vector<2x4xf32>
    %1326 = vector.extract_strided_slice %1311 {offsets = [0, 0], sizes = [2, 16], strides = [1, 1]} : vector<16x16xf32> to vector<2x16xf32>
    %1327 = vector.extract_strided_slice %1324 {offsets = [0, 0], sizes = [2, 1], strides = [1, 1]} : vector<2x4xf32> to vector<2x1xf32>
    %1328 = vector.broadcast %1327 : vector<2x1xf32> to vector<2x16xf32>
    %1329 = arith.mulf %1328, %1314 : vector<2x16xf32>
    %1330 = vector.extract_strided_slice %1324 {offsets = [0, 1], sizes = [2, 1], strides = [1, 1]} : vector<2x4xf32> to vector<2x1xf32>
    %1331 = vector.broadcast %1330 : vector<2x1xf32> to vector<2x16xf32>
    %1332 = arith.mulf %1331, %1317 : vector<2x16xf32>
    %1333 = vector.extract_strided_slice %1324 {offsets = [0, 2], sizes = [2, 1], strides = [1, 1]} : vector<2x4xf32> to vector<2x1xf32>
    %1334 = vector.broadcast %1333 : vector<2x1xf32> to vector<2x16xf32>
    %1335 = arith.mulf %1334, %1320 : vector<2x16xf32>
    %1336 = vector.extract_strided_slice %1324 {offsets = [0, 3], sizes = [2, 1], strides = [1, 1]} : vector<2x4xf32> to vector<2x1xf32>
    %1337 = vector.broadcast %1336 : vector<2x1xf32> to vector<2x16xf32>
    %1338 = arith.mulf %1337, %1323 : vector<2x16xf32>
    %1339 = arith.addf %1329, %1332 : vector<2x16xf32>
    %1340 = arith.addf %1335, %1338 : vector<2x16xf32>
    %1341 = arith.addf %1339, %1340 : vector<2x16xf32>
    %1342 = arith.addf %1326, %1341 : vector<2x16xf32>
    %1343 = math.tanh %1342 : vector<2x16xf32>
    %1344 = arith.mulf %1343, %38 : vector<2x16xf32>
    %1345 = arith.addf %1344, %40 : vector<2x16xf32>
    %1346 = vector.extract_strided_slice %1345 {offsets = [0, 0], sizes = [2, 4], strides = [1, 1]} : vector<2x16xf32> to vector<2x4xf32>
    %1347 = vector.extract_strided_slice %1345 {offsets = [0, 4], sizes = [2, 4], strides = [1, 1]} : vector<2x16xf32> to vector<2x4xf32>
    %1348 = vector.extract_strided_slice %1345 {offsets = [0, 8], sizes = [2, 4], strides = [1, 1]} : vector<2x16xf32> to vector<2x4xf32>
    %1349 = vector.extract_strided_slice %1345 {offsets = [0, 12], sizes = [2, 4], strides = [1, 1]} : vector<2x16xf32> to vector<2x4xf32>
    %1350 = arith.mulf %1347, %1325 : vector<2x4xf32>
    %1351 = arith.mulf %1346, %1349 : vector<2x4xf32>
    %1352 = arith.addf %1350, %1351 : vector<2x4xf32>
    %1353 = math.tanh %1352 : vector<2x4xf32>
    %1354 = arith.mulf %1348, %1353 : vector<2x4xf32>
    %1355 = vector.extract_strided_slice %1311 {offsets = [2, 0], sizes = [2, 16], strides = [1, 1]} : vector<16x16xf32> to vector<2x16xf32>
    %1356 = vector.extract_strided_slice %1354 {offsets = [0, 0], sizes = [2, 1], strides = [1, 1]} : vector<2x4xf32> to vector<2x1xf32>
    %1357 = vector.broadcast %1356 : vector<2x1xf32> to vector<2x16xf32>
    %1358 = arith.mulf %1357, %1314 : vector<2x16xf32>
    %1359 = vector.extract_strided_slice %1354 {offsets = [0, 1], sizes = [2, 1], strides = [1, 1]} : vector<2x4xf32> to vector<2x1xf32>
    %1360 = vector.broadcast %1359 : vector<2x1xf32> to vector<2x16xf32>
    %1361 = arith.mulf %1360, %1317 : vector<2x16xf32>
    %1362 = vector.extract_strided_slice %1354 {offsets = [0, 2], sizes = [2, 1], strides = [1, 1]} : vector<2x4xf32> to vector<2x1xf32>
    %1363 = vector.broadcast %1362 : vector<2x1xf32> to vector<2x16xf32>
    %1364 = arith.mulf %1363, %1320 : vector<2x16xf32>
    %1365 = vector.extract_strided_slice %1354 {offsets = [0, 3], sizes = [2, 1], strides = [1, 1]} : vector<2x4xf32> to vector<2x1xf32>
    %1366 = vector.broadcast %1365 : vector<2x1xf32> to vector<2x16xf32>
    %1367 = arith.mulf %1366, %1323 : vector<2x16xf32>
    %1368 = arith.addf %1358, %1361 : vector<2x16xf32>
    %1369 = arith.addf %1364, %1367 : vector<2x16xf32>
    %1370 = arith.addf %1368, %1369 : vector<2x16xf32>
    %1371 = arith.addf %1355, %1370 : vector<2x16xf32>
    %1372 = math.tanh %1371 : vector<2x16xf32>
    %1373 = arith.mulf %1372, %38 : vector<2x16xf32>
    %1374 = arith.addf %1373, %40 : vector<2x16xf32>
    %1375 = vector.extract_strided_slice %1374 {offsets = [0, 0], sizes = [2, 4], strides = [1, 1]} : vector<2x16xf32> to vector<2x4xf32>
    %1376 = vector.extract_strided_slice %1374 {offsets = [0, 4], sizes = [2, 4], strides = [1, 1]} : vector<2x16xf32> to vector<2x4xf32>
    %1377 = vector.extract_strided_slice %1374 {offsets = [0, 8], sizes = [2, 4], strides = [1, 1]} : vector<2x16xf32> to vector<2x4xf32>
    %1378 = vector.extract_strided_slice %1374 {offsets = [0, 12], sizes = [2, 4], strides = [1, 1]} : vector<2x16xf32> to vector<2x4xf32>
    %1379 = arith.mulf %1376, %1352 : vector<2x4xf32>
    %1380 = arith.mulf %1375, %1378 : vector<2x4xf32>
    %1381 = arith.addf %1379, %1380 : vector<2x4xf32>
    %1382 = math.tanh %1381 : vector<2x4xf32>
    %1383 = arith.mulf %1377, %1382 : vector<2x4xf32>
    %1384 = vector.extract_strided_slice %1311 {offsets = [4, 0], sizes = [2, 16], strides = [1, 1]} : vector<16x16xf32> to vector<2x16xf32>
    %1385 = vector.extract_strided_slice %1383 {offsets = [0, 0], sizes = [2, 1], strides = [1, 1]} : vector<2x4xf32> to vector<2x1xf32>
    %1386 = vector.broadcast %1385 : vector<2x1xf32> to vector<2x16xf32>
    %1387 = arith.mulf %1386, %1314 : vector<2x16xf32>
    %1388 = vector.extract_strided_slice %1383 {offsets = [0, 1], sizes = [2, 1], strides = [1, 1]} : vector<2x4xf32> to vector<2x1xf32>
    %1389 = vector.broadcast %1388 : vector<2x1xf32> to vector<2x16xf32>
    %1390 = arith.mulf %1389, %1317 : vector<2x16xf32>
    %1391 = vector.extract_strided_slice %1383 {offsets = [0, 2], sizes = [2, 1], strides = [1, 1]} : vector<2x4xf32> to vector<2x1xf32>
    %1392 = vector.broadcast %1391 : vector<2x1xf32> to vector<2x16xf32>
    %1393 = arith.mulf %1392, %1320 : vector<2x16xf32>
    %1394 = vector.extract_strided_slice %1383 {offsets = [0, 3], sizes = [2, 1], strides = [1, 1]} : vector<2x4xf32> to vector<2x1xf32>
    %1395 = vector.broadcast %1394 : vector<2x1xf32> to vector<2x16xf32>
    %1396 = arith.mulf %1395, %1323 : vector<2x16xf32>
    %1397 = arith.addf %1387, %1390 : vector<2x16xf32>
    %1398 = arith.addf %1393, %1396 : vector<2x16xf32>
    %1399 = arith.addf %1397, %1398 : vector<2x16xf32>
    %1400 = arith.addf %1384, %1399 : vector<2x16xf32>
    %1401 = math.tanh %1400 : vector<2x16xf32>
    %1402 = arith.mulf %1401, %38 : vector<2x16xf32>
    %1403 = arith.addf %1402, %40 : vector<2x16xf32>
    %1404 = vector.extract_strided_slice %1403 {offsets = [0, 0], sizes = [2, 4], strides = [1, 1]} : vector<2x16xf32> to vector<2x4xf32>
    %1405 = vector.extract_strided_slice %1403 {offsets = [0, 4], sizes = [2, 4], strides = [1, 1]} : vector<2x16xf32> to vector<2x4xf32>
    %1406 = vector.extract_strided_slice %1403 {offsets = [0, 8], sizes = [2, 4], strides = [1, 1]} : vector<2x16xf32> to vector<2x4xf32>
    %1407 = vector.extract_strided_slice %1403 {offsets = [0, 12], sizes = [2, 4], strides = [1, 1]} : vector<2x16xf32> to vector<2x4xf32>
    %1408 = arith.mulf %1405, %1381 : vector<2x4xf32>
    %1409 = arith.mulf %1404, %1407 : vector<2x4xf32>
    %1410 = arith.addf %1408, %1409 : vector<2x4xf32>
    %1411 = math.tanh %1410 : vector<2x4xf32>
    %1412 = arith.mulf %1406, %1411 : vector<2x4xf32>
    %1413 = vector.extract_strided_slice %1311 {offsets = [6, 0], sizes = [2, 16], strides = [1, 1]} : vector<16x16xf32> to vector<2x16xf32>
    %1414 = vector.extract_strided_slice %1412 {offsets = [0, 0], sizes = [2, 1], strides = [1, 1]} : vector<2x4xf32> to vector<2x1xf32>
    %1415 = vector.broadcast %1414 : vector<2x1xf32> to vector<2x16xf32>
    %1416 = arith.mulf %1415, %1314 : vector<2x16xf32>
    %1417 = vector.extract_strided_slice %1412 {offsets = [0, 1], sizes = [2, 1], strides = [1, 1]} : vector<2x4xf32> to vector<2x1xf32>
    %1418 = vector.broadcast %1417 : vector<2x1xf32> to vector<2x16xf32>
    %1419 = arith.mulf %1418, %1317 : vector<2x16xf32>
    %1420 = vector.extract_strided_slice %1412 {offsets = [0, 2], sizes = [2, 1], strides = [1, 1]} : vector<2x4xf32> to vector<2x1xf32>
    %1421 = vector.broadcast %1420 : vector<2x1xf32> to vector<2x16xf32>
    %1422 = arith.mulf %1421, %1320 : vector<2x16xf32>
    %1423 = vector.extract_strided_slice %1412 {offsets = [0, 3], sizes = [2, 1], strides = [1, 1]} : vector<2x4xf32> to vector<2x1xf32>
    %1424 = vector.broadcast %1423 : vector<2x1xf32> to vector<2x16xf32>
    %1425 = arith.mulf %1424, %1323 : vector<2x16xf32>
    %1426 = arith.addf %1416, %1419 : vector<2x16xf32>
    %1427 = arith.addf %1422, %1425 : vector<2x16xf32>
    %1428 = arith.addf %1426, %1427 : vector<2x16xf32>
    %1429 = arith.addf %1413, %1428 : vector<2x16xf32>
    %1430 = math.tanh %1429 : vector<2x16xf32>
    %1431 = arith.mulf %1430, %38 : vector<2x16xf32>
    %1432 = arith.addf %1431, %40 : vector<2x16xf32>
    %1433 = vector.extract_strided_slice %1432 {offsets = [0, 0], sizes = [2, 4], strides = [1, 1]} : vector<2x16xf32> to vector<2x4xf32>
    %1434 = vector.extract_strided_slice %1432 {offsets = [0, 4], sizes = [2, 4], strides = [1, 1]} : vector<2x16xf32> to vector<2x4xf32>
    %1435 = vector.extract_strided_slice %1432 {offsets = [0, 8], sizes = [2, 4], strides = [1, 1]} : vector<2x16xf32> to vector<2x4xf32>
    %1436 = vector.extract_strided_slice %1432 {offsets = [0, 12], sizes = [2, 4], strides = [1, 1]} : vector<2x16xf32> to vector<2x4xf32>
    %1437 = arith.mulf %1434, %1410 : vector<2x4xf32>
    %1438 = arith.mulf %1433, %1436 : vector<2x4xf32>
    %1439 = arith.addf %1437, %1438 : vector<2x4xf32>
    %1440 = math.tanh %1439 : vector<2x4xf32>
    %1441 = arith.mulf %1435, %1440 : vector<2x4xf32>
    %1442 = vector.extract_strided_slice %1311 {offsets = [8, 0], sizes = [2, 16], strides = [1, 1]} : vector<16x16xf32> to vector<2x16xf32>
    %1443 = vector.extract_strided_slice %1441 {offsets = [0, 0], sizes = [2, 1], strides = [1, 1]} : vector<2x4xf32> to vector<2x1xf32>
    %1444 = vector.broadcast %1443 : vector<2x1xf32> to vector<2x16xf32>
    %1445 = arith.mulf %1444, %1314 : vector<2x16xf32>
    %1446 = vector.extract_strided_slice %1441 {offsets = [0, 1], sizes = [2, 1], strides = [1, 1]} : vector<2x4xf32> to vector<2x1xf32>
    %1447 = vector.broadcast %1446 : vector<2x1xf32> to vector<2x16xf32>
    %1448 = arith.mulf %1447, %1317 : vector<2x16xf32>
    %1449 = vector.extract_strided_slice %1441 {offsets = [0, 2], sizes = [2, 1], strides = [1, 1]} : vector<2x4xf32> to vector<2x1xf32>
    %1450 = vector.broadcast %1449 : vector<2x1xf32> to vector<2x16xf32>
    %1451 = arith.mulf %1450, %1320 : vector<2x16xf32>
    %1452 = vector.extract_strided_slice %1441 {offsets = [0, 3], sizes = [2, 1], strides = [1, 1]} : vector<2x4xf32> to vector<2x1xf32>
    %1453 = vector.broadcast %1452 : vector<2x1xf32> to vector<2x16xf32>
    %1454 = arith.mulf %1453, %1323 : vector<2x16xf32>
    %1455 = arith.addf %1445, %1448 : vector<2x16xf32>
    %1456 = arith.addf %1451, %1454 : vector<2x16xf32>
    %1457 = arith.addf %1455, %1456 : vector<2x16xf32>
    %1458 = arith.addf %1442, %1457 : vector<2x16xf32>
    %1459 = math.tanh %1458 : vector<2x16xf32>
    %1460 = arith.mulf %1459, %38 : vector<2x16xf32>
    %1461 = arith.addf %1460, %40 : vector<2x16xf32>
    %1462 = vector.extract_strided_slice %1461 {offsets = [0, 0], sizes = [2, 4], strides = [1, 1]} : vector<2x16xf32> to vector<2x4xf32>
    %1463 = vector.extract_strided_slice %1461 {offsets = [0, 4], sizes = [2, 4], strides = [1, 1]} : vector<2x16xf32> to vector<2x4xf32>
    %1464 = vector.extract_strided_slice %1461 {offsets = [0, 8], sizes = [2, 4], strides = [1, 1]} : vector<2x16xf32> to vector<2x4xf32>
    %1465 = vector.extract_strided_slice %1461 {offsets = [0, 12], sizes = [2, 4], strides = [1, 1]} : vector<2x16xf32> to vector<2x4xf32>
    %1466 = arith.mulf %1463, %1439 : vector<2x4xf32>
    %1467 = arith.mulf %1462, %1465 : vector<2x4xf32>
    %1468 = arith.addf %1466, %1467 : vector<2x4xf32>
    %1469 = math.tanh %1468 : vector<2x4xf32>
    %1470 = arith.mulf %1464, %1469 : vector<2x4xf32>
    %1471 = vector.extract_strided_slice %1311 {offsets = [10, 0], sizes = [2, 16], strides = [1, 1]} : vector<16x16xf32> to vector<2x16xf32>
    %1472 = vector.extract_strided_slice %1470 {offsets = [0, 0], sizes = [2, 1], strides = [1, 1]} : vector<2x4xf32> to vector<2x1xf32>
    %1473 = vector.broadcast %1472 : vector<2x1xf32> to vector<2x16xf32>
    %1474 = arith.mulf %1473, %1314 : vector<2x16xf32>
    %1475 = vector.extract_strided_slice %1470 {offsets = [0, 1], sizes = [2, 1], strides = [1, 1]} : vector<2x4xf32> to vector<2x1xf32>
    %1476 = vector.broadcast %1475 : vector<2x1xf32> to vector<2x16xf32>
    %1477 = arith.mulf %1476, %1317 : vector<2x16xf32>
    %1478 = vector.extract_strided_slice %1470 {offsets = [0, 2], sizes = [2, 1], strides = [1, 1]} : vector<2x4xf32> to vector<2x1xf32>
    %1479 = vector.broadcast %1478 : vector<2x1xf32> to vector<2x16xf32>
    %1480 = arith.mulf %1479, %1320 : vector<2x16xf32>
    %1481 = vector.extract_strided_slice %1470 {offsets = [0, 3], sizes = [2, 1], strides = [1, 1]} : vector<2x4xf32> to vector<2x1xf32>
    %1482 = vector.broadcast %1481 : vector<2x1xf32> to vector<2x16xf32>
    %1483 = arith.mulf %1482, %1323 : vector<2x16xf32>
    %1484 = arith.addf %1474, %1477 : vector<2x16xf32>
    %1485 = arith.addf %1480, %1483 : vector<2x16xf32>
    %1486 = arith.addf %1484, %1485 : vector<2x16xf32>
    %1487 = arith.addf %1471, %1486 : vector<2x16xf32>
    %1488 = math.tanh %1487 : vector<2x16xf32>
    %1489 = arith.mulf %1488, %38 : vector<2x16xf32>
    %1490 = arith.addf %1489, %40 : vector<2x16xf32>
    %1491 = vector.extract_strided_slice %1490 {offsets = [0, 0], sizes = [2, 4], strides = [1, 1]} : vector<2x16xf32> to vector<2x4xf32>
    %1492 = vector.extract_strided_slice %1490 {offsets = [0, 4], sizes = [2, 4], strides = [1, 1]} : vector<2x16xf32> to vector<2x4xf32>
    %1493 = vector.extract_strided_slice %1490 {offsets = [0, 8], sizes = [2, 4], strides = [1, 1]} : vector<2x16xf32> to vector<2x4xf32>
    %1494 = vector.extract_strided_slice %1490 {offsets = [0, 12], sizes = [2, 4], strides = [1, 1]} : vector<2x16xf32> to vector<2x4xf32>
    %1495 = arith.mulf %1492, %1468 : vector<2x4xf32>
    %1496 = arith.mulf %1491, %1494 : vector<2x4xf32>
    %1497 = arith.addf %1495, %1496 : vector<2x4xf32>
    %1498 = math.tanh %1497 : vector<2x4xf32>
    %1499 = arith.mulf %1493, %1498 : vector<2x4xf32>
    %1500 = vector.extract_strided_slice %1311 {offsets = [12, 0], sizes = [2, 16], strides = [1, 1]} : vector<16x16xf32> to vector<2x16xf32>
    %1501 = vector.extract_strided_slice %1499 {offsets = [0, 0], sizes = [2, 1], strides = [1, 1]} : vector<2x4xf32> to vector<2x1xf32>
    %1502 = vector.broadcast %1501 : vector<2x1xf32> to vector<2x16xf32>
    %1503 = arith.mulf %1502, %1314 : vector<2x16xf32>
    %1504 = vector.extract_strided_slice %1499 {offsets = [0, 1], sizes = [2, 1], strides = [1, 1]} : vector<2x4xf32> to vector<2x1xf32>
    %1505 = vector.broadcast %1504 : vector<2x1xf32> to vector<2x16xf32>
    %1506 = arith.mulf %1505, %1317 : vector<2x16xf32>
    %1507 = vector.extract_strided_slice %1499 {offsets = [0, 2], sizes = [2, 1], strides = [1, 1]} : vector<2x4xf32> to vector<2x1xf32>
    %1508 = vector.broadcast %1507 : vector<2x1xf32> to vector<2x16xf32>
    %1509 = arith.mulf %1508, %1320 : vector<2x16xf32>
    %1510 = vector.extract_strided_slice %1499 {offsets = [0, 3], sizes = [2, 1], strides = [1, 1]} : vector<2x4xf32> to vector<2x1xf32>
    %1511 = vector.broadcast %1510 : vector<2x1xf32> to vector<2x16xf32>
    %1512 = arith.mulf %1511, %1323 : vector<2x16xf32>
    %1513 = arith.addf %1503, %1506 : vector<2x16xf32>
    %1514 = arith.addf %1509, %1512 : vector<2x16xf32>
    %1515 = arith.addf %1513, %1514 : vector<2x16xf32>
    %1516 = arith.addf %1500, %1515 : vector<2x16xf32>
    %1517 = math.tanh %1516 : vector<2x16xf32>
    %1518 = arith.mulf %1517, %38 : vector<2x16xf32>
    %1519 = arith.addf %1518, %40 : vector<2x16xf32>
    %1520 = vector.extract_strided_slice %1519 {offsets = [0, 0], sizes = [2, 4], strides = [1, 1]} : vector<2x16xf32> to vector<2x4xf32>
    %1521 = vector.extract_strided_slice %1519 {offsets = [0, 4], sizes = [2, 4], strides = [1, 1]} : vector<2x16xf32> to vector<2x4xf32>
    %1522 = vector.extract_strided_slice %1519 {offsets = [0, 8], sizes = [2, 4], strides = [1, 1]} : vector<2x16xf32> to vector<2x4xf32>
    %1523 = vector.extract_strided_slice %1519 {offsets = [0, 12], sizes = [2, 4], strides = [1, 1]} : vector<2x16xf32> to vector<2x4xf32>
    %1524 = arith.mulf %1521, %1497 : vector<2x4xf32>
    %1525 = arith.mulf %1520, %1523 : vector<2x4xf32>
    %1526 = arith.addf %1524, %1525 : vector<2x4xf32>
    %1527 = math.tanh %1526 : vector<2x4xf32>
    %1528 = arith.mulf %1522, %1527 : vector<2x4xf32>
    %1529 = vector.extract_strided_slice %1311 {offsets = [14, 0], sizes = [2, 16], strides = [1, 1]} : vector<16x16xf32> to vector<2x16xf32>
    %1530 = vector.extract_strided_slice %1528 {offsets = [0, 0], sizes = [2, 1], strides = [1, 1]} : vector<2x4xf32> to vector<2x1xf32>
    %1531 = vector.broadcast %1530 : vector<2x1xf32> to vector<2x16xf32>
    %1532 = arith.mulf %1531, %1314 : vector<2x16xf32>
    %1533 = vector.extract_strided_slice %1528 {offsets = [0, 1], sizes = [2, 1], strides = [1, 1]} : vector<2x4xf32> to vector<2x1xf32>
    %1534 = vector.broadcast %1533 : vector<2x1xf32> to vector<2x16xf32>
    %1535 = arith.mulf %1534, %1317 : vector<2x16xf32>
    %1536 = vector.extract_strided_slice %1528 {offsets = [0, 2], sizes = [2, 1], strides = [1, 1]} : vector<2x4xf32> to vector<2x1xf32>
    %1537 = vector.broadcast %1536 : vector<2x1xf32> to vector<2x16xf32>
    %1538 = arith.mulf %1537, %1320 : vector<2x16xf32>
    %1539 = vector.extract_strided_slice %1528 {offsets = [0, 3], sizes = [2, 1], strides = [1, 1]} : vector<2x4xf32> to vector<2x1xf32>
    %1540 = vector.broadcast %1539 : vector<2x1xf32> to vector<2x16xf32>
    %1541 = arith.mulf %1540, %1323 : vector<2x16xf32>
    %1542 = arith.addf %1532, %1535 : vector<2x16xf32>
    %1543 = arith.addf %1538, %1541 : vector<2x16xf32>
    %1544 = arith.addf %1542, %1543 : vector<2x16xf32>
    %1545 = arith.addf %1529, %1544 : vector<2x16xf32>
    %1546 = math.tanh %1545 : vector<2x16xf32>
    %1547 = arith.mulf %1546, %38 : vector<2x16xf32>
    %1548 = arith.addf %1547, %40 : vector<2x16xf32>
    %1549 = vector.extract_strided_slice %1548 {offsets = [0, 0], sizes = [2, 4], strides = [1, 1]} : vector<2x16xf32> to vector<2x4xf32>
    %1550 = vector.extract_strided_slice %1548 {offsets = [0, 4], sizes = [2, 4], strides = [1, 1]} : vector<2x16xf32> to vector<2x4xf32>
    %1551 = vector.extract_strided_slice %1548 {offsets = [0, 8], sizes = [2, 4], strides = [1, 1]} : vector<2x16xf32> to vector<2x4xf32>
    %1552 = vector.extract_strided_slice %1548 {offsets = [0, 12], sizes = [2, 4], strides = [1, 1]} : vector<2x16xf32> to vector<2x4xf32>
    %1553 = arith.mulf %1550, %1526 : vector<2x4xf32>
    %1554 = arith.mulf %1549, %1552 : vector<2x4xf32>
    %1555 = arith.addf %1553, %1554 : vector<2x4xf32>
    %1556 = math.tanh %1555 : vector<2x4xf32>
    %1557 = arith.mulf %1551, %1556 : vector<2x4xf32>
    %1558 = tpu.concatenate %1354, %1383, %1412, %1441, %1470, %1499, %1528, %1557 in 0 : vector<2x4xf32>, vector<2x4xf32>, vector<2x4xf32>, vector<2x4xf32>, vector<2x4xf32>, vector<2x4xf32>, vector<2x4xf32>, vector<2x4xf32> -> vector<16x4xf32>
    %c36_59 = arith.constant 36 : index
    %c0_60 = arith.constant 0 : index
    %1559 = vector.load %arg1[%c36_59, %c0_60] : memref<80x128xf32, #tpu.memory_space<vmem>>, vector<4x16xf32>
    %c52_61 = arith.constant 52 : index
    %c0_62 = arith.constant 0 : index
    %1560 = vector.load %arg1[%c52_61, %c0_62] : memref<80x128xf32, #tpu.memory_space<vmem>>, vector<4x16xf32>
    %c62_63 = arith.constant 62 : index
    %c0_64 = arith.constant 0 : index
    %1561 = vector.load %arg1[%c62_63, %c0_64] : memref<80x128xf32, #tpu.memory_space<vmem>>, vector<1x16xf32>
    %cst_65 = arith.constant dense<0.000000e+00> : vector<16x16xf32>
    %1562 = tpu.matmul %1558, %1559, %cst_65 {dimension_numbers = #tpu.dot_dimension_numbers<[1], [0], [0], [1], [0, 0, 1, 1], [], []>} : vector<16x4xf32>, vector<4x16xf32>, vector<16x16xf32> -> vector<16x16xf32>
    %1563 = vector.broadcast %1561 : vector<1x16xf32> to vector<16x16xf32>
    %1564 = arith.addf %1562, %1563 : vector<16x16xf32>
    %1565 = vector.extract_strided_slice %1560 {offsets = [0, 0], sizes = [1, 16], strides = [1, 1]} : vector<4x16xf32> to vector<1x16xf32>
    %1566 = vector.shape_cast %1565 : vector<1x16xf32> to vector<1x16xf32>
    %1567 = vector.broadcast %1566 : vector<1x16xf32> to vector<2x16xf32>
    %1568 = vector.extract_strided_slice %1560 {offsets = [1, 0], sizes = [1, 16], strides = [1, 1]} : vector<4x16xf32> to vector<1x16xf32>
    %1569 = vector.shape_cast %1568 : vector<1x16xf32> to vector<1x16xf32>
    %1570 = vector.broadcast %1569 : vector<1x16xf32> to vector<2x16xf32>
    %1571 = vector.extract_strided_slice %1560 {offsets = [2, 0], sizes = [1, 16], strides = [1, 1]} : vector<4x16xf32> to vector<1x16xf32>
    %1572 = vector.shape_cast %1571 : vector<1x16xf32> to vector<1x16xf32>
    %1573 = vector.broadcast %1572 : vector<1x16xf32> to vector<2x16xf32>
    %1574 = vector.extract_strided_slice %1560 {offsets = [3, 0], sizes = [1, 16], strides = [1, 1]} : vector<4x16xf32> to vector<1x16xf32>
    %1575 = vector.shape_cast %1574 : vector<1x16xf32> to vector<1x16xf32>
    %1576 = vector.broadcast %1575 : vector<1x16xf32> to vector<2x16xf32>
    %cst_66 = arith.constant 0.000000e+00 : f32
    %1577 = vector.broadcast %cst_66 : f32 to vector<2x4xf32>
    %cst_67 = arith.constant 0.000000e+00 : f32
    %1578 = vector.broadcast %cst_67 : f32 to vector<2x4xf32>
    %1579 = vector.extract_strided_slice %1564 {offsets = [0, 0], sizes = [2, 16], strides = [1, 1]} : vector<16x16xf32> to vector<2x16xf32>
    %1580 = vector.extract_strided_slice %1577 {offsets = [0, 0], sizes = [2, 1], strides = [1, 1]} : vector<2x4xf32> to vector<2x1xf32>
    %1581 = vector.broadcast %1580 : vector<2x1xf32> to vector<2x16xf32>
    %1582 = arith.mulf %1581, %1567 : vector<2x16xf32>
    %1583 = vector.extract_strided_slice %1577 {offsets = [0, 1], sizes = [2, 1], strides = [1, 1]} : vector<2x4xf32> to vector<2x1xf32>
    %1584 = vector.broadcast %1583 : vector<2x1xf32> to vector<2x16xf32>
    %1585 = arith.mulf %1584, %1570 : vector<2x16xf32>
    %1586 = vector.extract_strided_slice %1577 {offsets = [0, 2], sizes = [2, 1], strides = [1, 1]} : vector<2x4xf32> to vector<2x1xf32>
    %1587 = vector.broadcast %1586 : vector<2x1xf32> to vector<2x16xf32>
    %1588 = arith.mulf %1587, %1573 : vector<2x16xf32>
    %1589 = vector.extract_strided_slice %1577 {offsets = [0, 3], sizes = [2, 1], strides = [1, 1]} : vector<2x4xf32> to vector<2x1xf32>
    %1590 = vector.broadcast %1589 : vector<2x1xf32> to vector<2x16xf32>
    %1591 = arith.mulf %1590, %1576 : vector<2x16xf32>
    %1592 = arith.addf %1582, %1585 : vector<2x16xf32>
    %1593 = arith.addf %1588, %1591 : vector<2x16xf32>
    %1594 = arith.addf %1592, %1593 : vector<2x16xf32>
    %1595 = arith.addf %1579, %1594 : vector<2x16xf32>
    %1596 = math.tanh %1595 : vector<2x16xf32>
    %1597 = arith.mulf %1596, %38 : vector<2x16xf32>
    %1598 = arith.addf %1597, %40 : vector<2x16xf32>
    %1599 = vector.extract_strided_slice %1598 {offsets = [0, 0], sizes = [2, 4], strides = [1, 1]} : vector<2x16xf32> to vector<2x4xf32>
    %1600 = vector.extract_strided_slice %1598 {offsets = [0, 4], sizes = [2, 4], strides = [1, 1]} : vector<2x16xf32> to vector<2x4xf32>
    %1601 = vector.extract_strided_slice %1598 {offsets = [0, 8], sizes = [2, 4], strides = [1, 1]} : vector<2x16xf32> to vector<2x4xf32>
    %1602 = vector.extract_strided_slice %1598 {offsets = [0, 12], sizes = [2, 4], strides = [1, 1]} : vector<2x16xf32> to vector<2x4xf32>
    %1603 = arith.mulf %1600, %1578 : vector<2x4xf32>
    %1604 = arith.mulf %1599, %1602 : vector<2x4xf32>
    %1605 = arith.addf %1603, %1604 : vector<2x4xf32>
    %1606 = math.tanh %1605 : vector<2x4xf32>
    %1607 = arith.mulf %1601, %1606 : vector<2x4xf32>
    %1608 = vector.extract_strided_slice %1564 {offsets = [2, 0], sizes = [2, 16], strides = [1, 1]} : vector<16x16xf32> to vector<2x16xf32>
    %1609 = vector.extract_strided_slice %1607 {offsets = [0, 0], sizes = [2, 1], strides = [1, 1]} : vector<2x4xf32> to vector<2x1xf32>
    %1610 = vector.broadcast %1609 : vector<2x1xf32> to vector<2x16xf32>
    %1611 = arith.mulf %1610, %1567 : vector<2x16xf32>
    %1612 = vector.extract_strided_slice %1607 {offsets = [0, 1], sizes = [2, 1], strides = [1, 1]} : vector<2x4xf32> to vector<2x1xf32>
    %1613 = vector.broadcast %1612 : vector<2x1xf32> to vector<2x16xf32>
    %1614 = arith.mulf %1613, %1570 : vector<2x16xf32>
    %1615 = vector.extract_strided_slice %1607 {offsets = [0, 2], sizes = [2, 1], strides = [1, 1]} : vector<2x4xf32> to vector<2x1xf32>
    %1616 = vector.broadcast %1615 : vector<2x1xf32> to vector<2x16xf32>
    %1617 = arith.mulf %1616, %1573 : vector<2x16xf32>
    %1618 = vector.extract_strided_slice %1607 {offsets = [0, 3], sizes = [2, 1], strides = [1, 1]} : vector<2x4xf32> to vector<2x1xf32>
    %1619 = vector.broadcast %1618 : vector<2x1xf32> to vector<2x16xf32>
    %1620 = arith.mulf %1619, %1576 : vector<2x16xf32>
    %1621 = arith.addf %1611, %1614 : vector<2x16xf32>
    %1622 = arith.addf %1617, %1620 : vector<2x16xf32>
    %1623 = arith.addf %1621, %1622 : vector<2x16xf32>
    %1624 = arith.addf %1608, %1623 : vector<2x16xf32>
    %1625 = math.tanh %1624 : vector<2x16xf32>
    %1626 = arith.mulf %1625, %38 : vector<2x16xf32>
    %1627 = arith.addf %1626, %40 : vector<2x16xf32>
    %1628 = vector.extract_strided_slice %1627 {offsets = [0, 0], sizes = [2, 4], strides = [1, 1]} : vector<2x16xf32> to vector<2x4xf32>
    %1629 = vector.extract_strided_slice %1627 {offsets = [0, 4], sizes = [2, 4], strides = [1, 1]} : vector<2x16xf32> to vector<2x4xf32>
    %1630 = vector.extract_strided_slice %1627 {offsets = [0, 8], sizes = [2, 4], strides = [1, 1]} : vector<2x16xf32> to vector<2x4xf32>
    %1631 = vector.extract_strided_slice %1627 {offsets = [0, 12], sizes = [2, 4], strides = [1, 1]} : vector<2x16xf32> to vector<2x4xf32>
    %1632 = arith.mulf %1629, %1605 : vector<2x4xf32>
    %1633 = arith.mulf %1628, %1631 : vector<2x4xf32>
    %1634 = arith.addf %1632, %1633 : vector<2x4xf32>
    %1635 = math.tanh %1634 : vector<2x4xf32>
    %1636 = arith.mulf %1630, %1635 : vector<2x4xf32>
    %1637 = vector.extract_strided_slice %1564 {offsets = [4, 0], sizes = [2, 16], strides = [1, 1]} : vector<16x16xf32> to vector<2x16xf32>
    %1638 = vector.extract_strided_slice %1636 {offsets = [0, 0], sizes = [2, 1], strides = [1, 1]} : vector<2x4xf32> to vector<2x1xf32>
    %1639 = vector.broadcast %1638 : vector<2x1xf32> to vector<2x16xf32>
    %1640 = arith.mulf %1639, %1567 : vector<2x16xf32>
    %1641 = vector.extract_strided_slice %1636 {offsets = [0, 1], sizes = [2, 1], strides = [1, 1]} : vector<2x4xf32> to vector<2x1xf32>
    %1642 = vector.broadcast %1641 : vector<2x1xf32> to vector<2x16xf32>
    %1643 = arith.mulf %1642, %1570 : vector<2x16xf32>
    %1644 = vector.extract_strided_slice %1636 {offsets = [0, 2], sizes = [2, 1], strides = [1, 1]} : vector<2x4xf32> to vector<2x1xf32>
    %1645 = vector.broadcast %1644 : vector<2x1xf32> to vector<2x16xf32>
    %1646 = arith.mulf %1645, %1573 : vector<2x16xf32>
    %1647 = vector.extract_strided_slice %1636 {offsets = [0, 3], sizes = [2, 1], strides = [1, 1]} : vector<2x4xf32> to vector<2x1xf32>
    %1648 = vector.broadcast %1647 : vector<2x1xf32> to vector<2x16xf32>
    %1649 = arith.mulf %1648, %1576 : vector<2x16xf32>
    %1650 = arith.addf %1640, %1643 : vector<2x16xf32>
    %1651 = arith.addf %1646, %1649 : vector<2x16xf32>
    %1652 = arith.addf %1650, %1651 : vector<2x16xf32>
    %1653 = arith.addf %1637, %1652 : vector<2x16xf32>
    %1654 = math.tanh %1653 : vector<2x16xf32>
    %1655 = arith.mulf %1654, %38 : vector<2x16xf32>
    %1656 = arith.addf %1655, %40 : vector<2x16xf32>
    %1657 = vector.extract_strided_slice %1656 {offsets = [0, 0], sizes = [2, 4], strides = [1, 1]} : vector<2x16xf32> to vector<2x4xf32>
    %1658 = vector.extract_strided_slice %1656 {offsets = [0, 4], sizes = [2, 4], strides = [1, 1]} : vector<2x16xf32> to vector<2x4xf32>
    %1659 = vector.extract_strided_slice %1656 {offsets = [0, 8], sizes = [2, 4], strides = [1, 1]} : vector<2x16xf32> to vector<2x4xf32>
    %1660 = vector.extract_strided_slice %1656 {offsets = [0, 12], sizes = [2, 4], strides = [1, 1]} : vector<2x16xf32> to vector<2x4xf32>
    %1661 = arith.mulf %1658, %1634 : vector<2x4xf32>
    %1662 = arith.mulf %1657, %1660 : vector<2x4xf32>
    %1663 = arith.addf %1661, %1662 : vector<2x4xf32>
    %1664 = math.tanh %1663 : vector<2x4xf32>
    %1665 = arith.mulf %1659, %1664 : vector<2x4xf32>
    %1666 = vector.extract_strided_slice %1564 {offsets = [6, 0], sizes = [2, 16], strides = [1, 1]} : vector<16x16xf32> to vector<2x16xf32>
    %1667 = vector.extract_strided_slice %1665 {offsets = [0, 0], sizes = [2, 1], strides = [1, 1]} : vector<2x4xf32> to vector<2x1xf32>
    %1668 = vector.broadcast %1667 : vector<2x1xf32> to vector<2x16xf32>
    %1669 = arith.mulf %1668, %1567 : vector<2x16xf32>
    %1670 = vector.extract_strided_slice %1665 {offsets = [0, 1], sizes = [2, 1], strides = [1, 1]} : vector<2x4xf32> to vector<2x1xf32>
    %1671 = vector.broadcast %1670 : vector<2x1xf32> to vector<2x16xf32>
    %1672 = arith.mulf %1671, %1570 : vector<2x16xf32>
    %1673 = vector.extract_strided_slice %1665 {offsets = [0, 2], sizes = [2, 1], strides = [1, 1]} : vector<2x4xf32> to vector<2x1xf32>
    %1674 = vector.broadcast %1673 : vector<2x1xf32> to vector<2x16xf32>
    %1675 = arith.mulf %1674, %1573 : vector<2x16xf32>
    %1676 = vector.extract_strided_slice %1665 {offsets = [0, 3], sizes = [2, 1], strides = [1, 1]} : vector<2x4xf32> to vector<2x1xf32>
    %1677 = vector.broadcast %1676 : vector<2x1xf32> to vector<2x16xf32>
    %1678 = arith.mulf %1677, %1576 : vector<2x16xf32>
    %1679 = arith.addf %1669, %1672 : vector<2x16xf32>
    %1680 = arith.addf %1675, %1678 : vector<2x16xf32>
    %1681 = arith.addf %1679, %1680 : vector<2x16xf32>
    %1682 = arith.addf %1666, %1681 : vector<2x16xf32>
    %1683 = math.tanh %1682 : vector<2x16xf32>
    %1684 = arith.mulf %1683, %38 : vector<2x16xf32>
    %1685 = arith.addf %1684, %40 : vector<2x16xf32>
    %1686 = vector.extract_strided_slice %1685 {offsets = [0, 0], sizes = [2, 4], strides = [1, 1]} : vector<2x16xf32> to vector<2x4xf32>
    %1687 = vector.extract_strided_slice %1685 {offsets = [0, 4], sizes = [2, 4], strides = [1, 1]} : vector<2x16xf32> to vector<2x4xf32>
    %1688 = vector.extract_strided_slice %1685 {offsets = [0, 8], sizes = [2, 4], strides = [1, 1]} : vector<2x16xf32> to vector<2x4xf32>
    %1689 = vector.extract_strided_slice %1685 {offsets = [0, 12], sizes = [2, 4], strides = [1, 1]} : vector<2x16xf32> to vector<2x4xf32>
    %1690 = arith.mulf %1687, %1663 : vector<2x4xf32>
    %1691 = arith.mulf %1686, %1689 : vector<2x4xf32>
    %1692 = arith.addf %1690, %1691 : vector<2x4xf32>
    %1693 = math.tanh %1692 : vector<2x4xf32>
    %1694 = arith.mulf %1688, %1693 : vector<2x4xf32>
    %1695 = vector.extract_strided_slice %1564 {offsets = [8, 0], sizes = [2, 16], strides = [1, 1]} : vector<16x16xf32> to vector<2x16xf32>
    %1696 = vector.extract_strided_slice %1694 {offsets = [0, 0], sizes = [2, 1], strides = [1, 1]} : vector<2x4xf32> to vector<2x1xf32>
    %1697 = vector.broadcast %1696 : vector<2x1xf32> to vector<2x16xf32>
    %1698 = arith.mulf %1697, %1567 : vector<2x16xf32>
    %1699 = vector.extract_strided_slice %1694 {offsets = [0, 1], sizes = [2, 1], strides = [1, 1]} : vector<2x4xf32> to vector<2x1xf32>
    %1700 = vector.broadcast %1699 : vector<2x1xf32> to vector<2x16xf32>
    %1701 = arith.mulf %1700, %1570 : vector<2x16xf32>
    %1702 = vector.extract_strided_slice %1694 {offsets = [0, 2], sizes = [2, 1], strides = [1, 1]} : vector<2x4xf32> to vector<2x1xf32>
    %1703 = vector.broadcast %1702 : vector<2x1xf32> to vector<2x16xf32>
    %1704 = arith.mulf %1703, %1573 : vector<2x16xf32>
    %1705 = vector.extract_strided_slice %1694 {offsets = [0, 3], sizes = [2, 1], strides = [1, 1]} : vector<2x4xf32> to vector<2x1xf32>
    %1706 = vector.broadcast %1705 : vector<2x1xf32> to vector<2x16xf32>
    %1707 = arith.mulf %1706, %1576 : vector<2x16xf32>
    %1708 = arith.addf %1698, %1701 : vector<2x16xf32>
    %1709 = arith.addf %1704, %1707 : vector<2x16xf32>
    %1710 = arith.addf %1708, %1709 : vector<2x16xf32>
    %1711 = arith.addf %1695, %1710 : vector<2x16xf32>
    %1712 = math.tanh %1711 : vector<2x16xf32>
    %1713 = arith.mulf %1712, %38 : vector<2x16xf32>
    %1714 = arith.addf %1713, %40 : vector<2x16xf32>
    %1715 = vector.extract_strided_slice %1714 {offsets = [0, 0], sizes = [2, 4], strides = [1, 1]} : vector<2x16xf32> to vector<2x4xf32>
    %1716 = vector.extract_strided_slice %1714 {offsets = [0, 4], sizes = [2, 4], strides = [1, 1]} : vector<2x16xf32> to vector<2x4xf32>
    %1717 = vector.extract_strided_slice %1714 {offsets = [0, 8], sizes = [2, 4], strides = [1, 1]} : vector<2x16xf32> to vector<2x4xf32>
    %1718 = vector.extract_strided_slice %1714 {offsets = [0, 12], sizes = [2, 4], strides = [1, 1]} : vector<2x16xf32> to vector<2x4xf32>
    %1719 = arith.mulf %1716, %1692 : vector<2x4xf32>
    %1720 = arith.mulf %1715, %1718 : vector<2x4xf32>
    %1721 = arith.addf %1719, %1720 : vector<2x4xf32>
    %1722 = math.tanh %1721 : vector<2x4xf32>
    %1723 = arith.mulf %1717, %1722 : vector<2x4xf32>
    %1724 = vector.extract_strided_slice %1564 {offsets = [10, 0], sizes = [2, 16], strides = [1, 1]} : vector<16x16xf32> to vector<2x16xf32>
    %1725 = vector.extract_strided_slice %1723 {offsets = [0, 0], sizes = [2, 1], strides = [1, 1]} : vector<2x4xf32> to vector<2x1xf32>
    %1726 = vector.broadcast %1725 : vector<2x1xf32> to vector<2x16xf32>
    %1727 = arith.mulf %1726, %1567 : vector<2x16xf32>
    %1728 = vector.extract_strided_slice %1723 {offsets = [0, 1], sizes = [2, 1], strides = [1, 1]} : vector<2x4xf32> to vector<2x1xf32>
    %1729 = vector.broadcast %1728 : vector<2x1xf32> to vector<2x16xf32>
    %1730 = arith.mulf %1729, %1570 : vector<2x16xf32>
    %1731 = vector.extract_strided_slice %1723 {offsets = [0, 2], sizes = [2, 1], strides = [1, 1]} : vector<2x4xf32> to vector<2x1xf32>
    %1732 = vector.broadcast %1731 : vector<2x1xf32> to vector<2x16xf32>
    %1733 = arith.mulf %1732, %1573 : vector<2x16xf32>
    %1734 = vector.extract_strided_slice %1723 {offsets = [0, 3], sizes = [2, 1], strides = [1, 1]} : vector<2x4xf32> to vector<2x1xf32>
    %1735 = vector.broadcast %1734 : vector<2x1xf32> to vector<2x16xf32>
    %1736 = arith.mulf %1735, %1576 : vector<2x16xf32>
    %1737 = arith.addf %1727, %1730 : vector<2x16xf32>
    %1738 = arith.addf %1733, %1736 : vector<2x16xf32>
    %1739 = arith.addf %1737, %1738 : vector<2x16xf32>
    %1740 = arith.addf %1724, %1739 : vector<2x16xf32>
    %1741 = math.tanh %1740 : vector<2x16xf32>
    %1742 = arith.mulf %1741, %38 : vector<2x16xf32>
    %1743 = arith.addf %1742, %40 : vector<2x16xf32>
    %1744 = vector.extract_strided_slice %1743 {offsets = [0, 0], sizes = [2, 4], strides = [1, 1]} : vector<2x16xf32> to vector<2x4xf32>
    %1745 = vector.extract_strided_slice %1743 {offsets = [0, 4], sizes = [2, 4], strides = [1, 1]} : vector<2x16xf32> to vector<2x4xf32>
    %1746 = vector.extract_strided_slice %1743 {offsets = [0, 8], sizes = [2, 4], strides = [1, 1]} : vector<2x16xf32> to vector<2x4xf32>
    %1747 = vector.extract_strided_slice %1743 {offsets = [0, 12], sizes = [2, 4], strides = [1, 1]} : vector<2x16xf32> to vector<2x4xf32>
    %1748 = arith.mulf %1745, %1721 : vector<2x4xf32>
    %1749 = arith.mulf %1744, %1747 : vector<2x4xf32>
    %1750 = arith.addf %1748, %1749 : vector<2x4xf32>
    %1751 = math.tanh %1750 : vector<2x4xf32>
    %1752 = arith.mulf %1746, %1751 : vector<2x4xf32>
    %1753 = vector.extract_strided_slice %1564 {offsets = [12, 0], sizes = [2, 16], strides = [1, 1]} : vector<16x16xf32> to vector<2x16xf32>
    %1754 = vector.extract_strided_slice %1752 {offsets = [0, 0], sizes = [2, 1], strides = [1, 1]} : vector<2x4xf32> to vector<2x1xf32>
    %1755 = vector.broadcast %1754 : vector<2x1xf32> to vector<2x16xf32>
    %1756 = arith.mulf %1755, %1567 : vector<2x16xf32>
    %1757 = vector.extract_strided_slice %1752 {offsets = [0, 1], sizes = [2, 1], strides = [1, 1]} : vector<2x4xf32> to vector<2x1xf32>
    %1758 = vector.broadcast %1757 : vector<2x1xf32> to vector<2x16xf32>
    %1759 = arith.mulf %1758, %1570 : vector<2x16xf32>
    %1760 = vector.extract_strided_slice %1752 {offsets = [0, 2], sizes = [2, 1], strides = [1, 1]} : vector<2x4xf32> to vector<2x1xf32>
    %1761 = vector.broadcast %1760 : vector<2x1xf32> to vector<2x16xf32>
    %1762 = arith.mulf %1761, %1573 : vector<2x16xf32>
    %1763 = vector.extract_strided_slice %1752 {offsets = [0, 3], sizes = [2, 1], strides = [1, 1]} : vector<2x4xf32> to vector<2x1xf32>
    %1764 = vector.broadcast %1763 : vector<2x1xf32> to vector<2x16xf32>
    %1765 = arith.mulf %1764, %1576 : vector<2x16xf32>
    %1766 = arith.addf %1756, %1759 : vector<2x16xf32>
    %1767 = arith.addf %1762, %1765 : vector<2x16xf32>
    %1768 = arith.addf %1766, %1767 : vector<2x16xf32>
    %1769 = arith.addf %1753, %1768 : vector<2x16xf32>
    %1770 = math.tanh %1769 : vector<2x16xf32>
    %1771 = arith.mulf %1770, %38 : vector<2x16xf32>
    %1772 = arith.addf %1771, %40 : vector<2x16xf32>
    %1773 = vector.extract_strided_slice %1772 {offsets = [0, 0], sizes = [2, 4], strides = [1, 1]} : vector<2x16xf32> to vector<2x4xf32>
    %1774 = vector.extract_strided_slice %1772 {offsets = [0, 4], sizes = [2, 4], strides = [1, 1]} : vector<2x16xf32> to vector<2x4xf32>
    %1775 = vector.extract_strided_slice %1772 {offsets = [0, 8], sizes = [2, 4], strides = [1, 1]} : vector<2x16xf32> to vector<2x4xf32>
    %1776 = vector.extract_strided_slice %1772 {offsets = [0, 12], sizes = [2, 4], strides = [1, 1]} : vector<2x16xf32> to vector<2x4xf32>
    %1777 = arith.mulf %1774, %1750 : vector<2x4xf32>
    %1778 = arith.mulf %1773, %1776 : vector<2x4xf32>
    %1779 = arith.addf %1777, %1778 : vector<2x4xf32>
    %1780 = math.tanh %1779 : vector<2x4xf32>
    %1781 = arith.mulf %1775, %1780 : vector<2x4xf32>
    %1782 = vector.extract_strided_slice %1564 {offsets = [14, 0], sizes = [2, 16], strides = [1, 1]} : vector<16x16xf32> to vector<2x16xf32>
    %1783 = vector.extract_strided_slice %1781 {offsets = [0, 0], sizes = [2, 1], strides = [1, 1]} : vector<2x4xf32> to vector<2x1xf32>
    %1784 = vector.broadcast %1783 : vector<2x1xf32> to vector<2x16xf32>
    %1785 = arith.mulf %1784, %1567 : vector<2x16xf32>
    %1786 = vector.extract_strided_slice %1781 {offsets = [0, 1], sizes = [2, 1], strides = [1, 1]} : vector<2x4xf32> to vector<2x1xf32>
    %1787 = vector.broadcast %1786 : vector<2x1xf32> to vector<2x16xf32>
    %1788 = arith.mulf %1787, %1570 : vector<2x16xf32>
    %1789 = vector.extract_strided_slice %1781 {offsets = [0, 2], sizes = [2, 1], strides = [1, 1]} : vector<2x4xf32> to vector<2x1xf32>
    %1790 = vector.broadcast %1789 : vector<2x1xf32> to vector<2x16xf32>
    %1791 = arith.mulf %1790, %1573 : vector<2x16xf32>
    %1792 = vector.extract_strided_slice %1781 {offsets = [0, 3], sizes = [2, 1], strides = [1, 1]} : vector<2x4xf32> to vector<2x1xf32>
    %1793 = vector.broadcast %1792 : vector<2x1xf32> to vector<2x16xf32>
    %1794 = arith.mulf %1793, %1576 : vector<2x16xf32>
    %1795 = arith.addf %1785, %1788 : vector<2x16xf32>
    %1796 = arith.addf %1791, %1794 : vector<2x16xf32>
    %1797 = arith.addf %1795, %1796 : vector<2x16xf32>
    %1798 = arith.addf %1782, %1797 : vector<2x16xf32>
    %1799 = math.tanh %1798 : vector<2x16xf32>
    %1800 = arith.mulf %1799, %38 : vector<2x16xf32>
    %1801 = arith.addf %1800, %40 : vector<2x16xf32>
    %1802 = vector.extract_strided_slice %1801 {offsets = [0, 0], sizes = [2, 4], strides = [1, 1]} : vector<2x16xf32> to vector<2x4xf32>
    %1803 = vector.extract_strided_slice %1801 {offsets = [0, 4], sizes = [2, 4], strides = [1, 1]} : vector<2x16xf32> to vector<2x4xf32>
    %1804 = vector.extract_strided_slice %1801 {offsets = [0, 8], sizes = [2, 4], strides = [1, 1]} : vector<2x16xf32> to vector<2x4xf32>
    %1805 = vector.extract_strided_slice %1801 {offsets = [0, 12], sizes = [2, 4], strides = [1, 1]} : vector<2x16xf32> to vector<2x4xf32>
    %1806 = arith.mulf %1803, %1779 : vector<2x4xf32>
    %1807 = arith.mulf %1802, %1805 : vector<2x4xf32>
    %1808 = arith.addf %1806, %1807 : vector<2x4xf32>
    %1809 = math.tanh %1808 : vector<2x4xf32>
    %1810 = arith.mulf %1804, %1809 : vector<2x4xf32>
    %1811 = tpu.concatenate %1607, %1636, %1665, %1694, %1723, %1752, %1781, %1810 in 0 : vector<2x4xf32>, vector<2x4xf32>, vector<2x4xf32>, vector<2x4xf32>, vector<2x4xf32>, vector<2x4xf32>, vector<2x4xf32>, vector<2x4xf32> -> vector<16x4xf32>
    %c40_68 = arith.constant 40 : index
    %c0_69 = arith.constant 0 : index
    %1812 = vector.load %arg1[%c40_68, %c0_69] : memref<80x128xf32, #tpu.memory_space<vmem>>, vector<4x16xf32>
    %c56_70 = arith.constant 56 : index
    %c0_71 = arith.constant 0 : index
    %1813 = vector.load %arg1[%c56_70, %c0_71] : memref<80x128xf32, #tpu.memory_space<vmem>>, vector<4x16xf32>
    %c63_72 = arith.constant 63 : index
    %c0_73 = arith.constant 0 : index
    %1814 = vector.load %arg1[%c63_72, %c0_73] : memref<80x128xf32, #tpu.memory_space<vmem>>, vector<1x16xf32>
    %cst_74 = arith.constant dense<0.000000e+00> : vector<16x16xf32>
    %1815 = tpu.matmul %1811, %1812, %cst_74 {dimension_numbers = #tpu.dot_dimension_numbers<[1], [0], [0], [1], [0, 0, 1, 1], [], []>} : vector<16x4xf32>, vector<4x16xf32>, vector<16x16xf32> -> vector<16x16xf32>
    %1816 = vector.broadcast %1814 : vector<1x16xf32> to vector<16x16xf32>
    %1817 = arith.addf %1815, %1816 : vector<16x16xf32>
    %1818 = vector.extract_strided_slice %1813 {offsets = [0, 0], sizes = [1, 16], strides = [1, 1]} : vector<4x16xf32> to vector<1x16xf32>
    %1819 = vector.shape_cast %1818 : vector<1x16xf32> to vector<1x16xf32>
    %1820 = vector.broadcast %1819 : vector<1x16xf32> to vector<2x16xf32>
    %1821 = vector.extract_strided_slice %1813 {offsets = [1, 0], sizes = [1, 16], strides = [1, 1]} : vector<4x16xf32> to vector<1x16xf32>
    %1822 = vector.shape_cast %1821 : vector<1x16xf32> to vector<1x16xf32>
    %1823 = vector.broadcast %1822 : vector<1x16xf32> to vector<2x16xf32>
    %1824 = vector.extract_strided_slice %1813 {offsets = [2, 0], sizes = [1, 16], strides = [1, 1]} : vector<4x16xf32> to vector<1x16xf32>
    %1825 = vector.shape_cast %1824 : vector<1x16xf32> to vector<1x16xf32>
    %1826 = vector.broadcast %1825 : vector<1x16xf32> to vector<2x16xf32>
    %1827 = vector.extract_strided_slice %1813 {offsets = [3, 0], sizes = [1, 16], strides = [1, 1]} : vector<4x16xf32> to vector<1x16xf32>
    %1828 = vector.shape_cast %1827 : vector<1x16xf32> to vector<1x16xf32>
    %1829 = vector.broadcast %1828 : vector<1x16xf32> to vector<2x16xf32>
    %cst_75 = arith.constant 0.000000e+00 : f32
    %1830 = vector.broadcast %cst_75 : f32 to vector<2x4xf32>
    %cst_76 = arith.constant 0.000000e+00 : f32
    %1831 = vector.broadcast %cst_76 : f32 to vector<2x4xf32>
    %1832 = vector.extract_strided_slice %1817 {offsets = [0, 0], sizes = [2, 16], strides = [1, 1]} : vector<16x16xf32> to vector<2x16xf32>
    %1833 = vector.extract_strided_slice %1830 {offsets = [0, 0], sizes = [2, 1], strides = [1, 1]} : vector<2x4xf32> to vector<2x1xf32>
    %1834 = vector.broadcast %1833 : vector<2x1xf32> to vector<2x16xf32>
    %1835 = arith.mulf %1834, %1820 : vector<2x16xf32>
    %1836 = vector.extract_strided_slice %1830 {offsets = [0, 1], sizes = [2, 1], strides = [1, 1]} : vector<2x4xf32> to vector<2x1xf32>
    %1837 = vector.broadcast %1836 : vector<2x1xf32> to vector<2x16xf32>
    %1838 = arith.mulf %1837, %1823 : vector<2x16xf32>
    %1839 = vector.extract_strided_slice %1830 {offsets = [0, 2], sizes = [2, 1], strides = [1, 1]} : vector<2x4xf32> to vector<2x1xf32>
    %1840 = vector.broadcast %1839 : vector<2x1xf32> to vector<2x16xf32>
    %1841 = arith.mulf %1840, %1826 : vector<2x16xf32>
    %1842 = vector.extract_strided_slice %1830 {offsets = [0, 3], sizes = [2, 1], strides = [1, 1]} : vector<2x4xf32> to vector<2x1xf32>
    %1843 = vector.broadcast %1842 : vector<2x1xf32> to vector<2x16xf32>
    %1844 = arith.mulf %1843, %1829 : vector<2x16xf32>
    %1845 = arith.addf %1835, %1838 : vector<2x16xf32>
    %1846 = arith.addf %1841, %1844 : vector<2x16xf32>
    %1847 = arith.addf %1845, %1846 : vector<2x16xf32>
    %1848 = arith.addf %1832, %1847 : vector<2x16xf32>
    %1849 = math.tanh %1848 : vector<2x16xf32>
    %1850 = arith.mulf %1849, %38 : vector<2x16xf32>
    %1851 = arith.addf %1850, %40 : vector<2x16xf32>
    %1852 = vector.extract_strided_slice %1851 {offsets = [0, 0], sizes = [2, 4], strides = [1, 1]} : vector<2x16xf32> to vector<2x4xf32>
    %1853 = vector.extract_strided_slice %1851 {offsets = [0, 4], sizes = [2, 4], strides = [1, 1]} : vector<2x16xf32> to vector<2x4xf32>
    %1854 = vector.extract_strided_slice %1851 {offsets = [0, 8], sizes = [2, 4], strides = [1, 1]} : vector<2x16xf32> to vector<2x4xf32>
    %1855 = vector.extract_strided_slice %1851 {offsets = [0, 12], sizes = [2, 4], strides = [1, 1]} : vector<2x16xf32> to vector<2x4xf32>
    %1856 = arith.mulf %1853, %1831 : vector<2x4xf32>
    %1857 = arith.mulf %1852, %1855 : vector<2x4xf32>
    %1858 = arith.addf %1856, %1857 : vector<2x4xf32>
    %1859 = math.tanh %1858 : vector<2x4xf32>
    %1860 = arith.mulf %1854, %1859 : vector<2x4xf32>
    %1861 = vector.extract_strided_slice %1817 {offsets = [2, 0], sizes = [2, 16], strides = [1, 1]} : vector<16x16xf32> to vector<2x16xf32>
    %1862 = vector.extract_strided_slice %1860 {offsets = [0, 0], sizes = [2, 1], strides = [1, 1]} : vector<2x4xf32> to vector<2x1xf32>
    %1863 = vector.broadcast %1862 : vector<2x1xf32> to vector<2x16xf32>
    %1864 = arith.mulf %1863, %1820 : vector<2x16xf32>
    %1865 = vector.extract_strided_slice %1860 {offsets = [0, 1], sizes = [2, 1], strides = [1, 1]} : vector<2x4xf32> to vector<2x1xf32>
    %1866 = vector.broadcast %1865 : vector<2x1xf32> to vector<2x16xf32>
    %1867 = arith.mulf %1866, %1823 : vector<2x16xf32>
    %1868 = vector.extract_strided_slice %1860 {offsets = [0, 2], sizes = [2, 1], strides = [1, 1]} : vector<2x4xf32> to vector<2x1xf32>
    %1869 = vector.broadcast %1868 : vector<2x1xf32> to vector<2x16xf32>
    %1870 = arith.mulf %1869, %1826 : vector<2x16xf32>
    %1871 = vector.extract_strided_slice %1860 {offsets = [0, 3], sizes = [2, 1], strides = [1, 1]} : vector<2x4xf32> to vector<2x1xf32>
    %1872 = vector.broadcast %1871 : vector<2x1xf32> to vector<2x16xf32>
    %1873 = arith.mulf %1872, %1829 : vector<2x16xf32>
    %1874 = arith.addf %1864, %1867 : vector<2x16xf32>
    %1875 = arith.addf %1870, %1873 : vector<2x16xf32>
    %1876 = arith.addf %1874, %1875 : vector<2x16xf32>
    %1877 = arith.addf %1861, %1876 : vector<2x16xf32>
    %1878 = math.tanh %1877 : vector<2x16xf32>
    %1879 = arith.mulf %1878, %38 : vector<2x16xf32>
    %1880 = arith.addf %1879, %40 : vector<2x16xf32>
    %1881 = vector.extract_strided_slice %1880 {offsets = [0, 0], sizes = [2, 4], strides = [1, 1]} : vector<2x16xf32> to vector<2x4xf32>
    %1882 = vector.extract_strided_slice %1880 {offsets = [0, 4], sizes = [2, 4], strides = [1, 1]} : vector<2x16xf32> to vector<2x4xf32>
    %1883 = vector.extract_strided_slice %1880 {offsets = [0, 8], sizes = [2, 4], strides = [1, 1]} : vector<2x16xf32> to vector<2x4xf32>
    %1884 = vector.extract_strided_slice %1880 {offsets = [0, 12], sizes = [2, 4], strides = [1, 1]} : vector<2x16xf32> to vector<2x4xf32>
    %1885 = arith.mulf %1882, %1858 : vector<2x4xf32>
    %1886 = arith.mulf %1881, %1884 : vector<2x4xf32>
    %1887 = arith.addf %1885, %1886 : vector<2x4xf32>
    %1888 = math.tanh %1887 : vector<2x4xf32>
    %1889 = arith.mulf %1883, %1888 : vector<2x4xf32>
    %1890 = vector.extract_strided_slice %1817 {offsets = [4, 0], sizes = [2, 16], strides = [1, 1]} : vector<16x16xf32> to vector<2x16xf32>
    %1891 = vector.extract_strided_slice %1889 {offsets = [0, 0], sizes = [2, 1], strides = [1, 1]} : vector<2x4xf32> to vector<2x1xf32>
    %1892 = vector.broadcast %1891 : vector<2x1xf32> to vector<2x16xf32>
    %1893 = arith.mulf %1892, %1820 : vector<2x16xf32>
    %1894 = vector.extract_strided_slice %1889 {offsets = [0, 1], sizes = [2, 1], strides = [1, 1]} : vector<2x4xf32> to vector<2x1xf32>
    %1895 = vector.broadcast %1894 : vector<2x1xf32> to vector<2x16xf32>
    %1896 = arith.mulf %1895, %1823 : vector<2x16xf32>
    %1897 = vector.extract_strided_slice %1889 {offsets = [0, 2], sizes = [2, 1], strides = [1, 1]} : vector<2x4xf32> to vector<2x1xf32>
    %1898 = vector.broadcast %1897 : vector<2x1xf32> to vector<2x16xf32>
    %1899 = arith.mulf %1898, %1826 : vector<2x16xf32>
    %1900 = vector.extract_strided_slice %1889 {offsets = [0, 3], sizes = [2, 1], strides = [1, 1]} : vector<2x4xf32> to vector<2x1xf32>
    %1901 = vector.broadcast %1900 : vector<2x1xf32> to vector<2x16xf32>
    %1902 = arith.mulf %1901, %1829 : vector<2x16xf32>
    %1903 = arith.addf %1893, %1896 : vector<2x16xf32>
    %1904 = arith.addf %1899, %1902 : vector<2x16xf32>
    %1905 = arith.addf %1903, %1904 : vector<2x16xf32>
    %1906 = arith.addf %1890, %1905 : vector<2x16xf32>
    %1907 = math.tanh %1906 : vector<2x16xf32>
    %1908 = arith.mulf %1907, %38 : vector<2x16xf32>
    %1909 = arith.addf %1908, %40 : vector<2x16xf32>
    %1910 = vector.extract_strided_slice %1909 {offsets = [0, 0], sizes = [2, 4], strides = [1, 1]} : vector<2x16xf32> to vector<2x4xf32>
    %1911 = vector.extract_strided_slice %1909 {offsets = [0, 4], sizes = [2, 4], strides = [1, 1]} : vector<2x16xf32> to vector<2x4xf32>
    %1912 = vector.extract_strided_slice %1909 {offsets = [0, 8], sizes = [2, 4], strides = [1, 1]} : vector<2x16xf32> to vector<2x4xf32>
    %1913 = vector.extract_strided_slice %1909 {offsets = [0, 12], sizes = [2, 4], strides = [1, 1]} : vector<2x16xf32> to vector<2x4xf32>
    %1914 = arith.mulf %1911, %1887 : vector<2x4xf32>
    %1915 = arith.mulf %1910, %1913 : vector<2x4xf32>
    %1916 = arith.addf %1914, %1915 : vector<2x4xf32>
    %1917 = math.tanh %1916 : vector<2x4xf32>
    %1918 = arith.mulf %1912, %1917 : vector<2x4xf32>
    %1919 = vector.extract_strided_slice %1817 {offsets = [6, 0], sizes = [2, 16], strides = [1, 1]} : vector<16x16xf32> to vector<2x16xf32>
    %1920 = vector.extract_strided_slice %1918 {offsets = [0, 0], sizes = [2, 1], strides = [1, 1]} : vector<2x4xf32> to vector<2x1xf32>
    %1921 = vector.broadcast %1920 : vector<2x1xf32> to vector<2x16xf32>
    %1922 = arith.mulf %1921, %1820 : vector<2x16xf32>
    %1923 = vector.extract_strided_slice %1918 {offsets = [0, 1], sizes = [2, 1], strides = [1, 1]} : vector<2x4xf32> to vector<2x1xf32>
    %1924 = vector.broadcast %1923 : vector<2x1xf32> to vector<2x16xf32>
    %1925 = arith.mulf %1924, %1823 : vector<2x16xf32>
    %1926 = vector.extract_strided_slice %1918 {offsets = [0, 2], sizes = [2, 1], strides = [1, 1]} : vector<2x4xf32> to vector<2x1xf32>
    %1927 = vector.broadcast %1926 : vector<2x1xf32> to vector<2x16xf32>
    %1928 = arith.mulf %1927, %1826 : vector<2x16xf32>
    %1929 = vector.extract_strided_slice %1918 {offsets = [0, 3], sizes = [2, 1], strides = [1, 1]} : vector<2x4xf32> to vector<2x1xf32>
    %1930 = vector.broadcast %1929 : vector<2x1xf32> to vector<2x16xf32>
    %1931 = arith.mulf %1930, %1829 : vector<2x16xf32>
    %1932 = arith.addf %1922, %1925 : vector<2x16xf32>
    %1933 = arith.addf %1928, %1931 : vector<2x16xf32>
    %1934 = arith.addf %1932, %1933 : vector<2x16xf32>
    %1935 = arith.addf %1919, %1934 : vector<2x16xf32>
    %1936 = math.tanh %1935 : vector<2x16xf32>
    %1937 = arith.mulf %1936, %38 : vector<2x16xf32>
    %1938 = arith.addf %1937, %40 : vector<2x16xf32>
    %1939 = vector.extract_strided_slice %1938 {offsets = [0, 0], sizes = [2, 4], strides = [1, 1]} : vector<2x16xf32> to vector<2x4xf32>
    %1940 = vector.extract_strided_slice %1938 {offsets = [0, 4], sizes = [2, 4], strides = [1, 1]} : vector<2x16xf32> to vector<2x4xf32>
    %1941 = vector.extract_strided_slice %1938 {offsets = [0, 8], sizes = [2, 4], strides = [1, 1]} : vector<2x16xf32> to vector<2x4xf32>
    %1942 = vector.extract_strided_slice %1938 {offsets = [0, 12], sizes = [2, 4], strides = [1, 1]} : vector<2x16xf32> to vector<2x4xf32>
    %1943 = arith.mulf %1940, %1916 : vector<2x4xf32>
    %1944 = arith.mulf %1939, %1942 : vector<2x4xf32>
    %1945 = arith.addf %1943, %1944 : vector<2x4xf32>
    %1946 = math.tanh %1945 : vector<2x4xf32>
    %1947 = arith.mulf %1941, %1946 : vector<2x4xf32>
    %1948 = vector.extract_strided_slice %1817 {offsets = [8, 0], sizes = [2, 16], strides = [1, 1]} : vector<16x16xf32> to vector<2x16xf32>
    %1949 = vector.extract_strided_slice %1947 {offsets = [0, 0], sizes = [2, 1], strides = [1, 1]} : vector<2x4xf32> to vector<2x1xf32>
    %1950 = vector.broadcast %1949 : vector<2x1xf32> to vector<2x16xf32>
    %1951 = arith.mulf %1950, %1820 : vector<2x16xf32>
    %1952 = vector.extract_strided_slice %1947 {offsets = [0, 1], sizes = [2, 1], strides = [1, 1]} : vector<2x4xf32> to vector<2x1xf32>
    %1953 = vector.broadcast %1952 : vector<2x1xf32> to vector<2x16xf32>
    %1954 = arith.mulf %1953, %1823 : vector<2x16xf32>
    %1955 = vector.extract_strided_slice %1947 {offsets = [0, 2], sizes = [2, 1], strides = [1, 1]} : vector<2x4xf32> to vector<2x1xf32>
    %1956 = vector.broadcast %1955 : vector<2x1xf32> to vector<2x16xf32>
    %1957 = arith.mulf %1956, %1826 : vector<2x16xf32>
    %1958 = vector.extract_strided_slice %1947 {offsets = [0, 3], sizes = [2, 1], strides = [1, 1]} : vector<2x4xf32> to vector<2x1xf32>
    %1959 = vector.broadcast %1958 : vector<2x1xf32> to vector<2x16xf32>
    %1960 = arith.mulf %1959, %1829 : vector<2x16xf32>
    %1961 = arith.addf %1951, %1954 : vector<2x16xf32>
    %1962 = arith.addf %1957, %1960 : vector<2x16xf32>
    %1963 = arith.addf %1961, %1962 : vector<2x16xf32>
    %1964 = arith.addf %1948, %1963 : vector<2x16xf32>
    %1965 = math.tanh %1964 : vector<2x16xf32>
    %1966 = arith.mulf %1965, %38 : vector<2x16xf32>
    %1967 = arith.addf %1966, %40 : vector<2x16xf32>
    %1968 = vector.extract_strided_slice %1967 {offsets = [0, 0], sizes = [2, 4], strides = [1, 1]} : vector<2x16xf32> to vector<2x4xf32>
    %1969 = vector.extract_strided_slice %1967 {offsets = [0, 4], sizes = [2, 4], strides = [1, 1]} : vector<2x16xf32> to vector<2x4xf32>
    %1970 = vector.extract_strided_slice %1967 {offsets = [0, 8], sizes = [2, 4], strides = [1, 1]} : vector<2x16xf32> to vector<2x4xf32>
    %1971 = vector.extract_strided_slice %1967 {offsets = [0, 12], sizes = [2, 4], strides = [1, 1]} : vector<2x16xf32> to vector<2x4xf32>
    %1972 = arith.mulf %1969, %1945 : vector<2x4xf32>
    %1973 = arith.mulf %1968, %1971 : vector<2x4xf32>
    %1974 = arith.addf %1972, %1973 : vector<2x4xf32>
    %1975 = math.tanh %1974 : vector<2x4xf32>
    %1976 = arith.mulf %1970, %1975 : vector<2x4xf32>
    %1977 = vector.extract_strided_slice %1817 {offsets = [10, 0], sizes = [2, 16], strides = [1, 1]} : vector<16x16xf32> to vector<2x16xf32>
    %1978 = vector.extract_strided_slice %1976 {offsets = [0, 0], sizes = [2, 1], strides = [1, 1]} : vector<2x4xf32> to vector<2x1xf32>
    %1979 = vector.broadcast %1978 : vector<2x1xf32> to vector<2x16xf32>
    %1980 = arith.mulf %1979, %1820 : vector<2x16xf32>
    %1981 = vector.extract_strided_slice %1976 {offsets = [0, 1], sizes = [2, 1], strides = [1, 1]} : vector<2x4xf32> to vector<2x1xf32>
    %1982 = vector.broadcast %1981 : vector<2x1xf32> to vector<2x16xf32>
    %1983 = arith.mulf %1982, %1823 : vector<2x16xf32>
    %1984 = vector.extract_strided_slice %1976 {offsets = [0, 2], sizes = [2, 1], strides = [1, 1]} : vector<2x4xf32> to vector<2x1xf32>
    %1985 = vector.broadcast %1984 : vector<2x1xf32> to vector<2x16xf32>
    %1986 = arith.mulf %1985, %1826 : vector<2x16xf32>
    %1987 = vector.extract_strided_slice %1976 {offsets = [0, 3], sizes = [2, 1], strides = [1, 1]} : vector<2x4xf32> to vector<2x1xf32>
    %1988 = vector.broadcast %1987 : vector<2x1xf32> to vector<2x16xf32>
    %1989 = arith.mulf %1988, %1829 : vector<2x16xf32>
    %1990 = arith.addf %1980, %1983 : vector<2x16xf32>
    %1991 = arith.addf %1986, %1989 : vector<2x16xf32>
    %1992 = arith.addf %1990, %1991 : vector<2x16xf32>
    %1993 = arith.addf %1977, %1992 : vector<2x16xf32>
    %1994 = math.tanh %1993 : vector<2x16xf32>
    %1995 = arith.mulf %1994, %38 : vector<2x16xf32>
    %1996 = arith.addf %1995, %40 : vector<2x16xf32>
    %1997 = vector.extract_strided_slice %1996 {offsets = [0, 0], sizes = [2, 4], strides = [1, 1]} : vector<2x16xf32> to vector<2x4xf32>
    %1998 = vector.extract_strided_slice %1996 {offsets = [0, 4], sizes = [2, 4], strides = [1, 1]} : vector<2x16xf32> to vector<2x4xf32>
    %1999 = vector.extract_strided_slice %1996 {offsets = [0, 8], sizes = [2, 4], strides = [1, 1]} : vector<2x16xf32> to vector<2x4xf32>
    %2000 = vector.extract_strided_slice %1996 {offsets = [0, 12], sizes = [2, 4], strides = [1, 1]} : vector<2x16xf32> to vector<2x4xf32>
    %2001 = arith.mulf %1998, %1974 : vector<2x4xf32>
    %2002 = arith.mulf %1997, %2000 : vector<2x4xf32>
    %2003 = arith.addf %2001, %2002 : vector<2x4xf32>
    %2004 = math.tanh %2003 : vector<2x4xf32>
    %2005 = arith.mulf %1999, %2004 : vector<2x4xf32>
    %2006 = vector.extract_strided_slice %1817 {offsets = [12, 0], sizes = [2, 16], strides = [1, 1]} : vector<16x16xf32> to vector<2x16xf32>
    %2007 = vector.extract_strided_slice %2005 {offsets = [0, 0], sizes = [2, 1], strides = [1, 1]} : vector<2x4xf32> to vector<2x1xf32>
    %2008 = vector.broadcast %2007 : vector<2x1xf32> to vector<2x16xf32>
    %2009 = arith.mulf %2008, %1820 : vector<2x16xf32>
    %2010 = vector.extract_strided_slice %2005 {offsets = [0, 1], sizes = [2, 1], strides = [1, 1]} : vector<2x4xf32> to vector<2x1xf32>
    %2011 = vector.broadcast %2010 : vector<2x1xf32> to vector<2x16xf32>
    %2012 = arith.mulf %2011, %1823 : vector<2x16xf32>
    %2013 = vector.extract_strided_slice %2005 {offsets = [0, 2], sizes = [2, 1], strides = [1, 1]} : vector<2x4xf32> to vector<2x1xf32>
    %2014 = vector.broadcast %2013 : vector<2x1xf32> to vector<2x16xf32>
    %2015 = arith.mulf %2014, %1826 : vector<2x16xf32>
    %2016 = vector.extract_strided_slice %2005 {offsets = [0, 3], sizes = [2, 1], strides = [1, 1]} : vector<2x4xf32> to vector<2x1xf32>
    %2017 = vector.broadcast %2016 : vector<2x1xf32> to vector<2x16xf32>
    %2018 = arith.mulf %2017, %1829 : vector<2x16xf32>
    %2019 = arith.addf %2009, %2012 : vector<2x16xf32>
    %2020 = arith.addf %2015, %2018 : vector<2x16xf32>
    %2021 = arith.addf %2019, %2020 : vector<2x16xf32>
    %2022 = arith.addf %2006, %2021 : vector<2x16xf32>
    %2023 = math.tanh %2022 : vector<2x16xf32>
    %2024 = arith.mulf %2023, %38 : vector<2x16xf32>
    %2025 = arith.addf %2024, %40 : vector<2x16xf32>
    %2026 = vector.extract_strided_slice %2025 {offsets = [0, 0], sizes = [2, 4], strides = [1, 1]} : vector<2x16xf32> to vector<2x4xf32>
    %2027 = vector.extract_strided_slice %2025 {offsets = [0, 4], sizes = [2, 4], strides = [1, 1]} : vector<2x16xf32> to vector<2x4xf32>
    %2028 = vector.extract_strided_slice %2025 {offsets = [0, 8], sizes = [2, 4], strides = [1, 1]} : vector<2x16xf32> to vector<2x4xf32>
    %2029 = vector.extract_strided_slice %2025 {offsets = [0, 12], sizes = [2, 4], strides = [1, 1]} : vector<2x16xf32> to vector<2x4xf32>
    %2030 = arith.mulf %2027, %2003 : vector<2x4xf32>
    %2031 = arith.mulf %2026, %2029 : vector<2x4xf32>
    %2032 = arith.addf %2030, %2031 : vector<2x4xf32>
    %2033 = math.tanh %2032 : vector<2x4xf32>
    %2034 = arith.mulf %2028, %2033 : vector<2x4xf32>
    %2035 = vector.extract_strided_slice %1817 {offsets = [14, 0], sizes = [2, 16], strides = [1, 1]} : vector<16x16xf32> to vector<2x16xf32>
    %2036 = vector.extract_strided_slice %2034 {offsets = [0, 0], sizes = [2, 1], strides = [1, 1]} : vector<2x4xf32> to vector<2x1xf32>
    %2037 = vector.broadcast %2036 : vector<2x1xf32> to vector<2x16xf32>
    %2038 = arith.mulf %2037, %1820 : vector<2x16xf32>
    %2039 = vector.extract_strided_slice %2034 {offsets = [0, 1], sizes = [2, 1], strides = [1, 1]} : vector<2x4xf32> to vector<2x1xf32>
    %2040 = vector.broadcast %2039 : vector<2x1xf32> to vector<2x16xf32>
    %2041 = arith.mulf %2040, %1823 : vector<2x16xf32>
    %2042 = vector.extract_strided_slice %2034 {offsets = [0, 2], sizes = [2, 1], strides = [1, 1]} : vector<2x4xf32> to vector<2x1xf32>
    %2043 = vector.broadcast %2042 : vector<2x1xf32> to vector<2x16xf32>
    %2044 = arith.mulf %2043, %1826 : vector<2x16xf32>
    %2045 = vector.extract_strided_slice %2034 {offsets = [0, 3], sizes = [2, 1], strides = [1, 1]} : vector<2x4xf32> to vector<2x1xf32>
    %2046 = vector.broadcast %2045 : vector<2x1xf32> to vector<2x16xf32>
    %2047 = arith.mulf %2046, %1829 : vector<2x16xf32>
    %2048 = arith.addf %2038, %2041 : vector<2x16xf32>
    %2049 = arith.addf %2044, %2047 : vector<2x16xf32>
    %2050 = arith.addf %2048, %2049 : vector<2x16xf32>
    %2051 = arith.addf %2035, %2050 : vector<2x16xf32>
    %2052 = math.tanh %2051 : vector<2x16xf32>
    %2053 = arith.mulf %2052, %38 : vector<2x16xf32>
    %2054 = arith.addf %2053, %40 : vector<2x16xf32>
    %2055 = vector.extract_strided_slice %2054 {offsets = [0, 0], sizes = [2, 4], strides = [1, 1]} : vector<2x16xf32> to vector<2x4xf32>
    %2056 = vector.extract_strided_slice %2054 {offsets = [0, 4], sizes = [2, 4], strides = [1, 1]} : vector<2x16xf32> to vector<2x4xf32>
    %2057 = vector.extract_strided_slice %2054 {offsets = [0, 8], sizes = [2, 4], strides = [1, 1]} : vector<2x16xf32> to vector<2x4xf32>
    %2058 = vector.extract_strided_slice %2054 {offsets = [0, 12], sizes = [2, 4], strides = [1, 1]} : vector<2x16xf32> to vector<2x4xf32>
    %2059 = arith.mulf %2056, %2032 : vector<2x4xf32>
    %2060 = arith.mulf %2055, %2058 : vector<2x4xf32>
    %2061 = arith.addf %2059, %2060 : vector<2x4xf32>
    %2062 = math.tanh %2061 : vector<2x4xf32>
    %2063 = arith.mulf %2057, %2062 : vector<2x4xf32>
    %c67 = arith.constant 67 : index
    %c0_77 = arith.constant 0 : index
    %2064 = vector.load %arg1[%c67, %c0_77] : memref<80x128xf32, #tpu.memory_space<vmem>>, vector<4x4xf32>
    %c71 = arith.constant 71 : index
    %c0_78 = arith.constant 0 : index
    %2065 = vector.load %arg1[%c71, %c0_78] : memref<80x128xf32, #tpu.memory_space<vmem>>, vector<1x4xf32>
    %2066 = vector.extract_strided_slice %2063 {offsets = [0, 0], sizes = [2, 1], strides = [1, 1]} : vector<2x4xf32> to vector<2x1xf32>
    %2067 = vector.extract_strided_slice %2064 {offsets = [0, 0], sizes = [1, 4], strides = [1, 1]} : vector<4x4xf32> to vector<1x4xf32>
    %2068 = vector.shape_cast %2067 : vector<1x4xf32> to vector<1x4xf32>
    %2069 = vector.broadcast %2068 : vector<1x4xf32> to vector<2x4xf32>
    %2070 = vector.broadcast %2066 : vector<2x1xf32> to vector<2x4xf32>
    %2071 = arith.mulf %2070, %2069 : vector<2x4xf32>
    %2072 = vector.extract_strided_slice %2063 {offsets = [0, 1], sizes = [2, 1], strides = [1, 1]} : vector<2x4xf32> to vector<2x1xf32>
    %2073 = vector.extract_strided_slice %2064 {offsets = [1, 0], sizes = [1, 4], strides = [1, 1]} : vector<4x4xf32> to vector<1x4xf32>
    %2074 = vector.shape_cast %2073 : vector<1x4xf32> to vector<1x4xf32>
    %2075 = vector.broadcast %2074 : vector<1x4xf32> to vector<2x4xf32>
    %2076 = vector.broadcast %2072 : vector<2x1xf32> to vector<2x4xf32>
    %2077 = arith.mulf %2076, %2075 : vector<2x4xf32>
    %2078 = vector.extract_strided_slice %2063 {offsets = [0, 2], sizes = [2, 1], strides = [1, 1]} : vector<2x4xf32> to vector<2x1xf32>
    %2079 = vector.extract_strided_slice %2064 {offsets = [2, 0], sizes = [1, 4], strides = [1, 1]} : vector<4x4xf32> to vector<1x4xf32>
    %2080 = vector.shape_cast %2079 : vector<1x4xf32> to vector<1x4xf32>
    %2081 = vector.broadcast %2080 : vector<1x4xf32> to vector<2x4xf32>
    %2082 = vector.broadcast %2078 : vector<2x1xf32> to vector<2x4xf32>
    %2083 = arith.mulf %2082, %2081 : vector<2x4xf32>
    %2084 = vector.extract_strided_slice %2063 {offsets = [0, 3], sizes = [2, 1], strides = [1, 1]} : vector<2x4xf32> to vector<2x1xf32>
    %2085 = vector.extract_strided_slice %2064 {offsets = [3, 0], sizes = [1, 4], strides = [1, 1]} : vector<4x4xf32> to vector<1x4xf32>
    %2086 = vector.shape_cast %2085 : vector<1x4xf32> to vector<1x4xf32>
    %2087 = vector.broadcast %2086 : vector<1x4xf32> to vector<2x4xf32>
    %2088 = vector.broadcast %2084 : vector<2x1xf32> to vector<2x4xf32>
    %2089 = arith.mulf %2088, %2087 : vector<2x4xf32>
    %2090 = vector.shape_cast %2065 : vector<1x4xf32> to vector<1x4xf32>
    %2091 = vector.broadcast %2090 : vector<1x4xf32> to vector<2x4xf32>
    %2092 = arith.addf %2071, %2077 : vector<2x4xf32>
    %2093 = arith.addf %2083, %2089 : vector<2x4xf32>
    %2094 = arith.addf %2092, %2093 : vector<2x4xf32>
    %2095 = arith.addf %2091, %2094 : vector<2x4xf32>
    %cst_79 = arith.constant 0.000000e+00 : f32
    %2096 = vector.broadcast %cst_79 : f32 to vector<2x4xf32>
    %2097 = arith.maximumf %2095, %2096 : vector<2x4xf32>
    %c72 = arith.constant 72 : index
    %c0_80 = arith.constant 0 : index
    %2098 = vector.load %arg1[%c72, %c0_80] : memref<80x128xf32, #tpu.memory_space<vmem>>, vector<4x5xf32>
    %c76 = arith.constant 76 : index
    %c0_81 = arith.constant 0 : index
    %2099 = vector.load %arg1[%c76, %c0_81] : memref<80x128xf32, #tpu.memory_space<vmem>>, vector<1x5xf32>
    %2100 = vector.extract_strided_slice %2097 {offsets = [0, 0], sizes = [2, 1], strides = [1, 1]} : vector<2x4xf32> to vector<2x1xf32>
    %2101 = vector.extract_strided_slice %2098 {offsets = [0, 0], sizes = [1, 5], strides = [1, 1]} : vector<4x5xf32> to vector<1x5xf32>
    %2102 = vector.shape_cast %2101 : vector<1x5xf32> to vector<1x5xf32>
    %2103 = vector.broadcast %2102 : vector<1x5xf32> to vector<2x5xf32>
    %2104 = vector.broadcast %2100 : vector<2x1xf32> to vector<2x5xf32>
    %2105 = arith.mulf %2104, %2103 : vector<2x5xf32>
    %2106 = vector.extract_strided_slice %2097 {offsets = [0, 1], sizes = [2, 1], strides = [1, 1]} : vector<2x4xf32> to vector<2x1xf32>
    %2107 = vector.extract_strided_slice %2098 {offsets = [1, 0], sizes = [1, 5], strides = [1, 1]} : vector<4x5xf32> to vector<1x5xf32>
    %2108 = vector.shape_cast %2107 : vector<1x5xf32> to vector<1x5xf32>
    %2109 = vector.broadcast %2108 : vector<1x5xf32> to vector<2x5xf32>
    %2110 = vector.broadcast %2106 : vector<2x1xf32> to vector<2x5xf32>
    %2111 = arith.mulf %2110, %2109 : vector<2x5xf32>
    %2112 = vector.extract_strided_slice %2097 {offsets = [0, 2], sizes = [2, 1], strides = [1, 1]} : vector<2x4xf32> to vector<2x1xf32>
    %2113 = vector.extract_strided_slice %2098 {offsets = [2, 0], sizes = [1, 5], strides = [1, 1]} : vector<4x5xf32> to vector<1x5xf32>
    %2114 = vector.shape_cast %2113 : vector<1x5xf32> to vector<1x5xf32>
    %2115 = vector.broadcast %2114 : vector<1x5xf32> to vector<2x5xf32>
    %2116 = vector.broadcast %2112 : vector<2x1xf32> to vector<2x5xf32>
    %2117 = arith.mulf %2116, %2115 : vector<2x5xf32>
    %2118 = vector.extract_strided_slice %2097 {offsets = [0, 3], sizes = [2, 1], strides = [1, 1]} : vector<2x4xf32> to vector<2x1xf32>
    %2119 = vector.extract_strided_slice %2098 {offsets = [3, 0], sizes = [1, 5], strides = [1, 1]} : vector<4x5xf32> to vector<1x5xf32>
    %2120 = vector.shape_cast %2119 : vector<1x5xf32> to vector<1x5xf32>
    %2121 = vector.broadcast %2120 : vector<1x5xf32> to vector<2x5xf32>
    %2122 = vector.broadcast %2118 : vector<2x1xf32> to vector<2x5xf32>
    %2123 = arith.mulf %2122, %2121 : vector<2x5xf32>
    %2124 = vector.shape_cast %2099 : vector<1x5xf32> to vector<1x5xf32>
    %2125 = vector.broadcast %2124 : vector<1x5xf32> to vector<2x5xf32>
    %2126 = arith.addf %2105, %2111 : vector<2x5xf32>
    %2127 = arith.addf %2117, %2123 : vector<2x5xf32>
    %2128 = arith.addf %2126, %2127 : vector<2x5xf32>
    %2129 = arith.addf %2125, %2128 : vector<2x5xf32>
    %cst_82 = arith.constant dense<0xFF800000> : vector<2xf32>
    %2130 = vector.multi_reduction <maximumf>, %2129, %cst_82 [1] : vector<2x5xf32> to vector<2xf32>
    %2131 = vector.shape_cast %2130 : vector<2xf32> to vector<2x1xf32>
    %2132 = vector.broadcast %2131 : vector<2x1xf32> to vector<2x5xf32>
    %2133 = arith.subf %2129, %2132 : vector<2x5xf32>
    %2134 = math.exp %2133 : vector<2x5xf32>
    %cst_83 = arith.constant dense<0.000000e+00> : vector<2xf32>
    %2135 = vector.multi_reduction <add>, %2134, %cst_83 [1] : vector<2x5xf32> to vector<2xf32>
    %2136 = vector.shape_cast %2135 : vector<2xf32> to vector<2x1xf32>
    %2137 = math.log %2136 : vector<2x1xf32>
    %2138 = vector.broadcast %2137 : vector<2x1xf32> to vector<2x5xf32>
    %2139 = arith.subf %2133, %2138 : vector<2x5xf32>
    %c0_84 = arith.constant 0 : index
    %c0_85 = arith.constant 0 : index
    %2140 = vector.load %arg2[%c0_84, %c0_85] : memref<2x5xf32, #tpu.memory_space<vmem>>, vector<2x5xf32>
    tpu.vector_store %arg2[%c0_84, %c0_85], %2139 {strides = array<i32>} : memref<2x5xf32, #tpu.memory_space<vmem>>, vector<2x5xf32>,
    return
  }
}

</mosaic_0001>

<llo_original>
// kernel: net_forward.1
$region0: #{net_forward.1}
  #allocation0 [shape = 'u32[]', space=smem, size = 0x4, offset = 0x4, fixed_abs, tag = 'smem constant byte address 0x4 - core index']
  #allocation1 [shape = 'u32[72,128]{1,0:T(1,128)}', space=vmem, size = 0x9000, scoped, tag = 'internal scratch']
  %s0 = inlined_call_operand.vmem [shape: f32[16,28], index: 0, kind: input, shape index: {}]
  %s1 = inlined_call_operand.vmem [shape: f32[80,128], index: 1, kind: input, shape index: {}]
  %s2 = inlined_call_operand.hbm [shape: f32[2,5], index: 2, kind: output, shape index: {}]
  %s3 = sld [smem:[#allocation0]]
  $region18: #{net_forward.1} parent=0
    _
  %s5 = ssub.s32 1, %s3
  %s6 = scalar_select 0, %s5, %s3
  $region1: #{net_forward.1} parent=0
    #allocation2 [shape = 'u8[1024]{0}', space=vmem, size = 0x400, scoped, tag = 'output window, operand 0, single buffered']
    #allocation3 [shape = 's32[1]{0}', space=sflag, size = 0x4, scoped, tag = 'scoped memory for net_forward.1']
    %7 = vsyncpa [#allocation3], 0
    // Predicated region
    $region2: #{net_forward.1} parent=1 // pred_check
      _
    $region3: #{net_forward.1} parent=1 // pred_check_branch
      %9 = sbr.rel (0) target = $region5
    $region4: #{net_forward.1} parent=1 // pred_region
      _
    $region5: #{net_forward.1} parent=1 // pred_fallthru
      _
    // Predicated region
    $region6: #{net_forward.1} parent=1 // pred_check
      _
    $region7: #{net_forward.1} parent=1 // pred_check_branch
      %11 = sbr.rel (0) target = $region9
    $region8: #{net_forward.1} parent=1 // pred_region
      _
    $region9: #{net_forward.1} parent=1 // pred_fallthru
      _
    %v12 = vld [vmem:[%s1] sm:$0xff]
    %v13 = vld [vmem:[%s1 + $0x8] sm:$0xff]
    %v14 = vld [vmem:[%s1 + $0x10] sm:$0xff]
    %v15 = vld [vmem:[%s1 + $0x18] sm:$0xf]
    %v16 = vld [vmem:[%s1 + $0x40] sm:$0x1]
    %v17 = vld [vmem:[%s0] sm:$0xff]
    %v18 = vld [vmem:[%s0 + $0x8] sm:$0xff]
    %v19 = vperm.slane %v16, 0
    %vm20 = vcmask 228352
    %v22 = vsel %vm20, %v17, 0
    %v25 = vsel %vm20, %v18, 0
    %vm27 = vcmask 1043456
    %v29 = vsel %vm27, %v15, 0
    %31 = vmatpush.msra.mxu0 0.0
    %32 = vmatpush.msra.mxu0 0.0
    %33 = vmatpush.msra.mxu0 0.0
    %34 = vmatpush.msra.mxu0 0.0
    %35 = vmatpush.msra.mxu0 0.0
    %36 = vmatpush.msra.mxu0 0.0
    %37 = vmatpush.msra.mxu0 0.0
    %38 = vmatpush.msra.mxu0 0.0
    %39 = vmatpush.msra.mxu0 0.0
    %40 = vmatpush.msra.mxu0 0.0
    %41 = vmatpush.msra.mxu0 0.0
    %42 = vmatpush.msra.mxu0 0.0
    %43 = vmatpush.msra.mxu0 %v29
    %44 = vmatpush.msra.mxu0 %v14
    %45 = vmatpush.msra.mxu0 %v13
    %46 = vmatpush.msra.mxu0 %v12
    %47 = vmatmul.f32.gmra.mxu0 %v22
    %v48 = vpop.f32.mrf.mxu0
    %v49 = vadd.f32 %v19, %v48
    %50 = vmatmul.f32.gmra.mxu0 %v25
    %v51 = vpop.f32.mrf.mxu0
    %v52 = vadd.f32 %v19, %v51
    %53 = vdwg.mxu0
    %v54 = vld [vmem:[%s1 + $0x41] sm:$0x1]
    %v55 = vld [vmem:[%s1 + $0x42] sm:$0x1]
    %vm56 = vcmask 31744
    %v57 = vsel %vm56, %v49, 0.0
    %v58 = vsel %vm56, %v52, 0.0
    %v59 = vadd.f32 %v57, %v58
    %v60 = vrot.slane %v59, 4
    %v61 = vadd.f32 %v59, %v60
    %v62 = vrot.slane %v61, 2
    %v63 = vadd.f32 %v61, %v62
    %v64 = vrot.slane %v63, 1
    %v65 = vadd.f32 %v63, %v64
    %v66 = vrcp.pop 16.0
    %v67 = vmul.f32 16.0, %v66
    %v68 = vsub.f32 1.0, %v67
    %v69 = vmul.f32 %v66, %v68
    %v70 = vadd.f32 %v66, %v69
    %vm71 = vweird.f32 %v66
    %v72 = vsel %vm71, %v66, %v70
    %v73 = vmul.f32 %v65, %v72
    %v74 = vsub.f32 %v49, %v73
    %v75 = vsub.f32 %v52, %v73
    %v76 = vmul.f32 %v74, %v74
    %v77 = vmul.f32 %v75, %v75
    %v78 = vsel %vm56, %v76, 0.0
    %v79 = vsel %vm56, %v77, 0.0
    %v80 = vadd.f32 %v78, %v79
    %v81 = vrot.slane %v80, 4
    %v82 = vadd.f32 %v80, %v81
    %v83 = vrot.slane %v82, 2
    %v84 = vadd.f32 %v82, %v83
    %v85 = vrot.slane %v84, 1
    %v86 = vadd.f32 %v84, %v85
    %v87 = vmul.f32 %v86, %v72
    %v88 = vadd.f32 %v87, 1e-05
    %v89 = vrsqrt.pop %v88
    %v90 = vmul.f32 %v89, %v88
    %v91 = vmul.f32 %v90, %v89
    %v92 = vmul.f32 0.5, %v91
    %v93 = vsub.f32 1.5, %v92
    %v94 = vmul.f32 %v89, %v93
    %vm95 = vweird.f32 %v88
    %vm96 = vweird.f32 %v89
    %vm97 = vmor %vm95, %vm96
    %v98 = vsel %vm97, %v89, %v94
    %v99 = vmul.f32 %v74, %v98
    %v100 = vmul.f32 %v75, %v98
    %v101 = vperm.slane %v54, 0
    %v102 = vmul.f32 %v99, %v101
    %v103 = vmul.f32 %v100, %v101
    %v104 = vperm.slane %v55, 0
    %v105 = vadd.f32 %v102, %v104
    %v106 = vadd.f32 %v103, %v104
    %vm107 = vcmp.gt.f32.partialorder %v105, 0.0
    %vm108 = vcmp.gt.f32.partialorder %v106, 0.0
    %v109 = vmin.f32 %v105, 0.0
    %v110 = vmin.f32 %v106, 0.0
    %v111 = vmul.f32 %v109, 1.442695
    %v112 = vpow.pop %v111
    %v113 = vmul.f32 %v110, 1.442695
    %v114 = vpow.pop %v113
    %v115 = vsub.f32 %v112, 1.0
    %v116 = vsub.f32 %v114, 1.0
    %v117 = vsel %vm107, %v105, %v115
    %v118 = vsel %vm108, %v106, %v116
    %vm119 = vcmask 97280
    %v120 = vsel %vm119, 0.5, 1.0
    %v121 = vsel %vm119, 0.5, 0.0
    %v122 = vld [vmem:[%s1 + $0x1c] sm:$0xf]
    %v123 = vld [vmem:[%s1 + $0x2c] sm:$0xf]
    %v124 = vld [vmem:[%s1 + $0x3c] sm:$0x1]
    %v125 = vperm.slane %v124, 0
    %v127 = vsel %vm56, %v117, 0
    %v130 = vsel %vm56, %v118, 0
    %v133 = vsel %vm27, %v122, 0
    %135 = vmatpush.msra.mxu0 0.0
    %136 = vmatpush.msra.mxu0 0.0
    %137 = vmatpush.msra.mxu0 0.0
    %138 = vmatpush.msra.mxu0 0.0
    %139 = vmatpush.msra.mxu0 0.0
    %140 = vmatpush.msra.mxu0 0.0
    %141 = vmatpush.msra.mxu0 0.0
    %142 = vmatpush.msra.mxu0 0.0
    %143 = vmatpush.msra.mxu0 0.0
    %144 = vmatpush.msra.mxu0 0.0
    %145 = vmatpush.msra.mxu0 0.0
    %146 = vmatpush.msra.mxu0 0.0
    %147 = vmatpush.msra.mxu0 0.0
    %148 = vmatpush.msra.mxu0 0.0
    %149 = vmatpush.msra.mxu0 0.0
    %150 = vmatpush.msra.mxu0 %v133
    %151 = vmatmul.f32.gmra.mxu0 %v127
    %v152 = vpop.f32.mrf.mxu0
    %v153 = vadd.f32 %v125, %v152
    %154 = vmatmul.f32.gmra.mxu0 %v130
    %v155 = vpop.f32.mrf.mxu0
    %v156 = vadd.f32 %v125, %v155
    %157 = vdwg.mxu0
    %v158 = vperm.slane %v123, 0
    %v159 = vperm.slane %v123, 1
    %v160 = vperm.slane %v123, 2
    %v161 = vperm.slane %v123, 3
    %v162 = vmul.f32 %v158, 0.0
    %v163 = vmul.f32 %v159, 0.0
    %v164 = vmul.f32 %v160, 0.0
    %v165 = vmul.f32 %v161, 0.0
    %v166 = vadd.f32 %v162, %v163
    %v167 = vadd.f32 %v164, %v165
    %v168 = vadd.f32 %v166, %v167
    %v169 = vadd.f32 %v153, %v168
    %v170 = vtanh.pop %v169
    %v171 = vmul.f32 %v170, %v120
    %v172 = vadd.f32 %v171, %v121
    %v173 = vmul.f32 %v172, 0.0
    %175 = vrot.lane.b32.xlu0 %v172, 116
    %v176 = vpop.permute.xlu0 %175
    %v178 = vmul.f32 %v172, %v176
    %180 = vrot.lane.b32.xlu0 %v178, 4
    %v181 = vpop.permute.xlu0 %180
    %v183 = vadd.f32 %v173, %v181
    %v184 = vtanh.pop %v183
    %186 = vrot.lane.b32.xlu0 %v184, 4
    %v187 = vpop.permute.xlu0 %186
    %v189 = vmul.f32 %v172, %v187
    %191 = vset.pattern.permute.xlu0 8
    %192 = vperm.xlu0 %191, %v189
    %v193 = vpop.permute.xlu0 %192
    %v195 = vmul.f32 %v193, %v158
    %196 = vset.pattern.permute.xlu0 9
    %197 = vperm.xlu0 %196, %v189
    %v198 = vpop.permute.xlu0 %197
    %v200 = vmul.f32 %v198, %v159
    %201 = vset.pattern.permute.xlu0 10
    %202 = vperm.xlu0 %201, %v189
    %v203 = vpop.permute.xlu0 %202
    %v205 = vmul.f32 %v203, %v160
    %206 = vset.pattern.permute.xlu0 11
    %207 = vperm.xlu0 %206, %v189
    %v208 = vpop.permute.xlu0 %207
    %v210 = vmul.f32 %v208, %v161
    %v211 = vadd.f32 %v195, %v200
    %v212 = vadd.f32 %v205, %v210
    %v213 = vadd.f32 %v211, %v212
    %v215 = vrot.slane %v213, 6
    %v217 = vadd.f32 %v153, %v215
    %v218 = vtanh.pop %v217
    %v220 = vrot.slane %v120, 6
    %v222 = vmul.f32 %v218, %v220
    %v224 = vrot.slane %v121, 6
    %v226 = vadd.f32 %v222, %v224
    %v228 = vrot.slane %v183, 6
    %v230 = vmul.f32 %v226, %v228
    %232 = vrot.lane.b32.xlu0 %v226, 116
    %v233 = vpop.permute.xlu0 %232
    %v235 = vmul.f32 %v226, %v233
    %237 = vrot.lane.b32.xlu0 %v235, 4
    %v238 = vpop.permute.xlu0 %237
    %v240 = vadd.f32 %v230, %v238
    %v241 = vtanh.pop %v240
    %243 = vrot.lane.b32.xlu0 %v241, 4
    %v244 = vpop.permute.xlu0 %243
    %v246 = vmul.f32 %v226, %v244
    %248 = vset.pattern.permute.xlu0 8
    %249 = vperm.xlu0 %248, %v246
    %v250 = vpop.permute.xlu0 %249
    %v252 = vmul.f32 %v250, %v158
    %253 = vset.pattern.permute.xlu0 9
    %254 = vperm.xlu0 %253, %v246
    %v255 = vpop.permute.xlu0 %254
    %v257 = vmul.f32 %v255, %v159
    %258 = vset.pattern.permute.xlu0 10
    %259 = vperm.xlu0 %258, %v246
    %v260 = vpop.permute.xlu0 %259
    %v262 = vmul.f32 %v260, %v160
    %263 = vset.pattern.permute.xlu0 11
    %264 = vperm.xlu0 %263, %v246
    %v265 = vpop.permute.xlu0 %264
    %v267 = vmul.f32 %v265, %v161
    %v268 = vadd.f32 %v252, %v257
    %v269 = vadd.f32 %v262, %v267
    %v270 = vadd.f32 %v268, %v269
    %v272 = vrot.slane %v270, 6
    %v274 = vadd.f32 %v153, %v272
    %v275 = vtanh.pop %v274
    %v276 = vrot.slane %v120, 4
    %v278 = vmul.f32 %v275, %v276
    %v279 = vrot.slane %v121, 4
    %v281 = vadd.f32 %v278, %v279
    %v283 = vrot.slane %v240, 6
    %v285 = vmul.f32 %v281, %v283
    %287 = vrot.lane.b32.xlu0 %v281, 116
    %v288 = vpop.permute.xlu0 %287
    %v290 = vmul.f32 %v281, %v288
    %292 = vrot.lane.b32.xlu0 %v290, 4
    %v293 = vpop.permute.xlu0 %292
    %v295 = vadd.f32 %v285, %v293
    %v296 = vtanh.pop %v295
    %298 = vrot.lane.b32.xlu0 %v296, 4
    %v299 = vpop.permute.xlu0 %298
    %v301 = vmul.f32 %v281, %v299
    %303 = vset.pattern.permute.xlu0 8
    %304 = vperm.xlu0 %303, %v301
    %v305 = vpop.permute.xlu0 %304
    %v307 = vmul.f32 %v305, %v158
    %308 = vset.pattern.permute.xlu0 9
    %309 = vperm.xlu0 %308, %v301
    %v310 = vpop.permute.xlu0 %309
    %v312 = vmul.f32 %v310, %v159
    %313 = vset.pattern.permute.xlu0 10
    %314 = vperm.xlu0 %313, %v301
    %v315 = vpop.permute.xlu0 %314
    %v317 = vmul.f32 %v315, %v160
    %318 = vset.pattern.permute.xlu0 11
    %319 = vperm.xlu0 %318, %v301
    %v320 = vpop.permute.xlu0 %319
    %v322 = vmul.f32 %v320, %v161
    %v323 = vadd.f32 %v307, %v312
    %v324 = vadd.f32 %v317, %v322
    %v325 = vadd.f32 %v323, %v324
    %v327 = vrot.slane %v325, 6
    %v329 = vadd.f32 %v153, %v327
    %v330 = vtanh.pop %v329
    %v331 = vrot.slane %v120, 2
    %v333 = vmul.f32 %v330, %v331
    %v334 = vrot.slane %v121, 2
    %v336 = vadd.f32 %v333, %v334
    %v338 = vrot.slane %v295, 6
    %v340 = vmul.f32 %v336, %v338
    %342 = vrot.lane.b32.xlu0 %v336, 116
    %v343 = vpop.permute.xlu0 %342
    %v345 = vmul.f32 %v336, %v343
    %347 = vrot.lane.b32.xlu0 %v345, 4
    %v348 = vpop.permute.xlu0 %347
    %v350 = vadd.f32 %v340, %v348
    %v351 = vtanh.pop %v350
    %353 = vrot.lane.b32.xlu0 %v351, 4
    %v354 = vpop.permute.xlu0 %353
    %v356 = vmul.f32 %v336, %v354
    %358 = vset.pattern.permute.xlu0 8
    %359 = vperm.xlu0 %358, %v356
    %v360 = vpop.permute.xlu0 %359
    %v362 = vmul.f32 %v360, %v158
    %363 = vset.pattern.permute.xlu0 9
    %364 = vperm.xlu0 %363, %v356
    %v365 = vpop.permute.xlu0 %364
    %v367 = vmul.f32 %v365, %v159
    %368 = vset.pattern.permute.xlu0 10
    %369 = vperm.xlu0 %368, %v356
    %v370 = vpop.permute.xlu0 %369
    %v372 = vmul.f32 %v370, %v160
    %373 = vset.pattern.permute.xlu0 11
    %374 = vperm.xlu0 %373, %v356
    %v375 = vpop.permute.xlu0 %374
    %v377 = vmul.f32 %v375, %v161
    %v378 = vadd.f32 %v362, %v367
    %v379 = vadd.f32 %v372, %v377
    %v380 = vadd.f32 %v378, %v379
    %v382 = vrot.slane %v380, 6
    %v384 = vadd.f32 %v156, %v382
    %v385 = vtanh.pop %v384
    %v386 = vmul.f32 %v385, %v120
    %v387 = vadd.f32 %v386, %v121
    %v389 = vrot.slane %v350, 6
    %v391 = vmul.f32 %v387, %v389
    %393 = vrot.lane.b32.xlu0 %v387, 116
    %v394 = vpop.permute.xlu0 %393
    %v396 = vmul.f32 %v387, %v394
    %398 = vrot.lane.b32.xlu0 %v396, 4
    %v399 = vpop.permute.xlu0 %398
    %v401 = vadd.f32 %v391, %v399
    %v402 = vtanh.pop %v401
    %404 = vrot.lane.b32.xlu0 %v402, 4
    %v405 = vpop.permute.xlu0 %404
    %v407 = vmul.f32 %v387, %v405
    %409 = vset.pattern.permute.xlu0 8
    %410 = vperm.xlu0 %409, %v407
    %v411 = vpop.permute.xlu0 %410
    %v413 = vmul.f32 %v411, %v158
    %414 = vset.pattern.permute.xlu0 9
    %415 = vperm.xlu0 %414, %v407
    %v416 = vpop.permute.xlu0 %415
    %v418 = vmul.f32 %v416, %v159
    %419 = vset.pattern.permute.xlu0 10
    %420 = vperm.xlu0 %419, %v407
    %v421 = vpop.permute.xlu0 %420
    %v423 = vmul.f32 %v421, %v160
    %424 = vset.pattern.permute.xlu0 11
    %425 = vperm.xlu0 %424, %v407
    %v426 = vpop.permute.xlu0 %425
    %v428 = vmul.f32 %v426, %v161
    %v429 = vadd.f32 %v413, %v418
    %v430 = vadd.f32 %v423, %v428
    %v431 = vadd.f32 %v429, %v430
    %v433 = vrot.slane %v431, 6
    %v435 = vadd.f32 %v156, %v433
    %v436 = vtanh.pop %v435
    %v437 = vmul.f32 %v436, %v220
    %v438 = vadd.f32 %v437, %v224
    %v440 = vrot.slane %v401, 6
    %v442 = vmul.f32 %v438, %v440
    %444 = vrot.lane.b32.xlu0 %v438, 116
    %v445 = vpop.permute.xlu0 %444
    %v447 = vmul.f32 %v438, %v445
    %449 = vrot.lane.b32.xlu0 %v447, 4
    %v450 = vpop.permute.xlu0 %449
    %v452 = vadd.f32 %v442, %v450
    %v453 = vtanh.pop %v452
    %455 = vrot.lane.b32.xlu0 %v453, 4
    %v456 = vpop.permute.xlu0 %455
    %v458 = vmul.f32 %v438, %v456
    %460 = vset.pattern.permute.xlu0 8
    %461 = vperm.xlu0 %460, %v458
    %v462 = vpop.permute.xlu0 %461
    %v464 = vmul.f32 %v462, %v158
    %465 = vset.pattern.permute.xlu0 9
    %466 = vperm.xlu0 %465, %v458
    %v467 = vpop.permute.xlu0 %466
    %v469 = vmul.f32 %v467, %v159
    %470 = vset.pattern.permute.xlu0 10
    %471 = vperm.xlu0 %470, %v458
    %v472 = vpop.permute.xlu0 %471
    %v474 = vmul.f32 %v472, %v160
    %475 = vset.pattern.permute.xlu0 11
    %476 = vperm.xlu0 %475, %v458
    %v477 = vpop.permute.xlu0 %476
    %v479 = vmul.f32 %v477, %v161
    %v480 = vadd.f32 %v464, %v469
    %v481 = vadd.f32 %v474, %v479
    %v482 = vadd.f32 %v480, %v481
    %v484 = vrot.slane %v482, 6
    %v486 = vadd.f32 %v156, %v484
    %v487 = vtanh.pop %v486
    %v488 = vmul.f32 %v487, %v276
    %v489 = vadd.f32 %v488, %v279
    %v491 = vrot.slane %v452, 6
    %v493 = vmul.f32 %v489, %v491
    %495 = vrot.lane.b32.xlu0 %v489, 116
    %v496 = vpop.permute.xlu0 %495
    %v498 = vmul.f32 %v489, %v496
    %500 = vrot.lane.b32.xlu0 %v498, 4
    %v501 = vpop.permute.xlu0 %500
    %v503 = vadd.f32 %v493, %v501
    %v504 = vtanh.pop %v503
    %506 = vrot.lane.b32.xlu0 %v504, 4
    %v507 = vpop.permute.xlu0 %506
    %v509 = vmul.f32 %v489, %v507
    %511 = vset.pattern.permute.xlu0 8
    %512 = vperm.xlu0 %511, %v509
    %v513 = vpop.permute.xlu0 %512
    %v515 = vmul.f32 %v513, %v158
    %516 = vset.pattern.permute.xlu0 9
    %517 = vperm.xlu0 %516, %v509
    %v518 = vpop.permute.xlu0 %517
    %v520 = vmul.f32 %v518, %v159
    %521 = vset.pattern.permute.xlu0 10
    %522 = vperm.xlu0 %521, %v509
    %v523 = vpop.permute.xlu0 %522
    %v525 = vmul.f32 %v523, %v160
    %526 = vset.pattern.permute.xlu0 11
    %527 = vperm.xlu0 %526, %v509
    %v528 = vpop.permute.xlu0 %527
    %v530 = vmul.f32 %v528, %v161
    %v531 = vadd.f32 %v515, %v520
    %v532 = vadd.f32 %v525, %v530
    %v533 = vadd.f32 %v531, %v532
    %v535 = vrot.slane %v533, 6
    %v537 = vadd.f32 %v156, %v535
    %v538 = vtanh.pop %v537
    %v539 = vmul.f32 %v538, %v331
    %v540 = vadd.f32 %v539, %v334
    %v542 = vrot.slane %v503, 6
    %v544 = vmul.f32 %v540, %v542
    %546 = vrot.lane.b32.xlu0 %v540, 116
    %v547 = vpop.permute.xlu0 %546
    %v549 = vmul.f32 %v540, %v547
    %551 = vrot.lane.b32.xlu0 %v549, 4
    %v552 = vpop.permute.xlu0 %551
    %v554 = vadd.f32 %v544, %v552
    %v555 = vtanh.pop %v554
    %557 = vrot.lane.b32.xlu0 %v555, 4
    %v558 = vpop.permute.xlu0 %557
    %v560 = vmul.f32 %v540, %v558
    %vm561 = vcmask 1041408
    %v562 = vsel %vm561, %v189, %v246
    %v563 = vsel %vm27, %v562, %v301
    %vm564 = vcmask 1045504
    %v565 = vsel %vm564, %v563, %v356
    %v566 = vsel %vm561, %v407, %v458
    %v567 = vsel %vm27, %v566, %v509
    %v568 = vsel %vm564, %v567, %v560
    %v569 = vld [vmem:[%s1 + $0x20] sm:$0xf]
    %v570 = vld [vmem:[%s1 + $0x30] sm:$0xf]
    %v571 = vld [vmem:[%s1 + $0x3d] sm:$0x1]
    %v572 = vperm.slane %v571, 0
    %575 = vrot.lane.b32.xlu0 %v565, 120
    %v576 = vpop.permute.xlu0 %575
    %577 = vrot.lane.b32.xlu0 %v568, 120
    %v578 = vpop.permute.xlu0 %577
    %v579 = vsel %vm56, %v576, 0
    %v581 = vsel %vm56, %v578, 0
    %v584 = vsel %vm27, %v569, 0
    %586 = vmatpush.msra.mxu0 0.0
    %587 = vmatpush.msra.mxu0 0.0
    %588 = vmatpush.msra.mxu0 0.0
    %589 = vmatpush.msra.mxu0 0.0
    %590 = vmatpush.msra.mxu0 0.0
    %591 = vmatpush.msra.mxu0 0.0
    %592 = vmatpush.msra.mxu0 0.0
    %593 = vmatpush.msra.mxu0 0.0
    %594 = vmatpush.msra.mxu0 0.0
    %595 = vmatpush.msra.mxu0 0.0
    %596 = vmatpush.msra.mxu0 0.0
    %597 = vmatpush.msra.mxu0 0.0
    %598 = vmatpush.msra.mxu0 0.0
    %599 = vmatpush.msra.mxu0 0.0
    %600 = vmatpush.msra.mxu0 0.0
    %601 = vmatpush.msra.mxu0 %v584
    %602 = vmatmul.f32.gmra.mxu0 %v579
    %v603 = vpop.f32.mrf.mxu0
    %v604 = vadd.f32 %v572, %v603
    %605 = vmatmul.f32.gmra.mxu0 %v581
    %v606 = vpop.f32.mrf.mxu0
    %v607 = vadd.f32 %v572, %v606
    %608 = vdwg.mxu0
    %v609 = vperm.slane %v570, 0
    %v610 = vperm.slane %v570, 1
    %v611 = vperm.slane %v570, 2
    %v612 = vperm.slane %v570, 3
    %v613 = vmul.f32 %v609, 0.0
    %v614 = vmul.f32 %v610, 0.0
    %v615 = vmul.f32 %v611, 0.0
    %v616 = vmul.f32 %v612, 0.0
    %v617 = vadd.f32 %v613, %v614
    %v618 = vadd.f32 %v615, %v616
    %v619 = vadd.f32 %v617, %v618
    %v620 = vadd.f32 %v604, %v619
    %v621 = vtanh.pop %v620
    %v622 = vmul.f32 %v621, %v120
    %v623 = vadd.f32 %v622, %v121
    %v624 = vmul.f32 %v623, 0.0
    %626 = vrot.lane.b32.xlu0 %v623, 116
    %v627 = vpop.permute.xlu0 %626
    %v629 = vmul.f32 %v623, %v627
    %631 = vrot.lane.b32.xlu0 %v629, 4
    %v632 = vpop.permute.xlu0 %631
    %v634 = vadd.f32 %v624, %v632
    %v635 = vtanh.pop %v634
    %637 = vrot.lane.b32.xlu0 %v635, 4
    %v638 = vpop.permute.xlu0 %637
    %v640 = vmul.f32 %v623, %v638
    %642 = vset.pattern.permute.xlu0 8
    %643 = vperm.xlu0 %642, %v640
    %v644 = vpop.permute.xlu0 %643
    %v646 = vmul.f32 %v644, %v609
    %647 = vset.pattern.permute.xlu0 9
    %648 = vperm.xlu0 %647, %v640
    %v649 = vpop.permute.xlu0 %648
    %v651 = vmul.f32 %v649, %v610
    %652 = vset.pattern.permute.xlu0 10
    %653 = vperm.xlu0 %652, %v640
    %v654 = vpop.permute.xlu0 %653
    %v656 = vmul.f32 %v654, %v611
    %657 = vset.pattern.permute.xlu0 11
    %658 = vperm.xlu0 %657, %v640
    %v659 = vpop.permute.xlu0 %658
    %v661 = vmul.f32 %v659, %v612
    %v662 = vadd.f32 %v646, %v651
    %v663 = vadd.f32 %v656, %v661
    %v664 = vadd.f32 %v662, %v663
    %v666 = vrot.slane %v664, 6
    %v668 = vadd.f32 %v604, %v666
    %v669 = vtanh.pop %v668
    %v670 = vmul.f32 %v669, %v220
    %v671 = vadd.f32 %v670, %v224
    %v673 = vrot.slane %v634, 6
    %v675 = vmul.f32 %v671, %v673
    %677 = vrot.lane.b32.xlu0 %v671, 116
    %v678 = vpop.permute.xlu0 %677
    %v680 = vmul.f32 %v671, %v678
    %682 = vrot.lane.b32.xlu0 %v680, 4
    %v683 = vpop.permute.xlu0 %682
    %v685 = vadd.f32 %v675, %v683
    %v686 = vtanh.pop %v685
    %688 = vrot.lane.b32.xlu0 %v686, 4
    %v689 = vpop.permute.xlu0 %688
    %v691 = vmul.f32 %v671, %v689
    %693 = vset.pattern.permute.xlu0 8
    %694 = vperm.xlu0 %693, %v691
    %v695 = vpop.permute.xlu0 %694
    %v697 = vmul.f32 %v695, %v609
    %698 = vset.pattern.permute.xlu0 9
    %699 = vperm.xlu0 %698, %v691
    %v700 = vpop.permute.xlu0 %699
    %v702 = vmul.f32 %v700, %v610
    %703 = vset.pattern.permute.xlu0 10
    %704 = vperm.xlu0 %703, %v691
    %v705 = vpop.permute.xlu0 %704
    %v707 = vmul.f32 %v705, %v611
    %708 = vset.pattern.permute.xlu0 11
    %709 = vperm.xlu0 %708, %v691
    %v710 = vpop.permute.xlu0 %709
    %v712 = vmul.f32 %v710, %v612
    %v713 = vadd.f32 %v697, %v702
    %v714 = vadd.f32 %v707, %v712
    %v715 = vadd.f32 %v713, %v714
    %v717 = vrot.slane %v715, 6
    %v719 = vadd.f32 %v604, %v717
    %v720 = vtanh.pop %v719
    %v721 = vmul.f32 %v720, %v276
    %v722 = vadd.f32 %v721, %v279
    %v724 = vrot.slane %v685, 6
    %v726 = vmul.f32 %v722, %v724
    %728 = vrot.lane.b32.xlu0 %v722, 116
    %v729 = vpop.permute.xlu0 %728
    %v731 = vmul.f32 %v722, %v729
    %733 = vrot.lane.b32.xlu0 %v731, 4
    %v734 = vpop.permute.xlu0 %733
    %v736 = vadd.f32 %v726, %v734
    %v737 = vtanh.pop %v736
    %739 = vrot.lane.b32.xlu0 %v737, 4
    %v740 = vpop.permute.xlu0 %739
    %v742 = vmul.f32 %v722, %v740
    %744 = vset.pattern.permute.xlu0 8
    %745 = vperm.xlu0 %744, %v742
    %v746 = vpop.permute.xlu0 %745
    %v748 = vmul.f32 %v746, %v609
    %749 = vset.pattern.permute.xlu0 9
    %750 = vperm.xlu0 %749, %v742
    %v751 = vpop.permute.xlu0 %750
    %v753 = vmul.f32 %v751, %v610
    %754 = vset.pattern.permute.xlu0 10
    %755 = vperm.xlu0 %754, %v742
    %v756 = vpop.permute.xlu0 %755
    %v758 = vmul.f32 %v756, %v611
    %759 = vset.pattern.permute.xlu0 11
    %760 = vperm.xlu0 %759, %v742
    %v761 = vpop.permute.xlu0 %760
    %v763 = vmul.f32 %v761, %v612
    %v764 = vadd.f32 %v748, %v753
    %v765 = vadd.f32 %v758, %v763
    %v766 = vadd.f32 %v764, %v765
    %v768 = vrot.slane %v766, 6
    %v770 = vadd.f32 %v604, %v768
    %v771 = vtanh.pop %v770
    %v772 = vmul.f32 %v771, %v331
    %v773 = vadd.f32 %v772, %v334
    %v775 = vrot.slane %v736, 6
    %v777 = vmul.f32 %v773, %v775
    %779 = vrot.lane.b32.xlu0 %v773, 116
    %v780 = vpop.permute.xlu0 %779
    %v782 = vmul.f32 %v773, %v780
    %784 = vrot.lane.b32.xlu0 %v782, 4
    %v785 = vpop.permute.xlu0 %784
    %v787 = vadd.f32 %v777, %v785
    %v788 = vtanh.pop %v787
    %790 = vrot.lane.b32.xlu0 %v788, 4
    %v791 = vpop.permute.xlu0 %790
    %v793 = vmul.f32 %v773, %v791
    %795 = vset.pattern.permute.xlu0 8
    %796 = vperm.xlu0 %795, %v793
    %v797 = vpop.permute.xlu0 %796
    %v799 = vmul.f32 %v797, %v609
    %800 = vset.pattern.permute.xlu0 9
    %801 = vperm.xlu0 %800, %v793
    %v802 = vpop.permute.xlu0 %801
    %v804 = vmul.f32 %v802, %v610
    %805 = vset.pattern.permute.xlu0 10
    %806 = vperm.xlu0 %805, %v793
    %v807 = vpop.permute.xlu0 %806
    %v809 = vmul.f32 %v807, %v611
    %810 = vset.pattern.permute.xlu0 11
    %811 = vperm.xlu0 %810, %v793
    %v812 = vpop.permute.xlu0 %811
    %v814 = vmul.f32 %v812, %v612
    %v815 = vadd.f32 %v799, %v804
    %v816 = vadd.f32 %v809, %v814
    %v817 = vadd.f32 %v815, %v816
    %v819 = vrot.slane %v817, 6
    %v821 = vadd.f32 %v607, %v819
    %v822 = vtanh.pop %v821
    %v823 = vmul.f32 %v822, %v120
    %v824 = vadd.f32 %v823, %v121
    %v826 = vrot.slane %v787, 6
    %v828 = vmul.f32 %v824, %v826
    %830 = vrot.lane.b32.xlu0 %v824, 116
    %v831 = vpop.permute.xlu0 %830
    %v833 = vmul.f32 %v824, %v831
    %835 = vrot.lane.b32.xlu0 %v833, 4
    %v836 = vpop.permute.xlu0 %835
    %v838 = vadd.f32 %v828, %v836
    %v839 = vtanh.pop %v838
    %841 = vrot.lane.b32.xlu0 %v839, 4
    %v842 = vpop.permute.xlu0 %841
    %v844 = vmul.f32 %v824, %v842
    %846 = vset.pattern.permute.xlu0 8
    %847 = vperm.xlu0 %846, %v844
    %v848 = vpop.permute.xlu0 %847
    %v850 = vmul.f32 %v848, %v609
    %851 = vset.pattern.permute.xlu0 9
    %852 = vperm.xlu0 %851, %v844
    %v853 = vpop.permute.xlu0 %852
    %v855 = vmul.f32 %v853, %v610
    %856 = vset.pattern.permute.xlu0 10
    %857 = vperm.xlu0 %856, %v844
    %v858 = vpop.permute.xlu0 %857
    %v860 = vmul.f32 %v858, %v611
    %861 = vset.pattern.permute.xlu0 11
    %862 = vperm.xlu0 %861, %v844
    %v863 = vpop.permute.xlu0 %862
    %v865 = vmul.f32 %v863, %v612
    %v866 = vadd.f32 %v850, %v855
    %v867 = vadd.f32 %v860, %v865
    %v868 = vadd.f32 %v866, %v867
    %v870 = vrot.slane %v868, 6
    %v872 = vadd.f32 %v607, %v870
    %v873 = vtanh.pop %v872
    %v874 = vmul.f32 %v873, %v220
    %v875 = vadd.f32 %v874, %v224
    %v877 = vrot.slane %v838, 6
    %v879 = vmul.f32 %v875, %v877
    %881 = vrot.lane.b32.xlu0 %v875, 116
    %v882 = vpop.permute.xlu0 %881
    %v884 = vmul.f32 %v875, %v882
    %886 = vrot.lane.b32.xlu0 %v884, 4
    %v887 = vpop.permute.xlu0 %886
    %v889 = vadd.f32 %v879, %v887
    %v890 = vtanh.pop %v889
    %892 = vrot.lane.b32.xlu0 %v890, 4
    %v893 = vpop.permute.xlu0 %892
    %v895 = vmul.f32 %v875, %v893
    %897 = vset.pattern.permute.xlu0 8
    %898 = vperm.xlu0 %897, %v895
    %v899 = vpop.permute.xlu0 %898
    %v901 = vmul.f32 %v899, %v609
    %902 = vset.pattern.permute.xlu0 9
    %903 = vperm.xlu0 %902, %v895
    %v904 = vpop.permute.xlu0 %903
    %v906 = vmul.f32 %v904, %v610
    %907 = vset.pattern.permute.xlu0 10
    %908 = vperm.xlu0 %907, %v895
    %v909 = vpop.permute.xlu0 %908
    %v911 = vmul.f32 %v909, %v611
    %912 = vset.pattern.permute.xlu0 11
    %913 = vperm.xlu0 %912, %v895
    %v914 = vpop.permute.xlu0 %913
    %v916 = vmul.f32 %v914, %v612
    %v917 = vadd.f32 %v901, %v906
    %v918 = vadd.f32 %v911, %v916
    %v919 = vadd.f32 %v917, %v918
    %v921 = vrot.slane %v919, 6
    %v923 = vadd.f32 %v607, %v921
    %v924 = vtanh.pop %v923
    %v925 = vmul.f32 %v924, %v276
    %v926 = vadd.f32 %v925, %v279
    %v928 = vrot.slane %v889, 6
    %v930 = vmul.f32 %v926, %v928
    %932 = vrot.lane.b32.xlu0 %v926, 116
    %v933 = vpop.permute.xlu0 %932
    %v935 = vmul.f32 %v926, %v933
    %937 = vrot.lane.b32.xlu0 %v935, 4
    %v938 = vpop.permute.xlu0 %937
    %v940 = vadd.f32 %v930, %v938
    %v941 = vtanh.pop %v940
    %943 = vrot.lane.b32.xlu0 %v941, 4
    %v944 = vpop.permute.xlu0 %943
    %v946 = vmul.f32 %v926, %v944
    %948 = vset.pattern.permute.xlu0 8
    %949 = vperm.xlu0 %948, %v946
    %v950 = vpop.permute.xlu0 %949
    %v952 = vmul.f32 %v950, %v609
    %953 = vset.pattern.permute.xlu0 9
    %954 = vperm.xlu0 %953, %v946
    %v955 = vpop.permute.xlu0 %954
    %v957 = vmul.f32 %v955, %v610
    %958 = vset.pattern.permute.xlu0 10
    %959 = vperm.xlu0 %958, %v946
    %v960 = vpop.permute.xlu0 %959
    %v962 = vmul.f32 %v960, %v611
    %963 = vset.pattern.permute.xlu0 11
    %964 = vperm.xlu0 %963, %v946
    %v965 = vpop.permute.xlu0 %964
    %v967 = vmul.f32 %v965, %v612
    %v968 = vadd.f32 %v952, %v957
    %v969 = vadd.f32 %v962, %v967
    %v970 = vadd.f32 %v968, %v969
    %v972 = vrot.slane %v970, 6
    %v974 = vadd.f32 %v607, %v972
    %v975 = vtanh.pop %v974
    %v976 = vmul.f32 %v975, %v331
    %v977 = vadd.f32 %v976, %v334
    %v979 = vrot.slane %v940, 6
    %v981 = vmul.f32 %v977, %v979
    %983 = vrot.lane.b32.xlu0 %v977, 116
    %v984 = vpop.permute.xlu0 %983
    %v986 = vmul.f32 %v977, %v984
    %988 = vrot.lane.b32.xlu0 %v986, 4
    %v989 = vpop.permute.xlu0 %988
    %v991 = vadd.f32 %v981, %v989
    %v992 = vtanh.pop %v991
    %994 = vrot.lane.b32.xlu0 %v992, 4
    %v995 = vpop.permute.xlu0 %994
    %v997 = vmul.f32 %v977, %v995
    %v998 = vsel %vm561, %v640, %v691
    %v999 = vsel %vm27, %v998, %v742
    %v1000 = vsel %vm564, %v999, %v793
    %v1001 = vsel %vm561, %v844, %v895
    %v1002 = vsel %vm27, %v1001, %v946
    %v1003 = vsel %vm564, %v1002, %v997
    %v1004 = vld [vmem:[%s1 + $0x24] sm:$0xf]
    %v1005 = vld [vmem:[%s1 + $0x34] sm:$0xf]
    %v1006 = vld [vmem:[%s1 + $0x3e] sm:$0x1]
    %v1007 = vperm.slane %v1006, 0
    %1010 = vrot.lane.b32.xlu0 %v1000, 120
    %v1011 = vpop.permute.xlu0 %1010
    %1012 = vrot.lane.b32.xlu0 %v1003, 120
    %v1013 = vpop.permute.xlu0 %1012
    %v1014 = vsel %vm56, %v1011, 0
    %v1016 = vsel %vm56, %v1013, 0
    %v1019 = vsel %vm27, %v1004, 0
    %1021 = vmatpush.msra.mxu0 0.0
    %1022 = vmatpush.msra.mxu0 0.0
    %1023 = vmatpush.msra.mxu0 0.0
    %1024 = vmatpush.msra.mxu0 0.0
    %1025 = vmatpush.msra.mxu0 0.0
    %1026 = vmatpush.msra.mxu0 0.0
    %1027 = vmatpush.msra.mxu0 0.0
    %1028 = vmatpush.msra.mxu0 0.0
    %1029 = vmatpush.msra.mxu0 0.0
    %1030 = vmatpush.msra.mxu0 0.0
    %1031 = vmatpush.msra.mxu0 0.0
    %1032 = vmatpush.msra.mxu0 0.0
    %1033 = vmatpush.msra.mxu0 0.0
    %1034 = vmatpush.msra.mxu0 0.0
    %1035 = vmatpush.msra.mxu0 0.0
    %1036 = vmatpush.msra.mxu0 %v1019
    %1037 = vmatmul.f32.gmra.mxu0 %v1014
    %v1038 = vpop.f32.mrf.mxu0
    %v1039 = vadd.f32 %v1007, %v1038
    %1040 = vmatmul.f32.gmra.mxu0 %v1016
    %v1041 = vpop.f32.mrf.mxu0
    %v1042 = vadd.f32 %v1007, %v1041
    %1043 = vdwg.mxu0
    %v1044 = vperm.slane %v1005, 0
    %v1045 = vperm.slane %v1005, 1
    %v1046 = vperm.slane %v1005, 2
    %v1047 = vperm.slane %v1005, 3
    %v1048 = vmul.f32 %v1044, 0.0
    %v1049 = vmul.f32 %v1045, 0.0
    %v1050 = vmul.f32 %v1046, 0.0
    %v1051 = vmul.f32 %v1047, 0.0
    %v1052 = vadd.f32 %v1048, %v1049
    %v1053 = vadd.f32 %v1050, %v1051
    %v1054 = vadd.f32 %v1052, %v1053
    %v1055 = vadd.f32 %v1039, %v1054
    %v1056 = vtanh.pop %v1055
    %v1057 = vmul.f32 %v1056, %v120
    %v1058 = vadd.f32 %v1057, %v121
    %v1059 = vmul.f32 %v1058, 0.0
    %1061 = vrot.lane.b32.xlu0 %v1058, 116
    %v1062 = vpop.permute.xlu0 %1061
    %v1064 = vmul.f32 %v1058, %v1062
    %1066 = vrot.lane.b32.xlu0 %v1064, 4
    %v1067 = vpop.permute.xlu0 %1066
    %v1069 = vadd.f32 %v1059, %v1067
    %v1070 = vtanh.pop %v1069
    %1072 = vrot.lane.b32.xlu0 %v1070, 4
    %v1073 = vpop.permute.xlu0 %1072
    %v1075 = vmul.f32 %v1058, %v1073
    %1077 = vset.pattern.permute.xlu0 8
    %1078 = vperm.xlu0 %1077, %v1075
    %v1079 = vpop.permute.xlu0 %1078
    %v1081 = vmul.f32 %v1079, %v1044
    %1082 = vset.pattern.permute.xlu0 9
    %1083 = vperm.xlu0 %1082, %v1075
    %v1084 = vpop.permute.xlu0 %1083
    %v1086 = vmul.f32 %v1084, %v1045
    %1087 = vset.pattern.permute.xlu0 10
    %1088 = vperm.xlu0 %1087, %v1075
    %v1089 = vpop.permute.xlu0 %1088
    %v1091 = vmul.f32 %v1089, %v1046
    %1092 = vset.pattern.permute.xlu0 11
    %1093 = vperm.xlu0 %1092, %v1075
    %v1094 = vpop.permute.xlu0 %1093
    %v1096 = vmul.f32 %v1094, %v1047
    %v1097 = vadd.f32 %v1081, %v1086
    %v1098 = vadd.f32 %v1091, %v1096
    %v1099 = vadd.f32 %v1097, %v1098
    %v1101 = vrot.slane %v1099, 6
    %v1103 = vadd.f32 %v1039, %v1101
    %v1104 = vtanh.pop %v1103
    %v1105 = vmul.f32 %v1104, %v220
    %v1106 = vadd.f32 %v1105, %v224
    %v1108 = vrot.slane %v1069, 6
    %v1110 = vmul.f32 %v1106, %v1108
    %1112 = vrot.lane.b32.xlu0 %v1106, 116
    %v1113 = vpop.permute.xlu0 %1112
    %v1115 = vmul.f32 %v1106, %v1113
    %1117 = vrot.lane.b32.xlu0 %v1115, 4
    %v1118 = vpop.permute.xlu0 %1117
    %v1120 = vadd.f32 %v1110, %v1118
    %v1121 = vtanh.pop %v1120
    %1123 = vrot.lane.b32.xlu0 %v1121, 4
    %v1124 = vpop.permute.xlu0 %1123
    %v1126 = vmul.f32 %v1106, %v1124
    %1128 = vset.pattern.permute.xlu0 8
    %1129 = vperm.xlu0 %1128, %v1126
    %v1130 = vpop.permute.xlu0 %1129
    %v1132 = vmul.f32 %v1130, %v1044
    %1133 = vset.pattern.permute.xlu0 9
    %1134 = vperm.xlu0 %1133, %v1126
    %v1135 = vpop.permute.xlu0 %1134
    %v1137 = vmul.f32 %v1135, %v1045
    %1138 = vset.pattern.permute.xlu0 10
    %1139 = vperm.xlu0 %1138, %v1126
    %v1140 = vpop.permute.xlu0 %1139
    %v1142 = vmul.f32 %v1140, %v1046
    %1143 = vset.pattern.permute.xlu0 11
    %1144 = vperm.xlu0 %1143, %v1126
    %v1145 = vpop.permute.xlu0 %1144
    %v1147 = vmul.f32 %v1145, %v1047
    %v1148 = vadd.f32 %v1132, %v1137
    %v1149 = vadd.f32 %v1142, %v1147
    %v1150 = vadd.f32 %v1148, %v1149
    %v1152 = vrot.slane %v1150, 6
    %v1154 = vadd.f32 %v1039, %v1152
    %v1155 = vtanh.pop %v1154
    %v1156 = vmul.f32 %v1155, %v276
    %v1157 = vadd.f32 %v1156, %v279
    %v1159 = vrot.slane %v1120, 6
    %v1161 = vmul.f32 %v1157, %v1159
    %1163 = vrot.lane.b32.xlu0 %v1157, 116
    %v1164 = vpop.permute.xlu0 %1163
    %v1166 = vmul.f32 %v1157, %v1164
    %1168 = vrot.lane.b32.xlu0 %v1166, 4
    %v1169 = vpop.permute.xlu0 %1168
    %v1171 = vadd.f32 %v1161, %v1169
    %v1172 = vtanh.pop %v1171
    %1174 = vrot.lane.b32.xlu0 %v1172, 4
    %v1175 = vpop.permute.xlu0 %1174
    %v1177 = vmul.f32 %v1157, %v1175
    %1179 = vset.pattern.permute.xlu0 8
    %1180 = vperm.xlu0 %1179, %v1177
    %v1181 = vpop.permute.xlu0 %1180
    %v1183 = vmul.f32 %v1181, %v1044
    %1184 = vset.pattern.permute.xlu0 9
    %1185 = vperm.xlu0 %1184, %v1177
    %v1186 = vpop.permute.xlu0 %1185
    %v1188 = vmul.f32 %v1186, %v1045
    %1189 = vset.pattern.permute.xlu0 10
    %1190 = vperm.xlu0 %1189, %v1177
    %v1191 = vpop.permute.xlu0 %1190
    %v1193 = vmul.f32 %v1191, %v1046
    %1194 = vset.pattern.permute.xlu0 11
    %1195 = vperm.xlu0 %1194, %v1177
    %v1196 = vpop.permute.xlu0 %1195
    %v1198 = vmul.f32 %v1196, %v1047
    %v1199 = vadd.f32 %v1183, %v1188
    %v1200 = vadd.f32 %v1193, %v1198
    %v1201 = vadd.f32 %v1199, %v1200
    %v1203 = vrot.slane %v1201, 6
    %v1205 = vadd.f32 %v1039, %v1203
    %v1206 = vtanh.pop %v1205
    %v1207 = vmul.f32 %v1206, %v331
    %v1208 = vadd.f32 %v1207, %v334
    %v1210 = vrot.slane %v1171, 6
    %v1212 = vmul.f32 %v1208, %v1210
    %1214 = vrot.lane.b32.xlu0 %v1208, 116
    %v1215 = vpop.permute.xlu0 %1214
    %v1217 = vmul.f32 %v1208, %v1215
    %1219 = vrot.lane.b32.xlu0 %v1217, 4
    %v1220 = vpop.permute.xlu0 %1219
    %v1222 = vadd.f32 %v1212, %v1220
    %v1223 = vtanh.pop %v1222
    %1225 = vrot.lane.b32.xlu0 %v1223, 4
    %v1226 = vpop.permute.xlu0 %1225
    %v1228 = vmul.f32 %v1208, %v1226
    %1230 = vset.pattern.permute.xlu0 8
    %1231 = vperm.xlu0 %1230, %v1228
    %v1232 = vpop.permute.xlu0 %1231
    %v1234 = vmul.f32 %v1232, %v1044
    %1235 = vset.pattern.permute.xlu0 9
    %1236 = vperm.xlu0 %1235, %v1228
    %v1237 = vpop.permute.xlu0 %1236
    %v1239 = vmul.f32 %v1237, %v1045
    %1240 = vset.pattern.permute.xlu0 10
    %1241 = vperm.xlu0 %1240, %v1228
    %v1242 = vpop.permute.xlu0 %1241
    %v1244 = vmul.f32 %v1242, %v1046
    %1245 = vset.pattern.permute.xlu0 11
    %1246 = vperm.xlu0 %1245, %v1228
    %v1247 = vpop.permute.xlu0 %1246
    %v1249 = vmul.f32 %v1247, %v1047
    %v1250 = vadd.f32 %v1234, %v1239
    %v1251 = vadd.f32 %v1244, %v1249
    %v1252 = vadd.f32 %v1250, %v1251
    %v1254 = vrot.slane %v1252, 6
    %v1256 = vadd.f32 %v1042, %v1254
    %v1257 = vtanh.pop %v1256
    %v1258 = vmul.f32 %v1257, %v120
    %v1259 = vadd.f32 %v1258, %v121
    %v1261 = vrot.slane %v1222, 6
    %v1263 = vmul.f32 %v1259, %v1261
    %1265 = vrot.lane.b32.xlu0 %v1259, 116
    %v1266 = vpop.permute.xlu0 %1265
    %v1268 = vmul.f32 %v1259, %v1266
    %1270 = vrot.lane.b32.xlu0 %v1268, 4
    %v1271 = vpop.permute.xlu0 %1270
    %v1273 = vadd.f32 %v1263, %v1271
    %v1274 = vtanh.pop %v1273
    %1276 = vrot.lane.b32.xlu0 %v1274, 4
    %v1277 = vpop.permute.xlu0 %1276
    %v1279 = vmul.f32 %v1259, %v1277
    %1281 = vset.pattern.permute.xlu0 8
    %1282 = vperm.xlu0 %1281, %v1279
    %v1283 = vpop.permute.xlu0 %1282
    %v1285 = vmul.f32 %v1283, %v1044
    %1286 = vset.pattern.permute.xlu0 9
    %1287 = vperm.xlu0 %1286, %v1279
    %v1288 = vpop.permute.xlu0 %1287
    %v1290 = vmul.f32 %v1288, %v1045
    %1291 = vset.pattern.permute.xlu0 10
    %1292 = vperm.xlu0 %1291, %v1279
    %v1293 = vpop.permute.xlu0 %1292
    %v1295 = vmul.f32 %v1293, %v1046
    %1296 = vset.pattern.permute.xlu0 11
    %1297 = vperm.xlu0 %1296, %v1279
    %v1298 = vpop.permute.xlu0 %1297
    %v1300 = vmul.f32 %v1298, %v1047
    %v1301 = vadd.f32 %v1285, %v1290
    %v1302 = vadd.f32 %v1295, %v1300
    %v1303 = vadd.f32 %v1301, %v1302
    %v1305 = vrot.slane %v1303, 6
    %v1307 = vadd.f32 %v1042, %v1305
    %v1308 = vtanh.pop %v1307
    %v1309 = vmul.f32 %v1308, %v220
    %v1310 = vadd.f32 %v1309, %v224
    %v1312 = vrot.slane %v1273, 6
    %v1314 = vmul.f32 %v1310, %v1312
    %1316 = vrot.lane.b32.xlu0 %v1310, 116
    %v1317 = vpop.permute.xlu0 %1316
    %v1319 = vmul.f32 %v1310, %v1317
    %1321 = vrot.lane.b32.xlu0 %v1319, 4
    %v1322 = vpop.permute.xlu0 %1321
    %v1324 = vadd.f32 %v1314, %v1322
    %v1325 = vtanh.pop %v1324
    %1327 = vrot.lane.b32.xlu0 %v1325, 4
    %v1328 = vpop.permute.xlu0 %1327
    %v1330 = vmul.f32 %v1310, %v1328
    %1332 = vset.pattern.permute.xlu0 8
    %1333 = vperm.xlu0 %1332, %v1330
    %v1334 = vpop.permute.xlu0 %1333
    %v1336 = vmul.f32 %v1334, %v1044
    %1337 = vset.pattern.permute.xlu0 9
    %1338 = vperm.xlu0 %1337, %v1330
    %v1339 = vpop.permute.xlu0 %1338
    %v1341 = vmul.f32 %v1339, %v1045
    %1342 = vset.pattern.permute.xlu0 10
    %1343 = vperm.xlu0 %1342, %v1330
    %v1344 = vpop.permute.xlu0 %1343
    %v1346 = vmul.f32 %v1344, %v1046
    %1347 = vset.pattern.permute.xlu0 11
    %1348 = vperm.xlu0 %1347, %v1330
    %v1349 = vpop.permute.xlu0 %1348
    %v1351 = vmul.f32 %v1349, %v1047
    %v1352 = vadd.f32 %v1336, %v1341
    %v1353 = vadd.f32 %v1346, %v1351
    %v1354 = vadd.f32 %v1352, %v1353
    %v1356 = vrot.slane %v1354, 6
    %v1358 = vadd.f32 %v1042, %v1356
    %v1359 = vtanh.pop %v1358
    %v1360 = vmul.f32 %v1359, %v276
    %v1361 = vadd.f32 %v1360, %v279
    %v1363 = vrot.slane %v1324, 6
    %v1365 = vmul.f32 %v1361, %v1363
    %1367 = vrot.lane.b32.xlu0 %v1361, 116
    %v1368 = vpop.permute.xlu0 %1367
    %v1370 = vmul.f32 %v1361, %v1368
    %1372 = vrot.lane.b32.xlu0 %v1370, 4
    %v1373 = vpop.permute.xlu0 %1372
    %v1375 = vadd.f32 %v1365, %v1373
    %v1376 = vtanh.pop %v1375
    %1378 = vrot.lane.b32.xlu0 %v1376, 4
    %v1379 = vpop.permute.xlu0 %1378
    %v1381 = vmul.f32 %v1361, %v1379
    %1383 = vset.pattern.permute.xlu0 8
    %1384 = vperm.xlu0 %1383, %v1381
    %v1385 = vpop.permute.xlu0 %1384
    %v1387 = vmul.f32 %v1385, %v1044
    %1388 = vset.pattern.permute.xlu0 9
    %1389 = vperm.xlu0 %1388, %v1381
    %v1390 = vpop.permute.xlu0 %1389
    %v1392 = vmul.f32 %v1390, %v1045
    %1393 = vset.pattern.permute.xlu0 10
    %1394 = vperm.xlu0 %1393, %v1381
    %v1395 = vpop.permute.xlu0 %1394
    %v1397 = vmul.f32 %v1395, %v1046
    %1398 = vset.pattern.permute.xlu0 11
    %1399 = vperm.xlu0 %1398, %v1381
    %v1400 = vpop.permute.xlu0 %1399
    %v1402 = vmul.f32 %v1400, %v1047
    %v1403 = vadd.f32 %v1387, %v1392
    %v1404 = vadd.f32 %v1397, %v1402
    %v1405 = vadd.f32 %v1403, %v1404
    %v1407 = vrot.slane %v1405, 6
    %v1409 = vadd.f32 %v1042, %v1407
    %v1410 = vtanh.pop %v1409
    %v1411 = vmul.f32 %v1410, %v331
    %v1412 = vadd.f32 %v1411, %v334
    %v1414 = vrot.slane %v1375, 6
    %v1416 = vmul.f32 %v1412, %v1414
    %1418 = vrot.lane.b32.xlu0 %v1412, 116
    %v1419 = vpop.permute.xlu0 %1418
    %v1421 = vmul.f32 %v1412, %v1419
    %1423 = vrot.lane.b32.xlu0 %v1421, 4
    %v1424 = vpop.permute.xlu0 %1423
    %v1426 = vadd.f32 %v1416, %v1424
    %v1427 = vtanh.pop %v1426
    %1429 = vrot.lane.b32.xlu0 %v1427, 4
    %v1430 = vpop.permute.xlu0 %1429
    %v1432 = vmul.f32 %v1412, %v1430
    %v1433 = vsel %vm561, %v1075, %v1126
    %v1434 = vsel %vm27, %v1433, %v1177
    %v1435 = vsel %vm564, %v1434, %v1228
    %v1436 = vsel %vm561, %v1279, %v1330
    %v1437 = vsel %vm27, %v1436, %v1381
    %v1438 = vsel %vm564, %v1437, %v1432
    %v1439 = vld [vmem:[%s1 + $0x28] sm:$0xf]
    %v1440 = vld [vmem:[%s1 + $0x38] sm:$0xf]
    %v1441 = vld [vmem:[%s1 + $0x3f] sm:$0x1]
    %v1442 = vperm.slane %v1441, 0
    %1445 = vrot.lane.b32.xlu0 %v1435, 120
    %v1446 = vpop.permute.xlu0 %1445
    %1447 = vrot.lane.b32.xlu0 %v1438, 120
    %v1448 = vpop.permute.xlu0 %1447
    %v1449 = vsel %vm56, %v1446, 0
    %v1451 = vsel %vm56, %v1448, 0
    %v1454 = vsel %vm27, %v1439, 0
    %1456 = vmatpush.msra.mxu0 0.0
    %1457 = vmatpush.msra.mxu0 0.0
    %1458 = vmatpush.msra.mxu0 0.0
    %1459 = vmatpush.msra.mxu0 0.0
    %1460 = vmatpush.msra.mxu0 0.0
    %1461 = vmatpush.msra.mxu0 0.0
    %1462 = vmatpush.msra.mxu0 0.0
    %1463 = vmatpush.msra.mxu0 0.0
    %1464 = vmatpush.msra.mxu0 0.0
    %1465 = vmatpush.msra.mxu0 0.0
    %1466 = vmatpush.msra.mxu0 0.0
    %1467 = vmatpush.msra.mxu0 0.0
    %1468 = vmatpush.msra.mxu0 0.0
    %1469 = vmatpush.msra.mxu0 0.0
    %1470 = vmatpush.msra.mxu0 0.0
    %1471 = vmatpush.msra.mxu0 %v1454
    %1472 = vmatmul.f32.gmra.mxu0 %v1449
    %v1473 = vpop.f32.mrf.mxu0
    %v1474 = vadd.f32 %v1442, %v1473
    %1475 = vmatmul.f32.gmra.mxu0 %v1451
    %v1476 = vpop.f32.mrf.mxu0
    %v1477 = vadd.f32 %v1442, %v1476
    %1478 = vdwg.mxu0
    %v1479 = vperm.slane %v1440, 0
    %v1480 = vperm.slane %v1440, 1
    %v1481 = vperm.slane %v1440, 2
    %v1482 = vperm.slane %v1440, 3
    %v1483 = vmul.f32 %v1479, 0.0
    %v1484 = vmul.f32 %v1480, 0.0
    %v1485 = vmul.f32 %v1481, 0.0
    %v1486 = vmul.f32 %v1482, 0.0
    %v1487 = vadd.f32 %v1483, %v1484
    %v1488 = vadd.f32 %v1485, %v1486
    %v1489 = vadd.f32 %v1487, %v1488
    %v1490 = vadd.f32 %v1474, %v1489
    %v1491 = vtanh.pop %v1490
    %v1492 = vmul.f32 %v1491, %v120
    %v1493 = vadd.f32 %v1492, %v121
    %v1494 = vmul.f32 %v1493, 0.0
    %1496 = vrot.lane.b32.xlu0 %v1493, 116
    %v1497 = vpop.permute.xlu0 %1496
    %v1499 = vmul.f32 %v1493, %v1497
    %1501 = vrot.lane.b32.xlu0 %v1499, 4
    %v1502 = vpop.permute.xlu0 %1501
    %v1504 = vadd.f32 %v1494, %v1502
    %v1505 = vtanh.pop %v1504
    %1507 = vrot.lane.b32.xlu0 %v1505, 4
    %v1508 = vpop.permute.xlu0 %1507
    %v1510 = vmul.f32 %v1493, %v1508
    %1512 = vset.pattern.permute.xlu0 8
    %1513 = vperm.xlu0 %1512, %v1510
    %v1514 = vpop.permute.xlu0 %1513
    %v1516 = vmul.f32 %v1514, %v1479
    %1517 = vset.pattern.permute.xlu0 9
    %1518 = vperm.xlu0 %1517, %v1510
    %v1519 = vpop.permute.xlu0 %1518
    %v1521 = vmul.f32 %v1519, %v1480
    %1522 = vset.pattern.permute.xlu0 10
    %1523 = vperm.xlu0 %1522, %v1510
    %v1524 = vpop.permute.xlu0 %1523
    %v1526 = vmul.f32 %v1524, %v1481
    %1527 = vset.pattern.permute.xlu0 11
    %1528 = vperm.xlu0 %1527, %v1510
    %v1529 = vpop.permute.xlu0 %1528
    %v1531 = vmul.f32 %v1529, %v1482
    %v1532 = vadd.f32 %v1516, %v1521
    %v1533 = vadd.f32 %v1526, %v1531
    %v1534 = vadd.f32 %v1532, %v1533
    %v1536 = vrot.slane %v1534, 6
    %v1538 = vadd.f32 %v1474, %v1536
    %v1539 = vtanh.pop %v1538
    %v1540 = vmul.f32 %v1539, %v220
    %v1541 = vadd.f32 %v1540, %v224
    %v1543 = vrot.slane %v1504, 6
    %v1545 = vmul.f32 %v1541, %v1543
    %1547 = vrot.lane.b32.xlu0 %v1541, 116
    %v1548 = vpop.permute.xlu0 %1547
    %v1550 = vmul.f32 %v1541, %v1548
    %1552 = vrot.lane.b32.xlu0 %v1550, 4
    %v1553 = vpop.permute.xlu0 %1552
    %v1555 = vadd.f32 %v1545, %v1553
    %v1556 = vtanh.pop %v1555
    %1558 = vrot.lane.b32.xlu0 %v1556, 4
    %v1559 = vpop.permute.xlu0 %1558
    %v1561 = vmul.f32 %v1541, %v1559
    %1563 = vset.pattern.permute.xlu0 8
    %1564 = vperm.xlu0 %1563, %v1561
    %v1565 = vpop.permute.xlu0 %1564
    %v1567 = vmul.f32 %v1565, %v1479
    %1568 = vset.pattern.permute.xlu0 9
    %1569 = vperm.xlu0 %1568, %v1561
    %v1570 = vpop.permute.xlu0 %1569
    %v1572 = vmul.f32 %v1570, %v1480
    %1573 = vset.pattern.permute.xlu0 10
    %1574 = vperm.xlu0 %1573, %v1561
    %v1575 = vpop.permute.xlu0 %1574
    %v1577 = vmul.f32 %v1575, %v1481
    %1578 = vset.pattern.permute.xlu0 11
    %1579 = vperm.xlu0 %1578, %v1561
    %v1580 = vpop.permute.xlu0 %1579
    %v1582 = vmul.f32 %v1580, %v1482
    %v1583 = vadd.f32 %v1567, %v1572
    %v1584 = vadd.f32 %v1577, %v1582
    %v1585 = vadd.f32 %v1583, %v1584
    %v1587 = vrot.slane %v1585, 6
    %v1589 = vadd.f32 %v1474, %v1587
    %v1590 = vtanh.pop %v1589
    %v1591 = vmul.f32 %v1590, %v276
    %v1592 = vadd.f32 %v1591, %v279
    %v1594 = vrot.slane %v1555, 6
    %v1596 = vmul.f32 %v1592, %v1594
    %1598 = vrot.lane.b32.xlu0 %v1592, 116
    %v1599 = vpop.permute.xlu0 %1598
    %v1601 = vmul.f32 %v1592, %v1599
    %1603 = vrot.lane.b32.xlu0 %v1601, 4
    %v1604 = vpop.permute.xlu0 %1603
    %v1606 = vadd.f32 %v1596, %v1604
    %v1607 = vtanh.pop %v1606
    %1609 = vrot.lane.b32.xlu0 %v1607, 4
    %v1610 = vpop.permute.xlu0 %1609
    %v1612 = vmul.f32 %v1592, %v1610
    %1614 = vset.pattern.permute.xlu0 8
    %1615 = vperm.xlu0 %1614, %v1612
    %v1616 = vpop.permute.xlu0 %1615
    %v1618 = vmul.f32 %v1616, %v1479
    %1619 = vset.pattern.permute.xlu0 9
    %1620 = vperm.xlu0 %1619, %v1612
    %v1621 = vpop.permute.xlu0 %1620
    %v1623 = vmul.f32 %v1621, %v1480
    %1624 = vset.pattern.permute.xlu0 10
    %1625 = vperm.xlu0 %1624, %v1612
    %v1626 = vpop.permute.xlu0 %1625
    %v1628 = vmul.f32 %v1626, %v1481
    %1629 = vset.pattern.permute.xlu0 11
    %1630 = vperm.xlu0 %1629, %v1612
    %v1631 = vpop.permute.xlu0 %1630
    %v1633 = vmul.f32 %v1631, %v1482
    %v1634 = vadd.f32 %v1618, %v1623
    %v1635 = vadd.f32 %v1628, %v1633
    %v1636 = vadd.f32 %v1634, %v1635
    %v1638 = vrot.slane %v1636, 6
    %v1640 = vadd.f32 %v1474, %v1638
    %v1641 = vtanh.pop %v1640
    %v1642 = vmul.f32 %v1641, %v331
    %v1643 = vadd.f32 %v1642, %v334
    %v1645 = vrot.slane %v1606, 6
    %v1647 = vmul.f32 %v1643, %v1645
    %1649 = vrot.lane.b32.xlu0 %v1643, 116
    %v1650 = vpop.permute.xlu0 %1649
    %v1652 = vmul.f32 %v1643, %v1650
    %1654 = vrot.lane.b32.xlu0 %v1652, 4
    %v1655 = vpop.permute.xlu0 %1654
    %v1657 = vadd.f32 %v1647, %v1655
    %v1658 = vtanh.pop %v1657
    %1660 = vrot.lane.b32.xlu0 %v1658, 4
    %v1661 = vpop.permute.xlu0 %1660
    %v1663 = vmul.f32 %v1643, %v1661
    %1665 = vset.pattern.permute.xlu0 8
    %1666 = vperm.xlu0 %1665, %v1663
    %v1667 = vpop.permute.xlu0 %1666
    %v1669 = vmul.f32 %v1667, %v1479
    %1670 = vset.pattern.permute.xlu0 9
    %1671 = vperm.xlu0 %1670, %v1663
    %v1672 = vpop.permute.xlu0 %1671
    %v1674 = vmul.f32 %v1672, %v1480
    %1675 = vset.pattern.permute.xlu0 10
    %1676 = vperm.xlu0 %1675, %v1663
    %v1677 = vpop.permute.xlu0 %1676
    %v1679 = vmul.f32 %v1677, %v1481
    %1680 = vset.pattern.permute.xlu0 11
    %1681 = vperm.xlu0 %1680, %v1663
    %v1682 = vpop.permute.xlu0 %1681
    %v1684 = vmul.f32 %v1682, %v1482
    %v1685 = vadd.f32 %v1669, %v1674
    %v1686 = vadd.f32 %v1679, %v1684
    %v1687 = vadd.f32 %v1685, %v1686
    %v1689 = vrot.slane %v1687, 6
    %v1691 = vadd.f32 %v1477, %v1689
    %v1692 = vtanh.pop %v1691
    %v1693 = vmul.f32 %v1692, %v120
    %v1694 = vadd.f32 %v1693, %v121
    %v1696 = vrot.slane %v1657, 6
    %v1698 = vmul.f32 %v1694, %v1696
    %1700 = vrot.lane.b32.xlu0 %v1694, 116
    %v1701 = vpop.permute.xlu0 %1700
    %v1703 = vmul.f32 %v1694, %v1701
    %1705 = vrot.lane.b32.xlu0 %v1703, 4
    %v1706 = vpop.permute.xlu0 %1705
    %v1708 = vadd.f32 %v1698, %v1706
    %v1709 = vtanh.pop %v1708
    %1711 = vrot.lane.b32.xlu0 %v1709, 4
    %v1712 = vpop.permute.xlu0 %1711
    %v1714 = vmul.f32 %v1694, %v1712
    %1716 = vset.pattern.permute.xlu0 8
    %1717 = vperm.xlu0 %1716, %v1714
    %v1718 = vpop.permute.xlu0 %1717
    %v1720 = vmul.f32 %v1718, %v1479
    %1721 = vset.pattern.permute.xlu0 9
    %1722 = vperm.xlu0 %1721, %v1714
    %v1723 = vpop.permute.xlu0 %1722
    %v1725 = vmul.f32 %v1723, %v1480
    %1726 = vset.pattern.permute.xlu0 10
    %1727 = vperm.xlu0 %1726, %v1714
    %v1728 = vpop.permute.xlu0 %1727
    %v1730 = vmul.f32 %v1728, %v1481
    %1731 = vset.pattern.permute.xlu0 11
    %1732 = vperm.xlu0 %1731, %v1714
    %v1733 = vpop.permute.xlu0 %1732
    %v1735 = vmul.f32 %v1733, %v1482
    %v1736 = vadd.f32 %v1720, %v1725
    %v1737 = vadd.f32 %v1730, %v1735
    %v1738 = vadd.f32 %v1736, %v1737
    %v1740 = vrot.slane %v1738, 6
    %v1742 = vadd.f32 %v1477, %v1740
    %v1743 = vtanh.pop %v1742
    %v1744 = vmul.f32 %v1743, %v220
    %v1745 = vadd.f32 %v1744, %v224
    %v1747 = vrot.slane %v1708, 6
    %v1749 = vmul.f32 %v1745, %v1747
    %1751 = vrot.lane.b32.xlu0 %v1745, 116
    %v1752 = vpop.permute.xlu0 %1751
    %v1754 = vmul.f32 %v1745, %v1752
    %1756 = vrot.lane.b32.xlu0 %v1754, 4
    %v1757 = vpop.permute.xlu0 %1756
    %v1759 = vadd.f32 %v1749, %v1757
    %v1760 = vtanh.pop %v1759
    %1762 = vrot.lane.b32.xlu0 %v1760, 4
    %v1763 = vpop.permute.xlu0 %1762
    %v1765 = vmul.f32 %v1745, %v1763
    %1767 = vset.pattern.permute.xlu0 8
    %1768 = vperm.xlu0 %1767, %v1765
    %v1769 = vpop.permute.xlu0 %1768
    %v1771 = vmul.f32 %v1769, %v1479
    %1772 = vset.pattern.permute.xlu0 9
    %1773 = vperm.xlu0 %1772, %v1765
    %v1774 = vpop.permute.xlu0 %1773
    %v1776 = vmul.f32 %v1774, %v1480
    %1777 = vset.pattern.permute.xlu0 10
    %1778 = vperm.xlu0 %1777, %v1765
    %v1779 = vpop.permute.xlu0 %1778
    %v1781 = vmul.f32 %v1779, %v1481
    %1782 = vset.pattern.permute.xlu0 11
    %1783 = vperm.xlu0 %1782, %v1765
    %v1784 = vpop.permute.xlu0 %1783
    %v1786 = vmul.f32 %v1784, %v1482
    %v1787 = vadd.f32 %v1771, %v1776
    %v1788 = vadd.f32 %v1781, %v1786
    %v1789 = vadd.f32 %v1787, %v1788
    %v1791 = vrot.slane %v1789, 6
    %v1793 = vadd.f32 %v1477, %v1791
    %v1794 = vtanh.pop %v1793
    %v1795 = vmul.f32 %v1794, %v276
    %v1796 = vadd.f32 %v1795, %v279
    %v1798 = vrot.slane %v1759, 6
    %v1800 = vmul.f32 %v1796, %v1798
    %1802 = vrot.lane.b32.xlu0 %v1796, 116
    %v1803 = vpop.permute.xlu0 %1802
    %v1805 = vmul.f32 %v1796, %v1803
    %1807 = vrot.lane.b32.xlu0 %v1805, 4
    %v1808 = vpop.permute.xlu0 %1807
    %v1810 = vadd.f32 %v1800, %v1808
    %v1811 = vtanh.pop %v1810
    %1813 = vrot.lane.b32.xlu0 %v1811, 4
    %v1814 = vpop.permute.xlu0 %1813
    %v1816 = vmul.f32 %v1796, %v1814
    %1818 = vset.pattern.permute.xlu0 8
    %1819 = vperm.xlu0 %1818, %v1816
    %v1820 = vpop.permute.xlu0 %1819
    %v1822 = vmul.f32 %v1820, %v1479
    %1823 = vset.pattern.permute.xlu0 9
    %1824 = vperm.xlu0 %1823, %v1816
    %v1825 = vpop.permute.xlu0 %1824
    %v1827 = vmul.f32 %v1825, %v1480
    %1828 = vset.pattern.permute.xlu0 10
    %1829 = vperm.xlu0 %1828, %v1816
    %v1830 = vpop.permute.xlu0 %1829
    %v1832 = vmul.f32 %v1830, %v1481
    %1833 = vset.pattern.permute.xlu0 11
    %1834 = vperm.xlu0 %1833, %v1816
    %v1835 = vpop.permute.xlu0 %1834
    %v1837 = vmul.f32 %v1835, %v1482
    %v1838 = vadd.f32 %v1822, %v1827
    %v1839 = vadd.f32 %v1832, %v1837
    %v1840 = vadd.f32 %v1838, %v1839
    %v1842 = vrot.slane %v1840, 6
    %v1844 = vadd.f32 %v1477, %v1842
    %v1845 = vtanh.pop %v1844
    %v1846 = vmul.f32 %v1845, %v331
    %v1847 = vadd.f32 %v1846, %v334
    %v1849 = vrot.slane %v1810, 6
    %v1851 = vmul.f32 %v1847, %v1849
    %1853 = vrot.lane.b32.xlu0 %v1847, 116
    %v1854 = vpop.permute.xlu0 %1853
    %v1856 = vmul.f32 %v1847, %v1854
    %1858 = vrot.lane.b32.xlu0 %v1856, 4
    %v1859 = vpop.permute.xlu0 %1858
    %v1861 = vadd.f32 %v1851, %v1859
    %v1862 = vtanh.pop %v1861
    %1864 = vrot.lane.b32.xlu0 %v1862, 4
    %v1865 = vpop.permute.xlu0 %1864
    %v1867 = vmul.f32 %v1847, %v1865
    %v1868 = vsel %vm561, %v1510, %v1561
    %v1869 = vsel %vm27, %v1868, %v1612
    %v1870 = vsel %vm564, %v1869, %v1663
    %v1871 = vsel %vm561, %v1714, %v1765
    %v1872 = vsel %vm27, %v1871, %v1816
    %v1873 = vsel %vm564, %v1872, %v1867
    %1876 = vrot.lane.b32.xlu0 %v1870, 120
    %v1877 = vpop.permute.xlu0 %1876
    %1878 = vrot.lane.b32.xlu0 %v1873, 120
    %v1879 = vpop.permute.xlu0 %1878
    %v1880 = vsel %vm56, %v1877, 0
    %v1882 = vsel %vm56, %v1879, 0
    %1884 = vmatpush.msra.mxu0 0.0
    %1885 = vmatpush.msra.mxu0 0.0
    %1886 = vmatpush.msra.mxu0 0.0
    %1887 = vmatpush.msra.mxu0 0.0
    %1888 = vmatpush.msra.mxu0 0.0
    %1889 = vmatpush.msra.mxu0 0.0
    %1890 = vmatpush.msra.mxu0 0.0
    %1891 = vmatpush.msra.mxu0 0.0
    %1892 = vmatpush.msra.mxu0 0.0
    %1893 = vmatpush.msra.mxu0 0.0
    %1894 = vmatpush.msra.mxu0 0.0
    %1895 = vmatpush.msra.mxu0 0.0
    %1896 = vmatpush.msra.mxu0 0.0
    %1897 = vmatpush.msra.mxu0 0.0
    %1898 = vmatpush.msra.mxu0 0.0
    %1899 = vmatpush.msra.mxu0 %v133
    %1900 = vmatmul.f32.gmra.mxu0 %v1880
    %v1901 = vpop.f32.mrf.mxu0
    %v1902 = vadd.f32 %v125, %v1901
    %1903 = vmatmul.f32.gmra.mxu0 %v1882
    %v1904 = vpop.f32.mrf.mxu0
    %v1905 = vadd.f32 %v125, %v1904
    %1906 = vdwg.mxu0
    %v1907 = vadd.f32 %v1902, %v168
    %v1908 = vtanh.pop %v1907
    %v1909 = vmul.f32 %v1908, %v120
    %v1910 = vadd.f32 %v1909, %v121
    %v1911 = vmul.f32 %v1910, 0.0
    %1913 = vrot.lane.b32.xlu0 %v1910, 116
    %v1914 = vpop.permute.xlu0 %1913
    %v1916 = vmul.f32 %v1910, %v1914
    %1918 = vrot.lane.b32.xlu0 %v1916, 4
    %v1919 = vpop.permute.xlu0 %1918
    %v1921 = vadd.f32 %v1911, %v1919
    %v1922 = vtanh.pop %v1921
    %1924 = vrot.lane.b32.xlu0 %v1922, 4
    %v1925 = vpop.permute.xlu0 %1924
    %v1927 = vmul.f32 %v1910, %v1925
    %1929 = vset.pattern.permute.xlu0 8
    %1930 = vperm.xlu0 %1929, %v1927
    %v1931 = vpop.permute.xlu0 %1930
    %v1933 = vmul.f32 %v1931, %v158
    %1934 = vset.pattern.permute.xlu0 9
    %1935 = vperm.xlu0 %1934, %v1927
    %v1936 = vpop.permute.xlu0 %1935
    %v1938 = vmul.f32 %v1936, %v159
    %1939 = vset.pattern.permute.xlu0 10
    %1940 = vperm.xlu0 %1939, %v1927
    %v1941 = vpop.permute.xlu0 %1940
    %v1943 = vmul.f32 %v1941, %v160
    %1944 = vset.pattern.permute.xlu0 11
    %1945 = vperm.xlu0 %1944, %v1927
    %v1946 = vpop.permute.xlu0 %1945
    %v1948 = vmul.f32 %v1946, %v161
    %v1949 = vadd.f32 %v1933, %v1938
    %v1950 = vadd.f32 %v1943, %v1948
    %v1951 = vadd.f32 %v1949, %v1950
    %v1953 = vrot.slane %v1951, 6
    %v1955 = vadd.f32 %v1902, %v1953
    %v1956 = vtanh.pop %v1955
    %v1957 = vmul.f32 %v1956, %v220
    %v1958 = vadd.f32 %v1957, %v224
    %v1960 = vrot.slane %v1921, 6
    %v1962 = vmul.f32 %v1958, %v1960
    %1964 = vrot.lane.b32.xlu0 %v1958, 116
    %v1965 = vpop.permute.xlu0 %1964
    %v1967 = vmul.f32 %v1958, %v1965
    %1969 = vrot.lane.b32.xlu0 %v1967, 4
    %v1970 = vpop.permute.xlu0 %1969
    %v1972 = vadd.f32 %v1962, %v1970
    %v1973 = vtanh.pop %v1972
    %1975 = vrot.lane.b32.xlu0 %v1973, 4
    %v1976 = vpop.permute.xlu0 %1975
    %v1978 = vmul.f32 %v1958, %v1976
    %1980 = vset.pattern.permute.xlu0 8
    %1981 = vperm.xlu0 %1980, %v1978
    %v1982 = vpop.permute.xlu0 %1981
    %v1984 = vmul.f32 %v1982, %v158
    %1985 = vset.pattern.permute.xlu0 9
    %1986 = vperm.xlu0 %1985, %v1978
    %v1987 = vpop.permute.xlu0 %1986
    %v1989 = vmul.f32 %v1987, %v159
    %1990 = vset.pattern.permute.xlu0 10
    %1991 = vperm.xlu0 %1990, %v1978
    %v1992 = vpop.permute.xlu0 %1991
    %v1994 = vmul.f32 %v1992, %v160
    %1995 = vset.pattern.permute.xlu0 11
    %1996 = vperm.xlu0 %1995, %v1978
    %v1997 = vpop.permute.xlu0 %1996
    %v1999 = vmul.f32 %v1997, %v161
    %v2000 = vadd.f32 %v1984, %v1989
    %v2001 = vadd.f32 %v1994, %v1999
    %v2002 = vadd.f32 %v2000, %v2001
    %v2004 = vrot.slane %v2002, 6
    %v2006 = vadd.f32 %v1902, %v2004
    %v2007 = vtanh.pop %v2006
    %v2008 = vmul.f32 %v2007, %v276
    %v2009 = vadd.f32 %v2008, %v279
    %v2011 = vrot.slane %v1972, 6
    %v2013 = vmul.f32 %v2009, %v2011
    %2015 = vrot.lane.b32.xlu0 %v2009, 116
    %v2016 = vpop.permute.xlu0 %2015
    %v2018 = vmul.f32 %v2009, %v2016
    %2020 = vrot.lane.b32.xlu0 %v2018, 4
    %v2021 = vpop.permute.xlu0 %2020
    %v2023 = vadd.f32 %v2013, %v2021
    %v2024 = vtanh.pop %v2023
    %2026 = vrot.lane.b32.xlu0 %v2024, 4
    %v2027 = vpop.permute.xlu0 %2026
    %v2029 = vmul.f32 %v2009, %v2027
    %2031 = vset.pattern.permute.xlu0 8
    %2032 = vperm.xlu0 %2031, %v2029
    %v2033 = vpop.permute.xlu0 %2032
    %v2035 = vmul.f32 %v2033, %v158
    %2036 = vset.pattern.permute.xlu0 9
    %2037 = vperm.xlu0 %2036, %v2029
    %v2038 = vpop.permute.xlu0 %2037
    %v2040 = vmul.f32 %v2038, %v159
    %2041 = vset.pattern.permute.xlu0 10
    %2042 = vperm.xlu0 %2041, %v2029
    %v2043 = vpop.permute.xlu0 %2042
    %v2045 = vmul.f32 %v2043, %v160
    %2046 = vset.pattern.permute.xlu0 11
    %2047 = vperm.xlu0 %2046, %v2029
    %v2048 = vpop.permute.xlu0 %2047
    %v2050 = vmul.f32 %v2048, %v161
    %v2051 = vadd.f32 %v2035, %v2040
    %v2052 = vadd.f32 %v2045, %v2050
    %v2053 = vadd.f32 %v2051, %v2052
    %v2055 = vrot.slane %v2053, 6
    %v2057 = vadd.f32 %v1902, %v2055
    %v2058 = vtanh.pop %v2057
    %v2059 = vmul.f32 %v2058, %v331
    %v2060 = vadd.f32 %v2059, %v334
    %v2062 = vrot.slane %v2023, 6
    %v2064 = vmul.f32 %v2060, %v2062
    %2066 = vrot.lane.b32.xlu0 %v2060, 116
    %v2067 = vpop.permute.xlu0 %2066
    %v2069 = vmul.f32 %v2060, %v2067
    %2071 = vrot.lane.b32.xlu0 %v2069, 4
    %v2072 = vpop.permute.xlu0 %2071
    %v2074 = vadd.f32 %v2064, %v2072
    %v2075 = vtanh.pop %v2074
    %2077 = vrot.lane.b32.xlu0 %v2075, 4
    %v2078 = vpop.permute.xlu0 %2077
    %v2080 = vmul.f32 %v2060, %v2078
    %2082 = vset.pattern.permute.xlu0 8
    %2083 = vperm.xlu0 %2082, %v2080
    %v2084 = vpop.permute.xlu0 %2083
    %v2086 = vmul.f32 %v2084, %v158
    %2087 = vset.pattern.permute.xlu0 9
    %2088 = vperm.xlu0 %2087, %v2080
    %v2089 = vpop.permute.xlu0 %2088
    %v2091 = vmul.f32 %v2089, %v159
    %2092 = vset.pattern.permute.xlu0 10
    %2093 = vperm.xlu0 %2092, %v2080
    %v2094 = vpop.permute.xlu0 %2093
    %v2096 = vmul.f32 %v2094, %v160
    %2097 = vset.pattern.permute.xlu0 11
    %2098 = vperm.xlu0 %2097, %v2080
    %v2099 = vpop.permute.xlu0 %2098
    %v2101 = vmul.f32 %v2099, %v161
    %v2102 = vadd.f32 %v2086, %v2091
    %v2103 = vadd.f32 %v2096, %v2101
    %v2104 = vadd.f32 %v2102, %v2103
    %v2106 = vrot.slane %v2104, 6
    %v2108 = vadd.f32 %v1905, %v2106
    %v2109 = vtanh.pop %v2108
    %v2110 = vmul.f32 %v2109, %v120
    %v2111 = vadd.f32 %v2110, %v121
    %v2113 = vrot.slane %v2074, 6
    %v2115 = vmul.f32 %v2111, %v2113
    %2117 = vrot.lane.b32.xlu0 %v2111, 116
    %v2118 = vpop.permute.xlu0 %2117
    %v2120 = vmul.f32 %v2111, %v2118
    %2122 = vrot.lane.b32.xlu0 %v2120, 4
    %v2123 = vpop.permute.xlu0 %2122
    %v2125 = vadd.f32 %v2115, %v2123
    %v2126 = vtanh.pop %v2125
    %2128 = vrot.lane.b32.xlu0 %v2126, 4
    %v2129 = vpop.permute.xlu0 %2128
    %v2131 = vmul.f32 %v2111, %v2129
    %2133 = vset.pattern.permute.xlu0 8
    %2134 = vperm.xlu0 %2133, %v2131
    %v2135 = vpop.permute.xlu0 %2134
    %v2137 = vmul.f32 %v2135, %v158
    %2138 = vset.pattern.permute.xlu0 9
    %2139 = vperm.xlu0 %2138, %v2131
    %v2140 = vpop.permute.xlu0 %2139
    %v2142 = vmul.f32 %v2140, %v159
    %2143 = vset.pattern.permute.xlu0 10
    %2144 = vperm.xlu0 %2143, %v2131
    %v2145 = vpop.permute.xlu0 %2144
    %v2147 = vmul.f32 %v2145, %v160
    %2148 = vset.pattern.permute.xlu0 11
    %2149 = vperm.xlu0 %2148, %v2131
    %v2150 = vpop.permute.xlu0 %2149
    %v2152 = vmul.f32 %v2150, %v161
    %v2153 = vadd.f32 %v2137, %v2142
    %v2154 = vadd.f32 %v2147, %v2152
    %v2155 = vadd.f32 %v2153, %v2154
    %v2157 = vrot.slane %v2155, 6
    %v2159 = vadd.f32 %v1905, %v2157
    %v2160 = vtanh.pop %v2159
    %v2161 = vmul.f32 %v2160, %v220
    %v2162 = vadd.f32 %v2161, %v224
    %v2164 = vrot.slane %v2125, 6
    %v2166 = vmul.f32 %v2162, %v2164
    %2168 = vrot.lane.b32.xlu0 %v2162, 116
    %v2169 = vpop.permute.xlu0 %2168
    %v2171 = vmul.f32 %v2162, %v2169
    %2173 = vrot.lane.b32.xlu0 %v2171, 4
    %v2174 = vpop.permute.xlu0 %2173
    %v2176 = vadd.f32 %v2166, %v2174
    %v2177 = vtanh.pop %v2176
    %2179 = vrot.lane.b32.xlu0 %v2177, 4
    %v2180 = vpop.permute.xlu0 %2179
    %v2182 = vmul.f32 %v2162, %v2180
    %2184 = vset.pattern.permute.xlu0 8
    %2185 = vperm.xlu0 %2184, %v2182
    %v2186 = vpop.permute.xlu0 %2185
    %v2188 = vmul.f32 %v2186, %v158
    %2189 = vset.pattern.permute.xlu0 9
    %2190 = vperm.xlu0 %2189, %v2182
    %v2191 = vpop.permute.xlu0 %2190
    %v2193 = vmul.f32 %v2191, %v159
    %2194 = vset.pattern.permute.xlu0 10
    %2195 = vperm.xlu0 %2194, %v2182
    %v2196 = vpop.permute.xlu0 %2195
    %v2198 = vmul.f32 %v2196, %v160
    %2199 = vset.pattern.permute.xlu0 11
    %2200 = vperm.xlu0 %2199, %v2182
    %v2201 = vpop.permute.xlu0 %2200
    %v2203 = vmul.f32 %v2201, %v161
    %v2204 = vadd.f32 %v2188, %v2193
    %v2205 = vadd.f32 %v2198, %v2203
    %v2206 = vadd.f32 %v2204, %v2205
    %v2208 = vrot.slane %v2206, 6
    %v2210 = vadd.f32 %v1905, %v2208
    %v2211 = vtanh.pop %v2210
    %v2212 = vmul.f32 %v2211, %v276
    %v2213 = vadd.f32 %v2212, %v279
    %v2215 = vrot.slane %v2176, 6
    %v2217 = vmul.f32 %v2213, %v2215
    %2219 = vrot.lane.b32.xlu0 %v2213, 116
    %v2220 = vpop.permute.xlu0 %2219
    %v2222 = vmul.f32 %v2213, %v2220
    %2224 = vrot.lane.b32.xlu0 %v2222, 4
    %v2225 = vpop.permute.xlu0 %2224
    %v2227 = vadd.f32 %v2217, %v2225
    %v2228 = vtanh.pop %v2227
    %2230 = vrot.lane.b32.xlu0 %v2228, 4
    %v2231 = vpop.permute.xlu0 %2230
    %v2233 = vmul.f32 %v2213, %v2231
    %2235 = vset.pattern.permute.xlu0 8
    %2236 = vperm.xlu0 %2235, %v2233
    %v2237 = vpop.permute.xlu0 %2236
    %v2239 = vmul.f32 %v2237, %v158
    %2240 = vset.pattern.permute.xlu0 9
    %2241 = vperm.xlu0 %2240, %v2233
    %v2242 = vpop.permute.xlu0 %2241
    %v2244 = vmul.f32 %v2242, %v159
    %2245 = vset.pattern.permute.xlu0 10
    %2246 = vperm.xlu0 %2245, %v2233
    %v2247 = vpop.permute.xlu0 %2246
    %v2249 = vmul.f32 %v2247, %v160
    %2250 = vset.pattern.permute.xlu0 11
    %2251 = vperm.xlu0 %2250, %v2233
    %v2252 = vpop.permute.xlu0 %2251
    %v2254 = vmul.f32 %v2252, %v161
    %v2255 = vadd.f32 %v2239, %v2244
    %v2256 = vadd.f32 %v2249, %v2254
    %v2257 = vadd.f32 %v2255, %v2256
    %v2259 = vrot.slane %v2257, 6
    %v2261 = vadd.f32 %v1905, %v2259
    %v2262 = vtanh.pop %v2261
    %v2263 = vmul.f32 %v2262, %v331
    %v2264 = vadd.f32 %v2263, %v334
    %v2266 = vrot.slane %v2227, 6
    %v2268 = vmul.f32 %v2264, %v2266
    %2270 = vrot.lane.b32.xlu0 %v2264, 116
    %v2271 = vpop.permute.xlu0 %2270
    %v2273 = vmul.f32 %v2264, %v2271
    %2275 = vrot.lane.b32.xlu0 %v2273, 4
    %v2276 = vpop.permute.xlu0 %2275
    %v2278 = vadd.f32 %v2268, %v2276
    %v2279 = vtanh.pop %v2278
    %2281 = vrot.lane.b32.xlu0 %v2279, 4
    %v2282 = vpop.permute.xlu0 %2281
    %v2284 = vmul.f32 %v2264, %v2282
    %v2285 = vsel %vm561, %v1927, %v1978
    %v2286 = vsel %vm27, %v2285, %v2029
    %v2287 = vsel %vm564, %v2286, %v2080
    %v2288 = vsel %vm561, %v2131, %v2182
    %v2289 = vsel %vm27, %v2288, %v2233
    %v2290 = vsel %vm564, %v2289, %v2284
    %2293 = vrot.lane.b32.xlu0 %v2287, 120
    %v2294 = vpop.permute.xlu0 %2293
    %2295 = vrot.lane.b32.xlu0 %v2290, 120
    %v2296 = vpop.permute.xlu0 %2295
    %v2297 = vsel %vm56, %v2294, 0
    %v2299 = vsel %vm56, %v2296, 0
    %2301 = vmatpush.msra.mxu0 0.0
    %2302 = vmatpush.msra.mxu0 0.0
    %2303 = vmatpush.msra.mxu0 0.0
    %2304 = vmatpush.msra.mxu0 0.0
    %2305 = vmatpush.msra.mxu0 0.0
    %2306 = vmatpush.msra.mxu0 0.0
    %2307 = vmatpush.msra.mxu0 0.0
    %2308 = vmatpush.msra.mxu0 0.0
    %2309 = vmatpush.msra.mxu0 0.0
    %2310 = vmatpush.msra.mxu0 0.0
    %2311 = vmatpush.msra.mxu0 0.0
    %2312 = vmatpush.msra.mxu0 0.0
    %2313 = vmatpush.msra.mxu0 0.0
    %2314 = vmatpush.msra.mxu0 0.0
    %2315 = vmatpush.msra.mxu0 0.0
    %2316 = vmatpush.msra.mxu0 %v584
    %2317 = vmatmul.f32.gmra.mxu0 %v2297
    %v2318 = vpop.f32.mrf.mxu0
    %v2319 = vadd.f32 %v572, %v2318
    %2320 = vmatmul.f32.gmra.mxu0 %v2299
    %v2321 = vpop.f32.mrf.mxu0
    %v2322 = vadd.f32 %v572, %v2321
    %2323 = vdwg.mxu0
    %v2324 = vadd.f32 %v2319, %v619
    %v2325 = vtanh.pop %v2324
    %v2326 = vmul.f32 %v2325, %v120
    %v2327 = vadd.f32 %v2326, %v121
    %v2328 = vmul.f32 %v2327, 0.0
    %2330 = vrot.lane.b32.xlu0 %v2327, 116
    %v2331 = vpop.permute.xlu0 %2330
    %v2333 = vmul.f32 %v2327, %v2331
    %2335 = vrot.lane.b32.xlu0 %v2333, 4
    %v2336 = vpop.permute.xlu0 %2335
    %v2338 = vadd.f32 %v2328, %v2336
    %v2339 = vtanh.pop %v2338
    %2341 = vrot.lane.b32.xlu0 %v2339, 4
    %v2342 = vpop.permute.xlu0 %2341
    %v2344 = vmul.f32 %v2327, %v2342
    %2346 = vset.pattern.permute.xlu0 8
    %2347 = vperm.xlu0 %2346, %v2344
    %v2348 = vpop.permute.xlu0 %2347
    %v2350 = vmul.f32 %v2348, %v609
    %2351 = vset.pattern.permute.xlu0 9
    %2352 = vperm.xlu0 %2351, %v2344
    %v2353 = vpop.permute.xlu0 %2352
    %v2355 = vmul.f32 %v2353, %v610
    %2356 = vset.pattern.permute.xlu0 10
    %2357 = vperm.xlu0 %2356, %v2344
    %v2358 = vpop.permute.xlu0 %2357
    %v2360 = vmul.f32 %v2358, %v611
    %2361 = vset.pattern.permute.xlu0 11
    %2362 = vperm.xlu0 %2361, %v2344
    %v2363 = vpop.permute.xlu0 %2362
    %v2365 = vmul.f32 %v2363, %v612
    %v2366 = vadd.f32 %v2350, %v2355
    %v2367 = vadd.f32 %v2360, %v2365
    %v2368 = vadd.f32 %v2366, %v2367
    %v2370 = vrot.slane %v2368, 6
    %v2372 = vadd.f32 %v2319, %v2370
    %v2373 = vtanh.pop %v2372
    %v2374 = vmul.f32 %v2373, %v220
    %v2375 = vadd.f32 %v2374, %v224
    %v2377 = vrot.slane %v2338, 6
    %v2379 = vmul.f32 %v2375, %v2377
    %2381 = vrot.lane.b32.xlu0 %v2375, 116
    %v2382 = vpop.permute.xlu0 %2381
    %v2384 = vmul.f32 %v2375, %v2382
    %2386 = vrot.lane.b32.xlu0 %v2384, 4
    %v2387 = vpop.permute.xlu0 %2386
    %v2389 = vadd.f32 %v2379, %v2387
    %v2390 = vtanh.pop %v2389
    %2392 = vrot.lane.b32.xlu0 %v2390, 4
    %v2393 = vpop.permute.xlu0 %2392
    %v2395 = vmul.f32 %v2375, %v2393
    %2397 = vset.pattern.permute.xlu0 8
    %2398 = vperm.xlu0 %2397, %v2395
    %v2399 = vpop.permute.xlu0 %2398
    %v2401 = vmul.f32 %v2399, %v609
    %2402 = vset.pattern.permute.xlu0 9
    %2403 = vperm.xlu0 %2402, %v2395
    %v2404 = vpop.permute.xlu0 %2403
    %v2406 = vmul.f32 %v2404, %v610
    %2407 = vset.pattern.permute.xlu0 10
    %2408 = vperm.xlu0 %2407, %v2395
    %v2409 = vpop.permute.xlu0 %2408
    %v2411 = vmul.f32 %v2409, %v611
    %2412 = vset.pattern.permute.xlu0 11
    %2413 = vperm.xlu0 %2412, %v2395
    %v2414 = vpop.permute.xlu0 %2413
    %v2416 = vmul.f32 %v2414, %v612
    %v2417 = vadd.f32 %v2401, %v2406
    %v2418 = vadd.f32 %v2411, %v2416
    %v2419 = vadd.f32 %v2417, %v2418
    %v2421 = vrot.slane %v2419, 6
    %v2423 = vadd.f32 %v2319, %v2421
    %v2424 = vtanh.pop %v2423
    %v2425 = vmul.f32 %v2424, %v276
    %v2426 = vadd.f32 %v2425, %v279
    %v2428 = vrot.slane %v2389, 6
    %v2430 = vmul.f32 %v2426, %v2428
    %2432 = vrot.lane.b32.xlu0 %v2426, 116
    %v2433 = vpop.permute.xlu0 %2432
    %v2435 = vmul.f32 %v2426, %v2433
    %2437 = vrot.lane.b32.xlu0 %v2435, 4
    %v2438 = vpop.permute.xlu0 %2437
    %v2440 = vadd.f32 %v2430, %v2438
    %v2441 = vtanh.pop %v2440
    %2443 = vrot.lane.b32.xlu0 %v2441, 4
    %v2444 = vpop.permute.xlu0 %2443
    %v2446 = vmul.f32 %v2426, %v2444
    %2448 = vset.pattern.permute.xlu0 8
    %2449 = vperm.xlu0 %2448, %v2446
    %v2450 = vpop.permute.xlu0 %2449
    %v2452 = vmul.f32 %v2450, %v609
    %2453 = vset.pattern.permute.xlu0 9
    %2454 = vperm.xlu0 %2453, %v2446
    %v2455 = vpop.permute.xlu0 %2454
    %v2457 = vmul.f32 %v2455, %v610
    %2458 = vset.pattern.permute.xlu0 10
    %2459 = vperm.xlu0 %2458, %v2446
    %v2460 = vpop.permute.xlu0 %2459
    %v2462 = vmul.f32 %v2460, %v611
    %2463 = vset.pattern.permute.xlu0 11
    %2464 = vperm.xlu0 %2463, %v2446
    %v2465 = vpop.permute.xlu0 %2464
    %v2467 = vmul.f32 %v2465, %v612
    %v2468 = vadd.f32 %v2452, %v2457
    %v2469 = vadd.f32 %v2462, %v2467
    %v2470 = vadd.f32 %v2468, %v2469
    %v2472 = vrot.slane %v2470, 6
    %v2474 = vadd.f32 %v2319, %v2472
    %v2475 = vtanh.pop %v2474
    %v2476 = vmul.f32 %v2475, %v331
    %v2477 = vadd.f32 %v2476, %v334
    %v2479 = vrot.slane %v2440, 6
    %v2481 = vmul.f32 %v2477, %v2479
    %2483 = vrot.lane.b32.xlu0 %v2477, 116
    %v2484 = vpop.permute.xlu0 %2483
    %v2486 = vmul.f32 %v2477, %v2484
    %2488 = vrot.lane.b32.xlu0 %v2486, 4
    %v2489 = vpop.permute.xlu0 %2488
    %v2491 = vadd.f32 %v2481, %v2489
    %v2492 = vtanh.pop %v2491
    %2494 = vrot.lane.b32.xlu0 %v2492, 4
    %v2495 = vpop.permute.xlu0 %2494
    %v2497 = vmul.f32 %v2477, %v2495
    %2499 = vset.pattern.permute.xlu0 8
    %2500 = vperm.xlu0 %2499, %v2497
    %v2501 = vpop.permute.xlu0 %2500
    %v2503 = vmul.f32 %v2501, %v609
    %2504 = vset.pattern.permute.xlu0 9
    %2505 = vperm.xlu0 %2504, %v2497
    %v2506 = vpop.permute.xlu0 %2505
    %v2508 = vmul.f32 %v2506, %v610
    %2509 = vset.pattern.permute.xlu0 10
    %2510 = vperm.xlu0 %2509, %v2497
    %v2511 = vpop.permute.xlu0 %2510
    %v2513 = vmul.f32 %v2511, %v611
    %2514 = vset.pattern.permute.xlu0 11
    %2515 = vperm.xlu0 %2514, %v2497
    %v2516 = vpop.permute.xlu0 %2515
    %v2518 = vmul.f32 %v2516, %v612
    %v2519 = vadd.f32 %v2503, %v2508
    %v2520 = vadd.f32 %v2513, %v2518
    %v2521 = vadd.f32 %v2519, %v2520
    %v2523 = vrot.slane %v2521, 6
    %v2525 = vadd.f32 %v2322, %v2523
    %v2526 = vtanh.pop %v2525
    %v2527 = vmul.f32 %v2526, %v120
    %v2528 = vadd.f32 %v2527, %v121
    %v2530 = vrot.slane %v2491, 6
    %v2532 = vmul.f32 %v2528, %v2530
    %2534 = vrot.lane.b32.xlu0 %v2528, 116
    %v2535 = vpop.permute.xlu0 %2534
    %v2537 = vmul.f32 %v2528, %v2535
    %2539 = vrot.lane.b32.xlu0 %v2537, 4
    %v2540 = vpop.permute.xlu0 %2539
    %v2542 = vadd.f32 %v2532, %v2540
    %v2543 = vtanh.pop %v2542
    %2545 = vrot.lane.b32.xlu0 %v2543, 4
    %v2546 = vpop.permute.xlu0 %2545
    %v2548 = vmul.f32 %v2528, %v2546
    %2550 = vset.pattern.permute.xlu0 8
    %2551 = vperm.xlu0 %2550, %v2548
    %v2552 = vpop.permute.xlu0 %2551
    %v2554 = vmul.f32 %v2552, %v609
    %2555 = vset.pattern.permute.xlu0 9
    %2556 = vperm.xlu0 %2555, %v2548
    %v2557 = vpop.permute.xlu0 %2556
    %v2559 = vmul.f32 %v2557, %v610
    %2560 = vset.pattern.permute.xlu0 10
    %2561 = vperm.xlu0 %2560, %v2548
    %v2562 = vpop.permute.xlu0 %2561
    %v2564 = vmul.f32 %v2562, %v611
    %2565 = vset.pattern.permute.xlu0 11
    %2566 = vperm.xlu0 %2565, %v2548
    %v2567 = vpop.permute.xlu0 %2566
    %v2569 = vmul.f32 %v2567, %v612
    %v2570 = vadd.f32 %v2554, %v2559
    %v2571 = vadd.f32 %v2564, %v2569
    %v2572 = vadd.f32 %v2570, %v2571
    %v2574 = vrot.slane %v2572, 6
    %v2576 = vadd.f32 %v2322, %v2574
    %v2577 = vtanh.pop %v2576
    %v2578 = vmul.f32 %v2577, %v220
    %v2579 = vadd.f32 %v2578, %v224
    %v2581 = vrot.slane %v2542, 6
    %v2583 = vmul.f32 %v2579, %v2581
    %2585 = vrot.lane.b32.xlu0 %v2579, 116
    %v2586 = vpop.permute.xlu0 %2585
    %v2588 = vmul.f32 %v2579, %v2586
    %2590 = vrot.lane.b32.xlu0 %v2588, 4
    %v2591 = vpop.permute.xlu0 %2590
    %v2593 = vadd.f32 %v2583, %v2591
    %v2594 = vtanh.pop %v2593
    %2596 = vrot.lane.b32.xlu0 %v2594, 4
    %v2597 = vpop.permute.xlu0 %2596
    %v2599 = vmul.f32 %v2579, %v2597
    %2601 = vset.pattern.permute.xlu0 8
    %2602 = vperm.xlu0 %2601, %v2599
    %v2603 = vpop.permute.xlu0 %2602
    %v2605 = vmul.f32 %v2603, %v609
    %2606 = vset.pattern.permute.xlu0 9
    %2607 = vperm.xlu0 %2606, %v2599
    %v2608 = vpop.permute.xlu0 %2607
    %v2610 = vmul.f32 %v2608, %v610
    %2611 = vset.pattern.permute.xlu0 10
    %2612 = vperm.xlu0 %2611, %v2599
    %v2613 = vpop.permute.xlu0 %2612
    %v2615 = vmul.f32 %v2613, %v611
    %2616 = vset.pattern.permute.xlu0 11
    %2617 = vperm.xlu0 %2616, %v2599
    %v2618 = vpop.permute.xlu0 %2617
    %v2620 = vmul.f32 %v2618, %v612
    %v2621 = vadd.f32 %v2605, %v2610
    %v2622 = vadd.f32 %v2615, %v2620
    %v2623 = vadd.f32 %v2621, %v2622
    %v2625 = vrot.slane %v2623, 6
    %v2627 = vadd.f32 %v2322, %v2625
    %v2628 = vtanh.pop %v2627
    %v2629 = vmul.f32 %v2628, %v276
    %v2630 = vadd.f32 %v2629, %v279
    %v2632 = vrot.slane %v2593, 6
    %v2634 = vmul.f32 %v2630, %v2632
    %2636 = vrot.lane.b32.xlu0 %v2630, 116
    %v2637 = vpop.permute.xlu0 %2636
    %v2639 = vmul.f32 %v2630, %v2637
    %2641 = vrot.lane.b32.xlu0 %v2639, 4
    %v2642 = vpop.permute.xlu0 %2641
    %v2644 = vadd.f32 %v2634, %v2642
    %v2645 = vtanh.pop %v2644
    %2647 = vrot.lane.b32.xlu0 %v2645, 4
    %v2648 = vpop.permute.xlu0 %2647
    %v2650 = vmul.f32 %v2630, %v2648
    %2652 = vset.pattern.permute.xlu0 8
    %2653 = vperm.xlu0 %2652, %v2650
    %v2654 = vpop.permute.xlu0 %2653
    %v2656 = vmul.f32 %v2654, %v609
    %2657 = vset.pattern.permute.xlu0 9
    %2658 = vperm.xlu0 %2657, %v2650
    %v2659 = vpop.permute.xlu0 %2658
    %v2661 = vmul.f32 %v2659, %v610
    %2662 = vset.pattern.permute.xlu0 10
    %2663 = vperm.xlu0 %2662, %v2650
    %v2664 = vpop.permute.xlu0 %2663
    %v2666 = vmul.f32 %v2664, %v611
    %2667 = vset.pattern.permute.xlu0 11
    %2668 = vperm.xlu0 %2667, %v2650
    %v2669 = vpop.permute.xlu0 %2668
    %v2671 = vmul.f32 %v2669, %v612
    %v2672 = vadd.f32 %v2656, %v2661
    %v2673 = vadd.f32 %v2666, %v2671
    %v2674 = vadd.f32 %v2672, %v2673
    %v2676 = vrot.slane %v2674, 6
    %v2678 = vadd.f32 %v2322, %v2676
    %v2679 = vtanh.pop %v2678
    %v2680 = vmul.f32 %v2679, %v331
    %v2681 = vadd.f32 %v2680, %v334
    %v2683 = vrot.slane %v2644, 6
    %v2685 = vmul.f32 %v2681, %v2683
    %2687 = vrot.lane.b32.xlu0 %v2681, 116
    %v2688 = vpop.permute.xlu0 %2687
    %v2690 = vmul.f32 %v2681, %v2688
    %2692 = vrot.lane.b32.xlu0 %v2690, 4
    %v2693 = vpop.permute.xlu0 %2692
    %v2695 = vadd.f32 %v2685, %v2693
    %v2696 = vtanh.pop %v2695
    %2698 = vrot.lane.b32.xlu0 %v2696, 4
    %v2699 = vpop.permute.xlu0 %2698
    %v2701 = vmul.f32 %v2681, %v2699
    %v2702 = vsel %vm561, %v2344, %v2395
    %v2703 = vsel %vm27, %v2702, %v2446
    %v2704 = vsel %vm564, %v2703, %v2497
    %v2705 = vsel %vm561, %v2548, %v2599
    %v2706 = vsel %vm27, %v2705, %v2650
    %v2707 = vsel %vm564, %v2706, %v2701
    %2710 = vrot.lane.b32.xlu0 %v2704, 120
    %v2711 = vpop.permute.xlu0 %2710
    %2712 = vrot.lane.b32.xlu0 %v2707, 120
    %v2713 = vpop.permute.xlu0 %2712
    %v2714 = vsel %vm56, %v2711, 0
    %v2716 = vsel %vm56, %v2713, 0
    %2718 = vmatpush.msra.mxu0 0.0
    %2719 = vmatpush.msra.mxu0 0.0
    %2720 = vmatpush.msra.mxu0 0.0
    %2721 = vmatpush.msra.mxu0 0.0
    %2722 = vmatpush.msra.mxu0 0.0
    %2723 = vmatpush.msra.mxu0 0.0
    %2724 = vmatpush.msra.mxu0 0.0
    %2725 = vmatpush.msra.mxu0 0.0
    %2726 = vmatpush.msra.mxu0 0.0
    %2727 = vmatpush.msra.mxu0 0.0
    %2728 = vmatpush.msra.mxu0 0.0
    %2729 = vmatpush.msra.mxu0 0.0
    %2730 = vmatpush.msra.mxu0 0.0
    %2731 = vmatpush.msra.mxu0 0.0
    %2732 = vmatpush.msra.mxu0 0.0
    %2733 = vmatpush.msra.mxu0 %v1019
    %2734 = vmatmul.f32.gmra.mxu0 %v2714
    %v2735 = vpop.f32.mrf.mxu0
    %v2736 = vadd.f32 %v1007, %v2735
    %2737 = vmatmul.f32.gmra.mxu0 %v2716
    %v2738 = vpop.f32.mrf.mxu0
    %v2739 = vadd.f32 %v1007, %v2738
    %2740 = vdwg.mxu0
    %v2741 = vadd.f32 %v2736, %v1054
    %v2742 = vtanh.pop %v2741
    %v2743 = vmul.f32 %v2742, %v120
    %v2744 = vadd.f32 %v2743, %v121
    %v2745 = vmul.f32 %v2744, 0.0
    %2747 = vrot.lane.b32.xlu0 %v2744, 116
    %v2748 = vpop.permute.xlu0 %2747
    %v2750 = vmul.f32 %v2744, %v2748
    %2752 = vrot.lane.b32.xlu0 %v2750, 4
    %v2753 = vpop.permute.xlu0 %2752
    %v2755 = vadd.f32 %v2745, %v2753
    %v2756 = vtanh.pop %v2755
    %2758 = vrot.lane.b32.xlu0 %v2756, 4
    %v2759 = vpop.permute.xlu0 %2758
    %v2761 = vmul.f32 %v2744, %v2759
    %2763 = vset.pattern.permute.xlu0 8
    %2764 = vperm.xlu0 %2763, %v2761
    %v2765 = vpop.permute.xlu0 %2764
    %v2767 = vmul.f32 %v2765, %v1044
    %2768 = vset.pattern.permute.xlu0 9
    %2769 = vperm.xlu0 %2768, %v2761
    %v2770 = vpop.permute.xlu0 %2769
    %v2772 = vmul.f32 %v2770, %v1045
    %2773 = vset.pattern.permute.xlu0 10
    %2774 = vperm.xlu0 %2773, %v2761
    %v2775 = vpop.permute.xlu0 %2774
    %v2777 = vmul.f32 %v2775, %v1046
    %2778 = vset.pattern.permute.xlu0 11
    %2779 = vperm.xlu0 %2778, %v2761
    %v2780 = vpop.permute.xlu0 %2779
    %v2782 = vmul.f32 %v2780, %v1047
    %v2783 = vadd.f32 %v2767, %v2772
    %v2784 = vadd.f32 %v2777, %v2782
    %v2785 = vadd.f32 %v2783, %v2784
    %v2787 = vrot.slane %v2785, 6
    %v2789 = vadd.f32 %v2736, %v2787
    %v2790 = vtanh.pop %v2789
    %v2791 = vmul.f32 %v2790, %v220
    %v2792 = vadd.f32 %v2791, %v224
    %v2794 = vrot.slane %v2755, 6
    %v2796 = vmul.f32 %v2792, %v2794
    %2798 = vrot.lane.b32.xlu0 %v2792, 116
    %v2799 = vpop.permute.xlu0 %2798
    %v2801 = vmul.f32 %v2792, %v2799
    %2803 = vrot.lane.b32.xlu0 %v2801, 4
    %v2804 = vpop.permute.xlu0 %2803
    %v2806 = vadd.f32 %v2796, %v2804
    %v2807 = vtanh.pop %v2806
    %2809 = vrot.lane.b32.xlu0 %v2807, 4
    %v2810 = vpop.permute.xlu0 %2809
    %v2812 = vmul.f32 %v2792, %v2810
    %2814 = vset.pattern.permute.xlu0 8
    %2815 = vperm.xlu0 %2814, %v2812
    %v2816 = vpop.permute.xlu0 %2815
    %v2818 = vmul.f32 %v2816, %v1044
    %2819 = vset.pattern.permute.xlu0 9
    %2820 = vperm.xlu0 %2819, %v2812
    %v2821 = vpop.permute.xlu0 %2820
    %v2823 = vmul.f32 %v2821, %v1045
    %2824 = vset.pattern.permute.xlu0 10
    %2825 = vperm.xlu0 %2824, %v2812
    %v2826 = vpop.permute.xlu0 %2825
    %v2828 = vmul.f32 %v2826, %v1046
    %2829 = vset.pattern.permute.xlu0 11
    %2830 = vperm.xlu0 %2829, %v2812
    %v2831 = vpop.permute.xlu0 %2830
    %v2833 = vmul.f32 %v2831, %v1047
    %v2834 = vadd.f32 %v2818, %v2823
    %v2835 = vadd.f32 %v2828, %v2833
    %v2836 = vadd.f32 %v2834, %v2835
    %v2838 = vrot.slane %v2836, 6
    %v2840 = vadd.f32 %v2736, %v2838
    %v2841 = vtanh.pop %v2840
    %v2842 = vmul.f32 %v2841, %v276
    %v2843 = vadd.f32 %v2842, %v279
    %v2845 = vrot.slane %v2806, 6
    %v2847 = vmul.f32 %v2843, %v2845
    %2849 = vrot.lane.b32.xlu0 %v2843, 116
    %v2850 = vpop.permute.xlu0 %2849
    %v2852 = vmul.f32 %v2843, %v2850
    %2854 = vrot.lane.b32.xlu0 %v2852, 4
    %v2855 = vpop.permute.xlu0 %2854
    %v2857 = vadd.f32 %v2847, %v2855
    %v2858 = vtanh.pop %v2857
    %2860 = vrot.lane.b32.xlu0 %v2858, 4
    %v2861 = vpop.permute.xlu0 %2860
    %v2863 = vmul.f32 %v2843, %v2861
    %2865 = vset.pattern.permute.xlu0 8
    %2866 = vperm.xlu0 %2865, %v2863
    %v2867 = vpop.permute.xlu0 %2866
    %v2869 = vmul.f32 %v2867, %v1044
    %2870 = vset.pattern.permute.xlu0 9
    %2871 = vperm.xlu0 %2870, %v2863
    %v2872 = vpop.permute.xlu0 %2871
    %v2874 = vmul.f32 %v2872, %v1045
    %2875 = vset.pattern.permute.xlu0 10
    %2876 = vperm.xlu0 %2875, %v2863
    %v2877 = vpop.permute.xlu0 %2876
    %v2879 = vmul.f32 %v2877, %v1046
    %2880 = vset.pattern.permute.xlu0 11
    %2881 = vperm.xlu0 %2880, %v2863
    %v2882 = vpop.permute.xlu0 %2881
    %v2884 = vmul.f32 %v2882, %v1047
    %v2885 = vadd.f32 %v2869, %v2874
    %v2886 = vadd.f32 %v2879, %v2884
    %v2887 = vadd.f32 %v2885, %v2886
    %v2889 = vrot.slane %v2887, 6
    %v2891 = vadd.f32 %v2736, %v2889
    %v2892 = vtanh.pop %v2891
    %v2893 = vmul.f32 %v2892, %v331
    %v2894 = vadd.f32 %v2893, %v334
    %v2896 = vrot.slane %v2857, 6
    %v2898 = vmul.f32 %v2894, %v2896
    %2900 = vrot.lane.b32.xlu0 %v2894, 116
    %v2901 = vpop.permute.xlu0 %2900
    %v2903 = vmul.f32 %v2894, %v2901
    %2905 = vrot.lane.b32.xlu0 %v2903, 4
    %v2906 = vpop.permute.xlu0 %2905
    %v2908 = vadd.f32 %v2898, %v2906
    %v2909 = vtanh.pop %v2908
    %2911 = vrot.lane.b32.xlu0 %v2909, 4
    %v2912 = vpop.permute.xlu0 %2911
    %v2914 = vmul.f32 %v2894, %v2912
    %2916 = vset.pattern.permute.xlu0 8
    %2917 = vperm.xlu0 %2916, %v2914
    %v2918 = vpop.permute.xlu0 %2917
    %v2920 = vmul.f32 %v2918, %v1044
    %2921 = vset.pattern.permute.xlu0 9
    %2922 = vperm.xlu0 %2921, %v2914
    %v2923 = vpop.permute.xlu0 %2922
    %v2925 = vmul.f32 %v2923, %v1045
    %2926 = vset.pattern.permute.xlu0 10
    %2927 = vperm.xlu0 %2926, %v2914
    %v2928 = vpop.permute.xlu0 %2927
    %v2930 = vmul.f32 %v2928, %v1046
    %2931 = vset.pattern.permute.xlu0 11
    %2932 = vperm.xlu0 %2931, %v2914
    %v2933 = vpop.permute.xlu0 %2932
    %v2935 = vmul.f32 %v2933, %v1047
    %v2936 = vadd.f32 %v2920, %v2925
    %v2937 = vadd.f32 %v2930, %v2935
    %v2938 = vadd.f32 %v2936, %v2937
    %v2940 = vrot.slane %v2938, 6
    %v2942 = vadd.f32 %v2739, %v2940
    %v2943 = vtanh.pop %v2942
    %v2944 = vmul.f32 %v2943, %v120
    %v2945 = vadd.f32 %v2944, %v121
    %v2947 = vrot.slane %v2908, 6
    %v2949 = vmul.f32 %v2945, %v2947
    %2951 = vrot.lane.b32.xlu0 %v2945, 116
    %v2952 = vpop.permute.xlu0 %2951
    %v2954 = vmul.f32 %v2945, %v2952
    %2956 = vrot.lane.b32.xlu0 %v2954, 4
    %v2957 = vpop.permute.xlu0 %2956
    %v2959 = vadd.f32 %v2949, %v2957
    %v2960 = vtanh.pop %v2959
    %2962 = vrot.lane.b32.xlu0 %v2960, 4
    %v2963 = vpop.permute.xlu0 %2962
    %v2965 = vmul.f32 %v2945, %v2963
    %2967 = vset.pattern.permute.xlu0 8
    %2968 = vperm.xlu0 %2967, %v2965
    %v2969 = vpop.permute.xlu0 %2968
    %v2971 = vmul.f32 %v2969, %v1044
    %2972 = vset.pattern.permute.xlu0 9
    %2973 = vperm.xlu0 %2972, %v2965
    %v2974 = vpop.permute.xlu0 %2973
    %v2976 = vmul.f32 %v2974, %v1045
    %2977 = vset.pattern.permute.xlu0 10
    %2978 = vperm.xlu0 %2977, %v2965
    %v2979 = vpop.permute.xlu0 %2978
    %v2981 = vmul.f32 %v2979, %v1046
    %2982 = vset.pattern.permute.xlu0 11
    %2983 = vperm.xlu0 %2982, %v2965
    %v2984 = vpop.permute.xlu0 %2983
    %v2986 = vmul.f32 %v2984, %v1047
    %v2987 = vadd.f32 %v2971, %v2976
    %v2988 = vadd.f32 %v2981, %v2986
    %v2989 = vadd.f32 %v2987, %v2988
    %v2991 = vrot.slane %v2989, 6
    %v2993 = vadd.f32 %v2739, %v2991
    %v2994 = vtanh.pop %v2993
    %v2995 = vmul.f32 %v2994, %v220
    %v2996 = vadd.f32 %v2995, %v224
    %v2998 = vrot.slane %v2959, 6
    %v3000 = vmul.f32 %v2996, %v2998
    %3002 = vrot.lane.b32.xlu0 %v2996, 116
    %v3003 = vpop.permute.xlu0 %3002
    %v3005 = vmul.f32 %v2996, %v3003
    %3007 = vrot.lane.b32.xlu0 %v3005, 4
    %v3008 = vpop.permute.xlu0 %3007
    %v3010 = vadd.f32 %v3000, %v3008
    %v3011 = vtanh.pop %v3010
    %3013 = vrot.lane.b32.xlu0 %v3011, 4
    %v3014 = vpop.permute.xlu0 %3013
    %v3016 = vmul.f32 %v2996, %v3014
    %3018 = vset.pattern.permute.xlu0 8
    %3019 = vperm.xlu0 %3018, %v3016
    %v3020 = vpop.permute.xlu0 %3019
    %v3022 = vmul.f32 %v3020, %v1044
    %3023 = vset.pattern.permute.xlu0 9
    %3024 = vperm.xlu0 %3023, %v3016
    %v3025 = vpop.permute.xlu0 %3024
    %v3027 = vmul.f32 %v3025, %v1045
    %3028 = vset.pattern.permute.xlu0 10
    %3029 = vperm.xlu0 %3028, %v3016
    %v3030 = vpop.permute.xlu0 %3029
    %v3032 = vmul.f32 %v3030, %v1046
    %3033 = vset.pattern.permute.xlu0 11
    %3034 = vperm.xlu0 %3033, %v3016
    %v3035 = vpop.permute.xlu0 %3034
    %v3037 = vmul.f32 %v3035, %v1047
    %v3038 = vadd.f32 %v3022, %v3027
    %v3039 = vadd.f32 %v3032, %v3037
    %v3040 = vadd.f32 %v3038, %v3039
    %v3042 = vrot.slane %v3040, 6
    %v3044 = vadd.f32 %v2739, %v3042
    %v3045 = vtanh.pop %v3044
    %v3046 = vmul.f32 %v3045, %v276
    %v3047 = vadd.f32 %v3046, %v279
    %v3049 = vrot.slane %v3010, 6
    %v3051 = vmul.f32 %v3047, %v3049
    %3053 = vrot.lane.b32.xlu0 %v3047, 116
    %v3054 = vpop.permute.xlu0 %3053
    %v3056 = vmul.f32 %v3047, %v3054
    %3058 = vrot.lane.b32.xlu0 %v3056, 4
    %v3059 = vpop.permute.xlu0 %3058
    %v3061 = vadd.f32 %v3051, %v3059
    %v3062 = vtanh.pop %v3061
    %3064 = vrot.lane.b32.xlu0 %v3062, 4
    %v3065 = vpop.permute.xlu0 %3064
    %v3067 = vmul.f32 %v3047, %v3065
    %3069 = vset.pattern.permute.xlu0 8
    %3070 = vperm.xlu0 %3069, %v3067
    %v3071 = vpop.permute.xlu0 %3070
    %v3073 = vmul.f32 %v3071, %v1044
    %3074 = vset.pattern.permute.xlu0 9
    %3075 = vperm.xlu0 %3074, %v3067
    %v3076 = vpop.permute.xlu0 %3075
    %v3078 = vmul.f32 %v3076, %v1045
    %3079 = vset.pattern.permute.xlu0 10
    %3080 = vperm.xlu0 %3079, %v3067
    %v3081 = vpop.permute.xlu0 %3080
    %v3083 = vmul.f32 %v3081, %v1046
    %3084 = vset.pattern.permute.xlu0 11
    %3085 = vperm.xlu0 %3084, %v3067
    %v3086 = vpop.permute.xlu0 %3085
    %v3088 = vmul.f32 %v3086, %v1047
    %v3089 = vadd.f32 %v3073, %v3078
    %v3090 = vadd.f32 %v3083, %v3088
    %v3091 = vadd.f32 %v3089, %v3090
    %v3093 = vrot.slane %v3091, 6
    %v3095 = vadd.f32 %v2739, %v3093
    %v3096 = vtanh.pop %v3095
    %v3097 = vmul.f32 %v3096, %v331
    %v3098 = vadd.f32 %v3097, %v334
    %v3100 = vrot.slane %v3061, 6
    %v3102 = vmul.f32 %v3098, %v3100
    %3104 = vrot.lane.b32.xlu0 %v3098, 116
    %v3105 = vpop.permute.xlu0 %3104
    %v3107 = vmul.f32 %v3098, %v3105
    %3109 = vrot.lane.b32.xlu0 %v3107, 4
    %v3110 = vpop.permute.xlu0 %3109
    %v3112 = vadd.f32 %v3102, %v3110
    %v3113 = vtanh.pop %v3112
    %3115 = vrot.lane.b32.xlu0 %v3113, 4
    %v3116 = vpop.permute.xlu0 %3115
    %v3118 = vmul.f32 %v3098, %v3116
    %v3119 = vsel %vm561, %v2761, %v2812
    %v3120 = vsel %vm27, %v3119, %v2863
    %v3121 = vsel %vm564, %v3120, %v2914
    %v3122 = vsel %vm561, %v2965, %v3016
    %v3123 = vsel %vm27, %v3122, %v3067
    %v3124 = vsel %vm564, %v3123, %v3118
    %3127 = vrot.lane.b32.xlu0 %v3121, 120
    %v3128 = vpop.permute.xlu0 %3127
    %3129 = vrot.lane.b32.xlu0 %v3124, 120
    %v3130 = vpop.permute.xlu0 %3129
    %v3131 = vsel %vm56, %v3128, 0
    %v3133 = vsel %vm56, %v3130, 0
    %3135 = vmatpush.msra.mxu0 0.0
    %3136 = vmatpush.msra.mxu0 0.0
    %3137 = vmatpush.msra.mxu0 0.0
    %3138 = vmatpush.msra.mxu0 0.0
    %3139 = vmatpush.msra.mxu0 0.0
    %3140 = vmatpush.msra.mxu0 0.0
    %3141 = vmatpush.msra.mxu0 0.0
    %3142 = vmatpush.msra.mxu0 0.0
    %3143 = vmatpush.msra.mxu0 0.0
    %3144 = vmatpush.msra.mxu0 0.0
    %3145 = vmatpush.msra.mxu0 0.0
    %3146 = vmatpush.msra.mxu0 0.0
    %3147 = vmatpush.msra.mxu0 0.0
    %3148 = vmatpush.msra.mxu0 0.0
    %3149 = vmatpush.msra.mxu0 0.0
    %3150 = vmatpush.msra.mxu0 %v1454
    %3151 = vmatmul.f32.gmra.mxu0 %v3131
    %v3152 = vpop.f32.mrf.mxu0
    %v3153 = vadd.f32 %v1442, %v3152
    %3154 = vmatmul.f32.gmra.mxu0 %v3133
    %v3155 = vpop.f32.mrf.mxu0
    %v3156 = vadd.f32 %v1442, %v3155
    %3157 = vdwg.mxu0
    %v3158 = vadd.f32 %v3153, %v1489
    %v3159 = vtanh.pop %v3158
    %v3160 = vmul.f32 %v3159, %v120
    %v3161 = vadd.f32 %v3160, %v121
    %v3162 = vmul.f32 %v3161, 0.0
    %3164 = vrot.lane.b32.xlu0 %v3161, 116
    %v3165 = vpop.permute.xlu0 %3164
    %v3167 = vmul.f32 %v3161, %v3165
    %3169 = vrot.lane.b32.xlu0 %v3167, 4
    %v3170 = vpop.permute.xlu0 %3169
    %v3172 = vadd.f32 %v3162, %v3170
    %v3173 = vtanh.pop %v3172
    %3175 = vrot.lane.b32.xlu0 %v3173, 4
    %v3176 = vpop.permute.xlu0 %3175
    %v3178 = vmul.f32 %v3161, %v3176
    %3180 = vset.pattern.permute.xlu0 8
    %3181 = vperm.xlu0 %3180, %v3178
    %v3182 = vpop.permute.xlu0 %3181
    %v3184 = vmul.f32 %v3182, %v1479
    %3185 = vset.pattern.permute.xlu0 9
    %3186 = vperm.xlu0 %3185, %v3178
    %v3187 = vpop.permute.xlu0 %3186
    %v3189 = vmul.f32 %v3187, %v1480
    %3190 = vset.pattern.permute.xlu0 10
    %3191 = vperm.xlu0 %3190, %v3178
    %v3192 = vpop.permute.xlu0 %3191
    %v3194 = vmul.f32 %v3192, %v1481
    %3195 = vset.pattern.permute.xlu0 11
    %3196 = vperm.xlu0 %3195, %v3178
    %v3197 = vpop.permute.xlu0 %3196
    %v3199 = vmul.f32 %v3197, %v1482
    %v3200 = vadd.f32 %v3184, %v3189
    %v3201 = vadd.f32 %v3194, %v3199
    %v3202 = vadd.f32 %v3200, %v3201
    %v3204 = vrot.slane %v3202, 6
    %v3206 = vadd.f32 %v3153, %v3204
    %v3207 = vtanh.pop %v3206
    %v3208 = vmul.f32 %v3207, %v220
    %v3209 = vadd.f32 %v3208, %v224
    %v3211 = vrot.slane %v3172, 6
    %v3213 = vmul.f32 %v3209, %v3211
    %3215 = vrot.lane.b32.xlu0 %v3209, 116
    %v3216 = vpop.permute.xlu0 %3215
    %v3218 = vmul.f32 %v3209, %v3216
    %3220 = vrot.lane.b32.xlu0 %v3218, 4
    %v3221 = vpop.permute.xlu0 %3220
    %v3223 = vadd.f32 %v3213, %v3221
    %v3224 = vtanh.pop %v3223
    %3226 = vrot.lane.b32.xlu0 %v3224, 4
    %v3227 = vpop.permute.xlu0 %3226
    %v3229 = vmul.f32 %v3209, %v3227
    %3231 = vset.pattern.permute.xlu0 8
    %3232 = vperm.xlu0 %3231, %v3229
    %v3233 = vpop.permute.xlu0 %3232
    %v3235 = vmul.f32 %v3233, %v1479
    %3236 = vset.pattern.permute.xlu0 9
    %3237 = vperm.xlu0 %3236, %v3229
    %v3238 = vpop.permute.xlu0 %3237
    %v3240 = vmul.f32 %v3238, %v1480
    %3241 = vset.pattern.permute.xlu0 10
    %3242 = vperm.xlu0 %3241, %v3229
    %v3243 = vpop.permute.xlu0 %3242
    %v3245 = vmul.f32 %v3243, %v1481
    %3246 = vset.pattern.permute.xlu0 11
    %3247 = vperm.xlu0 %3246, %v3229
    %v3248 = vpop.permute.xlu0 %3247
    %v3250 = vmul.f32 %v3248, %v1482
    %v3251 = vadd.f32 %v3235, %v3240
    %v3252 = vadd.f32 %v3245, %v3250
    %v3253 = vadd.f32 %v3251, %v3252
    %v3255 = vrot.slane %v3253, 6
    %v3257 = vadd.f32 %v3153, %v3255
    %v3258 = vtanh.pop %v3257
    %v3259 = vmul.f32 %v3258, %v276
    %v3260 = vadd.f32 %v3259, %v279
    %v3262 = vrot.slane %v3223, 6
    %v3264 = vmul.f32 %v3260, %v3262
    %3266 = vrot.lane.b32.xlu0 %v3260, 116
    %v3267 = vpop.permute.xlu0 %3266
    %v3269 = vmul.f32 %v3260, %v3267
    %3271 = vrot.lane.b32.xlu0 %v3269, 4
    %v3272 = vpop.permute.xlu0 %3271
    %v3274 = vadd.f32 %v3264, %v3272
    %v3275 = vtanh.pop %v3274
    %3277 = vrot.lane.b32.xlu0 %v3275, 4
    %v3278 = vpop.permute.xlu0 %3277
    %v3280 = vmul.f32 %v3260, %v3278
    %3282 = vset.pattern.permute.xlu0 8
    %3283 = vperm.xlu0 %3282, %v3280
    %v3284 = vpop.permute.xlu0 %3283
    %v3286 = vmul.f32 %v3284, %v1479
    %3287 = vset.pattern.permute.xlu0 9
    %3288 = vperm.xlu0 %3287, %v3280
    %v3289 = vpop.permute.xlu0 %3288
    %v3291 = vmul.f32 %v3289, %v1480
    %3292 = vset.pattern.permute.xlu0 10
    %3293 = vperm.xlu0 %3292, %v3280
    %v3294 = vpop.permute.xlu0 %3293
    %v3296 = vmul.f32 %v3294, %v1481
    %3297 = vset.pattern.permute.xlu0 11
    %3298 = vperm.xlu0 %3297, %v3280
    %v3299 = vpop.permute.xlu0 %3298
    %v3301 = vmul.f32 %v3299, %v1482
    %v3302 = vadd.f32 %v3286, %v3291
    %v3303 = vadd.f32 %v3296, %v3301
    %v3304 = vadd.f32 %v3302, %v3303
    %v3306 = vrot.slane %v3304, 6
    %v3308 = vadd.f32 %v3153, %v3306
    %v3309 = vtanh.pop %v3308
    %v3310 = vmul.f32 %v3309, %v331
    %v3311 = vadd.f32 %v3310, %v334
    %v3313 = vrot.slane %v3274, 6
    %v3315 = vmul.f32 %v3311, %v3313
    %3317 = vrot.lane.b32.xlu0 %v3311, 116
    %v3318 = vpop.permute.xlu0 %3317
    %v3320 = vmul.f32 %v3311, %v3318
    %3322 = vrot.lane.b32.xlu0 %v3320, 4
    %v3323 = vpop.permute.xlu0 %3322
    %v3325 = vadd.f32 %v3315, %v3323
    %v3326 = vtanh.pop %v3325
    %3328 = vrot.lane.b32.xlu0 %v3326, 4
    %v3329 = vpop.permute.xlu0 %3328
    %v3331 = vmul.f32 %v3311, %v3329
    %3333 = vset.pattern.permute.xlu0 8
    %3334 = vperm.xlu0 %3333, %v3331
    %v3335 = vpop.permute.xlu0 %3334
    %v3337 = vmul.f32 %v3335, %v1479
    %3338 = vset.pattern.permute.xlu0 9
    %3339 = vperm.xlu0 %3338, %v3331
    %v3340 = vpop.permute.xlu0 %3339
    %v3342 = vmul.f32 %v3340, %v1480
    %3343 = vset.pattern.permute.xlu0 10
    %3344 = vperm.xlu0 %3343, %v3331
    %v3345 = vpop.permute.xlu0 %3344
    %v3347 = vmul.f32 %v3345, %v1481
    %3348 = vset.pattern.permute.xlu0 11
    %3349 = vperm.xlu0 %3348, %v3331
    %v3350 = vpop.permute.xlu0 %3349
    %v3352 = vmul.f32 %v3350, %v1482
    %v3353 = vadd.f32 %v3337, %v3342
    %v3354 = vadd.f32 %v3347, %v3352
    %v3355 = vadd.f32 %v3353, %v3354
    %v3357 = vrot.slane %v3355, 6
    %v3359 = vadd.f32 %v3156, %v3357
    %v3360 = vtanh.pop %v3359
    %v3361 = vmul.f32 %v3360, %v120
    %v3362 = vadd.f32 %v3361, %v121
    %v3364 = vrot.slane %v3325, 6
    %v3366 = vmul.f32 %v3362, %v3364
    %3368 = vrot.lane.b32.xlu0 %v3362, 116
    %v3369 = vpop.permute.xlu0 %3368
    %v3371 = vmul.f32 %v3362, %v3369
    %3373 = vrot.lane.b32.xlu0 %v3371, 4
    %v3374 = vpop.permute.xlu0 %3373
    %v3376 = vadd.f32 %v3366, %v3374
    %v3377 = vtanh.pop %v3376
    %3379 = vrot.lane.b32.xlu0 %v3377, 4
    %v3380 = vpop.permute.xlu0 %3379
    %v3382 = vmul.f32 %v3362, %v3380
    %3384 = vset.pattern.permute.xlu0 8
    %3385 = vperm.xlu0 %3384, %v3382
    %v3386 = vpop.permute.xlu0 %3385
    %v3388 = vmul.f32 %v3386, %v1479
    %3389 = vset.pattern.permute.xlu0 9
    %3390 = vperm.xlu0 %3389, %v3382
    %v3391 = vpop.permute.xlu0 %3390
    %v3393 = vmul.f32 %v3391, %v1480
    %3394 = vset.pattern.permute.xlu0 10
    %3395 = vperm.xlu0 %3394, %v3382
    %v3396 = vpop.permute.xlu0 %3395
    %v3398 = vmul.f32 %v3396, %v1481
    %3399 = vset.pattern.permute.xlu0 11
    %3400 = vperm.xlu0 %3399, %v3382
    %v3401 = vpop.permute.xlu0 %3400
    %v3403 = vmul.f32 %v3401, %v1482
    %v3404 = vadd.f32 %v3388, %v3393
    %v3405 = vadd.f32 %v3398, %v3403
    %v3406 = vadd.f32 %v3404, %v3405
    %v3408 = vrot.slane %v3406, 6
    %v3410 = vadd.f32 %v3156, %v3408
    %v3411 = vtanh.pop %v3410
    %v3412 = vmul.f32 %v3411, %v220
    %v3413 = vadd.f32 %v3412, %v224
    %v3415 = vrot.slane %v3376, 6
    %v3417 = vmul.f32 %v3413, %v3415
    %3419 = vrot.lane.b32.xlu0 %v3413, 116
    %v3420 = vpop.permute.xlu0 %3419
    %v3422 = vmul.f32 %v3413, %v3420
    %3424 = vrot.lane.b32.xlu0 %v3422, 4
    %v3425 = vpop.permute.xlu0 %3424
    %v3427 = vadd.f32 %v3417, %v3425
    %v3428 = vtanh.pop %v3427
    %3430 = vrot.lane.b32.xlu0 %v3428, 4
    %v3431 = vpop.permute.xlu0 %3430
    %v3433 = vmul.f32 %v3413, %v3431
    %3435 = vset.pattern.permute.xlu0 8
    %3436 = vperm.xlu0 %3435, %v3433
    %v3437 = vpop.permute.xlu0 %3436
    %v3439 = vmul.f32 %v3437, %v1479
    %3440 = vset.pattern.permute.xlu0 9
    %3441 = vperm.xlu0 %3440, %v3433
    %v3442 = vpop.permute.xlu0 %3441
    %v3444 = vmul.f32 %v3442, %v1480
    %3445 = vset.pattern.permute.xlu0 10
    %3446 = vperm.xlu0 %3445, %v3433
    %v3447 = vpop.permute.xlu0 %3446
    %v3449 = vmul.f32 %v3447, %v1481
    %3450 = vset.pattern.permute.xlu0 11
    %3451 = vperm.xlu0 %3450, %v3433
    %v3452 = vpop.permute.xlu0 %3451
    %v3454 = vmul.f32 %v3452, %v1482
    %v3455 = vadd.f32 %v3439, %v3444
    %v3456 = vadd.f32 %v3449, %v3454
    %v3457 = vadd.f32 %v3455, %v3456
    %v3459 = vrot.slane %v3457, 6
    %v3461 = vadd.f32 %v3156, %v3459
    %v3462 = vtanh.pop %v3461
    %v3463 = vmul.f32 %v3462, %v276
    %v3464 = vadd.f32 %v3463, %v279
    %v3466 = vrot.slane %v3427, 6
    %v3468 = vmul.f32 %v3464, %v3466
    %3470 = vrot.lane.b32.xlu0 %v3464, 116
    %v3471 = vpop.permute.xlu0 %3470
    %v3473 = vmul.f32 %v3464, %v3471
    %3475 = vrot.lane.b32.xlu0 %v3473, 4
    %v3476 = vpop.permute.xlu0 %3475
    %v3478 = vadd.f32 %v3468, %v3476
    %v3479 = vtanh.pop %v3478
    %3481 = vrot.lane.b32.xlu0 %v3479, 4
    %v3482 = vpop.permute.xlu0 %3481
    %v3484 = vmul.f32 %v3464, %v3482
    %3486 = vset.pattern.permute.xlu0 8
    %3487 = vperm.xlu0 %3486, %v3484
    %v3488 = vpop.permute.xlu0 %3487
    %v3490 = vmul.f32 %v3488, %v1479
    %3491 = vset.pattern.permute.xlu0 9
    %3492 = vperm.xlu0 %3491, %v3484
    %v3493 = vpop.permute.xlu0 %3492
    %v3495 = vmul.f32 %v3493, %v1480
    %3496 = vset.pattern.permute.xlu0 10
    %3497 = vperm.xlu0 %3496, %v3484
    %v3498 = vpop.permute.xlu0 %3497
    %v3500 = vmul.f32 %v3498, %v1481
    %3501 = vset.pattern.permute.xlu0 11
    %3502 = vperm.xlu0 %3501, %v3484
    %v3503 = vpop.permute.xlu0 %3502
    %v3505 = vmul.f32 %v3503, %v1482
    %v3506 = vadd.f32 %v3490, %v3495
    %v3507 = vadd.f32 %v3500, %v3505
    %v3508 = vadd.f32 %v3506, %v3507
    %v3510 = vrot.slane %v3508, 6
    %v3512 = vadd.f32 %v3156, %v3510
    %v3513 = vtanh.pop %v3512
    %v3514 = vmul.f32 %v3513, %v331
    %v3515 = vadd.f32 %v3514, %v334
    %v3517 = vrot.slane %v3478, 6
    %v3519 = vmul.f32 %v3515, %v3517
    %3521 = vrot.lane.b32.xlu0 %v3515, 116
    %v3522 = vpop.permute.xlu0 %3521
    %v3524 = vmul.f32 %v3515, %v3522
    %3526 = vrot.lane.b32.xlu0 %v3524, 4
    %v3527 = vpop.permute.xlu0 %3526
    %v3529 = vadd.f32 %v3519, %v3527
    %v3530 = vtanh.pop %v3529
    %3532 = vrot.lane.b32.xlu0 %v3530, 4
    %v3533 = vpop.permute.xlu0 %3532
    %v3535 = vmul.f32 %v3515, %v3533
    %v3536 = vld [vmem:[%s1 + $0x43] sm:$0xf]
    %v3537 = vld [vmem:[%s1 + $0x47] sm:$0x1]
    %v3538 = vperm.slane %v3536, 0
    %3540 = vset.pattern.permute.xlu0 8
    %3541 = vperm.xlu0 %3540, %v3535
    %v3542 = vpop.permute.xlu0 %3541
    %v3544 = vmul.f32 %v3542, %v3538
    %v3545 = vperm.slane %v3536, 1
    %3546 = vset.pattern.permute.xlu0 9
    %3547 = vperm.xlu0 %3546, %v3535
    %v3548 = vpop.permute.xlu0 %3547
    %v3550 = vmul.f32 %v3548, %v3545
    %v3551 = vperm.slane %v3536, 2
    %3552 = vset.pattern.permute.xlu0 10
    %3553 = vperm.xlu0 %3552, %v3535
    %v3554 = vpop.permute.xlu0 %3553
    %v3556 = vmul.f32 %v3554, %v3551
    %v3557 = vperm.slane %v3536, 3
    %3558 = vset.pattern.permute.xlu0 11
    %3559 = vperm.xlu0 %3558, %v3535
    %v3560 = vpop.permute.xlu0 %3559
    %v3562 = vmul.f32 %v3560, %v3557
    %v3563 = vperm.slane %v3537, 0
    %v3564 = vadd.f32 %v3544, %v3550
    %v3565 = vadd.f32 %v3556, %v3562
    %v3566 = vadd.f32 %v3564, %v3565
    %v3567 = vadd.f32 %v3563, %v3566
    %v3568 = vmax.f32 %v3567, 0.0
    %v3569 = vld [vmem:[%s1 + $0x48] sm:$0xf]
    %v3570 = vld [vmem:[%s1 + $0x4c] sm:$0x1]
    %v3571 = vperm.slane %v3569, 0
    %3573 = vset.pattern.permute.xlu0 0
    %3574 = vperm.xlu0 %3573, %v3568
    %v3575 = vpop.permute.xlu0 %3574
    %v3577 = vmul.f32 %v3575, %v3571
    %v3578 = vperm.slane %v3569, 1
    %3579 = vset.pattern.permute.xlu0 1
    %3580 = vperm.xlu0 %3579, %v3568
    %v3581 = vpop.permute.xlu0 %3580
    %v3583 = vmul.f32 %v3581, %v3578
    %v3584 = vperm.slane %v3569, 2
    %3585 = vset.pattern.permute.xlu0 2
    %3586 = vperm.xlu0 %3585, %v3568
    %v3587 = vpop.permute.xlu0 %3586
    %v3589 = vmul.f32 %v3587, %v3584
    %v3590 = vperm.slane %v3569, 3
    %3591 = vset.pattern.permute.xlu0 3
    %3592 = vperm.xlu0 %3591, %v3568
    %v3593 = vpop.permute.xlu0 %3592
    %v3595 = vmul.f32 %v3593, %v3590
    %v3596 = vperm.slane %v3570, 0
    %v3597 = vadd.f32 %v3577, %v3583
    %v3598 = vadd.f32 %v3589, %v3595
    %v3599 = vadd.f32 %v3597, %v3598
    %v3600 = vadd.f32 %v3596, %v3599
    %vm3601 = vcmask 39942
    %v3602 = vsel %vm3601, %v3600, -inf
    %3603 = vmax.xlane.f32.xlu0 %v3602
    %v3604 = vpop.xlane.xlu0 %3603
    %v3605 = vsub.f32 %v3600, %v3604
    %v3606 = vmul.f32 %v3605, 1.442695
    %v3607 = vpow.pop %v3606
    %v3608 = vsel %vm3601, %v3607, 0.0
    %3609 = vadd.xlane.f32.xlu0 %v3608
    %v3610 = vpop.xlane.xlu0 %3609
    %v3611 = vlog2.pop %v3610
    %v3612 = vmul.f32 %v3611, 0.6931472
    %v3613 = vsub.f32 %v3605, %v3612
    %3614 = vst.msk [vmem:[#allocation2 - $0x6] sm:$0xc0] %vm3601, %v3613
    // Predicated region
    $region10: #{net_forward.1} parent=1 // pred_check
      _
    $region11: #{net_forward.1} parent=1 // pred_check_branch
      %3616 = sbr.rel (0) target = $region13
    $region12: #{net_forward.1} parent=1 // pred_region
      %3618 = vsyncadd [#allocation3], 0
      %s3620 = sshll.u32 [#allocation2], 4
      %s3621 = int_to_ptr.vmem [resolvable:$true] %s3620
      %s3622 = sshll.u32 %s2, 4
      %s3623 = int_to_ptr.hbm [resolvable:$true] %s3622
      %3625 = dma.vmem_to_hbm [thread:$0]  %s3621, 32, %s3623, [#allocation3]
    $region13: #{net_forward.1} parent=1 // pred_fallthru
      _
    // Predicated region
    $region14: #{net_forward.1} parent=1 // pred_check
      _
    $region15: #{net_forward.1} parent=1 // pred_check_branch
      %3627 = sbr.rel (0) target = $region17
    $region16: #{net_forward.1} parent=1 // pred_region
      %3629 = dma.done [#allocation3], 32
    $region17: #{net_forward.1} parent=1 // pred_fallthru
      _
    %3630 = vsyncpa [#allocation3], 1

</llo_original>
